<compile_context>
chip_gen: v6e
topology: v6e:2x2x1
jax: 0.10.0
libtpu: 0.0.40
codegen_flags: <defaults>
</compile_context>

<pallas_src>
import functools

import jax
import jax.numpy as jnp
import numpy as np
from jax.experimental import pallas as pl
from jax.experimental.pallas import tpu as pltpu


# ---------------------------------------------------------------------------
# Fused kernel: conv1 + ReLU + conv2 + bias + ReLU + flatten + fc1 + ReLU + fc2
# (one batch sample per grid step; every intermediate lives in VMEM)
# ---------------------------------------------------------------------------
def _qnet_kernel(p1_ref, w1_ref, g_ref, w2_ref, b2_ref,
                 wf1_ref, bf1_ref, wf2_ref, bf2_ref,
                 o_ref, flat_ref):
    f32 = jnp.float32

    # conv1 (no bias) + ReLU: one im2col matmul on the MXU.  (324, K1)@(K1,16)
    x1 = jnp.maximum(
        jnp.dot(p1_ref[0], w1_ref[...], preferred_element_type=f32), 0.0)    # (324, 16)

    # conv2 + bias + ReLU.  For each of the 16 (di, dj) offsets a constant
    # 0/1 matrix gathers the 64 conv1 rows that offset needs (MXU matmul),
    # then the per-offset (16, 32) weight slice is applied and accumulated.
    acc2 = jnp.zeros((64, 32), f32)
    for t in range(16):
        rows = jnp.dot(g_ref[t], x1, preferred_element_type=f32)             # (64, 16)
        acc2 = acc2 + jnp.dot(rows, w2_ref[t], preferred_element_type=f32)   # (64, 32)
    x2 = jnp.maximum(acc2 + b2_ref[...], 0.0)                                # (64, 32)

    # flatten (p, q, c) -> (1, 2048) via VMEM scratch (fc1 rows pre-permuted
    # at init so this order reproduces the PyTorch NCHW view(-1, 2048)).
    for r in range(64):
        flat_ref[:, r * 32:(r + 1) * 32] = x2[r:r + 1, :]

    # fc1 + ReLU, fc2 (output lanes padded to 128 -> lane-dense store).
    h = jnp.maximum(
        jnp.dot(flat_ref[...], wf1_ref[...], preferred_element_type=f32)
        + bf1_ref[...], 0.0)                                                 # (1, 256)
    o_ref[0] = jnp.dot(h, wf2_ref[...], preferred_element_type=f32) + bf2_ref[...]


# ---------------------------------------------------------------------------
# Forward wrapper
# ---------------------------------------------------------------------------
@functools.partial(jax.jit, static_argnames=("a_dim",))
def conv_qnet_forward(state, params, *, a_dim):
    # state: (N, c_dim, 76, 76) float32, NCHW (PyTorch convention)
    n, c, hh, ww = state.shape
    assert (hh, ww) == (76, 76), "view(-1, 2048) implies a 76x76 input"
    k1f = 64 * c  # conv1 im2col feature size, order (di, dj, c)

    # conv1 im2col (wrapper-side XLA): NHWC strided slices + concat, no 5-D
    # transpose.  Feature order matches params["w1"].
    x = jnp.transpose(state, (0, 2, 3, 1))                       # (n, 76, 76, c)
    cols = [x[:, di:di + 72:4, dj:dj + 72:4, :]
            for di in range(8) for dj in range(8)]               # each (n, 18, 18, c)
    p1 = jnp.concatenate(cols, axis=-1).reshape(n, 324, k1f)     # (n, 324, 64c)

    a_pad = params["fc_w2"].shape[1]
    out = pl.pallas_call(
        _qnet_kernel,
        out_shape=jax.ShapeDtypeStruct((n, 1, a_pad), jnp.float32),
        grid=(n,),
        in_specs=[
            pl.BlockSpec((1, 324, k1f), lambda b: (b, 0, 0)),    # conv1 patches
            pl.BlockSpec((k1f, 16), lambda b: (0, 0)),           # conv1 weight
            pl.BlockSpec((16, 64, 324), lambda b: (0, 0, 0)),    # conv2 gather mats
            pl.BlockSpec((16, 16, 32), lambda b: (0, 0, 0)),     # conv2 weight
            pl.BlockSpec((1, 32), lambda b: (0, 0)),             # conv2 bias
            pl.BlockSpec((2048, 256), lambda b: (0, 0)),         # fc1 weight (permuted)
            pl.BlockSpec((1, 256), lambda b: (0, 0)),            # fc1 bias
            pl.BlockSpec((256, a_pad), lambda b: (0, 0)),        # fc2 weight (padded)
            pl.BlockSpec((1, a_pad), lambda b: (0, 0)),          # fc2 bias (padded)
        ],
        out_specs=pl.BlockSpec((1, 1, a_pad), lambda b: (b, 0, 0)),
        scratch_shapes=[pltpu.VMEM((1, 2048), jnp.float32)],
        compiler_params=pltpu.CompilerParams(
            dimension_semantics=("parallel",)),
    )(p1, params["w1"], params["g"], params["w2"], params["b2"],
      params["fc_w1"], params["fc_b1"], params["fc_w2"], params["fc_b2"])

    return out[:, 0, :a_dim]


# ---------------------------------------------------------------------------
# Parameter preparation (PyTorch layouts -> kernel layouts, one-time)
# ---------------------------------------------------------------------------
def _conv2_gather_matrices():
    # g[t, p*8+q, (2p+di)*18 + (2q+dj)] = 1   with t = di*4 + dj
    g = np.zeros((16, 64, 324), np.float32)
    for di in range(4):
        for dj in range(4):
            t = di * 4 + dj
            for p in range(8):
                for q in range(8):
                    g[t, p * 8 + q, (2 * p + di) * 18 + (2 * q + dj)] = 1.0
    return jnp.asarray(g)


def init_params(key, c_dim, a_dim):
    ks = jax.random.split(key, 6)
    scale = 0.05
    # PyTorch-layout parameters
    w1_t = scale * jax.random.normal(ks[0], (16, c_dim, 8, 8), jnp.float32)   # conv1.weight
    w2_t = scale * jax.random.normal(ks[1], (32, 16, 4, 4), jnp.float32)      # conv2.weight
    b2_t = scale * jax.random.normal(ks[2], (32,), jnp.float32)               # conv2.bias
    f1w_t = scale * jax.random.normal(ks[3], (256, 2048), jnp.float32)        # fc1.weight
    f1b_t = scale * jax.random.normal(ks[4], (256,), jnp.float32)             # fc1.bias
    f2w_t = scale * jax.random.normal(ks[5], (a_dim, 256), jnp.float32)       # fc2.weight
    f2b_t = jnp.zeros((a_dim,), jnp.float32)                                  # fc2.bias

    # conv1: im2col feature order (di, dj, c) -> (64*c_dim, 16)
    w1 = jnp.transpose(w1_t, (2, 3, 1, 0)).reshape(64 * c_dim, 16)
    # conv2: per-offset (16, 32) slices, t = di*4 + dj
    w2 = jnp.transpose(w2_t, (2, 3, 1, 0)).reshape(16, 16, 32)
    # fc1: permute input rows from the torch NCHW flatten index (c*64 + p*8 + q)
    # to the kernel's flatten index ((p*8 + q)*32 + c).
    f1w = jnp.transpose(f1w_t.T.reshape(32, 64, 256), (1, 0, 2)).reshape(2048, 256)
    # fc2: pad output dim to a lane-dense multiple of 128; sliced back outside.
    a_pad = ((a_dim + 127) // 128) * 128
    f2w = jnp.zeros((256, a_pad), jnp.float32).at[:, :a_dim].set(f2w_t.T)
    f2b = jnp.zeros((1, a_pad), jnp.float32).at[:, :a_dim].set(f2b_t)

    return {
        "w1": w1,
        "g": _conv2_gather_matrices(),
        "w2": w2,
        "b2": b2_t.reshape(1, 32),
        "fc_w1": f1w,
        "fc_b1": f1b_t.reshape(1, 256),
        "fc_w2": f2w,
        "fc_b2": f2b,
    }


if __name__ == "__main__":
    key = jax.random.PRNGKey(0)
    c_dim, a_dim, batch = 4, 6, 2
    k_x, k_p = jax.random.split(key)

    # Input spatial 76x76 so the conv trunk produces exactly 2048 flat features.
    x = jax.random.normal(k_x, (batch, c_dim, 76, 76), jnp.float32)
    params = init_params(k_p, c_dim, a_dim)

    out = conv_qnet_forward(x, params, a_dim=a_dim)
    jax.block_until_ready(out)
    assert out.shape == (batch, a_dim)
    print("KERNEL_OK")
</pallas_src>

<mosaic_0001>
module attributes {stable_mosaic.version = 11 : i64} {
  func.func @_qnet_kernel(%arg0: i32, %arg1: memref<1x324x256xf32, #tpu.memory_space<vmem>>, %arg2: memref<256x16xf32, #tpu.memory_space<vmem>>, %arg3: memref<16x64x324xf32, #tpu.memory_space<vmem>>, %arg4: memref<16x16x32xf32, #tpu.memory_space<vmem>>, %arg5: memref<1x32xf32, #tpu.memory_space<vmem>>, %arg6: memref<2048x256xf32, #tpu.memory_space<vmem>>, %arg7: memref<1x256xf32, #tpu.memory_space<vmem>>, %arg8: memref<256x128xf32, #tpu.memory_space<vmem>>, %arg9: memref<1x128xf32, #tpu.memory_space<vmem>>, %arg10: memref<1x1x128xf32, #tpu.memory_space<vmem>>, %arg11: memref<1x2048xf32, #tpu.memory_space<vmem>>) attributes {dimension_semantics = [#tpu.dimension_semantics<parallel>], iteration_bounds = array<i64: 2>, scalar_prefetch = 0 : i64, scratch_operands = 1 : i64, tpu.core_type = #tpu.core_type<tc>, window_params = [{transform_indices = @transform_0, window_bounds = array<i64: 1, 324, 256>}, {pipeline_mode = #tpu.pipeline_mode<synchronous>, transform_indices = @transform_1, window_bounds = array<i64: 256, 16>}, {pipeline_mode = #tpu.pipeline_mode<synchronous>, transform_indices = @transform_2, window_bounds = array<i64: 16, 64, 324>}, {pipeline_mode = #tpu.pipeline_mode<synchronous>, transform_indices = @transform_3, window_bounds = array<i64: 16, 16, 32>}, {pipeline_mode = #tpu.pipeline_mode<synchronous>, transform_indices = @transform_4, window_bounds = array<i64: 1, 32>}, {pipeline_mode = #tpu.pipeline_mode<synchronous>, transform_indices = @transform_5, window_bounds = array<i64: 2048, 256>}, {pipeline_mode = #tpu.pipeline_mode<synchronous>, transform_indices = @transform_6, window_bounds = array<i64: 1, 256>}, {pipeline_mode = #tpu.pipeline_mode<synchronous>, transform_indices = @transform_7, window_bounds = array<i64: 256, 128>}, {pipeline_mode = #tpu.pipeline_mode<synchronous>, transform_indices = @transform_8, window_bounds = array<i64: 1, 128>}, {transform_indices = @transform_9, window_bounds = array<i64: 1, 1, 128>}]} {
    %c0 = arith.constant 0 : index
    %c0_0 = arith.constant 0 : index
    %c0_1 = arith.constant 0 : index
    %0 = vector.load %arg1[%c0, %c0_0, %c0_1] : memref<1x324x256xf32, #tpu.memory_space<vmem>>, vector<1x324x256xf32>
    %1 = vector.shape_cast %0 : vector<1x324x256xf32> to vector<324x256xf32>
    %c0_2 = arith.constant 0 : index
    %c0_3 = arith.constant 0 : index
    %2 = vector.load %arg2[%c0_2, %c0_3] : memref<256x16xf32, #tpu.memory_space<vmem>>, vector<256x16xf32>
    %cst = arith.constant dense<0.000000e+00> : vector<324x16xf32>
    %3 = tpu.matmul %1, %2, %cst {dimension_numbers = #tpu.dot_dimension_numbers<[1], [0], [0], [1], [0, 0, 1, 1], [], []>} : vector<324x256xf32>, vector<256x16xf32>, vector<324x16xf32> -> vector<324x16xf32>
    %cst_4 = arith.constant 0.000000e+00 : f32
    %4 = vector.broadcast %cst_4 : f32 to vector<324x16xf32>
    %5 = arith.maximumf %3, %4 : vector<324x16xf32>
    %cst_5 = arith.constant 0.000000e+00 : f32
    %6 = vector.broadcast %cst_5 : f32 to vector<64x32xf32>
    %c0_6 = arith.constant 0 : index
    %c0_7 = arith.constant 0 : index
    %c0_8 = arith.constant 0 : index
    %7 = vector.load %arg3[%c0_6, %c0_7, %c0_8] : memref<16x64x324xf32, #tpu.memory_space<vmem>>, vector<1x64x324xf32>
    %8 = vector.shape_cast %7 : vector<1x64x324xf32> to vector<64x324xf32>
    %cst_9 = arith.constant dense<0.000000e+00> : vector<64x16xf32>
    %9 = tpu.matmul %8, %5, %cst_9 {dimension_numbers = #tpu.dot_dimension_numbers<[1], [0], [0], [1], [0, 0, 1, 1], [], []>} : vector<64x324xf32>, vector<324x16xf32>, vector<64x16xf32> -> vector<64x16xf32>
    %c0_10 = arith.constant 0 : index
    %c0_11 = arith.constant 0 : index
    %c0_12 = arith.constant 0 : index
    %10 = vector.load %arg4[%c0_10, %c0_11, %c0_12] : memref<16x16x32xf32, #tpu.memory_space<vmem>>, vector<1x16x32xf32>
    %11 = vector.shape_cast %10 : vector<1x16x32xf32> to vector<16x32xf32>
    %cst_13 = arith.constant dense<0.000000e+00> : vector<64x32xf32>
    %12 = tpu.matmul %9, %11, %cst_13 {dimension_numbers = #tpu.dot_dimension_numbers<[1], [0], [0], [1], [0, 0, 1, 1], [], []>} : vector<64x16xf32>, vector<16x32xf32>, vector<64x32xf32> -> vector<64x32xf32>
    %13 = arith.addf %6, %12 : vector<64x32xf32>
    %c1 = arith.constant 1 : index
    %c0_14 = arith.constant 0 : index
    %c0_15 = arith.constant 0 : index
    %14 = vector.load %arg3[%c1, %c0_14, %c0_15] : memref<16x64x324xf32, #tpu.memory_space<vmem>>, vector<1x64x324xf32>
    %15 = vector.shape_cast %14 : vector<1x64x324xf32> to vector<64x324xf32>
    %cst_16 = arith.constant dense<0.000000e+00> : vector<64x16xf32>
    %16 = tpu.matmul %15, %5, %cst_16 {dimension_numbers = #tpu.dot_dimension_numbers<[1], [0], [0], [1], [0, 0, 1, 1], [], []>} : vector<64x324xf32>, vector<324x16xf32>, vector<64x16xf32> -> vector<64x16xf32>
    %c1_17 = arith.constant 1 : index
    %c0_18 = arith.constant 0 : index
    %c0_19 = arith.constant 0 : index
    %17 = vector.load %arg4[%c1_17, %c0_18, %c0_19] : memref<16x16x32xf32, #tpu.memory_space<vmem>>, vector<1x16x32xf32>
    %18 = vector.shape_cast %17 : vector<1x16x32xf32> to vector<16x32xf32>
    %cst_20 = arith.constant dense<0.000000e+00> : vector<64x32xf32>
    %19 = tpu.matmul %16, %18, %cst_20 {dimension_numbers = #tpu.dot_dimension_numbers<[1], [0], [0], [1], [0, 0, 1, 1], [], []>} : vector<64x16xf32>, vector<16x32xf32>, vector<64x32xf32> -> vector<64x32xf32>
    %20 = arith.addf %13, %19 : vector<64x32xf32>
    %c2 = arith.constant 2 : index
    %c0_21 = arith.constant 0 : index
    %c0_22 = arith.constant 0 : index
    %21 = vector.load %arg3[%c2, %c0_21, %c0_22] : memref<16x64x324xf32, #tpu.memory_space<vmem>>, vector<1x64x324xf32>
    %22 = vector.shape_cast %21 : vector<1x64x324xf32> to vector<64x324xf32>
    %cst_23 = arith.constant dense<0.000000e+00> : vector<64x16xf32>
    %23 = tpu.matmul %22, %5, %cst_23 {dimension_numbers = #tpu.dot_dimension_numbers<[1], [0], [0], [1], [0, 0, 1, 1], [], []>} : vector<64x324xf32>, vector<324x16xf32>, vector<64x16xf32> -> vector<64x16xf32>
    %c2_24 = arith.constant 2 : index
    %c0_25 = arith.constant 0 : index
    %c0_26 = arith.constant 0 : index
    %24 = vector.load %arg4[%c2_24, %c0_25, %c0_26] : memref<16x16x32xf32, #tpu.memory_space<vmem>>, vector<1x16x32xf32>
    %25 = vector.shape_cast %24 : vector<1x16x32xf32> to vector<16x32xf32>
    %cst_27 = arith.constant dense<0.000000e+00> : vector<64x32xf32>
    %26 = tpu.matmul %23, %25, %cst_27 {dimension_numbers = #tpu.dot_dimension_numbers<[1], [0], [0], [1], [0, 0, 1, 1], [], []>} : vector<64x16xf32>, vector<16x32xf32>, vector<64x32xf32> -> vector<64x32xf32>
    %27 = arith.addf %20, %26 : vector<64x32xf32>
    %c3 = arith.constant 3 : index
    %c0_28 = arith.constant 0 : index
    %c0_29 = arith.constant 0 : index
    %28 = vector.load %arg3[%c3, %c0_28, %c0_29] : memref<16x64x324xf32, #tpu.memory_space<vmem>>, vector<1x64x324xf32>
    %29 = vector.shape_cast %28 : vector<1x64x324xf32> to vector<64x324xf32>
    %cst_30 = arith.constant dense<0.000000e+00> : vector<64x16xf32>
    %30 = tpu.matmul %29, %5, %cst_30 {dimension_numbers = #tpu.dot_dimension_numbers<[1], [0], [0], [1], [0, 0, 1, 1], [], []>} : vector<64x324xf32>, vector<324x16xf32>, vector<64x16xf32> -> vector<64x16xf32>
    %c3_31 = arith.constant 3 : index
    %c0_32 = arith.constant 0 : index
    %c0_33 = arith.constant 0 : index
    %31 = vector.load %arg4[%c3_31, %c0_32, %c0_33] : memref<16x16x32xf32, #tpu.memory_space<vmem>>, vector<1x16x32xf32>
    %32 = vector.shape_cast %31 : vector<1x16x32xf32> to vector<16x32xf32>
    %cst_34 = arith.constant dense<0.000000e+00> : vector<64x32xf32>
    %33 = tpu.matmul %30, %32, %cst_34 {dimension_numbers = #tpu.dot_dimension_numbers<[1], [0], [0], [1], [0, 0, 1, 1], [], []>} : vector<64x16xf32>, vector<16x32xf32>, vector<64x32xf32> -> vector<64x32xf32>
    %34 = arith.addf %27, %33 : vector<64x32xf32>
    %c4 = arith.constant 4 : index
    %c0_35 = arith.constant 0 : index
    %c0_36 = arith.constant 0 : index
    %35 = vector.load %arg3[%c4, %c0_35, %c0_36] : memref<16x64x324xf32, #tpu.memory_space<vmem>>, vector<1x64x324xf32>
    %36 = vector.shape_cast %35 : vector<1x64x324xf32> to vector<64x324xf32>
    %cst_37 = arith.constant dense<0.000000e+00> : vector<64x16xf32>
    %37 = tpu.matmul %36, %5, %cst_37 {dimension_numbers = #tpu.dot_dimension_numbers<[1], [0], [0], [1], [0, 0, 1, 1], [], []>} : vector<64x324xf32>, vector<324x16xf32>, vector<64x16xf32> -> vector<64x16xf32>
    %c4_38 = arith.constant 4 : index
    %c0_39 = arith.constant 0 : index
    %c0_40 = arith.constant 0 : index
    %38 = vector.load %arg4[%c4_38, %c0_39, %c0_40] : memref<16x16x32xf32, #tpu.memory_space<vmem>>, vector<1x16x32xf32>
    %39 = vector.shape_cast %38 : vector<1x16x32xf32> to vector<16x32xf32>
    %cst_41 = arith.constant dense<0.000000e+00> : vector<64x32xf32>
    %40 = tpu.matmul %37, %39, %cst_41 {dimension_numbers = #tpu.dot_dimension_numbers<[1], [0], [0], [1], [0, 0, 1, 1], [], []>} : vector<64x16xf32>, vector<16x32xf32>, vector<64x32xf32> -> vector<64x32xf32>
    %41 = arith.addf %34, %40 : vector<64x32xf32>
    %c5 = arith.constant 5 : index
    %c0_42 = arith.constant 0 : index
    %c0_43 = arith.constant 0 : index
    %42 = vector.load %arg3[%c5, %c0_42, %c0_43] : memref<16x64x324xf32, #tpu.memory_space<vmem>>, vector<1x64x324xf32>
    %43 = vector.shape_cast %42 : vector<1x64x324xf32> to vector<64x324xf32>
    %cst_44 = arith.constant dense<0.000000e+00> : vector<64x16xf32>
    %44 = tpu.matmul %43, %5, %cst_44 {dimension_numbers = #tpu.dot_dimension_numbers<[1], [0], [0], [1], [0, 0, 1, 1], [], []>} : vector<64x324xf32>, vector<324x16xf32>, vector<64x16xf32> -> vector<64x16xf32>
    %c5_45 = arith.constant 5 : index
    %c0_46 = arith.constant 0 : index
    %c0_47 = arith.constant 0 : index
    %45 = vector.load %arg4[%c5_45, %c0_46, %c0_47] : memref<16x16x32xf32, #tpu.memory_space<vmem>>, vector<1x16x32xf32>
    %46 = vector.shape_cast %45 : vector<1x16x32xf32> to vector<16x32xf32>
    %cst_48 = arith.constant dense<0.000000e+00> : vector<64x32xf32>
    %47 = tpu.matmul %44, %46, %cst_48 {dimension_numbers = #tpu.dot_dimension_numbers<[1], [0], [0], [1], [0, 0, 1, 1], [], []>} : vector<64x16xf32>, vector<16x32xf32>, vector<64x32xf32> -> vector<64x32xf32>
    %48 = arith.addf %41, %47 : vector<64x32xf32>
    %c6 = arith.constant 6 : index
    %c0_49 = arith.constant 0 : index
    %c0_50 = arith.constant 0 : index
    %49 = vector.load %arg3[%c6, %c0_49, %c0_50] : memref<16x64x324xf32, #tpu.memory_space<vmem>>, vector<1x64x324xf32>
    %50 = vector.shape_cast %49 : vector<1x64x324xf32> to vector<64x324xf32>
    %cst_51 = arith.constant dense<0.000000e+00> : vector<64x16xf32>
    %51 = tpu.matmul %50, %5, %cst_51 {dimension_numbers = #tpu.dot_dimension_numbers<[1], [0], [0], [1], [0, 0, 1, 1], [], []>} : vector<64x324xf32>, vector<324x16xf32>, vector<64x16xf32> -> vector<64x16xf32>
    %c6_52 = arith.constant 6 : index
    %c0_53 = arith.constant 0 : index
    %c0_54 = arith.constant 0 : index
    %52 = vector.load %arg4[%c6_52, %c0_53, %c0_54] : memref<16x16x32xf32, #tpu.memory_space<vmem>>, vector<1x16x32xf32>
    %53 = vector.shape_cast %52 : vector<1x16x32xf32> to vector<16x32xf32>
    %cst_55 = arith.constant dense<0.000000e+00> : vector<64x32xf32>
    %54 = tpu.matmul %51, %53, %cst_55 {dimension_numbers = #tpu.dot_dimension_numbers<[1], [0], [0], [1], [0, 0, 1, 1], [], []>} : vector<64x16xf32>, vector<16x32xf32>, vector<64x32xf32> -> vector<64x32xf32>
    %55 = arith.addf %48, %54 : vector<64x32xf32>
    %c7 = arith.constant 7 : index
    %c0_56 = arith.constant 0 : index
    %c0_57 = arith.constant 0 : index
    %56 = vector.load %arg3[%c7, %c0_56, %c0_57] : memref<16x64x324xf32, #tpu.memory_space<vmem>>, vector<1x64x324xf32>
    %57 = vector.shape_cast %56 : vector<1x64x324xf32> to vector<64x324xf32>
    %cst_58 = arith.constant dense<0.000000e+00> : vector<64x16xf32>
    %58 = tpu.matmul %57, %5, %cst_58 {dimension_numbers = #tpu.dot_dimension_numbers<[1], [0], [0], [1], [0, 0, 1, 1], [], []>} : vector<64x324xf32>, vector<324x16xf32>, vector<64x16xf32> -> vector<64x16xf32>
    %c7_59 = arith.constant 7 : index
    %c0_60 = arith.constant 0 : index
    %c0_61 = arith.constant 0 : index
    %59 = vector.load %arg4[%c7_59, %c0_60, %c0_61] : memref<16x16x32xf32, #tpu.memory_space<vmem>>, vector<1x16x32xf32>
    %60 = vector.shape_cast %59 : vector<1x16x32xf32> to vector<16x32xf32>
    %cst_62 = arith.constant dense<0.000000e+00> : vector<64x32xf32>
    %61 = tpu.matmul %58, %60, %cst_62 {dimension_numbers = #tpu.dot_dimension_numbers<[1], [0], [0], [1], [0, 0, 1, 1], [], []>} : vector<64x16xf32>, vector<16x32xf32>, vector<64x32xf32> -> vector<64x32xf32>
    %62 = arith.addf %55, %61 : vector<64x32xf32>
    %c8 = arith.constant 8 : index
    %c0_63 = arith.constant 0 : index
    %c0_64 = arith.constant 0 : index
    %63 = vector.load %arg3[%c8, %c0_63, %c0_64] : memref<16x64x324xf32, #tpu.memory_space<vmem>>, vector<1x64x324xf32>
    %64 = vector.shape_cast %63 : vector<1x64x324xf32> to vector<64x324xf32>
    %cst_65 = arith.constant dense<0.000000e+00> : vector<64x16xf32>
    %65 = tpu.matmul %64, %5, %cst_65 {dimension_numbers = #tpu.dot_dimension_numbers<[1], [0], [0], [1], [0, 0, 1, 1], [], []>} : vector<64x324xf32>, vector<324x16xf32>, vector<64x16xf32> -> vector<64x16xf32>
    %c8_66 = arith.constant 8 : index
    %c0_67 = arith.constant 0 : index
    %c0_68 = arith.constant 0 : index
    %66 = vector.load %arg4[%c8_66, %c0_67, %c0_68] : memref<16x16x32xf32, #tpu.memory_space<vmem>>, vector<1x16x32xf32>
    %67 = vector.shape_cast %66 : vector<1x16x32xf32> to vector<16x32xf32>
    %cst_69 = arith.constant dense<0.000000e+00> : vector<64x32xf32>
    %68 = tpu.matmul %65, %67, %cst_69 {dimension_numbers = #tpu.dot_dimension_numbers<[1], [0], [0], [1], [0, 0, 1, 1], [], []>} : vector<64x16xf32>, vector<16x32xf32>, vector<64x32xf32> -> vector<64x32xf32>
    %69 = arith.addf %62, %68 : vector<64x32xf32>
    %c9 = arith.constant 9 : index
    %c0_70 = arith.constant 0 : index
    %c0_71 = arith.constant 0 : index
    %70 = vector.load %arg3[%c9, %c0_70, %c0_71] : memref<16x64x324xf32, #tpu.memory_space<vmem>>, vector<1x64x324xf32>
    %71 = vector.shape_cast %70 : vector<1x64x324xf32> to vector<64x324xf32>
    %cst_72 = arith.constant dense<0.000000e+00> : vector<64x16xf32>
    %72 = tpu.matmul %71, %5, %cst_72 {dimension_numbers = #tpu.dot_dimension_numbers<[1], [0], [0], [1], [0, 0, 1, 1], [], []>} : vector<64x324xf32>, vector<324x16xf32>, vector<64x16xf32> -> vector<64x16xf32>
    %c9_73 = arith.constant 9 : index
    %c0_74 = arith.constant 0 : index
    %c0_75 = arith.constant 0 : index
    %73 = vector.load %arg4[%c9_73, %c0_74, %c0_75] : memref<16x16x32xf32, #tpu.memory_space<vmem>>, vector<1x16x32xf32>
    %74 = vector.shape_cast %73 : vector<1x16x32xf32> to vector<16x32xf32>
    %cst_76 = arith.constant dense<0.000000e+00> : vector<64x32xf32>
    %75 = tpu.matmul %72, %74, %cst_76 {dimension_numbers = #tpu.dot_dimension_numbers<[1], [0], [0], [1], [0, 0, 1, 1], [], []>} : vector<64x16xf32>, vector<16x32xf32>, vector<64x32xf32> -> vector<64x32xf32>
    %76 = arith.addf %69, %75 : vector<64x32xf32>
    %c10 = arith.constant 10 : index
    %c0_77 = arith.constant 0 : index
    %c0_78 = arith.constant 0 : index
    %77 = vector.load %arg3[%c10, %c0_77, %c0_78] : memref<16x64x324xf32, #tpu.memory_space<vmem>>, vector<1x64x324xf32>
    %78 = vector.shape_cast %77 : vector<1x64x324xf32> to vector<64x324xf32>
    %cst_79 = arith.constant dense<0.000000e+00> : vector<64x16xf32>
    %79 = tpu.matmul %78, %5, %cst_79 {dimension_numbers = #tpu.dot_dimension_numbers<[1], [0], [0], [1], [0, 0, 1, 1], [], []>} : vector<64x324xf32>, vector<324x16xf32>, vector<64x16xf32> -> vector<64x16xf32>
    %c10_80 = arith.constant 10 : index
    %c0_81 = arith.constant 0 : index
    %c0_82 = arith.constant 0 : index
    %80 = vector.load %arg4[%c10_80, %c0_81, %c0_82] : memref<16x16x32xf32, #tpu.memory_space<vmem>>, vector<1x16x32xf32>
    %81 = vector.shape_cast %80 : vector<1x16x32xf32> to vector<16x32xf32>
    %cst_83 = arith.constant dense<0.000000e+00> : vector<64x32xf32>
    %82 = tpu.matmul %79, %81, %cst_83 {dimension_numbers = #tpu.dot_dimension_numbers<[1], [0], [0], [1], [0, 0, 1, 1], [], []>} : vector<64x16xf32>, vector<16x32xf32>, vector<64x32xf32> -> vector<64x32xf32>
    %83 = arith.addf %76, %82 : vector<64x32xf32>
    %c11 = arith.constant 11 : index
    %c0_84 = arith.constant 0 : index
    %c0_85 = arith.constant 0 : index
    %84 = vector.load %arg3[%c11, %c0_84, %c0_85] : memref<16x64x324xf32, #tpu.memory_space<vmem>>, vector<1x64x324xf32>
    %85 = vector.shape_cast %84 : vector<1x64x324xf32> to vector<64x324xf32>
    %cst_86 = arith.constant dense<0.000000e+00> : vector<64x16xf32>
    %86 = tpu.matmul %85, %5, %cst_86 {dimension_numbers = #tpu.dot_dimension_numbers<[1], [0], [0], [1], [0, 0, 1, 1], [], []>} : vector<64x324xf32>, vector<324x16xf32>, vector<64x16xf32> -> vector<64x16xf32>
    %c11_87 = arith.constant 11 : index
    %c0_88 = arith.constant 0 : index
    %c0_89 = arith.constant 0 : index
    %87 = vector.load %arg4[%c11_87, %c0_88, %c0_89] : memref<16x16x32xf32, #tpu.memory_space<vmem>>, vector<1x16x32xf32>
    %88 = vector.shape_cast %87 : vector<1x16x32xf32> to vector<16x32xf32>
    %cst_90 = arith.constant dense<0.000000e+00> : vector<64x32xf32>
    %89 = tpu.matmul %86, %88, %cst_90 {dimension_numbers = #tpu.dot_dimension_numbers<[1], [0], [0], [1], [0, 0, 1, 1], [], []>} : vector<64x16xf32>, vector<16x32xf32>, vector<64x32xf32> -> vector<64x32xf32>
    %90 = arith.addf %83, %89 : vector<64x32xf32>
    %c12 = arith.constant 12 : index
    %c0_91 = arith.constant 0 : index
    %c0_92 = arith.constant 0 : index
    %91 = vector.load %arg3[%c12, %c0_91, %c0_92] : memref<16x64x324xf32, #tpu.memory_space<vmem>>, vector<1x64x324xf32>
    %92 = vector.shape_cast %91 : vector<1x64x324xf32> to vector<64x324xf32>
    %cst_93 = arith.constant dense<0.000000e+00> : vector<64x16xf32>
    %93 = tpu.matmul %92, %5, %cst_93 {dimension_numbers = #tpu.dot_dimension_numbers<[1], [0], [0], [1], [0, 0, 1, 1], [], []>} : vector<64x324xf32>, vector<324x16xf32>, vector<64x16xf32> -> vector<64x16xf32>
    %c12_94 = arith.constant 12 : index
    %c0_95 = arith.constant 0 : index
    %c0_96 = arith.constant 0 : index
    %94 = vector.load %arg4[%c12_94, %c0_95, %c0_96] : memref<16x16x32xf32, #tpu.memory_space<vmem>>, vector<1x16x32xf32>
    %95 = vector.shape_cast %94 : vector<1x16x32xf32> to vector<16x32xf32>
    %cst_97 = arith.constant dense<0.000000e+00> : vector<64x32xf32>
    %96 = tpu.matmul %93, %95, %cst_97 {dimension_numbers = #tpu.dot_dimension_numbers<[1], [0], [0], [1], [0, 0, 1, 1], [], []>} : vector<64x16xf32>, vector<16x32xf32>, vector<64x32xf32> -> vector<64x32xf32>
    %97 = arith.addf %90, %96 : vector<64x32xf32>
    %c13 = arith.constant 13 : index
    %c0_98 = arith.constant 0 : index
    %c0_99 = arith.constant 0 : index
    %98 = vector.load %arg3[%c13, %c0_98, %c0_99] : memref<16x64x324xf32, #tpu.memory_space<vmem>>, vector<1x64x324xf32>
    %99 = vector.shape_cast %98 : vector<1x64x324xf32> to vector<64x324xf32>
    %cst_100 = arith.constant dense<0.000000e+00> : vector<64x16xf32>
    %100 = tpu.matmul %99, %5, %cst_100 {dimension_numbers = #tpu.dot_dimension_numbers<[1], [0], [0], [1], [0, 0, 1, 1], [], []>} : vector<64x324xf32>, vector<324x16xf32>, vector<64x16xf32> -> vector<64x16xf32>
    %c13_101 = arith.constant 13 : index
    %c0_102 = arith.constant 0 : index
    %c0_103 = arith.constant 0 : index
    %101 = vector.load %arg4[%c13_101, %c0_102, %c0_103] : memref<16x16x32xf32, #tpu.memory_space<vmem>>, vector<1x16x32xf32>
    %102 = vector.shape_cast %101 : vector<1x16x32xf32> to vector<16x32xf32>
    %cst_104 = arith.constant dense<0.000000e+00> : vector<64x32xf32>
    %103 = tpu.matmul %100, %102, %cst_104 {dimension_numbers = #tpu.dot_dimension_numbers<[1], [0], [0], [1], [0, 0, 1, 1], [], []>} : vector<64x16xf32>, vector<16x32xf32>, vector<64x32xf32> -> vector<64x32xf32>
    %104 = arith.addf %97, %103 : vector<64x32xf32>
    %c14 = arith.constant 14 : index
    %c0_105 = arith.constant 0 : index
    %c0_106 = arith.constant 0 : index
    %105 = vector.load %arg3[%c14, %c0_105, %c0_106] : memref<16x64x324xf32, #tpu.memory_space<vmem>>, vector<1x64x324xf32>
    %106 = vector.shape_cast %105 : vector<1x64x324xf32> to vector<64x324xf32>
    %cst_107 = arith.constant dense<0.000000e+00> : vector<64x16xf32>
    %107 = tpu.matmul %106, %5, %cst_107 {dimension_numbers = #tpu.dot_dimension_numbers<[1], [0], [0], [1], [0, 0, 1, 1], [], []>} : vector<64x324xf32>, vector<324x16xf32>, vector<64x16xf32> -> vector<64x16xf32>
    %c14_108 = arith.constant 14 : index
    %c0_109 = arith.constant 0 : index
    %c0_110 = arith.constant 0 : index
    %108 = vector.load %arg4[%c14_108, %c0_109, %c0_110] : memref<16x16x32xf32, #tpu.memory_space<vmem>>, vector<1x16x32xf32>
    %109 = vector.shape_cast %108 : vector<1x16x32xf32> to vector<16x32xf32>
    %cst_111 = arith.constant dense<0.000000e+00> : vector<64x32xf32>
    %110 = tpu.matmul %107, %109, %cst_111 {dimension_numbers = #tpu.dot_dimension_numbers<[1], [0], [0], [1], [0, 0, 1, 1], [], []>} : vector<64x16xf32>, vector<16x32xf32>, vector<64x32xf32> -> vector<64x32xf32>
    %111 = arith.addf %104, %110 : vector<64x32xf32>
    %c15 = arith.constant 15 : index
    %c0_112 = arith.constant 0 : index
    %c0_113 = arith.constant 0 : index
    %112 = vector.load %arg3[%c15, %c0_112, %c0_113] : memref<16x64x324xf32, #tpu.memory_space<vmem>>, vector<1x64x324xf32>
    %113 = vector.shape_cast %112 : vector<1x64x324xf32> to vector<64x324xf32>
    %cst_114 = arith.constant dense<0.000000e+00> : vector<64x16xf32>
    %114 = tpu.matmul %113, %5, %cst_114 {dimension_numbers = #tpu.dot_dimension_numbers<[1], [0], [0], [1], [0, 0, 1, 1], [], []>} : vector<64x324xf32>, vector<324x16xf32>, vector<64x16xf32> -> vector<64x16xf32>
    %c15_115 = arith.constant 15 : index
    %c0_116 = arith.constant 0 : index
    %c0_117 = arith.constant 0 : index
    %115 = vector.load %arg4[%c15_115, %c0_116, %c0_117] : memref<16x16x32xf32, #tpu.memory_space<vmem>>, vector<1x16x32xf32>
    %116 = vector.shape_cast %115 : vector<1x16x32xf32> to vector<16x32xf32>
    %cst_118 = arith.constant dense<0.000000e+00> : vector<64x32xf32>
    %117 = tpu.matmul %114, %116, %cst_118 {dimension_numbers = #tpu.dot_dimension_numbers<[1], [0], [0], [1], [0, 0, 1, 1], [], []>} : vector<64x16xf32>, vector<16x32xf32>, vector<64x32xf32> -> vector<64x32xf32>
    %118 = arith.addf %111, %117 : vector<64x32xf32>
    %c0_119 = arith.constant 0 : index
    %c0_120 = arith.constant 0 : index
    %119 = vector.load %arg5[%c0_119, %c0_120] : memref<1x32xf32, #tpu.memory_space<vmem>>, vector<1x32xf32>
    %120 = vector.broadcast %119 : vector<1x32xf32> to vector<64x32xf32>
    %121 = arith.addf %118, %120 : vector<64x32xf32>
    %cst_121 = arith.constant 0.000000e+00 : f32
    %122 = vector.broadcast %cst_121 : f32 to vector<64x32xf32>
    %123 = arith.maximumf %121, %122 : vector<64x32xf32>
    %124 = vector.extract_strided_slice %123 {offsets = [0, 0], sizes = [1, 32], strides = [1, 1]} : vector<64x32xf32> to vector<1x32xf32>
    %c0_122 = arith.constant 0 : index
    %c0_123 = arith.constant 0 : index
    %125 = vector.load %arg11[%c0_122, %c0_123] : memref<1x2048xf32, #tpu.memory_space<vmem>>, vector<1x32xf32>
    tpu.vector_store %arg11[%c0_122, %c0_123], %124 {strides = array<i32>} : memref<1x2048xf32, #tpu.memory_space<vmem>>, vector<1x32xf32>,
    %126 = vector.extract_strided_slice %123 {offsets = [1, 0], sizes = [1, 32], strides = [1, 1]} : vector<64x32xf32> to vector<1x32xf32>
    %c0_124 = arith.constant 0 : index
    %c32 = arith.constant 32 : index
    %127 = vector.load %arg11[%c0_124, %c32] : memref<1x2048xf32, #tpu.memory_space<vmem>>, vector<1x32xf32>
    tpu.vector_store %arg11[%c0_124, %c32], %126 {strides = array<i32>} : memref<1x2048xf32, #tpu.memory_space<vmem>>, vector<1x32xf32>,
    %128 = vector.extract_strided_slice %123 {offsets = [2, 0], sizes = [1, 32], strides = [1, 1]} : vector<64x32xf32> to vector<1x32xf32>
    %c0_125 = arith.constant 0 : index
    %c64 = arith.constant 64 : index
    %129 = vector.load %arg11[%c0_125, %c64] : memref<1x2048xf32, #tpu.memory_space<vmem>>, vector<1x32xf32>
    tpu.vector_store %arg11[%c0_125, %c64], %128 {strides = array<i32>} : memref<1x2048xf32, #tpu.memory_space<vmem>>, vector<1x32xf32>,
    %130 = vector.extract_strided_slice %123 {offsets = [3, 0], sizes = [1, 32], strides = [1, 1]} : vector<64x32xf32> to vector<1x32xf32>
    %c0_126 = arith.constant 0 : index
    %c96 = arith.constant 96 : index
    %131 = vector.load %arg11[%c0_126, %c96] : memref<1x2048xf32, #tpu.memory_space<vmem>>, vector<1x32xf32>
    tpu.vector_store %arg11[%c0_126, %c96], %130 {strides = array<i32>} : memref<1x2048xf32, #tpu.memory_space<vmem>>, vector<1x32xf32>,
    %132 = vector.extract_strided_slice %123 {offsets = [4, 0], sizes = [1, 32], strides = [1, 1]} : vector<64x32xf32> to vector<1x32xf32>
    %c0_127 = arith.constant 0 : index
    %c128 = arith.constant 128 : index
    %133 = vector.load %arg11[%c0_127, %c128] : memref<1x2048xf32, #tpu.memory_space<vmem>>, vector<1x32xf32>
    tpu.vector_store %arg11[%c0_127, %c128], %132 {strides = array<i32>} : memref<1x2048xf32, #tpu.memory_space<vmem>>, vector<1x32xf32>,
    %134 = vector.extract_strided_slice %123 {offsets = [5, 0], sizes = [1, 32], strides = [1, 1]} : vector<64x32xf32> to vector<1x32xf32>
    %c0_128 = arith.constant 0 : index
    %c160 = arith.constant 160 : index
    %135 = vector.load %arg11[%c0_128, %c160] : memref<1x2048xf32, #tpu.memory_space<vmem>>, vector<1x32xf32>
    tpu.vector_store %arg11[%c0_128, %c160], %134 {strides = array<i32>} : memref<1x2048xf32, #tpu.memory_space<vmem>>, vector<1x32xf32>,
    %136 = vector.extract_strided_slice %123 {offsets = [6, 0], sizes = [1, 32], strides = [1, 1]} : vector<64x32xf32> to vector<1x32xf32>
    %c0_129 = arith.constant 0 : index
    %c192 = arith.constant 192 : index
    %137 = vector.load %arg11[%c0_129, %c192] : memref<1x2048xf32, #tpu.memory_space<vmem>>, vector<1x32xf32>
    tpu.vector_store %arg11[%c0_129, %c192], %136 {strides = array<i32>} : memref<1x2048xf32, #tpu.memory_space<vmem>>, vector<1x32xf32>,
    %138 = vector.extract_strided_slice %123 {offsets = [7, 0], sizes = [1, 32], strides = [1, 1]} : vector<64x32xf32> to vector<1x32xf32>
    %c0_130 = arith.constant 0 : index
    %c224 = arith.constant 224 : index
    %139 = vector.load %arg11[%c0_130, %c224] : memref<1x2048xf32, #tpu.memory_space<vmem>>, vector<1x32xf32>
    tpu.vector_store %arg11[%c0_130, %c224], %138 {strides = array<i32>} : memref<1x2048xf32, #tpu.memory_space<vmem>>, vector<1x32xf32>,
    %140 = vector.extract_strided_slice %123 {offsets = [8, 0], sizes = [1, 32], strides = [1, 1]} : vector<64x32xf32> to vector<1x32xf32>
    %c0_131 = arith.constant 0 : index
    %c256 = arith.constant 256 : index
    %141 = vector.load %arg11[%c0_131, %c256] : memref<1x2048xf32, #tpu.memory_space<vmem>>, vector<1x32xf32>
    tpu.vector_store %arg11[%c0_131, %c256], %140 {strides = array<i32>} : memref<1x2048xf32, #tpu.memory_space<vmem>>, vector<1x32xf32>,
    %142 = vector.extract_strided_slice %123 {offsets = [9, 0], sizes = [1, 32], strides = [1, 1]} : vector<64x32xf32> to vector<1x32xf32>
    %c0_132 = arith.constant 0 : index
    %c288 = arith.constant 288 : index
    %143 = vector.load %arg11[%c0_132, %c288] : memref<1x2048xf32, #tpu.memory_space<vmem>>, vector<1x32xf32>
    tpu.vector_store %arg11[%c0_132, %c288], %142 {strides = array<i32>} : memref<1x2048xf32, #tpu.memory_space<vmem>>, vector<1x32xf32>,
    %144 = vector.extract_strided_slice %123 {offsets = [10, 0], sizes = [1, 32], strides = [1, 1]} : vector<64x32xf32> to vector<1x32xf32>
    %c0_133 = arith.constant 0 : index
    %c320 = arith.constant 320 : index
    %145 = vector.load %arg11[%c0_133, %c320] : memref<1x2048xf32, #tpu.memory_space<vmem>>, vector<1x32xf32>
    tpu.vector_store %arg11[%c0_133, %c320], %144 {strides = array<i32>} : memref<1x2048xf32, #tpu.memory_space<vmem>>, vector<1x32xf32>,
    %146 = vector.extract_strided_slice %123 {offsets = [11, 0], sizes = [1, 32], strides = [1, 1]} : vector<64x32xf32> to vector<1x32xf32>
    %c0_134 = arith.constant 0 : index
    %c352 = arith.constant 352 : index
    %147 = vector.load %arg11[%c0_134, %c352] : memref<1x2048xf32, #tpu.memory_space<vmem>>, vector<1x32xf32>
    tpu.vector_store %arg11[%c0_134, %c352], %146 {strides = array<i32>} : memref<1x2048xf32, #tpu.memory_space<vmem>>, vector<1x32xf32>,
    %148 = vector.extract_strided_slice %123 {offsets = [12, 0], sizes = [1, 32], strides = [1, 1]} : vector<64x32xf32> to vector<1x32xf32>
    %c0_135 = arith.constant 0 : index
    %c384 = arith.constant 384 : index
    %149 = vector.load %arg11[%c0_135, %c384] : memref<1x2048xf32, #tpu.memory_space<vmem>>, vector<1x32xf32>
    tpu.vector_store %arg11[%c0_135, %c384], %148 {strides = array<i32>} : memref<1x2048xf32, #tpu.memory_space<vmem>>, vector<1x32xf32>,
    %150 = vector.extract_strided_slice %123 {offsets = [13, 0], sizes = [1, 32], strides = [1, 1]} : vector<64x32xf32> to vector<1x32xf32>
    %c0_136 = arith.constant 0 : index
    %c416 = arith.constant 416 : index
    %151 = vector.load %arg11[%c0_136, %c416] : memref<1x2048xf32, #tpu.memory_space<vmem>>, vector<1x32xf32>
    tpu.vector_store %arg11[%c0_136, %c416], %150 {strides = array<i32>} : memref<1x2048xf32, #tpu.memory_space<vmem>>, vector<1x32xf32>,
    %152 = vector.extract_strided_slice %123 {offsets = [14, 0], sizes = [1, 32], strides = [1, 1]} : vector<64x32xf32> to vector<1x32xf32>
    %c0_137 = arith.constant 0 : index
    %c448 = arith.constant 448 : index
    %153 = vector.load %arg11[%c0_137, %c448] : memref<1x2048xf32, #tpu.memory_space<vmem>>, vector<1x32xf32>
    tpu.vector_store %arg11[%c0_137, %c448], %152 {strides = array<i32>} : memref<1x2048xf32, #tpu.memory_space<vmem>>, vector<1x32xf32>,
    %154 = vector.extract_strided_slice %123 {offsets = [15, 0], sizes = [1, 32], strides = [1, 1]} : vector<64x32xf32> to vector<1x32xf32>
    %c0_138 = arith.constant 0 : index
    %c480 = arith.constant 480 : index
    %155 = vector.load %arg11[%c0_138, %c480] : memref<1x2048xf32, #tpu.memory_space<vmem>>, vector<1x32xf32>
    tpu.vector_store %arg11[%c0_138, %c480], %154 {strides = array<i32>} : memref<1x2048xf32, #tpu.memory_space<vmem>>, vector<1x32xf32>,
    %156 = vector.extract_strided_slice %123 {offsets = [16, 0], sizes = [1, 32], strides = [1, 1]} : vector<64x32xf32> to vector<1x32xf32>
    %c0_139 = arith.constant 0 : index
    %c512 = arith.constant 512 : index
    %157 = vector.load %arg11[%c0_139, %c512] : memref<1x2048xf32, #tpu.memory_space<vmem>>, vector<1x32xf32>
    tpu.vector_store %arg11[%c0_139, %c512], %156 {strides = array<i32>} : memref<1x2048xf32, #tpu.memory_space<vmem>>, vector<1x32xf32>,
    %158 = vector.extract_strided_slice %123 {offsets = [17, 0], sizes = [1, 32], strides = [1, 1]} : vector<64x32xf32> to vector<1x32xf32>
    %c0_140 = arith.constant 0 : index
    %c544 = arith.constant 544 : index
    %159 = vector.load %arg11[%c0_140, %c544] : memref<1x2048xf32, #tpu.memory_space<vmem>>, vector<1x32xf32>
    tpu.vector_store %arg11[%c0_140, %c544], %158 {strides = array<i32>} : memref<1x2048xf32, #tpu.memory_space<vmem>>, vector<1x32xf32>,
    %160 = vector.extract_strided_slice %123 {offsets = [18, 0], sizes = [1, 32], strides = [1, 1]} : vector<64x32xf32> to vector<1x32xf32>
    %c0_141 = arith.constant 0 : index
    %c576 = arith.constant 576 : index
    %161 = vector.load %arg11[%c0_141, %c576] : memref<1x2048xf32, #tpu.memory_space<vmem>>, vector<1x32xf32>
    tpu.vector_store %arg11[%c0_141, %c576], %160 {strides = array<i32>} : memref<1x2048xf32, #tpu.memory_space<vmem>>, vector<1x32xf32>,
    %162 = vector.extract_strided_slice %123 {offsets = [19, 0], sizes = [1, 32], strides = [1, 1]} : vector<64x32xf32> to vector<1x32xf32>
    %c0_142 = arith.constant 0 : index
    %c608 = arith.constant 608 : index
    %163 = vector.load %arg11[%c0_142, %c608] : memref<1x2048xf32, #tpu.memory_space<vmem>>, vector<1x32xf32>
    tpu.vector_store %arg11[%c0_142, %c608], %162 {strides = array<i32>} : memref<1x2048xf32, #tpu.memory_space<vmem>>, vector<1x32xf32>,
    %164 = vector.extract_strided_slice %123 {offsets = [20, 0], sizes = [1, 32], strides = [1, 1]} : vector<64x32xf32> to vector<1x32xf32>
    %c0_143 = arith.constant 0 : index
    %c640 = arith.constant 640 : index
    %165 = vector.load %arg11[%c0_143, %c640] : memref<1x2048xf32, #tpu.memory_space<vmem>>, vector<1x32xf32>
    tpu.vector_store %arg11[%c0_143, %c640], %164 {strides = array<i32>} : memref<1x2048xf32, #tpu.memory_space<vmem>>, vector<1x32xf32>,
    %166 = vector.extract_strided_slice %123 {offsets = [21, 0], sizes = [1, 32], strides = [1, 1]} : vector<64x32xf32> to vector<1x32xf32>
    %c0_144 = arith.constant 0 : index
    %c672 = arith.constant 672 : index
    %167 = vector.load %arg11[%c0_144, %c672] : memref<1x2048xf32, #tpu.memory_space<vmem>>, vector<1x32xf32>
    tpu.vector_store %arg11[%c0_144, %c672], %166 {strides = array<i32>} : memref<1x2048xf32, #tpu.memory_space<vmem>>, vector<1x32xf32>,
    %168 = vector.extract_strided_slice %123 {offsets = [22, 0], sizes = [1, 32], strides = [1, 1]} : vector<64x32xf32> to vector<1x32xf32>
    %c0_145 = arith.constant 0 : index
    %c704 = arith.constant 704 : index
    %169 = vector.load %arg11[%c0_145, %c704] : memref<1x2048xf32, #tpu.memory_space<vmem>>, vector<1x32xf32>
    tpu.vector_store %arg11[%c0_145, %c704], %168 {strides = array<i32>} : memref<1x2048xf32, #tpu.memory_space<vmem>>, vector<1x32xf32>,
    %170 = vector.extract_strided_slice %123 {offsets = [23, 0], sizes = [1, 32], strides = [1, 1]} : vector<64x32xf32> to vector<1x32xf32>
    %c0_146 = arith.constant 0 : index
    %c736 = arith.constant 736 : index
    %171 = vector.load %arg11[%c0_146, %c736] : memref<1x2048xf32, #tpu.memory_space<vmem>>, vector<1x32xf32>
    tpu.vector_store %arg11[%c0_146, %c736], %170 {strides = array<i32>} : memref<1x2048xf32, #tpu.memory_space<vmem>>, vector<1x32xf32>,
    %172 = vector.extract_strided_slice %123 {offsets = [24, 0], sizes = [1, 32], strides = [1, 1]} : vector<64x32xf32> to vector<1x32xf32>
    %c0_147 = arith.constant 0 : index
    %c768 = arith.constant 768 : index
    %173 = vector.load %arg11[%c0_147, %c768] : memref<1x2048xf32, #tpu.memory_space<vmem>>, vector<1x32xf32>
    tpu.vector_store %arg11[%c0_147, %c768], %172 {strides = array<i32>} : memref<1x2048xf32, #tpu.memory_space<vmem>>, vector<1x32xf32>,
    %174 = vector.extract_strided_slice %123 {offsets = [25, 0], sizes = [1, 32], strides = [1, 1]} : vector<64x32xf32> to vector<1x32xf32>
    %c0_148 = arith.constant 0 : index
    %c800 = arith.constant 800 : index
    %175 = vector.load %arg11[%c0_148, %c800] : memref<1x2048xf32, #tpu.memory_space<vmem>>, vector<1x32xf32>
    tpu.vector_store %arg11[%c0_148, %c800], %174 {strides = array<i32>} : memref<1x2048xf32, #tpu.memory_space<vmem>>, vector<1x32xf32>,
    %176 = vector.extract_strided_slice %123 {offsets = [26, 0], sizes = [1, 32], strides = [1, 1]} : vector<64x32xf32> to vector<1x32xf32>
    %c0_149 = arith.constant 0 : index
    %c832 = arith.constant 832 : index
    %177 = vector.load %arg11[%c0_149, %c832] : memref<1x2048xf32, #tpu.memory_space<vmem>>, vector<1x32xf32>
    tpu.vector_store %arg11[%c0_149, %c832], %176 {strides = array<i32>} : memref<1x2048xf32, #tpu.memory_space<vmem>>, vector<1x32xf32>,
    %178 = vector.extract_strided_slice %123 {offsets = [27, 0], sizes = [1, 32], strides = [1, 1]} : vector<64x32xf32> to vector<1x32xf32>
    %c0_150 = arith.constant 0 : index
    %c864 = arith.constant 864 : index
    %179 = vector.load %arg11[%c0_150, %c864] : memref<1x2048xf32, #tpu.memory_space<vmem>>, vector<1x32xf32>
    tpu.vector_store %arg11[%c0_150, %c864], %178 {strides = array<i32>} : memref<1x2048xf32, #tpu.memory_space<vmem>>, vector<1x32xf32>,
    %180 = vector.extract_strided_slice %123 {offsets = [28, 0], sizes = [1, 32], strides = [1, 1]} : vector<64x32xf32> to vector<1x32xf32>
    %c0_151 = arith.constant 0 : index
    %c896 = arith.constant 896 : index
    %181 = vector.load %arg11[%c0_151, %c896] : memref<1x2048xf32, #tpu.memory_space<vmem>>, vector<1x32xf32>
    tpu.vector_store %arg11[%c0_151, %c896], %180 {strides = array<i32>} : memref<1x2048xf32, #tpu.memory_space<vmem>>, vector<1x32xf32>,
    %182 = vector.extract_strided_slice %123 {offsets = [29, 0], sizes = [1, 32], strides = [1, 1]} : vector<64x32xf32> to vector<1x32xf32>
    %c0_152 = arith.constant 0 : index
    %c928 = arith.constant 928 : index
    %183 = vector.load %arg11[%c0_152, %c928] : memref<1x2048xf32, #tpu.memory_space<vmem>>, vector<1x32xf32>
    tpu.vector_store %arg11[%c0_152, %c928], %182 {strides = array<i32>} : memref<1x2048xf32, #tpu.memory_space<vmem>>, vector<1x32xf32>,
    %184 = vector.extract_strided_slice %123 {offsets = [30, 0], sizes = [1, 32], strides = [1, 1]} : vector<64x32xf32> to vector<1x32xf32>
    %c0_153 = arith.constant 0 : index
    %c960 = arith.constant 960 : index
    %185 = vector.load %arg11[%c0_153, %c960] : memref<1x2048xf32, #tpu.memory_space<vmem>>, vector<1x32xf32>
    tpu.vector_store %arg11[%c0_153, %c960], %184 {strides = array<i32>} : memref<1x2048xf32, #tpu.memory_space<vmem>>, vector<1x32xf32>,
    %186 = vector.extract_strided_slice %123 {offsets = [31, 0], sizes = [1, 32], strides = [1, 1]} : vector<64x32xf32> to vector<1x32xf32>
    %c0_154 = arith.constant 0 : index
    %c992 = arith.constant 992 : index
    %187 = vector.load %arg11[%c0_154, %c992] : memref<1x2048xf32, #tpu.memory_space<vmem>>, vector<1x32xf32>
    tpu.vector_store %arg11[%c0_154, %c992], %186 {strides = array<i32>} : memref<1x2048xf32, #tpu.memory_space<vmem>>, vector<1x32xf32>,
    %188 = vector.extract_strided_slice %123 {offsets = [32, 0], sizes = [1, 32], strides = [1, 1]} : vector<64x32xf32> to vector<1x32xf32>
    %c0_155 = arith.constant 0 : index
    %c1024 = arith.constant 1024 : index
    %189 = vector.load %arg11[%c0_155, %c1024] : memref<1x2048xf32, #tpu.memory_space<vmem>>, vector<1x32xf32>
    tpu.vector_store %arg11[%c0_155, %c1024], %188 {strides = array<i32>} : memref<1x2048xf32, #tpu.memory_space<vmem>>, vector<1x32xf32>,
    %190 = vector.extract_strided_slice %123 {offsets = [33, 0], sizes = [1, 32], strides = [1, 1]} : vector<64x32xf32> to vector<1x32xf32>
    %c0_156 = arith.constant 0 : index
    %c1056 = arith.constant 1056 : index
    %191 = vector.load %arg11[%c0_156, %c1056] : memref<1x2048xf32, #tpu.memory_space<vmem>>, vector<1x32xf32>
    tpu.vector_store %arg11[%c0_156, %c1056], %190 {strides = array<i32>} : memref<1x2048xf32, #tpu.memory_space<vmem>>, vector<1x32xf32>,
    %192 = vector.extract_strided_slice %123 {offsets = [34, 0], sizes = [1, 32], strides = [1, 1]} : vector<64x32xf32> to vector<1x32xf32>
    %c0_157 = arith.constant 0 : index
    %c1088 = arith.constant 1088 : index
    %193 = vector.load %arg11[%c0_157, %c1088] : memref<1x2048xf32, #tpu.memory_space<vmem>>, vector<1x32xf32>
    tpu.vector_store %arg11[%c0_157, %c1088], %192 {strides = array<i32>} : memref<1x2048xf32, #tpu.memory_space<vmem>>, vector<1x32xf32>,
    %194 = vector.extract_strided_slice %123 {offsets = [35, 0], sizes = [1, 32], strides = [1, 1]} : vector<64x32xf32> to vector<1x32xf32>
    %c0_158 = arith.constant 0 : index
    %c1120 = arith.constant 1120 : index
    %195 = vector.load %arg11[%c0_158, %c1120] : memref<1x2048xf32, #tpu.memory_space<vmem>>, vector<1x32xf32>
    tpu.vector_store %arg11[%c0_158, %c1120], %194 {strides = array<i32>} : memref<1x2048xf32, #tpu.memory_space<vmem>>, vector<1x32xf32>,
    %196 = vector.extract_strided_slice %123 {offsets = [36, 0], sizes = [1, 32], strides = [1, 1]} : vector<64x32xf32> to vector<1x32xf32>
    %c0_159 = arith.constant 0 : index
    %c1152 = arith.constant 1152 : index
    %197 = vector.load %arg11[%c0_159, %c1152] : memref<1x2048xf32, #tpu.memory_space<vmem>>, vector<1x32xf32>
    tpu.vector_store %arg11[%c0_159, %c1152], %196 {strides = array<i32>} : memref<1x2048xf32, #tpu.memory_space<vmem>>, vector<1x32xf32>,
    %198 = vector.extract_strided_slice %123 {offsets = [37, 0], sizes = [1, 32], strides = [1, 1]} : vector<64x32xf32> to vector<1x32xf32>
    %c0_160 = arith.constant 0 : index
    %c1184 = arith.constant 1184 : index
    %199 = vector.load %arg11[%c0_160, %c1184] : memref<1x2048xf32, #tpu.memory_space<vmem>>, vector<1x32xf32>
    tpu.vector_store %arg11[%c0_160, %c1184], %198 {strides = array<i32>} : memref<1x2048xf32, #tpu.memory_space<vmem>>, vector<1x32xf32>,
    %200 = vector.extract_strided_slice %123 {offsets = [38, 0], sizes = [1, 32], strides = [1, 1]} : vector<64x32xf32> to vector<1x32xf32>
    %c0_161 = arith.constant 0 : index
    %c1216 = arith.constant 1216 : index
    %201 = vector.load %arg11[%c0_161, %c1216] : memref<1x2048xf32, #tpu.memory_space<vmem>>, vector<1x32xf32>
    tpu.vector_store %arg11[%c0_161, %c1216], %200 {strides = array<i32>} : memref<1x2048xf32, #tpu.memory_space<vmem>>, vector<1x32xf32>,
    %202 = vector.extract_strided_slice %123 {offsets = [39, 0], sizes = [1, 32], strides = [1, 1]} : vector<64x32xf32> to vector<1x32xf32>
    %c0_162 = arith.constant 0 : index
    %c1248 = arith.constant 1248 : index
    %203 = vector.load %arg11[%c0_162, %c1248] : memref<1x2048xf32, #tpu.memory_space<vmem>>, vector<1x32xf32>
    tpu.vector_store %arg11[%c0_162, %c1248], %202 {strides = array<i32>} : memref<1x2048xf32, #tpu.memory_space<vmem>>, vector<1x32xf32>,
    %204 = vector.extract_strided_slice %123 {offsets = [40, 0], sizes = [1, 32], strides = [1, 1]} : vector<64x32xf32> to vector<1x32xf32>
    %c0_163 = arith.constant 0 : index
    %c1280 = arith.constant 1280 : index
    %205 = vector.load %arg11[%c0_163, %c1280] : memref<1x2048xf32, #tpu.memory_space<vmem>>, vector<1x32xf32>
    tpu.vector_store %arg11[%c0_163, %c1280], %204 {strides = array<i32>} : memref<1x2048xf32, #tpu.memory_space<vmem>>, vector<1x32xf32>,
    %206 = vector.extract_strided_slice %123 {offsets = [41, 0], sizes = [1, 32], strides = [1, 1]} : vector<64x32xf32> to vector<1x32xf32>
    %c0_164 = arith.constant 0 : index
    %c1312 = arith.constant 1312 : index
    %207 = vector.load %arg11[%c0_164, %c1312] : memref<1x2048xf32, #tpu.memory_space<vmem>>, vector<1x32xf32>
    tpu.vector_store %arg11[%c0_164, %c1312], %206 {strides = array<i32>} : memref<1x2048xf32, #tpu.memory_space<vmem>>, vector<1x32xf32>,
    %208 = vector.extract_strided_slice %123 {offsets = [42, 0], sizes = [1, 32], strides = [1, 1]} : vector<64x32xf32> to vector<1x32xf32>
    %c0_165 = arith.constant 0 : index
    %c1344 = arith.constant 1344 : index
    %209 = vector.load %arg11[%c0_165, %c1344] : memref<1x2048xf32, #tpu.memory_space<vmem>>, vector<1x32xf32>
    tpu.vector_store %arg11[%c0_165, %c1344], %208 {strides = array<i32>} : memref<1x2048xf32, #tpu.memory_space<vmem>>, vector<1x32xf32>,
    %210 = vector.extract_strided_slice %123 {offsets = [43, 0], sizes = [1, 32], strides = [1, 1]} : vector<64x32xf32> to vector<1x32xf32>
    %c0_166 = arith.constant 0 : index
    %c1376 = arith.constant 1376 : index
    %211 = vector.load %arg11[%c0_166, %c1376] : memref<1x2048xf32, #tpu.memory_space<vmem>>, vector<1x32xf32>
    tpu.vector_store %arg11[%c0_166, %c1376], %210 {strides = array<i32>} : memref<1x2048xf32, #tpu.memory_space<vmem>>, vector<1x32xf32>,
    %212 = vector.extract_strided_slice %123 {offsets = [44, 0], sizes = [1, 32], strides = [1, 1]} : vector<64x32xf32> to vector<1x32xf32>
    %c0_167 = arith.constant 0 : index
    %c1408 = arith.constant 1408 : index
    %213 = vector.load %arg11[%c0_167, %c1408] : memref<1x2048xf32, #tpu.memory_space<vmem>>, vector<1x32xf32>
    tpu.vector_store %arg11[%c0_167, %c1408], %212 {strides = array<i32>} : memref<1x2048xf32, #tpu.memory_space<vmem>>, vector<1x32xf32>,
    %214 = vector.extract_strided_slice %123 {offsets = [45, 0], sizes = [1, 32], strides = [1, 1]} : vector<64x32xf32> to vector<1x32xf32>
    %c0_168 = arith.constant 0 : index
    %c1440 = arith.constant 1440 : index
    %215 = vector.load %arg11[%c0_168, %c1440] : memref<1x2048xf32, #tpu.memory_space<vmem>>, vector<1x32xf32>
    tpu.vector_store %arg11[%c0_168, %c1440], %214 {strides = array<i32>} : memref<1x2048xf32, #tpu.memory_space<vmem>>, vector<1x32xf32>,
    %216 = vector.extract_strided_slice %123 {offsets = [46, 0], sizes = [1, 32], strides = [1, 1]} : vector<64x32xf32> to vector<1x32xf32>
    %c0_169 = arith.constant 0 : index
    %c1472 = arith.constant 1472 : index
    %217 = vector.load %arg11[%c0_169, %c1472] : memref<1x2048xf32, #tpu.memory_space<vmem>>, vector<1x32xf32>
    tpu.vector_store %arg11[%c0_169, %c1472], %216 {strides = array<i32>} : memref<1x2048xf32, #tpu.memory_space<vmem>>, vector<1x32xf32>,
    %218 = vector.extract_strided_slice %123 {offsets = [47, 0], sizes = [1, 32], strides = [1, 1]} : vector<64x32xf32> to vector<1x32xf32>
    %c0_170 = arith.constant 0 : index
    %c1504 = arith.constant 1504 : index
    %219 = vector.load %arg11[%c0_170, %c1504] : memref<1x2048xf32, #tpu.memory_space<vmem>>, vector<1x32xf32>
    tpu.vector_store %arg11[%c0_170, %c1504], %218 {strides = array<i32>} : memref<1x2048xf32, #tpu.memory_space<vmem>>, vector<1x32xf32>,
    %220 = vector.extract_strided_slice %123 {offsets = [48, 0], sizes = [1, 32], strides = [1, 1]} : vector<64x32xf32> to vector<1x32xf32>
    %c0_171 = arith.constant 0 : index
    %c1536 = arith.constant 1536 : index
    %221 = vector.load %arg11[%c0_171, %c1536] : memref<1x2048xf32, #tpu.memory_space<vmem>>, vector<1x32xf32>
    tpu.vector_store %arg11[%c0_171, %c1536], %220 {strides = array<i32>} : memref<1x2048xf32, #tpu.memory_space<vmem>>, vector<1x32xf32>,
    %222 = vector.extract_strided_slice %123 {offsets = [49, 0], sizes = [1, 32], strides = [1, 1]} : vector<64x32xf32> to vector<1x32xf32>
    %c0_172 = arith.constant 0 : index
    %c1568 = arith.constant 1568 : index
    %223 = vector.load %arg11[%c0_172, %c1568] : memref<1x2048xf32, #tpu.memory_space<vmem>>, vector<1x32xf32>
    tpu.vector_store %arg11[%c0_172, %c1568], %222 {strides = array<i32>} : memref<1x2048xf32, #tpu.memory_space<vmem>>, vector<1x32xf32>,
    %224 = vector.extract_strided_slice %123 {offsets = [50, 0], sizes = [1, 32], strides = [1, 1]} : vector<64x32xf32> to vector<1x32xf32>
    %c0_173 = arith.constant 0 : index
    %c1600 = arith.constant 1600 : index
    %225 = vector.load %arg11[%c0_173, %c1600] : memref<1x2048xf32, #tpu.memory_space<vmem>>, vector<1x32xf32>
    tpu.vector_store %arg11[%c0_173, %c1600], %224 {strides = array<i32>} : memref<1x2048xf32, #tpu.memory_space<vmem>>, vector<1x32xf32>,
    %226 = vector.extract_strided_slice %123 {offsets = [51, 0], sizes = [1, 32], strides = [1, 1]} : vector<64x32xf32> to vector<1x32xf32>
    %c0_174 = arith.constant 0 : index
    %c1632 = arith.constant 1632 : index
    %227 = vector.load %arg11[%c0_174, %c1632] : memref<1x2048xf32, #tpu.memory_space<vmem>>, vector<1x32xf32>
    tpu.vector_store %arg11[%c0_174, %c1632], %226 {strides = array<i32>} : memref<1x2048xf32, #tpu.memory_space<vmem>>, vector<1x32xf32>,
    %228 = vector.extract_strided_slice %123 {offsets = [52, 0], sizes = [1, 32], strides = [1, 1]} : vector<64x32xf32> to vector<1x32xf32>
    %c0_175 = arith.constant 0 : index
    %c1664 = arith.constant 1664 : index
    %229 = vector.load %arg11[%c0_175, %c1664] : memref<1x2048xf32, #tpu.memory_space<vmem>>, vector<1x32xf32>
    tpu.vector_store %arg11[%c0_175, %c1664], %228 {strides = array<i32>} : memref<1x2048xf32, #tpu.memory_space<vmem>>, vector<1x32xf32>,
    %230 = vector.extract_strided_slice %123 {offsets = [53, 0], sizes = [1, 32], strides = [1, 1]} : vector<64x32xf32> to vector<1x32xf32>
    %c0_176 = arith.constant 0 : index
    %c1696 = arith.constant 1696 : index
    %231 = vector.load %arg11[%c0_176, %c1696] : memref<1x2048xf32, #tpu.memory_space<vmem>>, vector<1x32xf32>
    tpu.vector_store %arg11[%c0_176, %c1696], %230 {strides = array<i32>} : memref<1x2048xf32, #tpu.memory_space<vmem>>, vector<1x32xf32>,
    %232 = vector.extract_strided_slice %123 {offsets = [54, 0], sizes = [1, 32], strides = [1, 1]} : vector<64x32xf32> to vector<1x32xf32>
    %c0_177 = arith.constant 0 : index
    %c1728 = arith.constant 1728 : index
    %233 = vector.load %arg11[%c0_177, %c1728] : memref<1x2048xf32, #tpu.memory_space<vmem>>, vector<1x32xf32>
    tpu.vector_store %arg11[%c0_177, %c1728], %232 {strides = array<i32>} : memref<1x2048xf32, #tpu.memory_space<vmem>>, vector<1x32xf32>,
    %234 = vector.extract_strided_slice %123 {offsets = [55, 0], sizes = [1, 32], strides = [1, 1]} : vector<64x32xf32> to vector<1x32xf32>
    %c0_178 = arith.constant 0 : index
    %c1760 = arith.constant 1760 : index
    %235 = vector.load %arg11[%c0_178, %c1760] : memref<1x2048xf32, #tpu.memory_space<vmem>>, vector<1x32xf32>
    tpu.vector_store %arg11[%c0_178, %c1760], %234 {strides = array<i32>} : memref<1x2048xf32, #tpu.memory_space<vmem>>, vector<1x32xf32>,
    %236 = vector.extract_strided_slice %123 {offsets = [56, 0], sizes = [1, 32], strides = [1, 1]} : vector<64x32xf32> to vector<1x32xf32>
    %c0_179 = arith.constant 0 : index
    %c1792 = arith.constant 1792 : index
    %237 = vector.load %arg11[%c0_179, %c1792] : memref<1x2048xf32, #tpu.memory_space<vmem>>, vector<1x32xf32>
    tpu.vector_store %arg11[%c0_179, %c1792], %236 {strides = array<i32>} : memref<1x2048xf32, #tpu.memory_space<vmem>>, vector<1x32xf32>,
    %238 = vector.extract_strided_slice %123 {offsets = [57, 0], sizes = [1, 32], strides = [1, 1]} : vector<64x32xf32> to vector<1x32xf32>
    %c0_180 = arith.constant 0 : index
    %c1824 = arith.constant 1824 : index
    %239 = vector.load %arg11[%c0_180, %c1824] : memref<1x2048xf32, #tpu.memory_space<vmem>>, vector<1x32xf32>
    tpu.vector_store %arg11[%c0_180, %c1824], %238 {strides = array<i32>} : memref<1x2048xf32, #tpu.memory_space<vmem>>, vector<1x32xf32>,
    %240 = vector.extract_strided_slice %123 {offsets = [58, 0], sizes = [1, 32], strides = [1, 1]} : vector<64x32xf32> to vector<1x32xf32>
    %c0_181 = arith.constant 0 : index
    %c1856 = arith.constant 1856 : index
    %241 = vector.load %arg11[%c0_181, %c1856] : memref<1x2048xf32, #tpu.memory_space<vmem>>, vector<1x32xf32>
    tpu.vector_store %arg11[%c0_181, %c1856], %240 {strides = array<i32>} : memref<1x2048xf32, #tpu.memory_space<vmem>>, vector<1x32xf32>,
    %242 = vector.extract_strided_slice %123 {offsets = [59, 0], sizes = [1, 32], strides = [1, 1]} : vector<64x32xf32> to vector<1x32xf32>
    %c0_182 = arith.constant 0 : index
    %c1888 = arith.constant 1888 : index
    %243 = vector.load %arg11[%c0_182, %c1888] : memref<1x2048xf32, #tpu.memory_space<vmem>>, vector<1x32xf32>
    tpu.vector_store %arg11[%c0_182, %c1888], %242 {strides = array<i32>} : memref<1x2048xf32, #tpu.memory_space<vmem>>, vector<1x32xf32>,
    %244 = vector.extract_strided_slice %123 {offsets = [60, 0], sizes = [1, 32], strides = [1, 1]} : vector<64x32xf32> to vector<1x32xf32>
    %c0_183 = arith.constant 0 : index
    %c1920 = arith.constant 1920 : index
    %245 = vector.load %arg11[%c0_183, %c1920] : memref<1x2048xf32, #tpu.memory_space<vmem>>, vector<1x32xf32>
    tpu.vector_store %arg11[%c0_183, %c1920], %244 {strides = array<i32>} : memref<1x2048xf32, #tpu.memory_space<vmem>>, vector<1x32xf32>,
    %246 = vector.extract_strided_slice %123 {offsets = [61, 0], sizes = [1, 32], strides = [1, 1]} : vector<64x32xf32> to vector<1x32xf32>
    %c0_184 = arith.constant 0 : index
    %c1952 = arith.constant 1952 : index
    %247 = vector.load %arg11[%c0_184, %c1952] : memref<1x2048xf32, #tpu.memory_space<vmem>>, vector<1x32xf32>
    tpu.vector_store %arg11[%c0_184, %c1952], %246 {strides = array<i32>} : memref<1x2048xf32, #tpu.memory_space<vmem>>, vector<1x32xf32>,
    %248 = vector.extract_strided_slice %123 {offsets = [62, 0], sizes = [1, 32], strides = [1, 1]} : vector<64x32xf32> to vector<1x32xf32>
    %c0_185 = arith.constant 0 : index
    %c1984 = arith.constant 1984 : index
    %249 = vector.load %arg11[%c0_185, %c1984] : memref<1x2048xf32, #tpu.memory_space<vmem>>, vector<1x32xf32>
    tpu.vector_store %arg11[%c0_185, %c1984], %248 {strides = array<i32>} : memref<1x2048xf32, #tpu.memory_space<vmem>>, vector<1x32xf32>,
    %250 = vector.extract_strided_slice %123 {offsets = [63, 0], sizes = [1, 32], strides = [1, 1]} : vector<64x32xf32> to vector<1x32xf32>
    %c0_186 = arith.constant 0 : index
    %c2016 = arith.constant 2016 : index
    %251 = vector.load %arg11[%c0_186, %c2016] : memref<1x2048xf32, #tpu.memory_space<vmem>>, vector<1x32xf32>
    tpu.vector_store %arg11[%c0_186, %c2016], %250 {strides = array<i32>} : memref<1x2048xf32, #tpu.memory_space<vmem>>, vector<1x32xf32>,
    %c0_187 = arith.constant 0 : index
    %c0_188 = arith.constant 0 : index
    %252 = vector.load %arg11[%c0_187, %c0_188] : memref<1x2048xf32, #tpu.memory_space<vmem>>, vector<1x2048xf32>
    %c0_189 = arith.constant 0 : index
    %c0_190 = arith.constant 0 : index
    %253 = vector.load %arg6[%c0_189, %c0_190] : memref<2048x256xf32, #tpu.memory_space<vmem>>, vector<2048x256xf32>
    %cst_191 = arith.constant dense<0.000000e+00> : vector<1x256xf32>
    %254 = tpu.matmul %252, %253, %cst_191 {dimension_numbers = #tpu.dot_dimension_numbers<[1], [0], [0], [1], [0, 0, 1, 1], [], []>} : vector<1x2048xf32>, vector<2048x256xf32>, vector<1x256xf32> -> vector<1x256xf32>
    %c0_192 = arith.constant 0 : index
    %c0_193 = arith.constant 0 : index
    %255 = vector.load %arg7[%c0_192, %c0_193] : memref<1x256xf32, #tpu.memory_space<vmem>>, vector<1x256xf32>
    %256 = arith.addf %254, %255 : vector<1x256xf32>
    %cst_194 = arith.constant 0.000000e+00 : f32
    %257 = vector.broadcast %cst_194 : f32 to vector<1x256xf32>
    %258 = arith.maximumf %256, %257 : vector<1x256xf32>
    %c0_195 = arith.constant 0 : index
    %c0_196 = arith.constant 0 : index
    %259 = vector.load %arg8[%c0_195, %c0_196] : memref<256x128xf32, #tpu.memory_space<vmem>>, vector<256x128xf32>
    %cst_197 = arith.constant dense<0.000000e+00> : vector<1x128xf32>
    %260 = tpu.matmul %258, %259, %cst_197 {dimension_numbers = #tpu.dot_dimension_numbers<[1], [0], [0], [1], [0, 0, 1, 1], [], []>} : vector<1x256xf32>, vector<256x128xf32>, vector<1x128xf32> -> vector<1x128xf32>
    %c0_198 = arith.constant 0 : index
    %c0_199 = arith.constant 0 : index
    %261 = vector.load %arg9[%c0_198, %c0_199] : memref<1x128xf32, #tpu.memory_space<vmem>>, vector<1x128xf32>
    %262 = arith.addf %260, %261 : vector<1x128xf32>
    %c0_200 = arith.constant 0 : index
    %c0_201 = arith.constant 0 : index
    %c0_202 = arith.constant 0 : index
    %263 = vector.load %arg10[%c0_200, %c0_201, %c0_202] : memref<1x1x128xf32, #tpu.memory_space<vmem>>, vector<1x1x128xf32>
    %264 = vector.shape_cast %263 : vector<1x1x128xf32> to vector<1x128xf32>
    %265 = vector.shape_cast %262 : vector<1x128xf32> to vector<1x1x128xf32>
    tpu.vector_store %arg10[%c0_200, %c0_201, %c0_202], %265 {strides = array<i32>} : memref<1x1x128xf32, #tpu.memory_space<vmem>>, vector<1x1x128xf32>,
    return
  }
  func.func @transform_0(%arg0: i32) -> (i32, i32, i32) {
    %c0_i32 = arith.constant 0 : i32
    %c0_i32_0 = arith.constant 0 : i32
    %c0_i32_1 = arith.constant 0 : i32
    return %arg0, %c0_i32, %c0_i32_0 : i32, i32, i32
  }
  func.func @transform_1(%arg0: i32) -> (i32, i32) {
    %c0_i32 = arith.constant 0 : i32
    %c0_i32_0 = arith.constant 0 : i32
    %c0_i32_1 = arith.constant 0 : i32
    return %c0_i32, %c0_i32_0 : i32, i32
  }
  func.func @transform_2(%arg0: i32) -> (i32, i32, i32) {
    %c0_i32 = arith.constant 0 : i32
    %c0_i32_0 = arith.constant 0 : i32
    %c0_i32_1 = arith.constant 0 : i32
    %c0_i32_2 = arith.constant 0 : i32
    return %c0_i32, %c0_i32_0, %c0_i32_1 : i32, i32, i32
  }
  func.func @transform_3(%arg0: i32) -> (i32, i32, i32) {
    %c0_i32 = arith.constant 0 : i32
    %c0_i32_0 = arith.constant 0 : i32
    %c0_i32_1 = arith.constant 0 : i32
    %c0_i32_2 = arith.constant 0 : i32
    return %c0_i32, %c0_i32_0, %c0_i32_1 : i32, i32, i32
  }
  func.func @transform_4(%arg0: i32) -> (i32, i32) {
    %c0_i32 = arith.constant 0 : i32
    %c0_i32_0 = arith.constant 0 : i32
    %c0_i32_1 = arith.constant 0 : i32
    return %c0_i32, %c0_i32_0 : i32, i32
  }
  func.func @transform_5(%arg0: i32) -> (i32, i32) {
    %c0_i32 = arith.constant 0 : i32
    %c0_i32_0 = arith.constant 0 : i32
    %c0_i32_1 = arith.constant 0 : i32
    return %c0_i32, %c0_i32_0 : i32, i32
  }
  func.func @transform_6(%arg0: i32) -> (i32, i32) {
    %c0_i32 = arith.constant 0 : i32
    %c0_i32_0 = arith.constant 0 : i32
    %c0_i32_1 = arith.constant 0 : i32
    return %c0_i32, %c0_i32_0 : i32, i32
  }
  func.func @transform_7(%arg0: i32) -> (i32, i32) {
    %c0_i32 = arith.constant 0 : i32
    %c0_i32_0 = arith.constant 0 : i32
    %c0_i32_1 = arith.constant 0 : i32
    return %c0_i32, %c0_i32_0 : i32, i32
  }
  func.func @transform_8(%arg0: i32) -> (i32, i32) {
    %c0_i32 = arith.constant 0 : i32
    %c0_i32_0 = arith.constant 0 : i32
    %c0_i32_1 = arith.constant 0 : i32
    return %c0_i32, %c0_i32_0 : i32, i32
  }
  func.func @transform_9(%arg0: i32) -> (i32, i32, i32) {
    %c0_i32 = arith.constant 0 : i32
    %c0_i32_0 = arith.constant 0 : i32
    %c0_i32_1 = arith.constant 0 : i32
    return %arg0, %c0_i32, %c0_i32_0 : i32, i32, i32
  }
}

</mosaic_0001>

<llo_original>
// kernel: conv_qnet_forward.1
$region0: #{conv_qnet_forward.1}
  #allocation0 [shape = 'u32[]', space=smem, size = 0x4, offset = 0x4, fixed_abs, tag = 'smem constant byte address 0x4 - core index']
  #allocation1 [shape = 'u32[144,128]{1,0:T(1,128)}', space=vmem, size = 0x12000, scoped, tag = 'internal scratch']
  #allocation2 [shape = 'f32[1,2048]{1,0:T(1,128)}', space=vmem, size = 0x2000, scoped, tag = 'scratch operand']
  %s0 = inlined_call_operand.vmem [shape: f32[2,324,256], index: 0, kind: input, shape index: {}]
  %s1 = inlined_call_operand.vmem [shape: f32[256,16], index: 1, kind: input, shape index: {}]
  %s2 = inlined_call_operand.vmem [shape: f32[16,64,324], index: 2, kind: input, shape index: {}]
  %s3 = inlined_call_operand.vmem [shape: f32[16,16,32], index: 3, kind: input, shape index: {}]
  %s4 = inlined_call_operand.vmem [shape: f32[1,32], index: 4, kind: input, shape index: {}]
  %s5 = inlined_call_operand.vmem [shape: f32[2048,256], index: 5, kind: input, shape index: {}]
  %s6 = inlined_call_operand.vmem [shape: f32[1,256], index: 6, kind: input, shape index: {}]
  %s7 = inlined_call_operand.vmem [shape: f32[256,128], index: 7, kind: input, shape index: {}]
  %s8 = inlined_call_operand.vmem [shape: f32[1,128], index: 8, kind: input, shape index: {}]
  %s9 = inlined_call_operand.hbm [shape: f32[2,1,128], index: 9, kind: output, shape index: {}]
  %s10 = sld [smem:[#allocation0]]
  $region69: #{conv_qnet_forward.1} parent=0
    _
  %s12 = ssub.s32 1, %s10
  %s13 = scalar_select 0, %s12, %s10
  $region1: #{conv_qnet_forward.1} parent=0
    #allocation3 [shape = 'u8[1024]{0}', space=vmem, size = 0x400, scoped, tag = 'output window, operand 0']
    #allocation4 [shape = 's32[2]{0}', space=sflag, size = 0x8, scoped, tag = 'scoped memory for conv_qnet_forward.1']
    %14 = vsyncpa [#allocation4], 0
    %s15 = scalar_lea.sflag [#allocation4], 1
    %16 = vsyncpa %s15, 0
    loop: start=0, step=1, limit=4
    $region2: #{conv_qnet_forward.1} parent=1 // loop_pre_header
      _
    $region3: #{conv_qnet_forward.1} parent=1 // loop_header
      %s18 = sphi 0, %s22
      %p19 = scmp.ge.s32.totalorder %s18, 4
      %s28 = sphi 0, %s30
      %s31 = sphi 0, %s28
      %s32 = sphi 0, %s31
      %s48 = sphi 0, %s32
      %s52 = sphi 0, %s52
      %s54 = sphi 0, %s52
      %s55 = sphi 0, %s54
      %s69 = sphi 0, %s55
      %s73 = sphi 0, %s73
      %s75 = sphi 0, %s73
      %s76 = sphi 0, %s75
      %s90 = sphi 0, %s76
      %s94 = sphi 0, %s94
      %s96 = sphi 0, %s94
      %s97 = sphi 0, %s96
      %s111 = sphi 0, %s97
      %s115 = sphi 0, %s115
      %s117 = sphi 0, %s115
      %s118 = sphi 0, %s117
      %s132 = sphi 0, %s118
      %s136 = sphi 0, %s136
      %s138 = sphi 0, %s136
      %s139 = sphi 0, %s138
      %s153 = sphi 0, %s139
      %s157 = sphi 0, %s157
      %s159 = sphi 0, %s157
      %s160 = sphi 0, %s159
      %s174 = sphi 0, %s160
      %s178 = sphi 0, %s178
      %s180 = sphi 0, %s178
      %s181 = sphi 0, %s180
      %s195 = sphi 0, %s181
      %s199 = sphi 0, %s199
      %s201 = sphi 0, %s199
      %s202 = sphi 0, %s201
      %s216 = sphi 0, %s202
      %s222 = sphi 0, %s224
      %s225 = sphi 0, %s222
      %s226 = sphi 0, %s225
      %s242 = sphi 0, %s226
    $region4: #{conv_qnet_forward.1} parent=1 // loop_header_branch
      %21 = sbr.rel (%p19) target = $region8
    $region5: #{conv_qnet_forward.1} parent=1 // loop_body
      %s23 = ssub.s32 %s18, 1
      %s24 = ssub.s32 %s18, 2
      %s25 = sadd.s32 %s18, 1
      %s26 = ssub.s32 %s18, %s25
      %p27 = scmp.eq.s32.totalorder %s26, 0
      %s29 = sadd.s32 %s28, 1
      %s30 = scalar_select %p27, %s28, %s29
      %p33 = pneg %p27
      %p34 = scmp.eq.s32.totalorder %s18, 1
      %p35 = por %p33, %p34
      %p36 = scmp.ne.s32.totalorder %s28, %s31
      %p37 = scmp.eq.s32.totalorder %s18, 0
      %p38 = por %p36, %p37
      %p39 = scmp.ne.s32.totalorder %s28, %s31
      %p40 = scmp.eq.s32.totalorder %s23, 1
      %p41 = por %p39, %p40
      %p42 = scmp.ne.s32.totalorder %s31, %s32
      %p43 = scmp.eq.s32.totalorder %s23, 0
      %p44 = por %p42, %p43
      %p45 = scmp.ne.s32.totalorder %s31, %s32
      %p46 = scmp.eq.s32.totalorder %s24, 1
      %p47 = por %p45, %p46
      %p49 = scmp.ne.s32.totalorder %s32, %s48
      %p50 = scmp.eq.s32.totalorder %s24, 0
      %p51 = por %p49, %p50
      %s53 = sadd.s32 %s52, 1
      %p56 = scmp.eq.s32.totalorder %s18, 1
      %p57 = scmp.ne.s32.totalorder %s52, %s54
      %p58 = scmp.eq.s32.totalorder %s18, 0
      %p59 = por %p57, %p58
      %p60 = scmp.ne.s32.totalorder %s52, %s54
      %p61 = scmp.eq.s32.totalorder %s23, 1
      %p62 = por %p60, %p61
      %p63 = scmp.ne.s32.totalorder %s54, %s55
      %p64 = scmp.eq.s32.totalorder %s23, 0
      %p65 = por %p63, %p64
      %p66 = scmp.ne.s32.totalorder %s54, %s55
      %p67 = scmp.eq.s32.totalorder %s24, 1
      %p68 = por %p66, %p67
      %p70 = scmp.ne.s32.totalorder %s55, %s69
      %p71 = scmp.eq.s32.totalorder %s24, 0
      %p72 = por %p70, %p71
      %s74 = sadd.s32 %s73, 1
      %p77 = scmp.eq.s32.totalorder %s18, 1
      %p78 = scmp.ne.s32.totalorder %s73, %s75
      %p79 = scmp.eq.s32.totalorder %s18, 0
      %p80 = por %p78, %p79
      %p81 = scmp.ne.s32.totalorder %s73, %s75
      %p82 = scmp.eq.s32.totalorder %s23, 1
      %p83 = por %p81, %p82
      %p84 = scmp.ne.s32.totalorder %s75, %s76
      %p85 = scmp.eq.s32.totalorder %s23, 0
      %p86 = por %p84, %p85
      %p87 = scmp.ne.s32.totalorder %s75, %s76
      %p88 = scmp.eq.s32.totalorder %s24, 1
      %p89 = por %p87, %p88
      %p91 = scmp.ne.s32.totalorder %s76, %s90
      %p92 = scmp.eq.s32.totalorder %s24, 0
      %p93 = por %p91, %p92
      %s95 = sadd.s32 %s94, 1
      %p98 = scmp.eq.s32.totalorder %s18, 1
      %p99 = scmp.ne.s32.totalorder %s94, %s96
      %p100 = scmp.eq.s32.totalorder %s18, 0
      %p101 = por %p99, %p100
      %p102 = scmp.ne.s32.totalorder %s94, %s96
      %p103 = scmp.eq.s32.totalorder %s23, 1
      %p104 = por %p102, %p103
      %p105 = scmp.ne.s32.totalorder %s96, %s97
      %p106 = scmp.eq.s32.totalorder %s23, 0
      %p107 = por %p105, %p106
      %p108 = scmp.ne.s32.totalorder %s96, %s97
      %p109 = scmp.eq.s32.totalorder %s24, 1
      %p110 = por %p108, %p109
      %p112 = scmp.ne.s32.totalorder %s97, %s111
      %p113 = scmp.eq.s32.totalorder %s24, 0
      %p114 = por %p112, %p113
      %s116 = sadd.s32 %s115, 1
      %p119 = scmp.eq.s32.totalorder %s18, 1
      %p120 = scmp.ne.s32.totalorder %s115, %s117
      %p121 = scmp.eq.s32.totalorder %s18, 0
      %p122 = por %p120, %p121
      %p123 = scmp.ne.s32.totalorder %s115, %s117
      %p124 = scmp.eq.s32.totalorder %s23, 1
      %p125 = por %p123, %p124
      %p126 = scmp.ne.s32.totalorder %s117, %s118
      %p127 = scmp.eq.s32.totalorder %s23, 0
      %p128 = por %p126, %p127
      %p129 = scmp.ne.s32.totalorder %s117, %s118
      %p130 = scmp.eq.s32.totalorder %s24, 1
      %p131 = por %p129, %p130
      %p133 = scmp.ne.s32.totalorder %s118, %s132
      %p134 = scmp.eq.s32.totalorder %s24, 0
      %p135 = por %p133, %p134
      %s137 = sadd.s32 %s136, 1
      %p140 = scmp.eq.s32.totalorder %s18, 1
      %p141 = scmp.ne.s32.totalorder %s136, %s138
      %p142 = scmp.eq.s32.totalorder %s18, 0
      %p143 = por %p141, %p142
      %p144 = scmp.ne.s32.totalorder %s136, %s138
      %p145 = scmp.eq.s32.totalorder %s23, 1
      %p146 = por %p144, %p145
      %p147 = scmp.ne.s32.totalorder %s138, %s139
      %p148 = scmp.eq.s32.totalorder %s23, 0
      %p149 = por %p147, %p148
      %p150 = scmp.ne.s32.totalorder %s138, %s139
      %p151 = scmp.eq.s32.totalorder %s24, 1
      %p152 = por %p150, %p151
      %p154 = scmp.ne.s32.totalorder %s139, %s153
      %p155 = scmp.eq.s32.totalorder %s24, 0
      %p156 = por %p154, %p155
      %s158 = sadd.s32 %s157, 1
      %p161 = scmp.eq.s32.totalorder %s18, 1
      %p162 = scmp.ne.s32.totalorder %s157, %s159
      %p163 = scmp.eq.s32.totalorder %s18, 0
      %p164 = por %p162, %p163
      %p165 = scmp.ne.s32.totalorder %s157, %s159
      %p166 = scmp.eq.s32.totalorder %s23, 1
      %p167 = por %p165, %p166
      %p168 = scmp.ne.s32.totalorder %s159, %s160
      %p169 = scmp.eq.s32.totalorder %s23, 0
      %p170 = por %p168, %p169
      %p171 = scmp.ne.s32.totalorder %s159, %s160
      %p172 = scmp.eq.s32.totalorder %s24, 1
      %p173 = por %p171, %p172
      %p175 = scmp.ne.s32.totalorder %s160, %s174
      %p176 = scmp.eq.s32.totalorder %s24, 0
      %p177 = por %p175, %p176
      %s179 = sadd.s32 %s178, 1
      %p182 = scmp.eq.s32.totalorder %s18, 1
      %p183 = scmp.ne.s32.totalorder %s178, %s180
      %p184 = scmp.eq.s32.totalorder %s18, 0
      %p185 = por %p183, %p184
      %p186 = scmp.ne.s32.totalorder %s178, %s180
      %p187 = scmp.eq.s32.totalorder %s23, 1
      %p188 = por %p186, %p187
      %p189 = scmp.ne.s32.totalorder %s180, %s181
      %p190 = scmp.eq.s32.totalorder %s23, 0
      %p191 = por %p189, %p190
      %p192 = scmp.ne.s32.totalorder %s180, %s181
      %p193 = scmp.eq.s32.totalorder %s24, 1
      %p194 = por %p192, %p193
      %p196 = scmp.ne.s32.totalorder %s181, %s195
      %p197 = scmp.eq.s32.totalorder %s24, 0
      %p198 = por %p196, %p197
      %s200 = sadd.s32 %s199, 1
      %p203 = scmp.eq.s32.totalorder %s18, 1
      %p204 = scmp.ne.s32.totalorder %s199, %s201
      %p205 = scmp.eq.s32.totalorder %s18, 0
      %p206 = por %p204, %p205
      %p207 = scmp.ne.s32.totalorder %s199, %s201
      %p208 = scmp.eq.s32.totalorder %s23, 1
      %p209 = por %p207, %p208
      %p210 = scmp.ne.s32.totalorder %s201, %s202
      %p211 = scmp.eq.s32.totalorder %s23, 0
      %p212 = por %p210, %p211
      %p213 = scmp.ne.s32.totalorder %s201, %s202
      %p214 = scmp.eq.s32.totalorder %s24, 1
      %p215 = por %p213, %p214
      %p217 = scmp.ne.s32.totalorder %s202, %s216
      %p218 = scmp.eq.s32.totalorder %s24, 0
      %p219 = por %p217, %p218
      %s220 = ssub.s32 %s18, %s25
      %p221 = scmp.eq.s32.totalorder %s220, 0
      %s223 = sadd.s32 %s222, 1
      %s224 = scalar_select %p221, %s222, %s223
      %p227 = pneg %p221
      %p228 = scmp.eq.s32.totalorder %s18, 1
      %p229 = por %p227, %p228
      %p230 = scmp.ne.s32.totalorder %s222, %s225
      %p231 = scmp.eq.s32.totalorder %s18, 0
      %p232 = por %p230, %p231
      %p233 = scmp.ne.s32.totalorder %s222, %s225
      %p234 = scmp.eq.s32.totalorder %s23, 1
      %p235 = por %p233, %p234
      %p236 = scmp.ne.s32.totalorder %s225, %s226
      %p237 = scmp.eq.s32.totalorder %s23, 0
      %p238 = por %p236, %p237
      %p239 = scmp.ne.s32.totalorder %s225, %s226
      %p240 = scmp.eq.s32.totalorder %s24, 1
      %p241 = por %p239, %p240
      %p243 = scmp.ne.s32.totalorder %s226, %s242
      %p244 = scmp.eq.s32.totalorder %s24, 0
      %p245 = por %p243, %p244
      %p246 = scmp.le.s32.totalorder 1, %s18
      %p247 = scmp.lt.s32.totalorder %s18, 3
      %p248 = pnand %p246, %p247
      %p249 = pneg %p248
      // Predicated region
      $region9: #{conv_qnet_forward.1} parent=5 // pred_check
        _
      $region10: #{conv_qnet_forward.1} parent=5 // pred_check_branch
        %251 = sbr.rel (%p248) target = $region12
      $region11: #{conv_qnet_forward.1} parent=5 // pred_region
        %s252 = ssub.s32 %s18, 1
        // Predicated region
        $region13: #{conv_qnet_forward.1} parent=11 // pred_check
          %p253 = pneg %p65
        $region14: #{conv_qnet_forward.1} parent=11 // pred_check_branch
          %255 = sbr.rel (%p253) target = $region16
        $region15: #{conv_qnet_forward.1} parent=11 // pred_region
          _
        $region16: #{conv_qnet_forward.1} parent=11 // pred_fallthru
          _
        // Predicated region
        $region17: #{conv_qnet_forward.1} parent=11 // pred_check
          %p256 = pneg %p86
        $region18: #{conv_qnet_forward.1} parent=11 // pred_check_branch
          %258 = sbr.rel (%p256) target = $region20
        $region19: #{conv_qnet_forward.1} parent=11 // pred_region
          _
        $region20: #{conv_qnet_forward.1} parent=11 // pred_fallthru
          _
        // Predicated region
        $region21: #{conv_qnet_forward.1} parent=11 // pred_check
          %p259 = pneg %p107
        $region22: #{conv_qnet_forward.1} parent=11 // pred_check_branch
          %261 = sbr.rel (%p259) target = $region24
        $region23: #{conv_qnet_forward.1} parent=11 // pred_region
          _
        $region24: #{conv_qnet_forward.1} parent=11 // pred_fallthru
          _
        // Predicated region
        $region25: #{conv_qnet_forward.1} parent=11 // pred_check
          %p262 = pneg %p128
        $region26: #{conv_qnet_forward.1} parent=11 // pred_check_branch
          %264 = sbr.rel (%p262) target = $region28
        $region27: #{conv_qnet_forward.1} parent=11 // pred_region
          _
        $region28: #{conv_qnet_forward.1} parent=11 // pred_fallthru
          _
        // Predicated region
        $region29: #{conv_qnet_forward.1} parent=11 // pred_check
          %p265 = pneg %p149
        $region30: #{conv_qnet_forward.1} parent=11 // pred_check_branch
          %267 = sbr.rel (%p265) target = $region32
        $region31: #{conv_qnet_forward.1} parent=11 // pred_region
          _
        $region32: #{conv_qnet_forward.1} parent=11 // pred_fallthru
          _
        // Predicated region
        $region33: #{conv_qnet_forward.1} parent=11 // pred_check
          %p268 = pneg %p170
        $region34: #{conv_qnet_forward.1} parent=11 // pred_check_branch
          %270 = sbr.rel (%p268) target = $region36
        $region35: #{conv_qnet_forward.1} parent=11 // pred_region
          _
        $region36: #{conv_qnet_forward.1} parent=11 // pred_fallthru
          _
        // Predicated region
        $region37: #{conv_qnet_forward.1} parent=11 // pred_check
          %p271 = pneg %p191
        $region38: #{conv_qnet_forward.1} parent=11 // pred_check_branch
          %273 = sbr.rel (%p271) target = $region40
        $region39: #{conv_qnet_forward.1} parent=11 // pred_region
          _
        $region40: #{conv_qnet_forward.1} parent=11 // pred_fallthru
          _
        // Predicated region
        $region41: #{conv_qnet_forward.1} parent=11 // pred_check
          %p274 = pneg %p212
        $region42: #{conv_qnet_forward.1} parent=11 // pred_check_branch
          %276 = sbr.rel (%p274) target = $region44
        $region43: #{conv_qnet_forward.1} parent=11 // pred_region
          _
        $region44: #{conv_qnet_forward.1} parent=11 // pred_fallthru
          _
      $region12: #{conv_qnet_forward.1} parent=5 // pred_fallthru
        _
      %p277 = scmp.lt.s32.totalorder %s18, 2
      // Predicated region
      $region45: #{conv_qnet_forward.1} parent=5 // pred_check
        %p278 = pneg %p277
      $region46: #{conv_qnet_forward.1} parent=5 // pred_check_branch
        %280 = sbr.rel (%p278) target = $region48
      $region47: #{conv_qnet_forward.1} parent=5 // pred_region
        // Predicated region
        $region49: #{conv_qnet_forward.1} parent=47 // pred_check
          %p281 = pneg %p38
        $region50: #{conv_qnet_forward.1} parent=47 // pred_check_branch
          %283 = sbr.rel (%p281) target = $region52
        $region51: #{conv_qnet_forward.1} parent=47 // pred_region
          %p284 = scmp.lt.s32.totalorder %s18, 1
          %s285 = scalar_select %p284, %s18, 1
          %s286 = smul.addr %s285, 82
          %s287 = smul.addr %s286, 8
          %s288 = scalar_lea.vmem %s0, %s287
        $region52: #{conv_qnet_forward.1} parent=47 // pred_fallthru
          _
      $region48: #{conv_qnet_forward.1} parent=5 // pred_fallthru
        _
      %p289 = scmp.le.s32.totalorder 1, %s18
      %p290 = scmp.lt.s32.totalorder %s18, 3
      %p291 = pnand %p289, %p290
      %p292 = pneg %p291
      // Predicated region
      $region53: #{conv_qnet_forward.1} parent=5 // pred_check
        _
      $region54: #{conv_qnet_forward.1} parent=5 // pred_check_branch
        %294 = sbr.rel (%p291) target = $region56
      $region55: #{conv_qnet_forward.1} parent=5 // pred_region
        %s295 = ssub.s32 %s18, 1
        %p296 = scmp.lt.s32.totalorder %s23, 1
        %s297 = scalar_select %p296, %s23, 1
        %s298 = smul.addr %s297, 82
        %s299 = smul.addr %s298, 8
        %s300 = scalar_lea.vmem %s0, %s299
        %p301 = pneg %p44
        %p302 = pneg %p41
        %p303 = pneg %p65
        %p304 = pneg %p62
        %p305 = pneg %p86
        %p306 = pneg %p83
        %p307 = pneg %p107
        %p308 = pneg %p104
        %p309 = pneg %p128
        %p310 = pneg %p125
        %p311 = pneg %p149
        %p312 = pneg %p146
        %p313 = pneg %p170
        %p314 = pneg %p167
        %p315 = pneg %p191
        %p316 = pneg %p188
        %p317 = pneg %p212
        %p318 = pneg %p209
        %p319 = pneg %p238
        %p320 = pneg %p235
        %s321 = sand.u32 %s225, 1
        %s322 = scalar_lea.sflag [#allocation4], %s321
        %s323 = sand.u32 %s225, 1
        %s324 = scalar_lea.vmem [#allocation3], %s323
        %p325 = scmp.lt.s32.totalorder %s23, 1
        %s326 = scalar_select %p325, %s23, 1
        %s327 = smul.addr %s326, 82
        %s328 = smul.addr %s327, 8
        %s329 = scalar_lea.vmem %s0, %s328
        %v330 = vld [vmem:[%s329] sm:$0xff]
        %v331 = vld [vmem:[%s329 + $0x8] sm:$0xff]
        %v332 = vld [vmem:[%s329 + $0x10] sm:$0xff]
        %v333 = vld [vmem:[%s329 + $0x18] sm:$0xff]
        %v334 = vld [vmem:[%s329 + $0x20] sm:$0xff]
        %v335 = vld [vmem:[%s329 + $0x28] sm:$0xff]
        %v336 = vld [vmem:[%s329 + $0x30] sm:$0xff]
        %v337 = vld [vmem:[%s329 + $0x38] sm:$0xff]
        %v338 = vld [vmem:[%s329 + $0x40] sm:$0xff]
        %v339 = vld [vmem:[%s329 + $0x48] sm:$0xff]
        %v340 = vld [vmem:[%s329 + $0x50] sm:$0xff]
        %v341 = vld [vmem:[%s329 + $0x58] sm:$0xff]
        %v342 = vld [vmem:[%s329 + $0x60] sm:$0xff]
        %v343 = vld [vmem:[%s329 + $0x68] sm:$0xff]
        %v344 = vld [vmem:[%s329 + $0x70] sm:$0xff]
        %v345 = vld [vmem:[%s329 + $0x78] sm:$0xff]
        %v346 = vld [vmem:[%s329 + $0x80] sm:$0xff]
        %v347 = vld [vmem:[%s329 + $0x88] sm:$0xff]
        %v348 = vld [vmem:[%s329 + $0x90] sm:$0xff]
        %v349 = vld [vmem:[%s329 + $0x98] sm:$0xff]
        %v350 = vld [vmem:[%s329 + $0xa0] sm:$0xff]
        %v351 = vld [vmem:[%s329 + $0xa8] sm:$0xff]
        %v352 = vld [vmem:[%s329 + $0xb0] sm:$0xff]
        %v353 = vld [vmem:[%s329 + $0xb8] sm:$0xff]
        %v354 = vld [vmem:[%s329 + $0xc0] sm:$0xff]
        %v355 = vld [vmem:[%s329 + $0xc8] sm:$0xff]
        %v356 = vld [vmem:[%s329 + $0xd0] sm:$0xff]
        %v357 = vld [vmem:[%s329 + $0xd8] sm:$0xff]
        %v358 = vld [vmem:[%s329 + $0xe0] sm:$0xff]
        %v359 = vld [vmem:[%s329 + $0xe8] sm:$0xff]
        %v360 = vld [vmem:[%s329 + $0xf0] sm:$0xff]
        %v361 = vld [vmem:[%s329 + $0xf8] sm:$0xff]
        %v362 = vld [vmem:[%s329 + $0x100] sm:$0xff]
        %v363 = vld [vmem:[%s329 + $0x108] sm:$0xff]
        %v364 = vld [vmem:[%s329 + $0x110] sm:$0xff]
        %v365 = vld [vmem:[%s329 + $0x118] sm:$0xff]
        %v366 = vld [vmem:[%s329 + $0x120] sm:$0xff]
        %v367 = vld [vmem:[%s329 + $0x128] sm:$0xff]
        %v368 = vld [vmem:[%s329 + $0x130] sm:$0xff]
        %v369 = vld [vmem:[%s329 + $0x138] sm:$0xff]
        %v370 = vld [vmem:[%s329 + $0x140] sm:$0xff]
        %v371 = vld [vmem:[%s329 + $0x148] sm:$0xff]
        %v372 = vld [vmem:[%s329 + $0x150] sm:$0xff]
        %v373 = vld [vmem:[%s329 + $0x158] sm:$0xff]
        %v374 = vld [vmem:[%s329 + $0x160] sm:$0xff]
        %v375 = vld [vmem:[%s329 + $0x168] sm:$0xff]
        %v376 = vld [vmem:[%s329 + $0x170] sm:$0xff]
        %v377 = vld [vmem:[%s329 + $0x178] sm:$0xff]
        %v378 = vld [vmem:[%s329 + $0x180] sm:$0xff]
        %v379 = vld [vmem:[%s329 + $0x188] sm:$0xff]
        %v380 = vld [vmem:[%s329 + $0x190] sm:$0xff]
        %v381 = vld [vmem:[%s329 + $0x198] sm:$0xff]
        %v382 = vld [vmem:[%s329 + $0x1a0] sm:$0xff]
        %v383 = vld [vmem:[%s329 + $0x1a8] sm:$0xff]
        %v384 = vld [vmem:[%s329 + $0x1b0] sm:$0xff]
        %v385 = vld [vmem:[%s329 + $0x1b8] sm:$0xff]
        %v386 = vld [vmem:[%s329 + $0x1c0] sm:$0xff]
        %v387 = vld [vmem:[%s329 + $0x1c8] sm:$0xff]
        %v388 = vld [vmem:[%s329 + $0x1d0] sm:$0xff]
        %v389 = vld [vmem:[%s329 + $0x1d8] sm:$0xff]
        %v390 = vld [vmem:[%s329 + $0x1e0] sm:$0xff]
        %v391 = vld [vmem:[%s329 + $0x1e8] sm:$0xff]
        %v392 = vld [vmem:[%s329 + $0x1f0] sm:$0xff]
        %v393 = vld [vmem:[%s329 + $0x1f8] sm:$0xff]
        %v394 = vld [vmem:[%s329 + $0x200] sm:$0xff]
        %v395 = vld [vmem:[%s329 + $0x208] sm:$0xff]
        %v396 = vld [vmem:[%s329 + $0x210] sm:$0xff]
        %v397 = vld [vmem:[%s329 + $0x218] sm:$0xff]
        %v398 = vld [vmem:[%s329 + $0x220] sm:$0xff]
        %v399 = vld [vmem:[%s329 + $0x228] sm:$0xff]
        %v400 = vld [vmem:[%s329 + $0x230] sm:$0xff]
        %v401 = vld [vmem:[%s329 + $0x238] sm:$0xff]
        %v402 = vld [vmem:[%s329 + $0x240] sm:$0xff]
        %v403 = vld [vmem:[%s329 + $0x248] sm:$0xff]
        %v404 = vld [vmem:[%s329 + $0x250] sm:$0xff]
        %v405 = vld [vmem:[%s329 + $0x258] sm:$0xff]
        %v406 = vld [vmem:[%s329 + $0x260] sm:$0xff]
        %v407 = vld [vmem:[%s329 + $0x268] sm:$0xff]
        %v408 = vld [vmem:[%s329 + $0x270] sm:$0xff]
        %v409 = vld [vmem:[%s329 + $0x278] sm:$0xff]
        %v410 = vld [vmem:[%s329 + $0x280] sm:$0xf]
        %v411 = vld [vmem:[%s329 + $0x288] sm:$0xf]
        %v412 = vld [vmem:[%s1] sm:$0xff]
        %v413 = vld [vmem:[%s1 + $0x8] sm:$0xff]
        %v414 = vld [vmem:[%s1 + $0x10] sm:$0xff]
        %v415 = vld [vmem:[%s1 + $0x18] sm:$0xff]
        %v416 = vld [vmem:[%s1 + $0x20] sm:$0xff]
        %v417 = vld [vmem:[%s1 + $0x28] sm:$0xff]
        %v418 = vld [vmem:[%s1 + $0x30] sm:$0xff]
        %v419 = vld [vmem:[%s1 + $0x38] sm:$0xff]
        %v420 = vld [vmem:[%s1 + $0x40] sm:$0xff]
        %v421 = vld [vmem:[%s1 + $0x48] sm:$0xff]
        %v422 = vld [vmem:[%s1 + $0x50] sm:$0xff]
        %v423 = vld [vmem:[%s1 + $0x58] sm:$0xff]
        %v424 = vld [vmem:[%s1 + $0x60] sm:$0xff]
        %v425 = vld [vmem:[%s1 + $0x68] sm:$0xff]
        %v426 = vld [vmem:[%s1 + $0x70] sm:$0xff]
        %v427 = vld [vmem:[%s1 + $0x78] sm:$0xff]
        %v428 = vld [vmem:[%s1 + $0x80] sm:$0xff]
        %v429 = vld [vmem:[%s1 + $0x88] sm:$0xff]
        %v430 = vld [vmem:[%s1 + $0x90] sm:$0xff]
        %v431 = vld [vmem:[%s1 + $0x98] sm:$0xff]
        %v432 = vld [vmem:[%s1 + $0xa0] sm:$0xff]
        %v433 = vld [vmem:[%s1 + $0xa8] sm:$0xff]
        %v434 = vld [vmem:[%s1 + $0xb0] sm:$0xff]
        %v435 = vld [vmem:[%s1 + $0xb8] sm:$0xff]
        %v436 = vld [vmem:[%s1 + $0xc0] sm:$0xff]
        %v437 = vld [vmem:[%s1 + $0xc8] sm:$0xff]
        %v438 = vld [vmem:[%s1 + $0xd0] sm:$0xff]
        %v439 = vld [vmem:[%s1 + $0xd8] sm:$0xff]
        %v440 = vld [vmem:[%s1 + $0xe0] sm:$0xff]
        %v441 = vld [vmem:[%s1 + $0xe8] sm:$0xff]
        %v442 = vld [vmem:[%s1 + $0xf0] sm:$0xff]
        %v443 = vld [vmem:[%s1 + $0xf8] sm:$0xff]
        %444 = vmatprep.subr.mxu0 0.0
        %445 = vmatpush1.msra.mxu0 %v427
        %446 = vmatprep.subr.mxu0 0.0
        %447 = vmatpush1.msra.mxu0 %v426
        %448 = vmatprep.subr.mxu0 0.0
        %449 = vmatpush1.msra.mxu0 %v425
        %450 = vmatprep.subr.mxu0 0.0
        %451 = vmatpush1.msra.mxu0 %v424
        %452 = vmatprep.subr.mxu0 0.0
        %453 = vmatpush1.msra.mxu0 %v423
        %454 = vmatprep.subr.mxu0 0.0
        %455 = vmatpush1.msra.mxu0 %v422
        %456 = vmatprep.subr.mxu0 0.0
        %457 = vmatpush1.msra.mxu0 %v421
        %458 = vmatprep.subr.mxu0 0.0
        %459 = vmatpush1.msra.mxu0 %v420
        %460 = vmatprep.subr.mxu0 0.0
        %461 = vmatpush1.msra.mxu0 %v419
        %462 = vmatprep.subr.mxu0 0.0
        %463 = vmatpush1.msra.mxu0 %v418
        %464 = vmatprep.subr.mxu0 0.0
        %465 = vmatpush1.msra.mxu0 %v417
        %466 = vmatprep.subr.mxu0 0.0
        %467 = vmatpush1.msra.mxu0 %v416
        %468 = vmatprep.subr.mxu0 0.0
        %469 = vmatpush1.msra.mxu0 %v415
        %470 = vmatprep.subr.mxu0 0.0
        %471 = vmatpush1.msra.mxu0 %v414
        %472 = vmatprep.subr.mxu0 0.0
        %473 = vmatpush1.msra.mxu0 %v413
        %474 = vmatprep.subr.mxu0 0.0
        %475 = vmatpush1.msra.mxu0 %v412
        %476 = vmatprep.subr.mxu0 0.0
        %477 = vmatpush2.msra.mxu0 %v443
        %478 = vmatprep.subr.mxu0 0.0
        %479 = vmatpush2.msra.mxu0 %v442
        %480 = vmatprep.subr.mxu0 0.0
        %481 = vmatpush2.msra.mxu0 %v441
        %482 = vmatprep.subr.mxu0 0.0
        %483 = vmatpush2.msra.mxu0 %v440
        %484 = vmatprep.subr.mxu0 0.0
        %485 = vmatpush2.msra.mxu0 %v439
        %486 = vmatprep.subr.mxu0 0.0
        %487 = vmatpush2.msra.mxu0 %v438
        %488 = vmatprep.subr.mxu0 0.0
        %489 = vmatpush2.msra.mxu0 %v437
        %490 = vmatprep.subr.mxu0 0.0
        %491 = vmatpush2.msra.mxu0 %v436
        %492 = vmatprep.subr.mxu0 0.0
        %493 = vmatpush2.msra.mxu0 %v435
        %494 = vmatprep.subr.mxu0 0.0
        %495 = vmatpush2.msra.mxu0 %v434
        %496 = vmatprep.subr.mxu0 0.0
        %497 = vmatpush2.msra.mxu0 %v433
        %498 = vmatprep.subr.mxu0 0.0
        %499 = vmatpush2.msra.mxu0 %v432
        %500 = vmatprep.subr.mxu0 0.0
        %501 = vmatpush2.msra.mxu0 %v431
        %502 = vmatprep.subr.mxu0 0.0
        %503 = vmatpush2.msra.mxu0 %v430
        %504 = vmatprep.subr.mxu0 0.0
        %505 = vmatpush2.msra.mxu0 %v429
        %506 = vmatprep.subr.mxu0 0.0
        %507 = vmatpush2.msra.mxu0 %v428
        %508 = vmatprep.mubr.f32.mxu0 %v331
        %509 = vmatmul.mubr.f32.gmra.mxu0 %v330
        %v510 = vpop.f32.mrf.mxu0
        %v511 = vadd.f32 0.0, %v510
        %v512 = vpop.f32.mrf.mxu0
        %513 = vmatprep.mubr.f32.mxu0 %v333
        %514 = vmatmul.mubr.f32.gmra.mxu0 %v332
        %v515 = vpop.f32.mrf.mxu0
        %v516 = vadd.f32 0.0, %v515
        %v517 = vpop.f32.mrf.mxu0
        %518 = vmatprep.mubr.f32.mxu0 %v335
        %519 = vmatmul.mubr.f32.gmra.mxu0 %v334
        %v520 = vpop.f32.mrf.mxu0
        %v521 = vadd.f32 0.0, %v520
        %v522 = vpop.f32.mrf.mxu0
        %523 = vmatprep.mubr.f32.mxu0 %v337
        %524 = vmatmul.mubr.f32.gmra.mxu0 %v336
        %v525 = vpop.f32.mrf.mxu0
        %v526 = vadd.f32 0.0, %v525
        %v527 = vpop.f32.mrf.mxu0
        %528 = vmatprep.mubr.f32.mxu0 %v339
        %529 = vmatmul.mubr.f32.gmra.mxu0 %v338
        %v530 = vpop.f32.mrf.mxu0
        %v531 = vadd.f32 0.0, %v530
        %v532 = vpop.f32.mrf.mxu0
        %533 = vmatprep.mubr.f32.mxu0 %v341
        %534 = vmatmul.mubr.f32.gmra.mxu0 %v340
        %v535 = vpop.f32.mrf.mxu0
        %v536 = vadd.f32 0.0, %v535
        %v537 = vpop.f32.mrf.mxu0
        %538 = vmatprep.mubr.f32.mxu0 %v343
        %539 = vmatmul.mubr.f32.gmra.mxu0 %v342
        %v540 = vpop.f32.mrf.mxu0
        %v541 = vadd.f32 0.0, %v540
        %v542 = vpop.f32.mrf.mxu0
        %543 = vmatprep.mubr.f32.mxu0 %v345
        %544 = vmatmul.mubr.f32.gmra.mxu0 %v344
        %v545 = vpop.f32.mrf.mxu0
        %v546 = vadd.f32 0.0, %v545
        %v547 = vpop.f32.mrf.mxu0
        %548 = vmatprep.mubr.f32.mxu0 %v347
        %549 = vmatmul.mubr.f32.gmra.mxu0 %v346
        %v550 = vpop.f32.mrf.mxu0
        %v551 = vadd.f32 0.0, %v550
        %v552 = vpop.f32.mrf.mxu0
        %553 = vmatprep.mubr.f32.mxu0 %v349
        %554 = vmatmul.mubr.f32.gmra.mxu0 %v348
        %v555 = vpop.f32.mrf.mxu0
        %v556 = vadd.f32 0.0, %v555
        %v557 = vpop.f32.mrf.mxu0
        %558 = vmatprep.mubr.f32.mxu0 %v351
        %559 = vmatmul.mubr.f32.gmra.mxu0 %v350
        %v560 = vpop.f32.mrf.mxu0
        %v561 = vadd.f32 0.0, %v560
        %v562 = vpop.f32.mrf.mxu0
        %563 = vmatprep.mubr.f32.mxu0 %v353
        %564 = vmatmul.mubr.f32.gmra.mxu0 %v352
        %v565 = vpop.f32.mrf.mxu0
        %v566 = vadd.f32 0.0, %v565
        %v567 = vpop.f32.mrf.mxu0
        %568 = vmatprep.mubr.f32.mxu0 %v355
        %569 = vmatmul.mubr.f32.gmra.mxu0 %v354
        %v570 = vpop.f32.mrf.mxu0
        %v571 = vadd.f32 0.0, %v570
        %v572 = vpop.f32.mrf.mxu0
        %573 = vmatprep.mubr.f32.mxu0 %v357
        %574 = vmatmul.mubr.f32.gmra.mxu0 %v356
        %v575 = vpop.f32.mrf.mxu0
        %v576 = vadd.f32 0.0, %v575
        %v577 = vpop.f32.mrf.mxu0
        %578 = vmatprep.mubr.f32.mxu0 %v359
        %579 = vmatmul.mubr.f32.gmra.mxu0 %v358
        %v580 = vpop.f32.mrf.mxu0
        %v581 = vadd.f32 0.0, %v580
        %v582 = vpop.f32.mrf.mxu0
        %583 = vmatprep.mubr.f32.mxu0 %v361
        %584 = vmatmul.mubr.f32.gmra.mxu0 %v360
        %v585 = vpop.f32.mrf.mxu0
        %v586 = vadd.f32 0.0, %v585
        %v587 = vpop.f32.mrf.mxu0
        %588 = vmatprep.mubr.f32.mxu0 %v363
        %589 = vmatmul.mubr.f32.gmra.mxu0 %v362
        %v590 = vpop.f32.mrf.mxu0
        %v591 = vadd.f32 0.0, %v590
        %v592 = vpop.f32.mrf.mxu0
        %593 = vmatprep.mubr.f32.mxu0 %v365
        %594 = vmatmul.mubr.f32.gmra.mxu0 %v364
        %v595 = vpop.f32.mrf.mxu0
        %v596 = vadd.f32 0.0, %v595
        %v597 = vpop.f32.mrf.mxu0
        %598 = vmatprep.mubr.f32.mxu0 %v367
        %599 = vmatmul.mubr.f32.gmra.mxu0 %v366
        %v600 = vpop.f32.mrf.mxu0
        %v601 = vadd.f32 0.0, %v600
        %v602 = vpop.f32.mrf.mxu0
        %603 = vmatprep.mubr.f32.mxu0 %v369
        %604 = vmatmul.mubr.f32.gmra.mxu0 %v368
        %v605 = vpop.f32.mrf.mxu0
        %v606 = vadd.f32 0.0, %v605
        %v607 = vpop.f32.mrf.mxu0
        %608 = vmatprep.mubr.f32.mxu0 %v371
        %609 = vmatmul.mubr.f32.gmra.mxu0 %v370
        %v610 = vpop.f32.mrf.mxu0
        %v611 = vadd.f32 0.0, %v610
        %v612 = vpop.f32.mrf.mxu0
        %613 = vmatprep.mubr.f32.mxu0 %v373
        %614 = vmatmul.mubr.f32.gmra.mxu0 %v372
        %v615 = vpop.f32.mrf.mxu0
        %v616 = vadd.f32 0.0, %v615
        %v617 = vpop.f32.mrf.mxu0
        %618 = vmatprep.mubr.f32.mxu0 %v375
        %619 = vmatmul.mubr.f32.gmra.mxu0 %v374
        %v620 = vpop.f32.mrf.mxu0
        %v621 = vadd.f32 0.0, %v620
        %v622 = vpop.f32.mrf.mxu0
        %623 = vmatprep.mubr.f32.mxu0 %v377
        %624 = vmatmul.mubr.f32.gmra.mxu0 %v376
        %v625 = vpop.f32.mrf.mxu0
        %v626 = vadd.f32 0.0, %v625
        %v627 = vpop.f32.mrf.mxu0
        %628 = vmatprep.mubr.f32.mxu0 %v379
        %629 = vmatmul.mubr.f32.gmra.mxu0 %v378
        %v630 = vpop.f32.mrf.mxu0
        %v631 = vadd.f32 0.0, %v630
        %v632 = vpop.f32.mrf.mxu0
        %633 = vmatprep.mubr.f32.mxu0 %v381
        %634 = vmatmul.mubr.f32.gmra.mxu0 %v380
        %v635 = vpop.f32.mrf.mxu0
        %v636 = vadd.f32 0.0, %v635
        %v637 = vpop.f32.mrf.mxu0
        %638 = vmatprep.mubr.f32.mxu0 %v383
        %639 = vmatmul.mubr.f32.gmra.mxu0 %v382
        %v640 = vpop.f32.mrf.mxu0
        %v641 = vadd.f32 0.0, %v640
        %v642 = vpop.f32.mrf.mxu0
        %643 = vmatprep.mubr.f32.mxu0 %v385
        %644 = vmatmul.mubr.f32.gmra.mxu0 %v384
        %v645 = vpop.f32.mrf.mxu0
        %v646 = vadd.f32 0.0, %v645
        %v647 = vpop.f32.mrf.mxu0
        %648 = vmatprep.mubr.f32.mxu0 %v387
        %649 = vmatmul.mubr.f32.gmra.mxu0 %v386
        %v650 = vpop.f32.mrf.mxu0
        %v651 = vadd.f32 0.0, %v650
        %v652 = vpop.f32.mrf.mxu0
        %653 = vmatprep.mubr.f32.mxu0 %v389
        %654 = vmatmul.mubr.f32.gmra.mxu0 %v388
        %v655 = vpop.f32.mrf.mxu0
        %v656 = vadd.f32 0.0, %v655
        %v657 = vpop.f32.mrf.mxu0
        %658 = vmatprep.mubr.f32.mxu0 %v391
        %659 = vmatmul.mubr.f32.gmra.mxu0 %v390
        %v660 = vpop.f32.mrf.mxu0
        %v661 = vadd.f32 0.0, %v660
        %v662 = vpop.f32.mrf.mxu0
        %663 = vmatprep.mubr.f32.mxu0 %v393
        %664 = vmatmul.mubr.f32.gmra.mxu0 %v392
        %v665 = vpop.f32.mrf.mxu0
        %v666 = vadd.f32 0.0, %v665
        %v667 = vpop.f32.mrf.mxu0
        %668 = vmatprep.mubr.f32.mxu0 %v395
        %669 = vmatmul.mubr.f32.gmra.mxu0 %v394
        %v670 = vpop.f32.mrf.mxu0
        %v671 = vadd.f32 0.0, %v670
        %v672 = vpop.f32.mrf.mxu0
        %673 = vmatprep.mubr.f32.mxu0 %v397
        %674 = vmatmul.mubr.f32.gmra.mxu0 %v396
        %v675 = vpop.f32.mrf.mxu0
        %v676 = vadd.f32 0.0, %v675
        %v677 = vpop.f32.mrf.mxu0
        %678 = vmatprep.mubr.f32.mxu0 %v399
        %679 = vmatmul.mubr.f32.gmra.mxu0 %v398
        %v680 = vpop.f32.mrf.mxu0
        %v681 = vadd.f32 0.0, %v680
        %v682 = vpop.f32.mrf.mxu0
        %683 = vmatprep.mubr.f32.mxu0 %v401
        %684 = vmatmul.mubr.f32.gmra.mxu0 %v400
        %v685 = vpop.f32.mrf.mxu0
        %v686 = vadd.f32 0.0, %v685
        %v687 = vpop.f32.mrf.mxu0
        %688 = vmatprep.mubr.f32.mxu0 %v403
        %689 = vmatmul.mubr.f32.gmra.mxu0 %v402
        %v690 = vpop.f32.mrf.mxu0
        %v691 = vadd.f32 0.0, %v690
        %v692 = vpop.f32.mrf.mxu0
        %693 = vmatprep.mubr.f32.mxu0 %v405
        %694 = vmatmul.mubr.f32.gmra.mxu0 %v404
        %v695 = vpop.f32.mrf.mxu0
        %v696 = vadd.f32 0.0, %v695
        %v697 = vpop.f32.mrf.mxu0
        %698 = vmatprep.mubr.f32.mxu0 %v407
        %699 = vmatmul.mubr.f32.gmra.mxu0 %v406
        %v700 = vpop.f32.mrf.mxu0
        %v701 = vadd.f32 0.0, %v700
        %v702 = vpop.f32.mrf.mxu0
        %703 = vmatprep.mubr.f32.mxu0 %v409
        %704 = vmatmul.mubr.f32.gmra.mxu0 %v408
        %v705 = vpop.f32.mrf.mxu0
        %v706 = vadd.f32 0.0, %v705
        %v707 = vpop.f32.mrf.mxu0
        %708 = vmatprep.mubr.f32.mxu0 %v411
        %709 = vmatmul.mubr.f32.gmra.mxu0 %v410
        %v710 = vpop.f32.mrf.mxu0
        %v711 = vadd.f32 0.0, %v710
        %v712 = vpop.f32.mrf.mxu0
        %713 = vdwg.mxu0
        %v714 = vmax.f32 %v511, 0.0
        %v715 = vmax.f32 %v516, 0.0
        %v716 = vmax.f32 %v521, 0.0
        %v717 = vmax.f32 %v526, 0.0
        %v718 = vmax.f32 %v531, 0.0
        %v719 = vmax.f32 %v536, 0.0
        %v720 = vmax.f32 %v541, 0.0
        %v721 = vmax.f32 %v546, 0.0
        %v722 = vmax.f32 %v551, 0.0
        %v723 = vmax.f32 %v556, 0.0
        %v724 = vmax.f32 %v561, 0.0
        %v725 = vmax.f32 %v566, 0.0
        %v726 = vmax.f32 %v571, 0.0
        %v727 = vmax.f32 %v576, 0.0
        %v728 = vmax.f32 %v581, 0.0
        %v729 = vmax.f32 %v586, 0.0
        %v730 = vmax.f32 %v591, 0.0
        %v731 = vmax.f32 %v596, 0.0
        %v732 = vmax.f32 %v601, 0.0
        %v733 = vmax.f32 %v606, 0.0
        %v734 = vmax.f32 %v611, 0.0
        %v735 = vmax.f32 %v616, 0.0
        %v736 = vmax.f32 %v621, 0.0
        %v737 = vmax.f32 %v626, 0.0
        %v738 = vmax.f32 %v631, 0.0
        %v739 = vmax.f32 %v636, 0.0
        %v740 = vmax.f32 %v641, 0.0
        %v741 = vmax.f32 %v646, 0.0
        %v742 = vmax.f32 %v651, 0.0
        %v743 = vmax.f32 %v656, 0.0
        %v744 = vmax.f32 %v661, 0.0
        %v745 = vmax.f32 %v666, 0.0
        %v746 = vmax.f32 %v671, 0.0
        %v747 = vmax.f32 %v676, 0.0
        %v748 = vmax.f32 %v681, 0.0
        %v749 = vmax.f32 %v686, 0.0
        %v750 = vmax.f32 %v691, 0.0
        %v751 = vmax.f32 %v696, 0.0
        %v752 = vmax.f32 %v701, 0.0
        %v753 = vmax.f32 %v706, 0.0
        %v754 = vmax.f32 %v711, 0.0
        %v755 = vld [vmem:[%s2] sm:$0xff]
        %v756 = vld [vmem:[%s2 + $0x8] sm:$0xff]
        %v757 = vld [vmem:[%s2 + $0x10] sm:$0xff]
        %v758 = vld [vmem:[%s2 + $0x18] sm:$0xff]
        %v759 = vld [vmem:[%s2 + $0x20] sm:$0xff]
        %v760 = vld [vmem:[%s2 + $0x28] sm:$0xff]
        %v761 = vld [vmem:[%s2 + $0x30] sm:$0xff]
        %v762 = vld [vmem:[%s2 + $0x38] sm:$0xff]
        %v763 = vld [vmem:[%s2 + $0x40] sm:$0xff]
        %v764 = vld [vmem:[%s2 + $0x48] sm:$0xff]
        %v765 = vld [vmem:[%s2 + $0x50] sm:$0xff]
        %v766 = vld [vmem:[%s2 + $0x58] sm:$0xff]
        %v767 = vld [vmem:[%s2 + $0x60] sm:$0xff]
        %v768 = vld [vmem:[%s2 + $0x68] sm:$0xff]
        %v769 = vld [vmem:[%s2 + $0x70] sm:$0xff]
        %v770 = vld [vmem:[%s2 + $0x78] sm:$0xff]
        %v771 = vld [vmem:[%s2 + $0x80] sm:$0xff]
        %v772 = vld [vmem:[%s2 + $0x88] sm:$0xff]
        %v773 = vld [vmem:[%s2 + $0x90] sm:$0xff]
        %v774 = vld [vmem:[%s2 + $0x98] sm:$0xff]
        %v775 = vld [vmem:[%s2 + $0xa0] sm:$0xff]
        %v776 = vld [vmem:[%s2 + $0xa8] sm:$0xff]
        %v777 = vld [vmem:[%s2 + $0xb0] sm:$0xff]
        %v778 = vld [vmem:[%s2 + $0xb8] sm:$0xff]
        %vm779 = vcmask 556032
        %v781 = vsel %vm779, %v757, 0
        %v784 = vsel %vm779, %v760, 0
        %v787 = vsel %vm779, %v763, 0
        %v790 = vsel %vm779, %v766, 0
        %v793 = vsel %vm779, %v769, 0
        %v796 = vsel %vm779, %v772, 0
        %v799 = vsel %vm779, %v775, 0
        %v802 = vsel %vm779, %v778, 0
        %vm804 = vcmask 1043456
        %v806 = vsel %vm804, %v754, 0
        %808 = vmatprep.subr.mxu0 0.0
        %809 = vmatpush1.msra.mxu0 %v729
        %810 = vmatprep.subr.mxu0 0.0
        %811 = vmatpush1.msra.mxu0 %v728
        %812 = vmatprep.subr.mxu0 0.0
        %813 = vmatpush1.msra.mxu0 %v727
        %814 = vmatprep.subr.mxu0 0.0
        %815 = vmatpush1.msra.mxu0 %v726
        %816 = vmatprep.subr.mxu0 0.0
        %817 = vmatpush1.msra.mxu0 %v725
        %818 = vmatprep.subr.mxu0 0.0
        %819 = vmatpush1.msra.mxu0 %v724
        %820 = vmatprep.subr.mxu0 0.0
        %821 = vmatpush1.msra.mxu0 %v723
        %822 = vmatprep.subr.mxu0 0.0
        %823 = vmatpush1.msra.mxu0 %v722
        %824 = vmatprep.subr.mxu0 0.0
        %825 = vmatpush1.msra.mxu0 %v721
        %826 = vmatprep.subr.mxu0 0.0
        %827 = vmatpush1.msra.mxu0 %v720
        %828 = vmatprep.subr.mxu0 0.0
        %829 = vmatpush1.msra.mxu0 %v719
        %830 = vmatprep.subr.mxu0 0.0
        %831 = vmatpush1.msra.mxu0 %v718
        %832 = vmatprep.subr.mxu0 0.0
        %833 = vmatpush1.msra.mxu0 %v717
        %834 = vmatprep.subr.mxu0 0.0
        %835 = vmatpush1.msra.mxu0 %v716
        %836 = vmatprep.subr.mxu0 0.0
        %837 = vmatpush1.msra.mxu0 %v715
        %838 = vmatprep.subr.mxu0 0.0
        %839 = vmatpush1.msra.mxu0 %v714
        %840 = vmatprep.subr.mxu0 0.0
        %841 = vmatpush2.msra.mxu0 %v745
        %842 = vmatprep.subr.mxu0 0.0
        %843 = vmatpush2.msra.mxu0 %v744
        %844 = vmatprep.subr.mxu0 0.0
        %845 = vmatpush2.msra.mxu0 %v743
        %846 = vmatprep.subr.mxu0 0.0
        %847 = vmatpush2.msra.mxu0 %v742
        %848 = vmatprep.subr.mxu0 0.0
        %849 = vmatpush2.msra.mxu0 %v741
        %850 = vmatprep.subr.mxu0 0.0
        %851 = vmatpush2.msra.mxu0 %v740
        %852 = vmatprep.subr.mxu0 0.0
        %853 = vmatpush2.msra.mxu0 %v739
        %854 = vmatprep.subr.mxu0 0.0
        %855 = vmatpush2.msra.mxu0 %v738
        %856 = vmatprep.subr.mxu0 0.0
        %857 = vmatpush2.msra.mxu0 %v737
        %858 = vmatprep.subr.mxu0 0.0
        %859 = vmatpush2.msra.mxu0 %v736
        %860 = vmatprep.subr.mxu0 0.0
        %861 = vmatpush2.msra.mxu0 %v735
        %862 = vmatprep.subr.mxu0 0.0
        %863 = vmatpush2.msra.mxu0 %v734
        %864 = vmatprep.subr.mxu0 0.0
        %865 = vmatpush2.msra.mxu0 %v733
        %866 = vmatprep.subr.mxu0 0.0
        %867 = vmatpush2.msra.mxu0 %v732
        %868 = vmatprep.subr.mxu0 0.0
        %869 = vmatpush2.msra.mxu0 %v731
        %870 = vmatprep.subr.mxu0 0.0
        %871 = vmatpush2.msra.mxu0 %v730
        %872 = vmatprep.mubr.f32.mxu0 %v756
        %873 = vmatmul.mubr.f32.gmra.mxu0 %v755
        %v874 = vpop.f32.mrf.mxu0
        %v875 = vadd.f32 0.0, %v874
        %v876 = vpop.f32.mrf.mxu0
        %877 = vmatprep.mubr.f32.mxu0 %v759
        %878 = vmatmul.mubr.f32.gmra.mxu0 %v758
        %v879 = vpop.f32.mrf.mxu0
        %v880 = vadd.f32 0.0, %v879
        %v881 = vpop.f32.mrf.mxu0
        %882 = vmatprep.mubr.f32.mxu0 %v762
        %883 = vmatmul.mubr.f32.gmra.mxu0 %v761
        %v884 = vpop.f32.mrf.mxu0
        %v885 = vadd.f32 0.0, %v884
        %v886 = vpop.f32.mrf.mxu0
        %887 = vmatprep.mubr.f32.mxu0 %v765
        %888 = vmatmul.mubr.f32.gmra.mxu0 %v764
        %v889 = vpop.f32.mrf.mxu0
        %v890 = vadd.f32 0.0, %v889
        %v891 = vpop.f32.mrf.mxu0
        %892 = vmatprep.mubr.f32.mxu0 %v768
        %893 = vmatmul.mubr.f32.gmra.mxu0 %v767
        %v894 = vpop.f32.mrf.mxu0
        %v895 = vadd.f32 0.0, %v894
        %v896 = vpop.f32.mrf.mxu0
        %897 = vmatprep.mubr.f32.mxu0 %v771
        %898 = vmatmul.mubr.f32.gmra.mxu0 %v770
        %v899 = vpop.f32.mrf.mxu0
        %v900 = vadd.f32 0.0, %v899
        %v901 = vpop.f32.mrf.mxu0
        %902 = vmatprep.mubr.f32.mxu0 %v774
        %903 = vmatmul.mubr.f32.gmra.mxu0 %v773
        %v904 = vpop.f32.mrf.mxu0
        %v905 = vadd.f32 0.0, %v904
        %v906 = vpop.f32.mrf.mxu0
        %907 = vmatprep.mubr.f32.mxu0 %v777
        %908 = vmatmul.mubr.f32.gmra.mxu0 %v776
        %v909 = vpop.f32.mrf.mxu0
        %v910 = vadd.f32 0.0, %v909
        %v911 = vpop.f32.mrf.mxu0
        %912 = vdwg.mxu0
        %913 = vmatprep.subr.mxu0 0.0
        %914 = vmatpush1.msra.mxu0 0.0
        %915 = vmatprep.subr.mxu0 0.0
        %916 = vmatpush1.msra.mxu0 0.0
        %917 = vmatprep.subr.mxu0 0.0
        %918 = vmatpush1.msra.mxu0 0.0
        %919 = vmatprep.subr.mxu0 0.0
        %920 = vmatpush1.msra.mxu0 0.0
        %921 = vmatprep.subr.mxu0 0.0
        %922 = vmatpush1.msra.mxu0 0.0
        %923 = vmatprep.subr.mxu0 0.0
        %924 = vmatpush1.msra.mxu0 0.0
        %925 = vmatprep.subr.mxu0 0.0
        %926 = vmatpush1.msra.mxu0 0.0
        %927 = vmatprep.subr.mxu0 0.0
        %928 = vmatpush1.msra.mxu0 %v806
        %929 = vmatprep.subr.mxu0 0.0
        %930 = vmatpush1.msra.mxu0 %v753
        %931 = vmatprep.subr.mxu0 0.0
        %932 = vmatpush1.msra.mxu0 %v752
        %933 = vmatprep.subr.mxu0 0.0
        %934 = vmatpush1.msra.mxu0 %v751
        %935 = vmatprep.subr.mxu0 0.0
        %936 = vmatpush1.msra.mxu0 %v750
        %937 = vmatprep.subr.mxu0 0.0
        %938 = vmatpush1.msra.mxu0 %v749
        %939 = vmatprep.subr.mxu0 0.0
        %940 = vmatpush1.msra.mxu0 %v748
        %941 = vmatprep.subr.mxu0 0.0
        %942 = vmatpush1.msra.mxu0 %v747
        %943 = vmatprep.subr.mxu0 0.0
        %944 = vmatpush1.msra.mxu0 %v746
        %945 = vmatprep.subr.mxu0 0.0
        %946 = vmatpush2.msra.mxu0 0.0
        %947 = vmatprep.subr.mxu0 0.0
        %948 = vmatpush2.msra.mxu0 0.0
        %949 = vmatprep.subr.mxu0 0.0
        %950 = vmatpush2.msra.mxu0 0.0
        %951 = vmatprep.subr.mxu0 0.0
        %952 = vmatpush2.msra.mxu0 0.0
        %953 = vmatprep.subr.mxu0 0.0
        %954 = vmatpush2.msra.mxu0 0.0
        %955 = vmatprep.subr.mxu0 0.0
        %956 = vmatpush2.msra.mxu0 0.0
        %957 = vmatprep.subr.mxu0 0.0
        %958 = vmatpush2.msra.mxu0 0.0
        %959 = vmatprep.subr.mxu0 0.0
        %960 = vmatpush2.msra.mxu0 0.0
        %961 = vmatprep.subr.mxu0 0.0
        %962 = vmatpush2.msra.mxu0 0.0
        %963 = vmatprep.subr.mxu0 0.0
        %964 = vmatpush2.msra.mxu0 0.0
        %965 = vmatprep.subr.mxu0 0.0
        %966 = vmatpush2.msra.mxu0 0.0
        %967 = vmatprep.subr.mxu0 0.0
        %968 = vmatpush2.msra.mxu0 0.0
        %969 = vmatprep.subr.mxu0 0.0
        %970 = vmatpush2.msra.mxu0 0.0
        %971 = vmatprep.subr.mxu0 0.0
        %972 = vmatpush2.msra.mxu0 0.0
        %973 = vmatprep.subr.mxu0 0.0
        %974 = vmatpush2.msra.mxu0 0.0
        %975 = vmatprep.subr.mxu0 0.0
        %976 = vmatpush2.msra.mxu0 0.0
        %977 = vmatprep.mubr.f32.mxu0 0.0
        %978 = vmatmul.mubr.f32.gmra.mxu0 %v781
        %v979 = vpop.f32.mrf.mxu0
        %v980 = vadd.f32 %v875, %v979
        %v981 = vpop.f32.mrf.mxu0
        %982 = vmatprep.mubr.f32.mxu0 0.0
        %983 = vmatmul.mubr.f32.gmra.mxu0 %v784
        %v984 = vpop.f32.mrf.mxu0
        %v985 = vadd.f32 %v880, %v984
        %v986 = vpop.f32.mrf.mxu0
        %987 = vmatprep.mubr.f32.mxu0 0.0
        %988 = vmatmul.mubr.f32.gmra.mxu0 %v787
        %v989 = vpop.f32.mrf.mxu0
        %v990 = vadd.f32 %v885, %v989
        %v991 = vpop.f32.mrf.mxu0
        %992 = vmatprep.mubr.f32.mxu0 0.0
        %993 = vmatmul.mubr.f32.gmra.mxu0 %v790
        %v994 = vpop.f32.mrf.mxu0
        %v995 = vadd.f32 %v890, %v994
        %v996 = vpop.f32.mrf.mxu0
        %997 = vmatprep.mubr.f32.mxu0 0.0
        %998 = vmatmul.mubr.f32.gmra.mxu0 %v793
        %v999 = vpop.f32.mrf.mxu0
        %v1000 = vadd.f32 %v895, %v999
        %v1001 = vpop.f32.mrf.mxu0
        %1002 = vmatprep.mubr.f32.mxu0 0.0
        %1003 = vmatmul.mubr.f32.gmra.mxu0 %v796
        %v1004 = vpop.f32.mrf.mxu0
        %v1005 = vadd.f32 %v900, %v1004
        %v1006 = vpop.f32.mrf.mxu0
        %1007 = vmatprep.mubr.f32.mxu0 0.0
        %1008 = vmatmul.mubr.f32.gmra.mxu0 %v799
        %v1009 = vpop.f32.mrf.mxu0
        %v1010 = vadd.f32 %v905, %v1009
        %v1011 = vpop.f32.mrf.mxu0
        %1012 = vmatprep.mubr.f32.mxu0 0.0
        %1013 = vmatmul.mubr.f32.gmra.mxu0 %v802
        %v1014 = vpop.f32.mrf.mxu0
        %v1015 = vadd.f32 %v910, %v1014
        %v1016 = vpop.f32.mrf.mxu0
        %1017 = vdwg.mxu0
        %v1018 = vld [vmem:[%s3] sm:$0xff]
        %v1019 = vld [vmem:[%s3 + $0x8] sm:$0xff]
        %s1020 = scalar_lea.vmem %s2, 192
        %v1021 = vld [vmem:[%s1020] sm:$0xff]
        %v1022 = vld [vmem:[%s1020 + $0x8] sm:$0xff]
        %v1023 = vld [vmem:[%s1020 + $0x10] sm:$0xff]
        %v1024 = vld [vmem:[%s1020 + $0x18] sm:$0xff]
        %v1025 = vld [vmem:[%s1020 + $0x20] sm:$0xff]
        %v1026 = vld [vmem:[%s1020 + $0x28] sm:$0xff]
        %v1027 = vld [vmem:[%s1020 + $0x30] sm:$0xff]
        %v1028 = vld [vmem:[%s1020 + $0x38] sm:$0xff]
        %v1029 = vld [vmem:[%s1020 + $0x40] sm:$0xff]
        %v1030 = vld [vmem:[%s1020 + $0x48] sm:$0xff]
        %v1031 = vld [vmem:[%s1020 + $0x50] sm:$0xff]
        %v1032 = vld [vmem:[%s1020 + $0x58] sm:$0xff]
        %v1033 = vld [vmem:[%s1020 + $0x60] sm:$0xff]
        %v1034 = vld [vmem:[%s1020 + $0x68] sm:$0xff]
        %v1035 = vld [vmem:[%s1020 + $0x70] sm:$0xff]
        %v1036 = vld [vmem:[%s1020 + $0x78] sm:$0xff]
        %v1037 = vld [vmem:[%s1020 + $0x80] sm:$0xff]
        %v1038 = vld [vmem:[%s1020 + $0x88] sm:$0xff]
        %v1039 = vld [vmem:[%s1020 + $0x90] sm:$0xff]
        %v1040 = vld [vmem:[%s1020 + $0x98] sm:$0xff]
        %v1041 = vld [vmem:[%s1020 + $0xa0] sm:$0xff]
        %v1042 = vld [vmem:[%s1020 + $0xa8] sm:$0xff]
        %v1043 = vld [vmem:[%s1020 + $0xb0] sm:$0xff]
        %v1044 = vld [vmem:[%s1020 + $0xb8] sm:$0xff]
        %v1046 = vsel %vm779, %v1023, 0
        %v1049 = vsel %vm779, %v1026, 0
        %v1052 = vsel %vm779, %v1029, 0
        %v1055 = vsel %vm779, %v1032, 0
        %v1058 = vsel %vm779, %v1035, 0
        %v1061 = vsel %vm779, %v1038, 0
        %v1064 = vsel %vm779, %v1041, 0
        %v1067 = vsel %vm779, %v1044, 0
        %1069 = vmatprep.subr.mxu0 0.0
        %1070 = vmatpush1.msra.mxu0 %v729
        %1071 = vmatprep.subr.mxu0 0.0
        %1072 = vmatpush1.msra.mxu0 %v728
        %1073 = vmatprep.subr.mxu0 0.0
        %1074 = vmatpush1.msra.mxu0 %v727
        %1075 = vmatprep.subr.mxu0 0.0
        %1076 = vmatpush1.msra.mxu0 %v726
        %1077 = vmatprep.subr.mxu0 0.0
        %1078 = vmatpush1.msra.mxu0 %v725
        %1079 = vmatprep.subr.mxu0 0.0
        %1080 = vmatpush1.msra.mxu0 %v724
        %1081 = vmatprep.subr.mxu0 0.0
        %1082 = vmatpush1.msra.mxu0 %v723
        %1083 = vmatprep.subr.mxu0 0.0
        %1084 = vmatpush1.msra.mxu0 %v722
        %1085 = vmatprep.subr.mxu0 0.0
        %1086 = vmatpush1.msra.mxu0 %v721
        %1087 = vmatprep.subr.mxu0 0.0
        %1088 = vmatpush1.msra.mxu0 %v720
        %1089 = vmatprep.subr.mxu0 0.0
        %1090 = vmatpush1.msra.mxu0 %v719
        %1091 = vmatprep.subr.mxu0 0.0
        %1092 = vmatpush1.msra.mxu0 %v718
        %1093 = vmatprep.subr.mxu0 0.0
        %1094 = vmatpush1.msra.mxu0 %v717
        %1095 = vmatprep.subr.mxu0 0.0
        %1096 = vmatpush1.msra.mxu0 %v716
        %1097 = vmatprep.subr.mxu0 0.0
        %1098 = vmatpush1.msra.mxu0 %v715
        %1099 = vmatprep.subr.mxu0 0.0
        %1100 = vmatpush1.msra.mxu0 %v714
        %1101 = vmatprep.subr.mxu0 0.0
        %1102 = vmatpush2.msra.mxu0 %v745
        %1103 = vmatprep.subr.mxu0 0.0
        %1104 = vmatpush2.msra.mxu0 %v744
        %1105 = vmatprep.subr.mxu0 0.0
        %1106 = vmatpush2.msra.mxu0 %v743
        %1107 = vmatprep.subr.mxu0 0.0
        %1108 = vmatpush2.msra.mxu0 %v742
        %1109 = vmatprep.subr.mxu0 0.0
        %1110 = vmatpush2.msra.mxu0 %v741
        %1111 = vmatprep.subr.mxu0 0.0
        %1112 = vmatpush2.msra.mxu0 %v740
        %1113 = vmatprep.subr.mxu0 0.0
        %1114 = vmatpush2.msra.mxu0 %v739
        %1115 = vmatprep.subr.mxu0 0.0
        %1116 = vmatpush2.msra.mxu0 %v738
        %1117 = vmatprep.subr.mxu0 0.0
        %1118 = vmatpush2.msra.mxu0 %v737
        %1119 = vmatprep.subr.mxu0 0.0
        %1120 = vmatpush2.msra.mxu0 %v736
        %1121 = vmatprep.subr.mxu0 0.0
        %1122 = vmatpush2.msra.mxu0 %v735
        %1123 = vmatprep.subr.mxu0 0.0
        %1124 = vmatpush2.msra.mxu0 %v734
        %1125 = vmatprep.subr.mxu0 0.0
        %1126 = vmatpush2.msra.mxu0 %v733
        %1127 = vmatprep.subr.mxu0 0.0
        %1128 = vmatpush2.msra.mxu0 %v732
        %1129 = vmatprep.subr.mxu0 0.0
        %1130 = vmatpush2.msra.mxu0 %v731
        %1131 = vmatprep.subr.mxu0 0.0
        %1132 = vmatpush2.msra.mxu0 %v730
        %1133 = vmatprep.mubr.f32.mxu0 %v1022
        %1134 = vmatmul.mubr.f32.gmra.mxu0 %v1021
        %v1135 = vpop.f32.mrf.mxu0
        %v1136 = vadd.f32 0.0, %v1135
        %v1137 = vpop.f32.mrf.mxu0
        %1138 = vmatprep.mubr.f32.mxu0 %v1025
        %1139 = vmatmul.mubr.f32.gmra.mxu0 %v1024
        %v1140 = vpop.f32.mrf.mxu0
        %v1141 = vadd.f32 0.0, %v1140
        %v1142 = vpop.f32.mrf.mxu0
        %1143 = vmatprep.mubr.f32.mxu0 %v1028
        %1144 = vmatmul.mubr.f32.gmra.mxu0 %v1027
        %v1145 = vpop.f32.mrf.mxu0
        %v1146 = vadd.f32 0.0, %v1145
        %v1147 = vpop.f32.mrf.mxu0
        %1148 = vmatprep.mubr.f32.mxu0 %v1031
        %1149 = vmatmul.mubr.f32.gmra.mxu0 %v1030
        %v1150 = vpop.f32.mrf.mxu0
        %v1151 = vadd.f32 0.0, %v1150
        %v1152 = vpop.f32.mrf.mxu0
        %1153 = vmatprep.mubr.f32.mxu0 %v1034
        %1154 = vmatmul.mubr.f32.gmra.mxu0 %v1033
        %v1155 = vpop.f32.mrf.mxu0
        %v1156 = vadd.f32 0.0, %v1155
        %v1157 = vpop.f32.mrf.mxu0
        %1158 = vmatprep.mubr.f32.mxu0 %v1037
        %1159 = vmatmul.mubr.f32.gmra.mxu0 %v1036
        %v1160 = vpop.f32.mrf.mxu0
        %v1161 = vadd.f32 0.0, %v1160
        %v1162 = vpop.f32.mrf.mxu0
        %1163 = vmatprep.mubr.f32.mxu0 %v1040
        %1164 = vmatmul.mubr.f32.gmra.mxu0 %v1039
        %v1165 = vpop.f32.mrf.mxu0
        %v1166 = vadd.f32 0.0, %v1165
        %v1167 = vpop.f32.mrf.mxu0
        %1168 = vmatprep.mubr.f32.mxu0 %v1043
        %1169 = vmatmul.mubr.f32.gmra.mxu0 %v1042
        %v1170 = vpop.f32.mrf.mxu0
        %v1171 = vadd.f32 0.0, %v1170
        %v1172 = vpop.f32.mrf.mxu0
        %1173 = vdwg.mxu0
        %1174 = vmatprep.subr.mxu0 0.0
        %1175 = vmatpush1.msra.mxu0 0.0
        %1176 = vmatprep.subr.mxu0 0.0
        %1177 = vmatpush1.msra.mxu0 0.0
        %1178 = vmatprep.subr.mxu0 0.0
        %1179 = vmatpush1.msra.mxu0 0.0
        %1180 = vmatprep.subr.mxu0 0.0
        %1181 = vmatpush1.msra.mxu0 0.0
        %1182 = vmatprep.subr.mxu0 0.0
        %1183 = vmatpush1.msra.mxu0 0.0
        %1184 = vmatprep.subr.mxu0 0.0
        %1185 = vmatpush1.msra.mxu0 0.0
        %1186 = vmatprep.subr.mxu0 0.0
        %1187 = vmatpush1.msra.mxu0 0.0
        %1188 = vmatprep.subr.mxu0 0.0
        %1189 = vmatpush1.msra.mxu0 %v806
        %1190 = vmatprep.subr.mxu0 0.0
        %1191 = vmatpush1.msra.mxu0 %v753
        %1192 = vmatprep.subr.mxu0 0.0
        %1193 = vmatpush1.msra.mxu0 %v752
        %1194 = vmatprep.subr.mxu0 0.0
        %1195 = vmatpush1.msra.mxu0 %v751
        %1196 = vmatprep.subr.mxu0 0.0
        %1197 = vmatpush1.msra.mxu0 %v750
        %1198 = vmatprep.subr.mxu0 0.0
        %1199 = vmatpush1.msra.mxu0 %v749
        %1200 = vmatprep.subr.mxu0 0.0
        %1201 = vmatpush1.msra.mxu0 %v748
        %1202 = vmatprep.subr.mxu0 0.0
        %1203 = vmatpush1.msra.mxu0 %v747
        %1204 = vmatprep.subr.mxu0 0.0
        %1205 = vmatpush1.msra.mxu0 %v746
        %1206 = vmatprep.subr.mxu0 0.0
        %1207 = vmatpush2.msra.mxu0 0.0
        %1208 = vmatprep.subr.mxu0 0.0
        %1209 = vmatpush2.msra.mxu0 0.0
        %1210 = vmatprep.subr.mxu0 0.0
        %1211 = vmatpush2.msra.mxu0 0.0
        %1212 = vmatprep.subr.mxu0 0.0
        %1213 = vmatpush2.msra.mxu0 0.0
        %1214 = vmatprep.subr.mxu0 0.0
        %1215 = vmatpush2.msra.mxu0 0.0
        %1216 = vmatprep.subr.mxu0 0.0
        %1217 = vmatpush2.msra.mxu0 0.0
        %1218 = vmatprep.subr.mxu0 0.0
        %1219 = vmatpush2.msra.mxu0 0.0
        %1220 = vmatprep.subr.mxu0 0.0
        %1221 = vmatpush2.msra.mxu0 0.0
        %1222 = vmatprep.subr.mxu0 0.0
        %1223 = vmatpush2.msra.mxu0 0.0
        %1224 = vmatprep.subr.mxu0 0.0
        %1225 = vmatpush2.msra.mxu0 0.0
        %1226 = vmatprep.subr.mxu0 0.0
        %1227 = vmatpush2.msra.mxu0 0.0
        %1228 = vmatprep.subr.mxu0 0.0
        %1229 = vmatpush2.msra.mxu0 0.0
        %1230 = vmatprep.subr.mxu0 0.0
        %1231 = vmatpush2.msra.mxu0 0.0
        %1232 = vmatprep.subr.mxu0 0.0
        %1233 = vmatpush2.msra.mxu0 0.0
        %1234 = vmatprep.subr.mxu0 0.0
        %1235 = vmatpush2.msra.mxu0 0.0
        %1236 = vmatprep.subr.mxu0 0.0
        %1237 = vmatpush2.msra.mxu0 0.0
        %1238 = vmatprep.mubr.f32.mxu0 0.0
        %1239 = vmatmul.mubr.f32.gmra.mxu0 %v1046
        %v1240 = vpop.f32.mrf.mxu0
        %v1241 = vadd.f32 %v1136, %v1240
        %v1242 = vpop.f32.mrf.mxu0
        %1243 = vmatprep.mubr.f32.mxu0 0.0
        %1244 = vmatmul.mubr.f32.gmra.mxu0 %v1049
        %v1245 = vpop.f32.mrf.mxu0
        %v1246 = vadd.f32 %v1141, %v1245
        %v1247 = vpop.f32.mrf.mxu0
        %1248 = vmatprep.mubr.f32.mxu0 0.0
        %1249 = vmatmul.mubr.f32.gmra.mxu0 %v1052
        %v1250 = vpop.f32.mrf.mxu0
        %v1251 = vadd.f32 %v1146, %v1250
        %v1252 = vpop.f32.mrf.mxu0
        %1253 = vmatprep.mubr.f32.mxu0 0.0
        %1254 = vmatmul.mubr.f32.gmra.mxu0 %v1055
        %v1255 = vpop.f32.mrf.mxu0
        %v1256 = vadd.f32 %v1151, %v1255
        %v1257 = vpop.f32.mrf.mxu0
        %1258 = vmatprep.mubr.f32.mxu0 0.0
        %1259 = vmatmul.mubr.f32.gmra.mxu0 %v1058
        %v1260 = vpop.f32.mrf.mxu0
        %v1261 = vadd.f32 %v1156, %v1260
        %v1262 = vpop.f32.mrf.mxu0
        %1263 = vmatprep.mubr.f32.mxu0 0.0
        %1264 = vmatmul.mubr.f32.gmra.mxu0 %v1061
        %v1265 = vpop.f32.mrf.mxu0
        %v1266 = vadd.f32 %v1161, %v1265
        %v1267 = vpop.f32.mrf.mxu0
        %1268 = vmatprep.mubr.f32.mxu0 0.0
        %1269 = vmatmul.mubr.f32.gmra.mxu0 %v1064
        %v1270 = vpop.f32.mrf.mxu0
        %v1271 = vadd.f32 %v1166, %v1270
        %v1272 = vpop.f32.mrf.mxu0
        %1273 = vmatprep.mubr.f32.mxu0 0.0
        %1274 = vmatmul.mubr.f32.gmra.mxu0 %v1067
        %v1275 = vpop.f32.mrf.mxu0
        %v1276 = vadd.f32 %v1171, %v1275
        %v1277 = vpop.f32.mrf.mxu0
        %1278 = vdwg.mxu0
        %s1279 = scalar_lea.vmem %s3, 16
        %v1280 = vld [vmem:[%s1279] sm:$0xff]
        %v1281 = vld [vmem:[%s1279 + $0x8] sm:$0xff]
        %vm1282 = vcmask 130048
        %v1284 = vsel %vm1282, %v1241, 0
        %v1287 = vsel %vm1282, %v1246, 0
        %v1290 = vsel %vm1282, %v1251, 0
        %v1293 = vsel %vm1282, %v1256, 0
        %v1296 = vsel %vm1282, %v1261, 0
        %v1299 = vsel %vm1282, %v1266, 0
        %v1302 = vsel %vm1282, %v1271, 0
        %v1305 = vsel %vm1282, %v1276, 0
        %1307 = vmatprep.subr.mxu0 0.0
        %1308 = vmatpush1.msra.mxu0 0.0
        %1309 = vmatprep.subr.mxu0 0.0
        %1310 = vmatpush1.msra.mxu0 0.0
        %1311 = vmatprep.subr.mxu0 0.0
        %1312 = vmatpush1.msra.mxu0 0.0
        %1313 = vmatprep.subr.mxu0 0.0
        %1314 = vmatpush1.msra.mxu0 0.0
        %1315 = vmatprep.subr.mxu0 0.0
        %1316 = vmatpush1.msra.mxu0 0.0
        %1317 = vmatprep.subr.mxu0 0.0
        %1318 = vmatpush1.msra.mxu0 0.0
        %1319 = vmatprep.subr.mxu0 0.0
        %1320 = vmatpush1.msra.mxu0 0.0
        %1321 = vmatprep.subr.mxu0 0.0
        %1322 = vmatpush1.msra.mxu0 0.0
        %1323 = vmatprep.subr.mxu0 0.0
        %1324 = vmatpush1.msra.mxu0 0.0
        %1325 = vmatprep.subr.mxu0 0.0
        %1326 = vmatpush1.msra.mxu0 0.0
        %1327 = vmatprep.subr.mxu0 0.0
        %1328 = vmatpush1.msra.mxu0 0.0
        %1329 = vmatprep.subr.mxu0 0.0
        %1330 = vmatpush1.msra.mxu0 0.0
        %1331 = vmatprep.subr.mxu0 0.0
        %1332 = vmatpush1.msra.mxu0 0.0
        %1333 = vmatprep.subr.mxu0 0.0
        %1334 = vmatpush1.msra.mxu0 0.0
        %1335 = vmatprep.subr.mxu0 0.0
        %1336 = vmatpush1.msra.mxu0 %v1281
        %1337 = vmatprep.subr.mxu0 0.0
        %1338 = vmatpush1.msra.mxu0 %v1280
        %1339 = vmatprep.subr.mxu0 0.0
        %1340 = vmatpush2.msra.mxu0 0.0
        %1341 = vmatprep.subr.mxu0 0.0
        %1342 = vmatpush2.msra.mxu0 0.0
        %1343 = vmatprep.subr.mxu0 0.0
        %1344 = vmatpush2.msra.mxu0 0.0
        %1345 = vmatprep.subr.mxu0 0.0
        %1346 = vmatpush2.msra.mxu0 0.0
        %1347 = vmatprep.subr.mxu0 0.0
        %1348 = vmatpush2.msra.mxu0 0.0
        %1349 = vmatprep.subr.mxu0 0.0
        %1350 = vmatpush2.msra.mxu0 0.0
        %1351 = vmatprep.subr.mxu0 0.0
        %1352 = vmatpush2.msra.mxu0 0.0
        %1353 = vmatprep.subr.mxu0 0.0
        %1354 = vmatpush2.msra.mxu0 0.0
        %1355 = vmatprep.subr.mxu0 0.0
        %1356 = vmatpush2.msra.mxu0 0.0
        %1357 = vmatprep.subr.mxu0 0.0
        %1358 = vmatpush2.msra.mxu0 0.0
        %1359 = vmatprep.subr.mxu0 0.0
        %1360 = vmatpush2.msra.mxu0 0.0
        %1361 = vmatprep.subr.mxu0 0.0
        %1362 = vmatpush2.msra.mxu0 0.0
        %1363 = vmatprep.subr.mxu0 0.0
        %1364 = vmatpush2.msra.mxu0 0.0
        %1365 = vmatprep.subr.mxu0 0.0
        %1366 = vmatpush2.msra.mxu0 0.0
        %1367 = vmatprep.subr.mxu0 0.0
        %1368 = vmatpush2.msra.mxu0 0.0
        %1369 = vmatprep.subr.mxu0 0.0
        %1370 = vmatpush2.msra.mxu0 0.0
        %1371 = vmatprep.mubr.f32.mxu0 0.0
        %1372 = vmatmul.mubr.f32.gmra.mxu0 %v1284
        %v1373 = vpop.f32.mrf.mxu0
        %v1374 = vadd.f32 0.0, %v1373
        %v1375 = vpop.f32.mrf.mxu0
        %1376 = vmatprep.mubr.f32.mxu0 0.0
        %1377 = vmatmul.mubr.f32.gmra.mxu0 %v1287
        %v1378 = vpop.f32.mrf.mxu0
        %v1379 = vadd.f32 0.0, %v1378
        %v1380 = vpop.f32.mrf.mxu0
        %1381 = vmatprep.mubr.f32.mxu0 0.0
        %1382 = vmatmul.mubr.f32.gmra.mxu0 %v1290
        %v1383 = vpop.f32.mrf.mxu0
        %v1384 = vadd.f32 0.0, %v1383
        %v1385 = vpop.f32.mrf.mxu0
        %1386 = vmatprep.mubr.f32.mxu0 0.0
        %1387 = vmatmul.mubr.f32.gmra.mxu0 %v1293
        %v1388 = vpop.f32.mrf.mxu0
        %v1389 = vadd.f32 0.0, %v1388
        %v1390 = vpop.f32.mrf.mxu0
        %1391 = vmatprep.mubr.f32.mxu0 0.0
        %1392 = vmatmul.mubr.f32.gmra.mxu0 %v1296
        %v1393 = vpop.f32.mrf.mxu0
        %v1394 = vadd.f32 0.0, %v1393
        %v1395 = vpop.f32.mrf.mxu0
        %1396 = vmatprep.mubr.f32.mxu0 0.0
        %1397 = vmatmul.mubr.f32.gmra.mxu0 %v1299
        %v1398 = vpop.f32.mrf.mxu0
        %v1399 = vadd.f32 0.0, %v1398
        %v1400 = vpop.f32.mrf.mxu0
        %1401 = vmatprep.mubr.f32.mxu0 0.0
        %1402 = vmatmul.mubr.f32.gmra.mxu0 %v1302
        %v1403 = vpop.f32.mrf.mxu0
        %v1404 = vadd.f32 0.0, %v1403
        %v1405 = vpop.f32.mrf.mxu0
        %1406 = vmatprep.mubr.f32.mxu0 0.0
        %1407 = vmatmul.mubr.f32.gmra.mxu0 %v1305
        %v1408 = vpop.f32.mrf.mxu0
        %v1409 = vadd.f32 0.0, %v1408
        %v1410 = vpop.f32.mrf.mxu0
        %1411 = vdwg.mxu0
        %v1413 = vsel %vm1282, %v980, 0
        %v1416 = vsel %vm1282, %v985, 0
        %v1419 = vsel %vm1282, %v990, 0
        %v1422 = vsel %vm1282, %v995, 0
        %v1425 = vsel %vm1282, %v1000, 0
        %v1428 = vsel %vm1282, %v1005, 0
        %v1431 = vsel %vm1282, %v1010, 0
        %v1434 = vsel %vm1282, %v1015, 0
        %1436 = vmatprep.subr.mxu0 0.0
        %1437 = vmatpush1.msra.mxu0 0.0
        %1438 = vmatprep.subr.mxu0 0.0
        %1439 = vmatpush1.msra.mxu0 0.0
        %1440 = vmatprep.subr.mxu0 0.0
        %1441 = vmatpush1.msra.mxu0 0.0
        %1442 = vmatprep.subr.mxu0 0.0
        %1443 = vmatpush1.msra.mxu0 0.0
        %1444 = vmatprep.subr.mxu0 0.0
        %1445 = vmatpush1.msra.mxu0 0.0
        %1446 = vmatprep.subr.mxu0 0.0
        %1447 = vmatpush1.msra.mxu0 0.0
        %1448 = vmatprep.subr.mxu0 0.0
        %1449 = vmatpush1.msra.mxu0 0.0
        %1450 = vmatprep.subr.mxu0 0.0
        %1451 = vmatpush1.msra.mxu0 0.0
        %1452 = vmatprep.subr.mxu0 0.0
        %1453 = vmatpush1.msra.mxu0 0.0
        %1454 = vmatprep.subr.mxu0 0.0
        %1455 = vmatpush1.msra.mxu0 0.0
        %1456 = vmatprep.subr.mxu0 0.0
        %1457 = vmatpush1.msra.mxu0 0.0
        %1458 = vmatprep.subr.mxu0 0.0
        %1459 = vmatpush1.msra.mxu0 0.0
        %1460 = vmatprep.subr.mxu0 0.0
        %1461 = vmatpush1.msra.mxu0 0.0
        %1462 = vmatprep.subr.mxu0 0.0
        %1463 = vmatpush1.msra.mxu0 0.0
        %1464 = vmatprep.subr.mxu0 0.0
        %1465 = vmatpush1.msra.mxu0 %v1019
        %1466 = vmatprep.subr.mxu0 0.0
        %1467 = vmatpush1.msra.mxu0 %v1018
        %1468 = vmatprep.subr.mxu0 0.0
        %1469 = vmatpush2.msra.mxu0 0.0
        %1470 = vmatprep.subr.mxu0 0.0
        %1471 = vmatpush2.msra.mxu0 0.0
        %1472 = vmatprep.subr.mxu0 0.0
        %1473 = vmatpush2.msra.mxu0 0.0
        %1474 = vmatprep.subr.mxu0 0.0
        %1475 = vmatpush2.msra.mxu0 0.0
        %1476 = vmatprep.subr.mxu0 0.0
        %1477 = vmatpush2.msra.mxu0 0.0
        %1478 = vmatprep.subr.mxu0 0.0
        %1479 = vmatpush2.msra.mxu0 0.0
        %1480 = vmatprep.subr.mxu0 0.0
        %1481 = vmatpush2.msra.mxu0 0.0
        %1482 = vmatprep.subr.mxu0 0.0
        %1483 = vmatpush2.msra.mxu0 0.0
        %1484 = vmatprep.subr.mxu0 0.0
        %1485 = vmatpush2.msra.mxu0 0.0
        %1486 = vmatprep.subr.mxu0 0.0
        %1487 = vmatpush2.msra.mxu0 0.0
        %1488 = vmatprep.subr.mxu0 0.0
        %1489 = vmatpush2.msra.mxu0 0.0
        %1490 = vmatprep.subr.mxu0 0.0
        %1491 = vmatpush2.msra.mxu0 0.0
        %1492 = vmatprep.subr.mxu0 0.0
        %1493 = vmatpush2.msra.mxu0 0.0
        %1494 = vmatprep.subr.mxu0 0.0
        %1495 = vmatpush2.msra.mxu0 0.0
        %1496 = vmatprep.subr.mxu0 0.0
        %1497 = vmatpush2.msra.mxu0 0.0
        %1498 = vmatprep.subr.mxu0 0.0
        %1499 = vmatpush2.msra.mxu0 0.0
        %1500 = vmatprep.mubr.f32.mxu0 0.0
        %1501 = vmatmul.mubr.f32.gmra.mxu0 %v1413
        %v1502 = vpop.f32.mrf.mxu0
        %v1503 = vadd.f32 %v1374, %v1502
        %v1504 = vpop.f32.mrf.mxu0
        %1505 = vmatprep.mubr.f32.mxu0 0.0
        %1506 = vmatmul.mubr.f32.gmra.mxu0 %v1416
        %v1507 = vpop.f32.mrf.mxu0
        %v1508 = vadd.f32 %v1379, %v1507
        %v1509 = vpop.f32.mrf.mxu0
        %1510 = vmatprep.mubr.f32.mxu0 0.0
        %1511 = vmatmul.mubr.f32.gmra.mxu0 %v1419
        %v1512 = vpop.f32.mrf.mxu0
        %v1513 = vadd.f32 %v1384, %v1512
        %v1514 = vpop.f32.mrf.mxu0
        %1515 = vmatprep.mubr.f32.mxu0 0.0
        %1516 = vmatmul.mubr.f32.gmra.mxu0 %v1422
        %v1517 = vpop.f32.mrf.mxu0
        %v1518 = vadd.f32 %v1389, %v1517
        %v1519 = vpop.f32.mrf.mxu0
        %1520 = vmatprep.mubr.f32.mxu0 0.0
        %1521 = vmatmul.mubr.f32.gmra.mxu0 %v1425
        %v1522 = vpop.f32.mrf.mxu0
        %v1523 = vadd.f32 %v1394, %v1522
        %v1524 = vpop.f32.mrf.mxu0
        %1525 = vmatprep.mubr.f32.mxu0 0.0
        %1526 = vmatmul.mubr.f32.gmra.mxu0 %v1428
        %v1527 = vpop.f32.mrf.mxu0
        %v1528 = vadd.f32 %v1399, %v1527
        %v1529 = vpop.f32.mrf.mxu0
        %1530 = vmatprep.mubr.f32.mxu0 0.0
        %1531 = vmatmul.mubr.f32.gmra.mxu0 %v1431
        %v1532 = vpop.f32.mrf.mxu0
        %v1533 = vadd.f32 %v1404, %v1532
        %v1534 = vpop.f32.mrf.mxu0
        %1535 = vmatprep.mubr.f32.mxu0 0.0
        %1536 = vmatmul.mubr.f32.gmra.mxu0 %v1434
        %v1537 = vpop.f32.mrf.mxu0
        %v1538 = vadd.f32 %v1409, %v1537
        %v1539 = vpop.f32.mrf.mxu0
        %1540 = vdwg.mxu0
        %s1541 = scalar_lea.vmem %s2, 384
        %v1542 = vld [vmem:[%s1541] sm:$0xff]
        %v1543 = vld [vmem:[%s1541 + $0x8] sm:$0xff]
        %v1544 = vld [vmem:[%s1541 + $0x10] sm:$0xff]
        %v1545 = vld [vmem:[%s1541 + $0x18] sm:$0xff]
        %v1546 = vld [vmem:[%s1541 + $0x20] sm:$0xff]
        %v1547 = vld [vmem:[%s1541 + $0x28] sm:$0xff]
        %v1548 = vld [vmem:[%s1541 + $0x30] sm:$0xff]
        %v1549 = vld [vmem:[%s1541 + $0x38] sm:$0xff]
        %v1550 = vld [vmem:[%s1541 + $0x40] sm:$0xff]
        %v1551 = vld [vmem:[%s1541 + $0x48] sm:$0xff]
        %v1552 = vld [vmem:[%s1541 + $0x50] sm:$0xff]
        %v1553 = vld [vmem:[%s1541 + $0x58] sm:$0xff]
        %v1554 = vld [vmem:[%s1541 + $0x60] sm:$0xff]
        %v1555 = vld [vmem:[%s1541 + $0x68] sm:$0xff]
        %v1556 = vld [vmem:[%s1541 + $0x70] sm:$0xff]
        %v1557 = vld [vmem:[%s1541 + $0x78] sm:$0xff]
        %v1558 = vld [vmem:[%s1541 + $0x80] sm:$0xff]
        %v1559 = vld [vmem:[%s1541 + $0x88] sm:$0xff]
        %v1560 = vld [vmem:[%s1541 + $0x90] sm:$0xff]
        %v1561 = vld [vmem:[%s1541 + $0x98] sm:$0xff]
        %v1562 = vld [vmem:[%s1541 + $0xa0] sm:$0xff]
        %v1563 = vld [vmem:[%s1541 + $0xa8] sm:$0xff]
        %v1564 = vld [vmem:[%s1541 + $0xb0] sm:$0xff]
        %v1565 = vld [vmem:[%s1541 + $0xb8] sm:$0xff]
        %v1567 = vsel %vm779, %v1544, 0
        %v1570 = vsel %vm779, %v1547, 0
        %v1573 = vsel %vm779, %v1550, 0
        %v1576 = vsel %vm779, %v1553, 0
        %v1579 = vsel %vm779, %v1556, 0
        %v1582 = vsel %vm779, %v1559, 0
        %v1585 = vsel %vm779, %v1562, 0
        %v1588 = vsel %vm779, %v1565, 0
        %1590 = vmatprep.subr.mxu0 0.0
        %1591 = vmatpush1.msra.mxu0 %v729
        %1592 = vmatprep.subr.mxu0 0.0
        %1593 = vmatpush1.msra.mxu0 %v728
        %1594 = vmatprep.subr.mxu0 0.0
        %1595 = vmatpush1.msra.mxu0 %v727
        %1596 = vmatprep.subr.mxu0 0.0
        %1597 = vmatpush1.msra.mxu0 %v726
        %1598 = vmatprep.subr.mxu0 0.0
        %1599 = vmatpush1.msra.mxu0 %v725
        %1600 = vmatprep.subr.mxu0 0.0
        %1601 = vmatpush1.msra.mxu0 %v724
        %1602 = vmatprep.subr.mxu0 0.0
        %1603 = vmatpush1.msra.mxu0 %v723
        %1604 = vmatprep.subr.mxu0 0.0
        %1605 = vmatpush1.msra.mxu0 %v722
        %1606 = vmatprep.subr.mxu0 0.0
        %1607 = vmatpush1.msra.mxu0 %v721
        %1608 = vmatprep.subr.mxu0 0.0
        %1609 = vmatpush1.msra.mxu0 %v720
        %1610 = vmatprep.subr.mxu0 0.0
        %1611 = vmatpush1.msra.mxu0 %v719
        %1612 = vmatprep.subr.mxu0 0.0
        %1613 = vmatpush1.msra.mxu0 %v718
        %1614 = vmatprep.subr.mxu0 0.0
        %1615 = vmatpush1.msra.mxu0 %v717
        %1616 = vmatprep.subr.mxu0 0.0
        %1617 = vmatpush1.msra.mxu0 %v716
        %1618 = vmatprep.subr.mxu0 0.0
        %1619 = vmatpush1.msra.mxu0 %v715
        %1620 = vmatprep.subr.mxu0 0.0
        %1621 = vmatpush1.msra.mxu0 %v714
        %1622 = vmatprep.subr.mxu0 0.0
        %1623 = vmatpush2.msra.mxu0 %v745
        %1624 = vmatprep.subr.mxu0 0.0
        %1625 = vmatpush2.msra.mxu0 %v744
        %1626 = vmatprep.subr.mxu0 0.0
        %1627 = vmatpush2.msra.mxu0 %v743
        %1628 = vmatprep.subr.mxu0 0.0
        %1629 = vmatpush2.msra.mxu0 %v742
        %1630 = vmatprep.subr.mxu0 0.0
        %1631 = vmatpush2.msra.mxu0 %v741
        %1632 = vmatprep.subr.mxu0 0.0
        %1633 = vmatpush2.msra.mxu0 %v740
        %1634 = vmatprep.subr.mxu0 0.0
        %1635 = vmatpush2.msra.mxu0 %v739
        %1636 = vmatprep.subr.mxu0 0.0
        %1637 = vmatpush2.msra.mxu0 %v738
        %1638 = vmatprep.subr.mxu0 0.0
        %1639 = vmatpush2.msra.mxu0 %v737
        %1640 = vmatprep.subr.mxu0 0.0
        %1641 = vmatpush2.msra.mxu0 %v736
        %1642 = vmatprep.subr.mxu0 0.0
        %1643 = vmatpush2.msra.mxu0 %v735
        %1644 = vmatprep.subr.mxu0 0.0
        %1645 = vmatpush2.msra.mxu0 %v734
        %1646 = vmatprep.subr.mxu0 0.0
        %1647 = vmatpush2.msra.mxu0 %v733
        %1648 = vmatprep.subr.mxu0 0.0
        %1649 = vmatpush2.msra.mxu0 %v732
        %1650 = vmatprep.subr.mxu0 0.0
        %1651 = vmatpush2.msra.mxu0 %v731
        %1652 = vmatprep.subr.mxu0 0.0
        %1653 = vmatpush2.msra.mxu0 %v730
        %1654 = vmatprep.mubr.f32.mxu0 %v1543
        %1655 = vmatmul.mubr.f32.gmra.mxu0 %v1542
        %v1656 = vpop.f32.mrf.mxu0
        %v1657 = vadd.f32 0.0, %v1656
        %v1658 = vpop.f32.mrf.mxu0
        %1659 = vmatprep.mubr.f32.mxu0 %v1546
        %1660 = vmatmul.mubr.f32.gmra.mxu0 %v1545
        %v1661 = vpop.f32.mrf.mxu0
        %v1662 = vadd.f32 0.0, %v1661
        %v1663 = vpop.f32.mrf.mxu0
        %1664 = vmatprep.mubr.f32.mxu0 %v1549
        %1665 = vmatmul.mubr.f32.gmra.mxu0 %v1548
        %v1666 = vpop.f32.mrf.mxu0
        %v1667 = vadd.f32 0.0, %v1666
        %v1668 = vpop.f32.mrf.mxu0
        %1669 = vmatprep.mubr.f32.mxu0 %v1552
        %1670 = vmatmul.mubr.f32.gmra.mxu0 %v1551
        %v1671 = vpop.f32.mrf.mxu0
        %v1672 = vadd.f32 0.0, %v1671
        %v1673 = vpop.f32.mrf.mxu0
        %1674 = vmatprep.mubr.f32.mxu0 %v1555
        %1675 = vmatmul.mubr.f32.gmra.mxu0 %v1554
        %v1676 = vpop.f32.mrf.mxu0
        %v1677 = vadd.f32 0.0, %v1676
        %v1678 = vpop.f32.mrf.mxu0
        %1679 = vmatprep.mubr.f32.mxu0 %v1558
        %1680 = vmatmul.mubr.f32.gmra.mxu0 %v1557
        %v1681 = vpop.f32.mrf.mxu0
        %v1682 = vadd.f32 0.0, %v1681
        %v1683 = vpop.f32.mrf.mxu0
        %1684 = vmatprep.mubr.f32.mxu0 %v1561
        %1685 = vmatmul.mubr.f32.gmra.mxu0 %v1560
        %v1686 = vpop.f32.mrf.mxu0
        %v1687 = vadd.f32 0.0, %v1686
        %v1688 = vpop.f32.mrf.mxu0
        %1689 = vmatprep.mubr.f32.mxu0 %v1564
        %1690 = vmatmul.mubr.f32.gmra.mxu0 %v1563
        %v1691 = vpop.f32.mrf.mxu0
        %v1692 = vadd.f32 0.0, %v1691
        %v1693 = vpop.f32.mrf.mxu0
        %1694 = vdwg.mxu0
        %1695 = vmatprep.subr.mxu0 0.0
        %1696 = vmatpush1.msra.mxu0 0.0
        %1697 = vmatprep.subr.mxu0 0.0
        %1698 = vmatpush1.msra.mxu0 0.0
        %1699 = vmatprep.subr.mxu0 0.0
        %1700 = vmatpush1.msra.mxu0 0.0
        %1701 = vmatprep.subr.mxu0 0.0
        %1702 = vmatpush1.msra.mxu0 0.0
        %1703 = vmatprep.subr.mxu0 0.0
        %1704 = vmatpush1.msra.mxu0 0.0
        %1705 = vmatprep.subr.mxu0 0.0
        %1706 = vmatpush1.msra.mxu0 0.0
        %1707 = vmatprep.subr.mxu0 0.0
        %1708 = vmatpush1.msra.mxu0 0.0
        %1709 = vmatprep.subr.mxu0 0.0
        %1710 = vmatpush1.msra.mxu0 %v806
        %1711 = vmatprep.subr.mxu0 0.0
        %1712 = vmatpush1.msra.mxu0 %v753
        %1713 = vmatprep.subr.mxu0 0.0
        %1714 = vmatpush1.msra.mxu0 %v752
        %1715 = vmatprep.subr.mxu0 0.0
        %1716 = vmatpush1.msra.mxu0 %v751
        %1717 = vmatprep.subr.mxu0 0.0
        %1718 = vmatpush1.msra.mxu0 %v750
        %1719 = vmatprep.subr.mxu0 0.0
        %1720 = vmatpush1.msra.mxu0 %v749
        %1721 = vmatprep.subr.mxu0 0.0
        %1722 = vmatpush1.msra.mxu0 %v748
        %1723 = vmatprep.subr.mxu0 0.0
        %1724 = vmatpush1.msra.mxu0 %v747
        %1725 = vmatprep.subr.mxu0 0.0
        %1726 = vmatpush1.msra.mxu0 %v746
        %1727 = vmatprep.subr.mxu0 0.0
        %1728 = vmatpush2.msra.mxu0 0.0
        %1729 = vmatprep.subr.mxu0 0.0
        %1730 = vmatpush2.msra.mxu0 0.0
        %1731 = vmatprep.subr.mxu0 0.0
        %1732 = vmatpush2.msra.mxu0 0.0
        %1733 = vmatprep.subr.mxu0 0.0
        %1734 = vmatpush2.msra.mxu0 0.0
        %1735 = vmatprep.subr.mxu0 0.0
        %1736 = vmatpush2.msra.mxu0 0.0
        %1737 = vmatprep.subr.mxu0 0.0
        %1738 = vmatpush2.msra.mxu0 0.0
        %1739 = vmatprep.subr.mxu0 0.0
        %1740 = vmatpush2.msra.mxu0 0.0
        %1741 = vmatprep.subr.mxu0 0.0
        %1742 = vmatpush2.msra.mxu0 0.0
        %1743 = vmatprep.subr.mxu0 0.0
        %1744 = vmatpush2.msra.mxu0 0.0
        %1745 = vmatprep.subr.mxu0 0.0
        %1746 = vmatpush2.msra.mxu0 0.0
        %1747 = vmatprep.subr.mxu0 0.0
        %1748 = vmatpush2.msra.mxu0 0.0
        %1749 = vmatprep.subr.mxu0 0.0
        %1750 = vmatpush2.msra.mxu0 0.0
        %1751 = vmatprep.subr.mxu0 0.0
        %1752 = vmatpush2.msra.mxu0 0.0
        %1753 = vmatprep.subr.mxu0 0.0
        %1754 = vmatpush2.msra.mxu0 0.0
        %1755 = vmatprep.subr.mxu0 0.0
        %1756 = vmatpush2.msra.mxu0 0.0
        %1757 = vmatprep.subr.mxu0 0.0
        %1758 = vmatpush2.msra.mxu0 0.0
        %1759 = vmatprep.mubr.f32.mxu0 0.0
        %1760 = vmatmul.mubr.f32.gmra.mxu0 %v1567
        %v1761 = vpop.f32.mrf.mxu0
        %v1762 = vadd.f32 %v1657, %v1761
        %v1763 = vpop.f32.mrf.mxu0
        %1764 = vmatprep.mubr.f32.mxu0 0.0
        %1765 = vmatmul.mubr.f32.gmra.mxu0 %v1570
        %v1766 = vpop.f32.mrf.mxu0
        %v1767 = vadd.f32 %v1662, %v1766
        %v1768 = vpop.f32.mrf.mxu0
        %1769 = vmatprep.mubr.f32.mxu0 0.0
        %1770 = vmatmul.mubr.f32.gmra.mxu0 %v1573
        %v1771 = vpop.f32.mrf.mxu0
        %v1772 = vadd.f32 %v1667, %v1771
        %v1773 = vpop.f32.mrf.mxu0
        %1774 = vmatprep.mubr.f32.mxu0 0.0
        %1775 = vmatmul.mubr.f32.gmra.mxu0 %v1576
        %v1776 = vpop.f32.mrf.mxu0
        %v1777 = vadd.f32 %v1672, %v1776
        %v1778 = vpop.f32.mrf.mxu0
        %1779 = vmatprep.mubr.f32.mxu0 0.0
        %1780 = vmatmul.mubr.f32.gmra.mxu0 %v1579
        %v1781 = vpop.f32.mrf.mxu0
        %v1782 = vadd.f32 %v1677, %v1781
        %v1783 = vpop.f32.mrf.mxu0
        %1784 = vmatprep.mubr.f32.mxu0 0.0
        %1785 = vmatmul.mubr.f32.gmra.mxu0 %v1582
        %v1786 = vpop.f32.mrf.mxu0
        %v1787 = vadd.f32 %v1682, %v1786
        %v1788 = vpop.f32.mrf.mxu0
        %1789 = vmatprep.mubr.f32.mxu0 0.0
        %1790 = vmatmul.mubr.f32.gmra.mxu0 %v1585
        %v1791 = vpop.f32.mrf.mxu0
        %v1792 = vadd.f32 %v1687, %v1791
        %v1793 = vpop.f32.mrf.mxu0
        %1794 = vmatprep.mubr.f32.mxu0 0.0
        %1795 = vmatmul.mubr.f32.gmra.mxu0 %v1588
        %v1796 = vpop.f32.mrf.mxu0
        %v1797 = vadd.f32 %v1692, %v1796
        %v1798 = vpop.f32.mrf.mxu0
        %1799 = vdwg.mxu0
        %s1800 = scalar_lea.vmem %s3, 32
        %v1801 = vld [vmem:[%s1800] sm:$0xff]
        %v1802 = vld [vmem:[%s1800 + $0x8] sm:$0xff]
        %v1804 = vsel %vm1282, %v1762, 0
        %v1807 = vsel %vm1282, %v1767, 0
        %v1810 = vsel %vm1282, %v1772, 0
        %v1813 = vsel %vm1282, %v1777, 0
        %v1816 = vsel %vm1282, %v1782, 0
        %v1819 = vsel %vm1282, %v1787, 0
        %v1822 = vsel %vm1282, %v1792, 0
        %v1825 = vsel %vm1282, %v1797, 0
        %1827 = vmatprep.subr.mxu0 0.0
        %1828 = vmatpush1.msra.mxu0 0.0
        %1829 = vmatprep.subr.mxu0 0.0
        %1830 = vmatpush1.msra.mxu0 0.0
        %1831 = vmatprep.subr.mxu0 0.0
        %1832 = vmatpush1.msra.mxu0 0.0
        %1833 = vmatprep.subr.mxu0 0.0
        %1834 = vmatpush1.msra.mxu0 0.0
        %1835 = vmatprep.subr.mxu0 0.0
        %1836 = vmatpush1.msra.mxu0 0.0
        %1837 = vmatprep.subr.mxu0 0.0
        %1838 = vmatpush1.msra.mxu0 0.0
        %1839 = vmatprep.subr.mxu0 0.0
        %1840 = vmatpush1.msra.mxu0 0.0
        %1841 = vmatprep.subr.mxu0 0.0
        %1842 = vmatpush1.msra.mxu0 0.0
        %1843 = vmatprep.subr.mxu0 0.0
        %1844 = vmatpush1.msra.mxu0 0.0
        %1845 = vmatprep.subr.mxu0 0.0
        %1846 = vmatpush1.msra.mxu0 0.0
        %1847 = vmatprep.subr.mxu0 0.0
        %1848 = vmatpush1.msra.mxu0 0.0
        %1849 = vmatprep.subr.mxu0 0.0
        %1850 = vmatpush1.msra.mxu0 0.0
        %1851 = vmatprep.subr.mxu0 0.0
        %1852 = vmatpush1.msra.mxu0 0.0
        %1853 = vmatprep.subr.mxu0 0.0
        %1854 = vmatpush1.msra.mxu0 0.0
        %1855 = vmatprep.subr.mxu0 0.0
        %1856 = vmatpush1.msra.mxu0 %v1802
        %1857 = vmatprep.subr.mxu0 0.0
        %1858 = vmatpush1.msra.mxu0 %v1801
        %1859 = vmatprep.subr.mxu0 0.0
        %1860 = vmatpush2.msra.mxu0 0.0
        %1861 = vmatprep.subr.mxu0 0.0
        %1862 = vmatpush2.msra.mxu0 0.0
        %1863 = vmatprep.subr.mxu0 0.0
        %1864 = vmatpush2.msra.mxu0 0.0
        %1865 = vmatprep.subr.mxu0 0.0
        %1866 = vmatpush2.msra.mxu0 0.0
        %1867 = vmatprep.subr.mxu0 0.0
        %1868 = vmatpush2.msra.mxu0 0.0
        %1869 = vmatprep.subr.mxu0 0.0
        %1870 = vmatpush2.msra.mxu0 0.0
        %1871 = vmatprep.subr.mxu0 0.0
        %1872 = vmatpush2.msra.mxu0 0.0
        %1873 = vmatprep.subr.mxu0 0.0
        %1874 = vmatpush2.msra.mxu0 0.0
        %1875 = vmatprep.subr.mxu0 0.0
        %1876 = vmatpush2.msra.mxu0 0.0
        %1877 = vmatprep.subr.mxu0 0.0
        %1878 = vmatpush2.msra.mxu0 0.0
        %1879 = vmatprep.subr.mxu0 0.0
        %1880 = vmatpush2.msra.mxu0 0.0
        %1881 = vmatprep.subr.mxu0 0.0
        %1882 = vmatpush2.msra.mxu0 0.0
        %1883 = vmatprep.subr.mxu0 0.0
        %1884 = vmatpush2.msra.mxu0 0.0
        %1885 = vmatprep.subr.mxu0 0.0
        %1886 = vmatpush2.msra.mxu0 0.0
        %1887 = vmatprep.subr.mxu0 0.0
        %1888 = vmatpush2.msra.mxu0 0.0
        %1889 = vmatprep.subr.mxu0 0.0
        %1890 = vmatpush2.msra.mxu0 0.0
        %1891 = vmatprep.mubr.f32.mxu0 0.0
        %1892 = vmatmul.mubr.f32.gmra.mxu0 %v1804
        %v1893 = vpop.f32.mrf.mxu0
        %v1894 = vadd.f32 0.0, %v1893
        %v1895 = vpop.f32.mrf.mxu0
        %1896 = vmatprep.mubr.f32.mxu0 0.0
        %1897 = vmatmul.mubr.f32.gmra.mxu0 %v1807
        %v1898 = vpop.f32.mrf.mxu0
        %v1899 = vadd.f32 0.0, %v1898
        %v1900 = vpop.f32.mrf.mxu0
        %1901 = vmatprep.mubr.f32.mxu0 0.0
        %1902 = vmatmul.mubr.f32.gmra.mxu0 %v1810
        %v1903 = vpop.f32.mrf.mxu0
        %v1904 = vadd.f32 0.0, %v1903
        %v1905 = vpop.f32.mrf.mxu0
        %1906 = vmatprep.mubr.f32.mxu0 0.0
        %1907 = vmatmul.mubr.f32.gmra.mxu0 %v1813
        %v1908 = vpop.f32.mrf.mxu0
        %v1909 = vadd.f32 0.0, %v1908
        %v1910 = vpop.f32.mrf.mxu0
        %1911 = vmatprep.mubr.f32.mxu0 0.0
        %1912 = vmatmul.mubr.f32.gmra.mxu0 %v1816
        %v1913 = vpop.f32.mrf.mxu0
        %v1914 = vadd.f32 0.0, %v1913
        %v1915 = vpop.f32.mrf.mxu0
        %1916 = vmatprep.mubr.f32.mxu0 0.0
        %1917 = vmatmul.mubr.f32.gmra.mxu0 %v1819
        %v1918 = vpop.f32.mrf.mxu0
        %v1919 = vadd.f32 0.0, %v1918
        %v1920 = vpop.f32.mrf.mxu0
        %1921 = vmatprep.mubr.f32.mxu0 0.0
        %1922 = vmatmul.mubr.f32.gmra.mxu0 %v1822
        %v1923 = vpop.f32.mrf.mxu0
        %v1924 = vadd.f32 0.0, %v1923
        %v1925 = vpop.f32.mrf.mxu0
        %1926 = vmatprep.mubr.f32.mxu0 0.0
        %1927 = vmatmul.mubr.f32.gmra.mxu0 %v1825
        %v1928 = vpop.f32.mrf.mxu0
        %v1929 = vadd.f32 0.0, %v1928
        %v1930 = vpop.f32.mrf.mxu0
        %1931 = vdwg.mxu0
        %v1932 = vadd.f32 %v1503, %v1894
        %v1933 = vadd.f32 %v1508, %v1899
        %v1934 = vadd.f32 %v1513, %v1904
        %v1935 = vadd.f32 %v1518, %v1909
        %v1936 = vadd.f32 %v1523, %v1914
        %v1937 = vadd.f32 %v1528, %v1919
        %v1938 = vadd.f32 %v1533, %v1924
        %v1939 = vadd.f32 %v1538, %v1929
        %s1940 = scalar_lea.vmem %s2, 576
        %v1941 = vld [vmem:[%s1940] sm:$0xff]
        %v1942 = vld [vmem:[%s1940 + $0x8] sm:$0xff]
        %v1943 = vld [vmem:[%s1940 + $0x10] sm:$0xff]
        %v1944 = vld [vmem:[%s1940 + $0x18] sm:$0xff]
        %v1945 = vld [vmem:[%s1940 + $0x20] sm:$0xff]
        %v1946 = vld [vmem:[%s1940 + $0x28] sm:$0xff]
        %v1947 = vld [vmem:[%s1940 + $0x30] sm:$0xff]
        %v1948 = vld [vmem:[%s1940 + $0x38] sm:$0xff]
        %v1949 = vld [vmem:[%s1940 + $0x40] sm:$0xff]
        %v1950 = vld [vmem:[%s1940 + $0x48] sm:$0xff]
        %v1951 = vld [vmem:[%s1940 + $0x50] sm:$0xff]
        %v1952 = vld [vmem:[%s1940 + $0x58] sm:$0xff]
        %v1953 = vld [vmem:[%s1940 + $0x60] sm:$0xff]
        %v1954 = vld [vmem:[%s1940 + $0x68] sm:$0xff]
        %v1955 = vld [vmem:[%s1940 + $0x70] sm:$0xff]
        %v1956 = vld [vmem:[%s1940 + $0x78] sm:$0xff]
        %v1957 = vld [vmem:[%s1940 + $0x80] sm:$0xff]
        %v1958 = vld [vmem:[%s1940 + $0x88] sm:$0xff]
        %v1959 = vld [vmem:[%s1940 + $0x90] sm:$0xff]
        %v1960 = vld [vmem:[%s1940 + $0x98] sm:$0xff]
        %v1961 = vld [vmem:[%s1940 + $0xa0] sm:$0xff]
        %v1962 = vld [vmem:[%s1940 + $0xa8] sm:$0xff]
        %v1963 = vld [vmem:[%s1940 + $0xb0] sm:$0xff]
        %v1964 = vld [vmem:[%s1940 + $0xb8] sm:$0xff]
        %v1966 = vsel %vm779, %v1943, 0
        %v1969 = vsel %vm779, %v1946, 0
        %v1972 = vsel %vm779, %v1949, 0
        %v1975 = vsel %vm779, %v1952, 0
        %v1978 = vsel %vm779, %v1955, 0
        %v1981 = vsel %vm779, %v1958, 0
        %v1984 = vsel %vm779, %v1961, 0
        %v1987 = vsel %vm779, %v1964, 0
        %1989 = vmatprep.subr.mxu0 0.0
        %1990 = vmatpush1.msra.mxu0 %v729
        %1991 = vmatprep.subr.mxu0 0.0
        %1992 = vmatpush1.msra.mxu0 %v728
        %1993 = vmatprep.subr.mxu0 0.0
        %1994 = vmatpush1.msra.mxu0 %v727
        %1995 = vmatprep.subr.mxu0 0.0
        %1996 = vmatpush1.msra.mxu0 %v726
        %1997 = vmatprep.subr.mxu0 0.0
        %1998 = vmatpush1.msra.mxu0 %v725
        %1999 = vmatprep.subr.mxu0 0.0
        %2000 = vmatpush1.msra.mxu0 %v724
        %2001 = vmatprep.subr.mxu0 0.0
        %2002 = vmatpush1.msra.mxu0 %v723
        %2003 = vmatprep.subr.mxu0 0.0
        %2004 = vmatpush1.msra.mxu0 %v722
        %2005 = vmatprep.subr.mxu0 0.0
        %2006 = vmatpush1.msra.mxu0 %v721
        %2007 = vmatprep.subr.mxu0 0.0
        %2008 = vmatpush1.msra.mxu0 %v720
        %2009 = vmatprep.subr.mxu0 0.0
        %2010 = vmatpush1.msra.mxu0 %v719
        %2011 = vmatprep.subr.mxu0 0.0
        %2012 = vmatpush1.msra.mxu0 %v718
        %2013 = vmatprep.subr.mxu0 0.0
        %2014 = vmatpush1.msra.mxu0 %v717
        %2015 = vmatprep.subr.mxu0 0.0
        %2016 = vmatpush1.msra.mxu0 %v716
        %2017 = vmatprep.subr.mxu0 0.0
        %2018 = vmatpush1.msra.mxu0 %v715
        %2019 = vmatprep.subr.mxu0 0.0
        %2020 = vmatpush1.msra.mxu0 %v714
        %2021 = vmatprep.subr.mxu0 0.0
        %2022 = vmatpush2.msra.mxu0 %v745
        %2023 = vmatprep.subr.mxu0 0.0
        %2024 = vmatpush2.msra.mxu0 %v744
        %2025 = vmatprep.subr.mxu0 0.0
        %2026 = vmatpush2.msra.mxu0 %v743
        %2027 = vmatprep.subr.mxu0 0.0
        %2028 = vmatpush2.msra.mxu0 %v742
        %2029 = vmatprep.subr.mxu0 0.0
        %2030 = vmatpush2.msra.mxu0 %v741
        %2031 = vmatprep.subr.mxu0 0.0
        %2032 = vmatpush2.msra.mxu0 %v740
        %2033 = vmatprep.subr.mxu0 0.0
        %2034 = vmatpush2.msra.mxu0 %v739
        %2035 = vmatprep.subr.mxu0 0.0
        %2036 = vmatpush2.msra.mxu0 %v738
        %2037 = vmatprep.subr.mxu0 0.0
        %2038 = vmatpush2.msra.mxu0 %v737
        %2039 = vmatprep.subr.mxu0 0.0
        %2040 = vmatpush2.msra.mxu0 %v736
        %2041 = vmatprep.subr.mxu0 0.0
        %2042 = vmatpush2.msra.mxu0 %v735
        %2043 = vmatprep.subr.mxu0 0.0
        %2044 = vmatpush2.msra.mxu0 %v734
        %2045 = vmatprep.subr.mxu0 0.0
        %2046 = vmatpush2.msra.mxu0 %v733
        %2047 = vmatprep.subr.mxu0 0.0
        %2048 = vmatpush2.msra.mxu0 %v732
        %2049 = vmatprep.subr.mxu0 0.0
        %2050 = vmatpush2.msra.mxu0 %v731
        %2051 = vmatprep.subr.mxu0 0.0
        %2052 = vmatpush2.msra.mxu0 %v730
        %2053 = vmatprep.mubr.f32.mxu0 %v1942
        %2054 = vmatmul.mubr.f32.gmra.mxu0 %v1941
        %v2055 = vpop.f32.mrf.mxu0
        %v2056 = vadd.f32 0.0, %v2055
        %v2057 = vpop.f32.mrf.mxu0
        %2058 = vmatprep.mubr.f32.mxu0 %v1945
        %2059 = vmatmul.mubr.f32.gmra.mxu0 %v1944
        %v2060 = vpop.f32.mrf.mxu0
        %v2061 = vadd.f32 0.0, %v2060
        %v2062 = vpop.f32.mrf.mxu0
        %2063 = vmatprep.mubr.f32.mxu0 %v1948
        %2064 = vmatmul.mubr.f32.gmra.mxu0 %v1947
        %v2065 = vpop.f32.mrf.mxu0
        %v2066 = vadd.f32 0.0, %v2065
        %v2067 = vpop.f32.mrf.mxu0
        %2068 = vmatprep.mubr.f32.mxu0 %v1951
        %2069 = vmatmul.mubr.f32.gmra.mxu0 %v1950
        %v2070 = vpop.f32.mrf.mxu0
        %v2071 = vadd.f32 0.0, %v2070
        %v2072 = vpop.f32.mrf.mxu0
        %2073 = vmatprep.mubr.f32.mxu0 %v1954
        %2074 = vmatmul.mubr.f32.gmra.mxu0 %v1953
        %v2075 = vpop.f32.mrf.mxu0
        %v2076 = vadd.f32 0.0, %v2075
        %v2077 = vpop.f32.mrf.mxu0
        %2078 = vmatprep.mubr.f32.mxu0 %v1957
        %2079 = vmatmul.mubr.f32.gmra.mxu0 %v1956
        %v2080 = vpop.f32.mrf.mxu0
        %v2081 = vadd.f32 0.0, %v2080
        %v2082 = vpop.f32.mrf.mxu0
        %2083 = vmatprep.mubr.f32.mxu0 %v1960
        %2084 = vmatmul.mubr.f32.gmra.mxu0 %v1959
        %v2085 = vpop.f32.mrf.mxu0
        %v2086 = vadd.f32 0.0, %v2085
        %v2087 = vpop.f32.mrf.mxu0
        %2088 = vmatprep.mubr.f32.mxu0 %v1963
        %2089 = vmatmul.mubr.f32.gmra.mxu0 %v1962
        %v2090 = vpop.f32.mrf.mxu0
        %v2091 = vadd.f32 0.0, %v2090
        %v2092 = vpop.f32.mrf.mxu0
        %2093 = vdwg.mxu0
        %2094 = vmatprep.subr.mxu0 0.0
        %2095 = vmatpush1.msra.mxu0 0.0
        %2096 = vmatprep.subr.mxu0 0.0
        %2097 = vmatpush1.msra.mxu0 0.0
        %2098 = vmatprep.subr.mxu0 0.0
        %2099 = vmatpush1.msra.mxu0 0.0
        %2100 = vmatprep.subr.mxu0 0.0
        %2101 = vmatpush1.msra.mxu0 0.0
        %2102 = vmatprep.subr.mxu0 0.0
        %2103 = vmatpush1.msra.mxu0 0.0
        %2104 = vmatprep.subr.mxu0 0.0
        %2105 = vmatpush1.msra.mxu0 0.0
        %2106 = vmatprep.subr.mxu0 0.0
        %2107 = vmatpush1.msra.mxu0 0.0
        %2108 = vmatprep.subr.mxu0 0.0
        %2109 = vmatpush1.msra.mxu0 %v806
        %2110 = vmatprep.subr.mxu0 0.0
        %2111 = vmatpush1.msra.mxu0 %v753
        %2112 = vmatprep.subr.mxu0 0.0
        %2113 = vmatpush1.msra.mxu0 %v752
        %2114 = vmatprep.subr.mxu0 0.0
        %2115 = vmatpush1.msra.mxu0 %v751
        %2116 = vmatprep.subr.mxu0 0.0
        %2117 = vmatpush1.msra.mxu0 %v750
        %2118 = vmatprep.subr.mxu0 0.0
        %2119 = vmatpush1.msra.mxu0 %v749
        %2120 = vmatprep.subr.mxu0 0.0
        %2121 = vmatpush1.msra.mxu0 %v748
        %2122 = vmatprep.subr.mxu0 0.0
        %2123 = vmatpush1.msra.mxu0 %v747
        %2124 = vmatprep.subr.mxu0 0.0
        %2125 = vmatpush1.msra.mxu0 %v746
        %2126 = vmatprep.subr.mxu0 0.0
        %2127 = vmatpush2.msra.mxu0 0.0
        %2128 = vmatprep.subr.mxu0 0.0
        %2129 = vmatpush2.msra.mxu0 0.0
        %2130 = vmatprep.subr.mxu0 0.0
        %2131 = vmatpush2.msra.mxu0 0.0
        %2132 = vmatprep.subr.mxu0 0.0
        %2133 = vmatpush2.msra.mxu0 0.0
        %2134 = vmatprep.subr.mxu0 0.0
        %2135 = vmatpush2.msra.mxu0 0.0
        %2136 = vmatprep.subr.mxu0 0.0
        %2137 = vmatpush2.msra.mxu0 0.0
        %2138 = vmatprep.subr.mxu0 0.0
        %2139 = vmatpush2.msra.mxu0 0.0
        %2140 = vmatprep.subr.mxu0 0.0
        %2141 = vmatpush2.msra.mxu0 0.0
        %2142 = vmatprep.subr.mxu0 0.0
        %2143 = vmatpush2.msra.mxu0 0.0
        %2144 = vmatprep.subr.mxu0 0.0
        %2145 = vmatpush2.msra.mxu0 0.0
        %2146 = vmatprep.subr.mxu0 0.0
        %2147 = vmatpush2.msra.mxu0 0.0
        %2148 = vmatprep.subr.mxu0 0.0
        %2149 = vmatpush2.msra.mxu0 0.0
        %2150 = vmatprep.subr.mxu0 0.0
        %2151 = vmatpush2.msra.mxu0 0.0
        %2152 = vmatprep.subr.mxu0 0.0
        %2153 = vmatpush2.msra.mxu0 0.0
        %2154 = vmatprep.subr.mxu0 0.0
        %2155 = vmatpush2.msra.mxu0 0.0
        %2156 = vmatprep.subr.mxu0 0.0
        %2157 = vmatpush2.msra.mxu0 0.0
        %2158 = vmatprep.mubr.f32.mxu0 0.0
        %2159 = vmatmul.mubr.f32.gmra.mxu0 %v1966
        %v2160 = vpop.f32.mrf.mxu0
        %v2161 = vadd.f32 %v2056, %v2160
        %v2162 = vpop.f32.mrf.mxu0
        %2163 = vmatprep.mubr.f32.mxu0 0.0
        %2164 = vmatmul.mubr.f32.gmra.mxu0 %v1969
        %v2165 = vpop.f32.mrf.mxu0
        %v2166 = vadd.f32 %v2061, %v2165
        %v2167 = vpop.f32.mrf.mxu0
        %2168 = vmatprep.mubr.f32.mxu0 0.0
        %2169 = vmatmul.mubr.f32.gmra.mxu0 %v1972
        %v2170 = vpop.f32.mrf.mxu0
        %v2171 = vadd.f32 %v2066, %v2170
        %v2172 = vpop.f32.mrf.mxu0
        %2173 = vmatprep.mubr.f32.mxu0 0.0
        %2174 = vmatmul.mubr.f32.gmra.mxu0 %v1975
        %v2175 = vpop.f32.mrf.mxu0
        %v2176 = vadd.f32 %v2071, %v2175
        %v2177 = vpop.f32.mrf.mxu0
        %2178 = vmatprep.mubr.f32.mxu0 0.0
        %2179 = vmatmul.mubr.f32.gmra.mxu0 %v1978
        %v2180 = vpop.f32.mrf.mxu0
        %v2181 = vadd.f32 %v2076, %v2180
        %v2182 = vpop.f32.mrf.mxu0
        %2183 = vmatprep.mubr.f32.mxu0 0.0
        %2184 = vmatmul.mubr.f32.gmra.mxu0 %v1981
        %v2185 = vpop.f32.mrf.mxu0
        %v2186 = vadd.f32 %v2081, %v2185
        %v2187 = vpop.f32.mrf.mxu0
        %2188 = vmatprep.mubr.f32.mxu0 0.0
        %2189 = vmatmul.mubr.f32.gmra.mxu0 %v1984
        %v2190 = vpop.f32.mrf.mxu0
        %v2191 = vadd.f32 %v2086, %v2190
        %v2192 = vpop.f32.mrf.mxu0
        %2193 = vmatprep.mubr.f32.mxu0 0.0
        %2194 = vmatmul.mubr.f32.gmra.mxu0 %v1987
        %v2195 = vpop.f32.mrf.mxu0
        %v2196 = vadd.f32 %v2091, %v2195
        %v2197 = vpop.f32.mrf.mxu0
        %2198 = vdwg.mxu0
        %s2199 = scalar_lea.vmem %s3, 48
        %v2200 = vld [vmem:[%s2199] sm:$0xff]
        %v2201 = vld [vmem:[%s2199 + $0x8] sm:$0xff]
        %v2203 = vsel %vm1282, %v2161, 0
        %v2206 = vsel %vm1282, %v2166, 0
        %v2209 = vsel %vm1282, %v2171, 0
        %v2212 = vsel %vm1282, %v2176, 0
        %v2215 = vsel %vm1282, %v2181, 0
        %v2218 = vsel %vm1282, %v2186, 0
        %v2221 = vsel %vm1282, %v2191, 0
        %v2224 = vsel %vm1282, %v2196, 0
        %2226 = vmatprep.subr.mxu0 0.0
        %2227 = vmatpush1.msra.mxu0 0.0
        %2228 = vmatprep.subr.mxu0 0.0
        %2229 = vmatpush1.msra.mxu0 0.0
        %2230 = vmatprep.subr.mxu0 0.0
        %2231 = vmatpush1.msra.mxu0 0.0
        %2232 = vmatprep.subr.mxu0 0.0
        %2233 = vmatpush1.msra.mxu0 0.0
        %2234 = vmatprep.subr.mxu0 0.0
        %2235 = vmatpush1.msra.mxu0 0.0
        %2236 = vmatprep.subr.mxu0 0.0
        %2237 = vmatpush1.msra.mxu0 0.0
        %2238 = vmatprep.subr.mxu0 0.0
        %2239 = vmatpush1.msra.mxu0 0.0
        %2240 = vmatprep.subr.mxu0 0.0
        %2241 = vmatpush1.msra.mxu0 0.0
        %2242 = vmatprep.subr.mxu0 0.0
        %2243 = vmatpush1.msra.mxu0 0.0
        %2244 = vmatprep.subr.mxu0 0.0
        %2245 = vmatpush1.msra.mxu0 0.0
        %2246 = vmatprep.subr.mxu0 0.0
        %2247 = vmatpush1.msra.mxu0 0.0
        %2248 = vmatprep.subr.mxu0 0.0
        %2249 = vmatpush1.msra.mxu0 0.0
        %2250 = vmatprep.subr.mxu0 0.0
        %2251 = vmatpush1.msra.mxu0 0.0
        %2252 = vmatprep.subr.mxu0 0.0
        %2253 = vmatpush1.msra.mxu0 0.0
        %2254 = vmatprep.subr.mxu0 0.0
        %2255 = vmatpush1.msra.mxu0 %v2201
        %2256 = vmatprep.subr.mxu0 0.0
        %2257 = vmatpush1.msra.mxu0 %v2200
        %2258 = vmatprep.subr.mxu0 0.0
        %2259 = vmatpush2.msra.mxu0 0.0
        %2260 = vmatprep.subr.mxu0 0.0
        %2261 = vmatpush2.msra.mxu0 0.0
        %2262 = vmatprep.subr.mxu0 0.0
        %2263 = vmatpush2.msra.mxu0 0.0
        %2264 = vmatprep.subr.mxu0 0.0
        %2265 = vmatpush2.msra.mxu0 0.0
        %2266 = vmatprep.subr.mxu0 0.0
        %2267 = vmatpush2.msra.mxu0 0.0
        %2268 = vmatprep.subr.mxu0 0.0
        %2269 = vmatpush2.msra.mxu0 0.0
        %2270 = vmatprep.subr.mxu0 0.0
        %2271 = vmatpush2.msra.mxu0 0.0
        %2272 = vmatprep.subr.mxu0 0.0
        %2273 = vmatpush2.msra.mxu0 0.0
        %2274 = vmatprep.subr.mxu0 0.0
        %2275 = vmatpush2.msra.mxu0 0.0
        %2276 = vmatprep.subr.mxu0 0.0
        %2277 = vmatpush2.msra.mxu0 0.0
        %2278 = vmatprep.subr.mxu0 0.0
        %2279 = vmatpush2.msra.mxu0 0.0
        %2280 = vmatprep.subr.mxu0 0.0
        %2281 = vmatpush2.msra.mxu0 0.0
        %2282 = vmatprep.subr.mxu0 0.0
        %2283 = vmatpush2.msra.mxu0 0.0
        %2284 = vmatprep.subr.mxu0 0.0
        %2285 = vmatpush2.msra.mxu0 0.0
        %2286 = vmatprep.subr.mxu0 0.0
        %2287 = vmatpush2.msra.mxu0 0.0
        %2288 = vmatprep.subr.mxu0 0.0
        %2289 = vmatpush2.msra.mxu0 0.0
        %2290 = vmatprep.mubr.f32.mxu0 0.0
        %2291 = vmatmul.mubr.f32.gmra.mxu0 %v2203
        %v2292 = vpop.f32.mrf.mxu0
        %v2293 = vadd.f32 0.0, %v2292
        %v2294 = vpop.f32.mrf.mxu0
        %2295 = vmatprep.mubr.f32.mxu0 0.0
        %2296 = vmatmul.mubr.f32.gmra.mxu0 %v2206
        %v2297 = vpop.f32.mrf.mxu0
        %v2298 = vadd.f32 0.0, %v2297
        %v2299 = vpop.f32.mrf.mxu0
        %2300 = vmatprep.mubr.f32.mxu0 0.0
        %2301 = vmatmul.mubr.f32.gmra.mxu0 %v2209
        %v2302 = vpop.f32.mrf.mxu0
        %v2303 = vadd.f32 0.0, %v2302
        %v2304 = vpop.f32.mrf.mxu0
        %2305 = vmatprep.mubr.f32.mxu0 0.0
        %2306 = vmatmul.mubr.f32.gmra.mxu0 %v2212
        %v2307 = vpop.f32.mrf.mxu0
        %v2308 = vadd.f32 0.0, %v2307
        %v2309 = vpop.f32.mrf.mxu0
        %2310 = vmatprep.mubr.f32.mxu0 0.0
        %2311 = vmatmul.mubr.f32.gmra.mxu0 %v2215
        %v2312 = vpop.f32.mrf.mxu0
        %v2313 = vadd.f32 0.0, %v2312
        %v2314 = vpop.f32.mrf.mxu0
        %2315 = vmatprep.mubr.f32.mxu0 0.0
        %2316 = vmatmul.mubr.f32.gmra.mxu0 %v2218
        %v2317 = vpop.f32.mrf.mxu0
        %v2318 = vadd.f32 0.0, %v2317
        %v2319 = vpop.f32.mrf.mxu0
        %2320 = vmatprep.mubr.f32.mxu0 0.0
        %2321 = vmatmul.mubr.f32.gmra.mxu0 %v2221
        %v2322 = vpop.f32.mrf.mxu0
        %v2323 = vadd.f32 0.0, %v2322
        %v2324 = vpop.f32.mrf.mxu0
        %2325 = vmatprep.mubr.f32.mxu0 0.0
        %2326 = vmatmul.mubr.f32.gmra.mxu0 %v2224
        %v2327 = vpop.f32.mrf.mxu0
        %v2328 = vadd.f32 0.0, %v2327
        %v2329 = vpop.f32.mrf.mxu0
        %2330 = vdwg.mxu0
        %v2331 = vadd.f32 %v1932, %v2293
        %v2332 = vadd.f32 %v1933, %v2298
        %v2333 = vadd.f32 %v1934, %v2303
        %v2334 = vadd.f32 %v1935, %v2308
        %v2335 = vadd.f32 %v1936, %v2313
        %v2336 = vadd.f32 %v1937, %v2318
        %v2337 = vadd.f32 %v1938, %v2323
        %v2338 = vadd.f32 %v1939, %v2328
        %s2339 = scalar_lea.vmem %s2, 768
        %v2340 = vld [vmem:[%s2339] sm:$0xff]
        %v2341 = vld [vmem:[%s2339 + $0x8] sm:$0xff]
        %v2342 = vld [vmem:[%s2339 + $0x10] sm:$0xff]
        %v2343 = vld [vmem:[%s2339 + $0x18] sm:$0xff]
        %v2344 = vld [vmem:[%s2339 + $0x20] sm:$0xff]
        %v2345 = vld [vmem:[%s2339 + $0x28] sm:$0xff]
        %v2346 = vld [vmem:[%s2339 + $0x30] sm:$0xff]
        %v2347 = vld [vmem:[%s2339 + $0x38] sm:$0xff]
        %v2348 = vld [vmem:[%s2339 + $0x40] sm:$0xff]
        %v2349 = vld [vmem:[%s2339 + $0x48] sm:$0xff]
        %v2350 = vld [vmem:[%s2339 + $0x50] sm:$0xff]
        %v2351 = vld [vmem:[%s2339 + $0x58] sm:$0xff]
        %v2352 = vld [vmem:[%s2339 + $0x60] sm:$0xff]
        %v2353 = vld [vmem:[%s2339 + $0x68] sm:$0xff]
        %v2354 = vld [vmem:[%s2339 + $0x70] sm:$0xff]
        %v2355 = vld [vmem:[%s2339 + $0x78] sm:$0xff]
        %v2356 = vld [vmem:[%s2339 + $0x80] sm:$0xff]
        %v2357 = vld [vmem:[%s2339 + $0x88] sm:$0xff]
        %v2358 = vld [vmem:[%s2339 + $0x90] sm:$0xff]
        %v2359 = vld [vmem:[%s2339 + $0x98] sm:$0xff]
        %v2360 = vld [vmem:[%s2339 + $0xa0] sm:$0xff]
        %v2361 = vld [vmem:[%s2339 + $0xa8] sm:$0xff]
        %v2362 = vld [vmem:[%s2339 + $0xb0] sm:$0xff]
        %v2363 = vld [vmem:[%s2339 + $0xb8] sm:$0xff]
        %v2365 = vsel %vm779, %v2342, 0
        %v2368 = vsel %vm779, %v2345, 0
        %v2371 = vsel %vm779, %v2348, 0
        %v2374 = vsel %vm779, %v2351, 0
        %v2377 = vsel %vm779, %v2354, 0
        %v2380 = vsel %vm779, %v2357, 0
        %v2383 = vsel %vm779, %v2360, 0
        %v2386 = vsel %vm779, %v2363, 0
        %2388 = vmatprep.subr.mxu0 0.0
        %2389 = vmatpush1.msra.mxu0 %v729
        %2390 = vmatprep.subr.mxu0 0.0
        %2391 = vmatpush1.msra.mxu0 %v728
        %2392 = vmatprep.subr.mxu0 0.0
        %2393 = vmatpush1.msra.mxu0 %v727
        %2394 = vmatprep.subr.mxu0 0.0
        %2395 = vmatpush1.msra.mxu0 %v726
        %2396 = vmatprep.subr.mxu0 0.0
        %2397 = vmatpush1.msra.mxu0 %v725
        %2398 = vmatprep.subr.mxu0 0.0
        %2399 = vmatpush1.msra.mxu0 %v724
        %2400 = vmatprep.subr.mxu0 0.0
        %2401 = vmatpush1.msra.mxu0 %v723
        %2402 = vmatprep.subr.mxu0 0.0
        %2403 = vmatpush1.msra.mxu0 %v722
        %2404 = vmatprep.subr.mxu0 0.0
        %2405 = vmatpush1.msra.mxu0 %v721
        %2406 = vmatprep.subr.mxu0 0.0
        %2407 = vmatpush1.msra.mxu0 %v720
        %2408 = vmatprep.subr.mxu0 0.0
        %2409 = vmatpush1.msra.mxu0 %v719
        %2410 = vmatprep.subr.mxu0 0.0
        %2411 = vmatpush1.msra.mxu0 %v718
        %2412 = vmatprep.subr.mxu0 0.0
        %2413 = vmatpush1.msra.mxu0 %v717
        %2414 = vmatprep.subr.mxu0 0.0
        %2415 = vmatpush1.msra.mxu0 %v716
        %2416 = vmatprep.subr.mxu0 0.0
        %2417 = vmatpush1.msra.mxu0 %v715
        %2418 = vmatprep.subr.mxu0 0.0
        %2419 = vmatpush1.msra.mxu0 %v714
        %2420 = vmatprep.subr.mxu0 0.0
        %2421 = vmatpush2.msra.mxu0 %v745
        %2422 = vmatprep.subr.mxu0 0.0
        %2423 = vmatpush2.msra.mxu0 %v744
        %2424 = vmatprep.subr.mxu0 0.0
        %2425 = vmatpush2.msra.mxu0 %v743
        %2426 = vmatprep.subr.mxu0 0.0
        %2427 = vmatpush2.msra.mxu0 %v742
        %2428 = vmatprep.subr.mxu0 0.0
        %2429 = vmatpush2.msra.mxu0 %v741
        %2430 = vmatprep.subr.mxu0 0.0
        %2431 = vmatpush2.msra.mxu0 %v740
        %2432 = vmatprep.subr.mxu0 0.0
        %2433 = vmatpush2.msra.mxu0 %v739
        %2434 = vmatprep.subr.mxu0 0.0
        %2435 = vmatpush2.msra.mxu0 %v738
        %2436 = vmatprep.subr.mxu0 0.0
        %2437 = vmatpush2.msra.mxu0 %v737
        %2438 = vmatprep.subr.mxu0 0.0
        %2439 = vmatpush2.msra.mxu0 %v736
        %2440 = vmatprep.subr.mxu0 0.0
        %2441 = vmatpush2.msra.mxu0 %v735
        %2442 = vmatprep.subr.mxu0 0.0
        %2443 = vmatpush2.msra.mxu0 %v734
        %2444 = vmatprep.subr.mxu0 0.0
        %2445 = vmatpush2.msra.mxu0 %v733
        %2446 = vmatprep.subr.mxu0 0.0
        %2447 = vmatpush2.msra.mxu0 %v732
        %2448 = vmatprep.subr.mxu0 0.0
        %2449 = vmatpush2.msra.mxu0 %v731
        %2450 = vmatprep.subr.mxu0 0.0
        %2451 = vmatpush2.msra.mxu0 %v730
        %2452 = vmatprep.mubr.f32.mxu0 %v2341
        %2453 = vmatmul.mubr.f32.gmra.mxu0 %v2340
        %v2454 = vpop.f32.mrf.mxu0
        %v2455 = vadd.f32 0.0, %v2454
        %v2456 = vpop.f32.mrf.mxu0
        %2457 = vmatprep.mubr.f32.mxu0 %v2344
        %2458 = vmatmul.mubr.f32.gmra.mxu0 %v2343
        %v2459 = vpop.f32.mrf.mxu0
        %v2460 = vadd.f32 0.0, %v2459
        %v2461 = vpop.f32.mrf.mxu0
        %2462 = vmatprep.mubr.f32.mxu0 %v2347
        %2463 = vmatmul.mubr.f32.gmra.mxu0 %v2346
        %v2464 = vpop.f32.mrf.mxu0
        %v2465 = vadd.f32 0.0, %v2464
        %v2466 = vpop.f32.mrf.mxu0
        %2467 = vmatprep.mubr.f32.mxu0 %v2350
        %2468 = vmatmul.mubr.f32.gmra.mxu0 %v2349
        %v2469 = vpop.f32.mrf.mxu0
        %v2470 = vadd.f32 0.0, %v2469
        %v2471 = vpop.f32.mrf.mxu0
        %2472 = vmatprep.mubr.f32.mxu0 %v2353
        %2473 = vmatmul.mubr.f32.gmra.mxu0 %v2352
        %v2474 = vpop.f32.mrf.mxu0
        %v2475 = vadd.f32 0.0, %v2474
        %v2476 = vpop.f32.mrf.mxu0
        %2477 = vmatprep.mubr.f32.mxu0 %v2356
        %2478 = vmatmul.mubr.f32.gmra.mxu0 %v2355
        %v2479 = vpop.f32.mrf.mxu0
        %v2480 = vadd.f32 0.0, %v2479
        %v2481 = vpop.f32.mrf.mxu0
        %2482 = vmatprep.mubr.f32.mxu0 %v2359
        %2483 = vmatmul.mubr.f32.gmra.mxu0 %v2358
        %v2484 = vpop.f32.mrf.mxu0
        %v2485 = vadd.f32 0.0, %v2484
        %v2486 = vpop.f32.mrf.mxu0
        %2487 = vmatprep.mubr.f32.mxu0 %v2362
        %2488 = vmatmul.mubr.f32.gmra.mxu0 %v2361
        %v2489 = vpop.f32.mrf.mxu0
        %v2490 = vadd.f32 0.0, %v2489
        %v2491 = vpop.f32.mrf.mxu0
        %2492 = vdwg.mxu0
        %2493 = vmatprep.subr.mxu0 0.0
        %2494 = vmatpush1.msra.mxu0 0.0
        %2495 = vmatprep.subr.mxu0 0.0
        %2496 = vmatpush1.msra.mxu0 0.0
        %2497 = vmatprep.subr.mxu0 0.0
        %2498 = vmatpush1.msra.mxu0 0.0
        %2499 = vmatprep.subr.mxu0 0.0
        %2500 = vmatpush1.msra.mxu0 0.0
        %2501 = vmatprep.subr.mxu0 0.0
        %2502 = vmatpush1.msra.mxu0 0.0
        %2503 = vmatprep.subr.mxu0 0.0
        %2504 = vmatpush1.msra.mxu0 0.0
        %2505 = vmatprep.subr.mxu0 0.0
        %2506 = vmatpush1.msra.mxu0 0.0
        %2507 = vmatprep.subr.mxu0 0.0
        %2508 = vmatpush1.msra.mxu0 %v806
        %2509 = vmatprep.subr.mxu0 0.0
        %2510 = vmatpush1.msra.mxu0 %v753
        %2511 = vmatprep.subr.mxu0 0.0
        %2512 = vmatpush1.msra.mxu0 %v752
        %2513 = vmatprep.subr.mxu0 0.0
        %2514 = vmatpush1.msra.mxu0 %v751
        %2515 = vmatprep.subr.mxu0 0.0
        %2516 = vmatpush1.msra.mxu0 %v750
        %2517 = vmatprep.subr.mxu0 0.0
        %2518 = vmatpush1.msra.mxu0 %v749
        %2519 = vmatprep.subr.mxu0 0.0
        %2520 = vmatpush1.msra.mxu0 %v748
        %2521 = vmatprep.subr.mxu0 0.0
        %2522 = vmatpush1.msra.mxu0 %v747
        %2523 = vmatprep.subr.mxu0 0.0
        %2524 = vmatpush1.msra.mxu0 %v746
        %2525 = vmatprep.subr.mxu0 0.0
        %2526 = vmatpush2.msra.mxu0 0.0
        %2527 = vmatprep.subr.mxu0 0.0
        %2528 = vmatpush2.msra.mxu0 0.0
        %2529 = vmatprep.subr.mxu0 0.0
        %2530 = vmatpush2.msra.mxu0 0.0
        %2531 = vmatprep.subr.mxu0 0.0
        %2532 = vmatpush2.msra.mxu0 0.0
        %2533 = vmatprep.subr.mxu0 0.0
        %2534 = vmatpush2.msra.mxu0 0.0
        %2535 = vmatprep.subr.mxu0 0.0
        %2536 = vmatpush2.msra.mxu0 0.0
        %2537 = vmatprep.subr.mxu0 0.0
        %2538 = vmatpush2.msra.mxu0 0.0
        %2539 = vmatprep.subr.mxu0 0.0
        %2540 = vmatpush2.msra.mxu0 0.0
        %2541 = vmatprep.subr.mxu0 0.0
        %2542 = vmatpush2.msra.mxu0 0.0
        %2543 = vmatprep.subr.mxu0 0.0
        %2544 = vmatpush2.msra.mxu0 0.0
        %2545 = vmatprep.subr.mxu0 0.0
        %2546 = vmatpush2.msra.mxu0 0.0
        %2547 = vmatprep.subr.mxu0 0.0
        %2548 = vmatpush2.msra.mxu0 0.0
        %2549 = vmatprep.subr.mxu0 0.0
        %2550 = vmatpush2.msra.mxu0 0.0
        %2551 = vmatprep.subr.mxu0 0.0
        %2552 = vmatpush2.msra.mxu0 0.0
        %2553 = vmatprep.subr.mxu0 0.0
        %2554 = vmatpush2.msra.mxu0 0.0
        %2555 = vmatprep.subr.mxu0 0.0
        %2556 = vmatpush2.msra.mxu0 0.0
        %2557 = vmatprep.mubr.f32.mxu0 0.0
        %2558 = vmatmul.mubr.f32.gmra.mxu0 %v2365
        %v2559 = vpop.f32.mrf.mxu0
        %v2560 = vadd.f32 %v2455, %v2559
        %v2561 = vpop.f32.mrf.mxu0
        %2562 = vmatprep.mubr.f32.mxu0 0.0
        %2563 = vmatmul.mubr.f32.gmra.mxu0 %v2368
        %v2564 = vpop.f32.mrf.mxu0
        %v2565 = vadd.f32 %v2460, %v2564
        %v2566 = vpop.f32.mrf.mxu0
        %2567 = vmatprep.mubr.f32.mxu0 0.0
        %2568 = vmatmul.mubr.f32.gmra.mxu0 %v2371
        %v2569 = vpop.f32.mrf.mxu0
        %v2570 = vadd.f32 %v2465, %v2569
        %v2571 = vpop.f32.mrf.mxu0
        %2572 = vmatprep.mubr.f32.mxu0 0.0
        %2573 = vmatmul.mubr.f32.gmra.mxu0 %v2374
        %v2574 = vpop.f32.mrf.mxu0
        %v2575 = vadd.f32 %v2470, %v2574
        %v2576 = vpop.f32.mrf.mxu0
        %2577 = vmatprep.mubr.f32.mxu0 0.0
        %2578 = vmatmul.mubr.f32.gmra.mxu0 %v2377
        %v2579 = vpop.f32.mrf.mxu0
        %v2580 = vadd.f32 %v2475, %v2579
        %v2581 = vpop.f32.mrf.mxu0
        %2582 = vmatprep.mubr.f32.mxu0 0.0
        %2583 = vmatmul.mubr.f32.gmra.mxu0 %v2380
        %v2584 = vpop.f32.mrf.mxu0
        %v2585 = vadd.f32 %v2480, %v2584
        %v2586 = vpop.f32.mrf.mxu0
        %2587 = vmatprep.mubr.f32.mxu0 0.0
        %2588 = vmatmul.mubr.f32.gmra.mxu0 %v2383
        %v2589 = vpop.f32.mrf.mxu0
        %v2590 = vadd.f32 %v2485, %v2589
        %v2591 = vpop.f32.mrf.mxu0
        %2592 = vmatprep.mubr.f32.mxu0 0.0
        %2593 = vmatmul.mubr.f32.gmra.mxu0 %v2386
        %v2594 = vpop.f32.mrf.mxu0
        %v2595 = vadd.f32 %v2490, %v2594
        %v2596 = vpop.f32.mrf.mxu0
        %2597 = vdwg.mxu0
        %s2598 = scalar_lea.vmem %s3, 64
        %v2599 = vld [vmem:[%s2598] sm:$0xff]
        %v2600 = vld [vmem:[%s2598 + $0x8] sm:$0xff]
        %v2602 = vsel %vm1282, %v2560, 0
        %v2605 = vsel %vm1282, %v2565, 0
        %v2608 = vsel %vm1282, %v2570, 0
        %v2611 = vsel %vm1282, %v2575, 0
        %v2614 = vsel %vm1282, %v2580, 0
        %v2617 = vsel %vm1282, %v2585, 0
        %v2620 = vsel %vm1282, %v2590, 0
        %v2623 = vsel %vm1282, %v2595, 0
        %2625 = vmatprep.subr.mxu0 0.0
        %2626 = vmatpush1.msra.mxu0 0.0
        %2627 = vmatprep.subr.mxu0 0.0
        %2628 = vmatpush1.msra.mxu0 0.0
        %2629 = vmatprep.subr.mxu0 0.0
        %2630 = vmatpush1.msra.mxu0 0.0
        %2631 = vmatprep.subr.mxu0 0.0
        %2632 = vmatpush1.msra.mxu0 0.0
        %2633 = vmatprep.subr.mxu0 0.0
        %2634 = vmatpush1.msra.mxu0 0.0
        %2635 = vmatprep.subr.mxu0 0.0
        %2636 = vmatpush1.msra.mxu0 0.0
        %2637 = vmatprep.subr.mxu0 0.0
        %2638 = vmatpush1.msra.mxu0 0.0
        %2639 = vmatprep.subr.mxu0 0.0
        %2640 = vmatpush1.msra.mxu0 0.0
        %2641 = vmatprep.subr.mxu0 0.0
        %2642 = vmatpush1.msra.mxu0 0.0
        %2643 = vmatprep.subr.mxu0 0.0
        %2644 = vmatpush1.msra.mxu0 0.0
        %2645 = vmatprep.subr.mxu0 0.0
        %2646 = vmatpush1.msra.mxu0 0.0
        %2647 = vmatprep.subr.mxu0 0.0
        %2648 = vmatpush1.msra.mxu0 0.0
        %2649 = vmatprep.subr.mxu0 0.0
        %2650 = vmatpush1.msra.mxu0 0.0
        %2651 = vmatprep.subr.mxu0 0.0
        %2652 = vmatpush1.msra.mxu0 0.0
        %2653 = vmatprep.subr.mxu0 0.0
        %2654 = vmatpush1.msra.mxu0 %v2600
        %2655 = vmatprep.subr.mxu0 0.0
        %2656 = vmatpush1.msra.mxu0 %v2599
        %2657 = vmatprep.subr.mxu0 0.0
        %2658 = vmatpush2.msra.mxu0 0.0
        %2659 = vmatprep.subr.mxu0 0.0
        %2660 = vmatpush2.msra.mxu0 0.0
        %2661 = vmatprep.subr.mxu0 0.0
        %2662 = vmatpush2.msra.mxu0 0.0
        %2663 = vmatprep.subr.mxu0 0.0
        %2664 = vmatpush2.msra.mxu0 0.0
        %2665 = vmatprep.subr.mxu0 0.0
        %2666 = vmatpush2.msra.mxu0 0.0
        %2667 = vmatprep.subr.mxu0 0.0
        %2668 = vmatpush2.msra.mxu0 0.0
        %2669 = vmatprep.subr.mxu0 0.0
        %2670 = vmatpush2.msra.mxu0 0.0
        %2671 = vmatprep.subr.mxu0 0.0
        %2672 = vmatpush2.msra.mxu0 0.0
        %2673 = vmatprep.subr.mxu0 0.0
        %2674 = vmatpush2.msra.mxu0 0.0
        %2675 = vmatprep.subr.mxu0 0.0
        %2676 = vmatpush2.msra.mxu0 0.0
        %2677 = vmatprep.subr.mxu0 0.0
        %2678 = vmatpush2.msra.mxu0 0.0
        %2679 = vmatprep.subr.mxu0 0.0
        %2680 = vmatpush2.msra.mxu0 0.0
        %2681 = vmatprep.subr.mxu0 0.0
        %2682 = vmatpush2.msra.mxu0 0.0
        %2683 = vmatprep.subr.mxu0 0.0
        %2684 = vmatpush2.msra.mxu0 0.0
        %2685 = vmatprep.subr.mxu0 0.0
        %2686 = vmatpush2.msra.mxu0 0.0
        %2687 = vmatprep.subr.mxu0 0.0
        %2688 = vmatpush2.msra.mxu0 0.0
        %2689 = vmatprep.mubr.f32.mxu0 0.0
        %2690 = vmatmul.mubr.f32.gmra.mxu0 %v2602
        %v2691 = vpop.f32.mrf.mxu0
        %v2692 = vadd.f32 0.0, %v2691
        %v2693 = vpop.f32.mrf.mxu0
        %2694 = vmatprep.mubr.f32.mxu0 0.0
        %2695 = vmatmul.mubr.f32.gmra.mxu0 %v2605
        %v2696 = vpop.f32.mrf.mxu0
        %v2697 = vadd.f32 0.0, %v2696
        %v2698 = vpop.f32.mrf.mxu0
        %2699 = vmatprep.mubr.f32.mxu0 0.0
        %2700 = vmatmul.mubr.f32.gmra.mxu0 %v2608
        %v2701 = vpop.f32.mrf.mxu0
        %v2702 = vadd.f32 0.0, %v2701
        %v2703 = vpop.f32.mrf.mxu0
        %2704 = vmatprep.mubr.f32.mxu0 0.0
        %2705 = vmatmul.mubr.f32.gmra.mxu0 %v2611
        %v2706 = vpop.f32.mrf.mxu0
        %v2707 = vadd.f32 0.0, %v2706
        %v2708 = vpop.f32.mrf.mxu0
        %2709 = vmatprep.mubr.f32.mxu0 0.0
        %2710 = vmatmul.mubr.f32.gmra.mxu0 %v2614
        %v2711 = vpop.f32.mrf.mxu0
        %v2712 = vadd.f32 0.0, %v2711
        %v2713 = vpop.f32.mrf.mxu0
        %2714 = vmatprep.mubr.f32.mxu0 0.0
        %2715 = vmatmul.mubr.f32.gmra.mxu0 %v2617
        %v2716 = vpop.f32.mrf.mxu0
        %v2717 = vadd.f32 0.0, %v2716
        %v2718 = vpop.f32.mrf.mxu0
        %2719 = vmatprep.mubr.f32.mxu0 0.0
        %2720 = vmatmul.mubr.f32.gmra.mxu0 %v2620
        %v2721 = vpop.f32.mrf.mxu0
        %v2722 = vadd.f32 0.0, %v2721
        %v2723 = vpop.f32.mrf.mxu0
        %2724 = vmatprep.mubr.f32.mxu0 0.0
        %2725 = vmatmul.mubr.f32.gmra.mxu0 %v2623
        %v2726 = vpop.f32.mrf.mxu0
        %v2727 = vadd.f32 0.0, %v2726
        %v2728 = vpop.f32.mrf.mxu0
        %2729 = vdwg.mxu0
        %v2730 = vadd.f32 %v2331, %v2692
        %v2731 = vadd.f32 %v2332, %v2697
        %v2732 = vadd.f32 %v2333, %v2702
        %v2733 = vadd.f32 %v2334, %v2707
        %v2734 = vadd.f32 %v2335, %v2712
        %v2735 = vadd.f32 %v2336, %v2717
        %v2736 = vadd.f32 %v2337, %v2722
        %v2737 = vadd.f32 %v2338, %v2727
        %s2738 = scalar_lea.vmem %s2, 960
        %v2739 = vld [vmem:[%s2738] sm:$0xff]
        %v2740 = vld [vmem:[%s2738 + $0x8] sm:$0xff]
        %v2741 = vld [vmem:[%s2738 + $0x10] sm:$0xff]
        %v2742 = vld [vmem:[%s2738 + $0x18] sm:$0xff]
        %v2743 = vld [vmem:[%s2738 + $0x20] sm:$0xff]
        %v2744 = vld [vmem:[%s2738 + $0x28] sm:$0xff]
        %v2745 = vld [vmem:[%s2738 + $0x30] sm:$0xff]
        %v2746 = vld [vmem:[%s2738 + $0x38] sm:$0xff]
        %v2747 = vld [vmem:[%s2738 + $0x40] sm:$0xff]
        %v2748 = vld [vmem:[%s2738 + $0x48] sm:$0xff]
        %v2749 = vld [vmem:[%s2738 + $0x50] sm:$0xff]
        %v2750 = vld [vmem:[%s2738 + $0x58] sm:$0xff]
        %v2751 = vld [vmem:[%s2738 + $0x60] sm:$0xff]
        %v2752 = vld [vmem:[%s2738 + $0x68] sm:$0xff]
        %v2753 = vld [vmem:[%s2738 + $0x70] sm:$0xff]
        %v2754 = vld [vmem:[%s2738 + $0x78] sm:$0xff]
        %v2755 = vld [vmem:[%s2738 + $0x80] sm:$0xff]
        %v2756 = vld [vmem:[%s2738 + $0x88] sm:$0xff]
        %v2757 = vld [vmem:[%s2738 + $0x90] sm:$0xff]
        %v2758 = vld [vmem:[%s2738 + $0x98] sm:$0xff]
        %v2759 = vld [vmem:[%s2738 + $0xa0] sm:$0xff]
        %v2760 = vld [vmem:[%s2738 + $0xa8] sm:$0xff]
        %v2761 = vld [vmem:[%s2738 + $0xb0] sm:$0xff]
        %v2762 = vld [vmem:[%s2738 + $0xb8] sm:$0xff]
        %v2764 = vsel %vm779, %v2741, 0
        %v2767 = vsel %vm779, %v2744, 0
        %v2770 = vsel %vm779, %v2747, 0
        %v2773 = vsel %vm779, %v2750, 0
        %v2776 = vsel %vm779, %v2753, 0
        %v2779 = vsel %vm779, %v2756, 0
        %v2782 = vsel %vm779, %v2759, 0
        %v2785 = vsel %vm779, %v2762, 0
        %2787 = vmatprep.subr.mxu0 0.0
        %2788 = vmatpush1.msra.mxu0 %v729
        %2789 = vmatprep.subr.mxu0 0.0
        %2790 = vmatpush1.msra.mxu0 %v728
        %2791 = vmatprep.subr.mxu0 0.0
        %2792 = vmatpush1.msra.mxu0 %v727
        %2793 = vmatprep.subr.mxu0 0.0
        %2794 = vmatpush1.msra.mxu0 %v726
        %2795 = vmatprep.subr.mxu0 0.0
        %2796 = vmatpush1.msra.mxu0 %v725
        %2797 = vmatprep.subr.mxu0 0.0
        %2798 = vmatpush1.msra.mxu0 %v724
        %2799 = vmatprep.subr.mxu0 0.0
        %2800 = vmatpush1.msra.mxu0 %v723
        %2801 = vmatprep.subr.mxu0 0.0
        %2802 = vmatpush1.msra.mxu0 %v722
        %2803 = vmatprep.subr.mxu0 0.0
        %2804 = vmatpush1.msra.mxu0 %v721
        %2805 = vmatprep.subr.mxu0 0.0
        %2806 = vmatpush1.msra.mxu0 %v720
        %2807 = vmatprep.subr.mxu0 0.0
        %2808 = vmatpush1.msra.mxu0 %v719
        %2809 = vmatprep.subr.mxu0 0.0
        %2810 = vmatpush1.msra.mxu0 %v718
        %2811 = vmatprep.subr.mxu0 0.0
        %2812 = vmatpush1.msra.mxu0 %v717
        %2813 = vmatprep.subr.mxu0 0.0
        %2814 = vmatpush1.msra.mxu0 %v716
        %2815 = vmatprep.subr.mxu0 0.0
        %2816 = vmatpush1.msra.mxu0 %v715
        %2817 = vmatprep.subr.mxu0 0.0
        %2818 = vmatpush1.msra.mxu0 %v714
        %2819 = vmatprep.subr.mxu0 0.0
        %2820 = vmatpush2.msra.mxu0 %v745
        %2821 = vmatprep.subr.mxu0 0.0
        %2822 = vmatpush2.msra.mxu0 %v744
        %2823 = vmatprep.subr.mxu0 0.0
        %2824 = vmatpush2.msra.mxu0 %v743
        %2825 = vmatprep.subr.mxu0 0.0
        %2826 = vmatpush2.msra.mxu0 %v742
        %2827 = vmatprep.subr.mxu0 0.0
        %2828 = vmatpush2.msra.mxu0 %v741
        %2829 = vmatprep.subr.mxu0 0.0
        %2830 = vmatpush2.msra.mxu0 %v740
        %2831 = vmatprep.subr.mxu0 0.0
        %2832 = vmatpush2.msra.mxu0 %v739
        %2833 = vmatprep.subr.mxu0 0.0
        %2834 = vmatpush2.msra.mxu0 %v738
        %2835 = vmatprep.subr.mxu0 0.0
        %2836 = vmatpush2.msra.mxu0 %v737
        %2837 = vmatprep.subr.mxu0 0.0
        %2838 = vmatpush2.msra.mxu0 %v736
        %2839 = vmatprep.subr.mxu0 0.0
        %2840 = vmatpush2.msra.mxu0 %v735
        %2841 = vmatprep.subr.mxu0 0.0
        %2842 = vmatpush2.msra.mxu0 %v734
        %2843 = vmatprep.subr.mxu0 0.0
        %2844 = vmatpush2.msra.mxu0 %v733
        %2845 = vmatprep.subr.mxu0 0.0
        %2846 = vmatpush2.msra.mxu0 %v732
        %2847 = vmatprep.subr.mxu0 0.0
        %2848 = vmatpush2.msra.mxu0 %v731
        %2849 = vmatprep.subr.mxu0 0.0
        %2850 = vmatpush2.msra.mxu0 %v730
        %2851 = vmatprep.mubr.f32.mxu0 %v2740
        %2852 = vmatmul.mubr.f32.gmra.mxu0 %v2739
        %v2853 = vpop.f32.mrf.mxu0
        %v2854 = vadd.f32 0.0, %v2853
        %v2855 = vpop.f32.mrf.mxu0
        %2856 = vmatprep.mubr.f32.mxu0 %v2743
        %2857 = vmatmul.mubr.f32.gmra.mxu0 %v2742
        %v2858 = vpop.f32.mrf.mxu0
        %v2859 = vadd.f32 0.0, %v2858
        %v2860 = vpop.f32.mrf.mxu0
        %2861 = vmatprep.mubr.f32.mxu0 %v2746
        %2862 = vmatmul.mubr.f32.gmra.mxu0 %v2745
        %v2863 = vpop.f32.mrf.mxu0
        %v2864 = vadd.f32 0.0, %v2863
        %v2865 = vpop.f32.mrf.mxu0
        %2866 = vmatprep.mubr.f32.mxu0 %v2749
        %2867 = vmatmul.mubr.f32.gmra.mxu0 %v2748
        %v2868 = vpop.f32.mrf.mxu0
        %v2869 = vadd.f32 0.0, %v2868
        %v2870 = vpop.f32.mrf.mxu0
        %2871 = vmatprep.mubr.f32.mxu0 %v2752
        %2872 = vmatmul.mubr.f32.gmra.mxu0 %v2751
        %v2873 = vpop.f32.mrf.mxu0
        %v2874 = vadd.f32 0.0, %v2873
        %v2875 = vpop.f32.mrf.mxu0
        %2876 = vmatprep.mubr.f32.mxu0 %v2755
        %2877 = vmatmul.mubr.f32.gmra.mxu0 %v2754
        %v2878 = vpop.f32.mrf.mxu0
        %v2879 = vadd.f32 0.0, %v2878
        %v2880 = vpop.f32.mrf.mxu0
        %2881 = vmatprep.mubr.f32.mxu0 %v2758
        %2882 = vmatmul.mubr.f32.gmra.mxu0 %v2757
        %v2883 = vpop.f32.mrf.mxu0
        %v2884 = vadd.f32 0.0, %v2883
        %v2885 = vpop.f32.mrf.mxu0
        %2886 = vmatprep.mubr.f32.mxu0 %v2761
        %2887 = vmatmul.mubr.f32.gmra.mxu0 %v2760
        %v2888 = vpop.f32.mrf.mxu0
        %v2889 = vadd.f32 0.0, %v2888
        %v2890 = vpop.f32.mrf.mxu0
        %2891 = vdwg.mxu0
        %2892 = vmatprep.subr.mxu0 0.0
        %2893 = vmatpush1.msra.mxu0 0.0
        %2894 = vmatprep.subr.mxu0 0.0
        %2895 = vmatpush1.msra.mxu0 0.0
        %2896 = vmatprep.subr.mxu0 0.0
        %2897 = vmatpush1.msra.mxu0 0.0
        %2898 = vmatprep.subr.mxu0 0.0
        %2899 = vmatpush1.msra.mxu0 0.0
        %2900 = vmatprep.subr.mxu0 0.0
        %2901 = vmatpush1.msra.mxu0 0.0
        %2902 = vmatprep.subr.mxu0 0.0
        %2903 = vmatpush1.msra.mxu0 0.0
        %2904 = vmatprep.subr.mxu0 0.0
        %2905 = vmatpush1.msra.mxu0 0.0
        %2906 = vmatprep.subr.mxu0 0.0
        %2907 = vmatpush1.msra.mxu0 %v806
        %2908 = vmatprep.subr.mxu0 0.0
        %2909 = vmatpush1.msra.mxu0 %v753
        %2910 = vmatprep.subr.mxu0 0.0
        %2911 = vmatpush1.msra.mxu0 %v752
        %2912 = vmatprep.subr.mxu0 0.0
        %2913 = vmatpush1.msra.mxu0 %v751
        %2914 = vmatprep.subr.mxu0 0.0
        %2915 = vmatpush1.msra.mxu0 %v750
        %2916 = vmatprep.subr.mxu0 0.0
        %2917 = vmatpush1.msra.mxu0 %v749
        %2918 = vmatprep.subr.mxu0 0.0
        %2919 = vmatpush1.msra.mxu0 %v748
        %2920 = vmatprep.subr.mxu0 0.0
        %2921 = vmatpush1.msra.mxu0 %v747
        %2922 = vmatprep.subr.mxu0 0.0
        %2923 = vmatpush1.msra.mxu0 %v746
        %2924 = vmatprep.subr.mxu0 0.0
        %2925 = vmatpush2.msra.mxu0 0.0
        %2926 = vmatprep.subr.mxu0 0.0
        %2927 = vmatpush2.msra.mxu0 0.0
        %2928 = vmatprep.subr.mxu0 0.0
        %2929 = vmatpush2.msra.mxu0 0.0
        %2930 = vmatprep.subr.mxu0 0.0
        %2931 = vmatpush2.msra.mxu0 0.0
        %2932 = vmatprep.subr.mxu0 0.0
        %2933 = vmatpush2.msra.mxu0 0.0
        %2934 = vmatprep.subr.mxu0 0.0
        %2935 = vmatpush2.msra.mxu0 0.0
        %2936 = vmatprep.subr.mxu0 0.0
        %2937 = vmatpush2.msra.mxu0 0.0
        %2938 = vmatprep.subr.mxu0 0.0
        %2939 = vmatpush2.msra.mxu0 0.0
        %2940 = vmatprep.subr.mxu0 0.0
        %2941 = vmatpush2.msra.mxu0 0.0
        %2942 = vmatprep.subr.mxu0 0.0
        %2943 = vmatpush2.msra.mxu0 0.0
        %2944 = vmatprep.subr.mxu0 0.0
        %2945 = vmatpush2.msra.mxu0 0.0
        %2946 = vmatprep.subr.mxu0 0.0
        %2947 = vmatpush2.msra.mxu0 0.0
        %2948 = vmatprep.subr.mxu0 0.0
        %2949 = vmatpush2.msra.mxu0 0.0
        %2950 = vmatprep.subr.mxu0 0.0
        %2951 = vmatpush2.msra.mxu0 0.0
        %2952 = vmatprep.subr.mxu0 0.0
        %2953 = vmatpush2.msra.mxu0 0.0
        %2954 = vmatprep.subr.mxu0 0.0
        %2955 = vmatpush2.msra.mxu0 0.0
        %2956 = vmatprep.mubr.f32.mxu0 0.0
        %2957 = vmatmul.mubr.f32.gmra.mxu0 %v2764
        %v2958 = vpop.f32.mrf.mxu0
        %v2959 = vadd.f32 %v2854, %v2958
        %v2960 = vpop.f32.mrf.mxu0
        %2961 = vmatprep.mubr.f32.mxu0 0.0
        %2962 = vmatmul.mubr.f32.gmra.mxu0 %v2767
        %v2963 = vpop.f32.mrf.mxu0
        %v2964 = vadd.f32 %v2859, %v2963
        %v2965 = vpop.f32.mrf.mxu0
        %2966 = vmatprep.mubr.f32.mxu0 0.0
        %2967 = vmatmul.mubr.f32.gmra.mxu0 %v2770
        %v2968 = vpop.f32.mrf.mxu0
        %v2969 = vadd.f32 %v2864, %v2968
        %v2970 = vpop.f32.mrf.mxu0
        %2971 = vmatprep.mubr.f32.mxu0 0.0
        %2972 = vmatmul.mubr.f32.gmra.mxu0 %v2773
        %v2973 = vpop.f32.mrf.mxu0
        %v2974 = vadd.f32 %v2869, %v2973
        %v2975 = vpop.f32.mrf.mxu0
        %2976 = vmatprep.mubr.f32.mxu0 0.0
        %2977 = vmatmul.mubr.f32.gmra.mxu0 %v2776
        %v2978 = vpop.f32.mrf.mxu0
        %v2979 = vadd.f32 %v2874, %v2978
        %v2980 = vpop.f32.mrf.mxu0
        %2981 = vmatprep.mubr.f32.mxu0 0.0
        %2982 = vmatmul.mubr.f32.gmra.mxu0 %v2779
        %v2983 = vpop.f32.mrf.mxu0
        %v2984 = vadd.f32 %v2879, %v2983
        %v2985 = vpop.f32.mrf.mxu0
        %2986 = vmatprep.mubr.f32.mxu0 0.0
        %2987 = vmatmul.mubr.f32.gmra.mxu0 %v2782
        %v2988 = vpop.f32.mrf.mxu0
        %v2989 = vadd.f32 %v2884, %v2988
        %v2990 = vpop.f32.mrf.mxu0
        %2991 = vmatprep.mubr.f32.mxu0 0.0
        %2992 = vmatmul.mubr.f32.gmra.mxu0 %v2785
        %v2993 = vpop.f32.mrf.mxu0
        %v2994 = vadd.f32 %v2889, %v2993
        %v2995 = vpop.f32.mrf.mxu0
        %2996 = vdwg.mxu0
        %s2997 = scalar_lea.vmem %s3, 80
        %v2998 = vld [vmem:[%s2997] sm:$0xff]
        %v2999 = vld [vmem:[%s2997 + $0x8] sm:$0xff]
        %v3001 = vsel %vm1282, %v2959, 0
        %v3004 = vsel %vm1282, %v2964, 0
        %v3007 = vsel %vm1282, %v2969, 0
        %v3010 = vsel %vm1282, %v2974, 0
        %v3013 = vsel %vm1282, %v2979, 0
        %v3016 = vsel %vm1282, %v2984, 0
        %v3019 = vsel %vm1282, %v2989, 0
        %v3022 = vsel %vm1282, %v2994, 0
        %3024 = vmatprep.subr.mxu0 0.0
        %3025 = vmatpush1.msra.mxu0 0.0
        %3026 = vmatprep.subr.mxu0 0.0
        %3027 = vmatpush1.msra.mxu0 0.0
        %3028 = vmatprep.subr.mxu0 0.0
        %3029 = vmatpush1.msra.mxu0 0.0
        %3030 = vmatprep.subr.mxu0 0.0
        %3031 = vmatpush1.msra.mxu0 0.0
        %3032 = vmatprep.subr.mxu0 0.0
        %3033 = vmatpush1.msra.mxu0 0.0
        %3034 = vmatprep.subr.mxu0 0.0
        %3035 = vmatpush1.msra.mxu0 0.0
        %3036 = vmatprep.subr.mxu0 0.0
        %3037 = vmatpush1.msra.mxu0 0.0
        %3038 = vmatprep.subr.mxu0 0.0
        %3039 = vmatpush1.msra.mxu0 0.0
        %3040 = vmatprep.subr.mxu0 0.0
        %3041 = vmatpush1.msra.mxu0 0.0
        %3042 = vmatprep.subr.mxu0 0.0
        %3043 = vmatpush1.msra.mxu0 0.0
        %3044 = vmatprep.subr.mxu0 0.0
        %3045 = vmatpush1.msra.mxu0 0.0
        %3046 = vmatprep.subr.mxu0 0.0
        %3047 = vmatpush1.msra.mxu0 0.0
        %3048 = vmatprep.subr.mxu0 0.0
        %3049 = vmatpush1.msra.mxu0 0.0
        %3050 = vmatprep.subr.mxu0 0.0
        %3051 = vmatpush1.msra.mxu0 0.0
        %3052 = vmatprep.subr.mxu0 0.0
        %3053 = vmatpush1.msra.mxu0 %v2999
        %3054 = vmatprep.subr.mxu0 0.0
        %3055 = vmatpush1.msra.mxu0 %v2998
        %3056 = vmatprep.subr.mxu0 0.0
        %3057 = vmatpush2.msra.mxu0 0.0
        %3058 = vmatprep.subr.mxu0 0.0
        %3059 = vmatpush2.msra.mxu0 0.0
        %3060 = vmatprep.subr.mxu0 0.0
        %3061 = vmatpush2.msra.mxu0 0.0
        %3062 = vmatprep.subr.mxu0 0.0
        %3063 = vmatpush2.msra.mxu0 0.0
        %3064 = vmatprep.subr.mxu0 0.0
        %3065 = vmatpush2.msra.mxu0 0.0
        %3066 = vmatprep.subr.mxu0 0.0
        %3067 = vmatpush2.msra.mxu0 0.0
        %3068 = vmatprep.subr.mxu0 0.0
        %3069 = vmatpush2.msra.mxu0 0.0
        %3070 = vmatprep.subr.mxu0 0.0
        %3071 = vmatpush2.msra.mxu0 0.0
        %3072 = vmatprep.subr.mxu0 0.0
        %3073 = vmatpush2.msra.mxu0 0.0
        %3074 = vmatprep.subr.mxu0 0.0
        %3075 = vmatpush2.msra.mxu0 0.0
        %3076 = vmatprep.subr.mxu0 0.0
        %3077 = vmatpush2.msra.mxu0 0.0
        %3078 = vmatprep.subr.mxu0 0.0
        %3079 = vmatpush2.msra.mxu0 0.0
        %3080 = vmatprep.subr.mxu0 0.0
        %3081 = vmatpush2.msra.mxu0 0.0
        %3082 = vmatprep.subr.mxu0 0.0
        %3083 = vmatpush2.msra.mxu0 0.0
        %3084 = vmatprep.subr.mxu0 0.0
        %3085 = vmatpush2.msra.mxu0 0.0
        %3086 = vmatprep.subr.mxu0 0.0
        %3087 = vmatpush2.msra.mxu0 0.0
        %3088 = vmatprep.mubr.f32.mxu0 0.0
        %3089 = vmatmul.mubr.f32.gmra.mxu0 %v3001
        %v3090 = vpop.f32.mrf.mxu0
        %v3091 = vadd.f32 0.0, %v3090
        %v3092 = vpop.f32.mrf.mxu0
        %3093 = vmatprep.mubr.f32.mxu0 0.0
        %3094 = vmatmul.mubr.f32.gmra.mxu0 %v3004
        %v3095 = vpop.f32.mrf.mxu0
        %v3096 = vadd.f32 0.0, %v3095
        %v3097 = vpop.f32.mrf.mxu0
        %3098 = vmatprep.mubr.f32.mxu0 0.0
        %3099 = vmatmul.mubr.f32.gmra.mxu0 %v3007
        %v3100 = vpop.f32.mrf.mxu0
        %v3101 = vadd.f32 0.0, %v3100
        %v3102 = vpop.f32.mrf.mxu0
        %3103 = vmatprep.mubr.f32.mxu0 0.0
        %3104 = vmatmul.mubr.f32.gmra.mxu0 %v3010
        %v3105 = vpop.f32.mrf.mxu0
        %v3106 = vadd.f32 0.0, %v3105
        %v3107 = vpop.f32.mrf.mxu0
        %3108 = vmatprep.mubr.f32.mxu0 0.0
        %3109 = vmatmul.mubr.f32.gmra.mxu0 %v3013
        %v3110 = vpop.f32.mrf.mxu0
        %v3111 = vadd.f32 0.0, %v3110
        %v3112 = vpop.f32.mrf.mxu0
        %3113 = vmatprep.mubr.f32.mxu0 0.0
        %3114 = vmatmul.mubr.f32.gmra.mxu0 %v3016
        %v3115 = vpop.f32.mrf.mxu0
        %v3116 = vadd.f32 0.0, %v3115
        %v3117 = vpop.f32.mrf.mxu0
        %3118 = vmatprep.mubr.f32.mxu0 0.0
        %3119 = vmatmul.mubr.f32.gmra.mxu0 %v3019
        %v3120 = vpop.f32.mrf.mxu0
        %v3121 = vadd.f32 0.0, %v3120
        %v3122 = vpop.f32.mrf.mxu0
        %3123 = vmatprep.mubr.f32.mxu0 0.0
        %3124 = vmatmul.mubr.f32.gmra.mxu0 %v3022
        %v3125 = vpop.f32.mrf.mxu0
        %v3126 = vadd.f32 0.0, %v3125
        %v3127 = vpop.f32.mrf.mxu0
        %3128 = vdwg.mxu0
        %v3129 = vadd.f32 %v2730, %v3091
        %v3130 = vadd.f32 %v2731, %v3096
        %v3131 = vadd.f32 %v2732, %v3101
        %v3132 = vadd.f32 %v2733, %v3106
        %v3133 = vadd.f32 %v2734, %v3111
        %v3134 = vadd.f32 %v2735, %v3116
        %v3135 = vadd.f32 %v2736, %v3121
        %v3136 = vadd.f32 %v2737, %v3126
        %s3137 = scalar_lea.vmem %s2, 1152
        %v3138 = vld [vmem:[%s3137] sm:$0xff]
        %v3139 = vld [vmem:[%s3137 + $0x8] sm:$0xff]
        %v3140 = vld [vmem:[%s3137 + $0x10] sm:$0xff]
        %v3141 = vld [vmem:[%s3137 + $0x18] sm:$0xff]
        %v3142 = vld [vmem:[%s3137 + $0x20] sm:$0xff]
        %v3143 = vld [vmem:[%s3137 + $0x28] sm:$0xff]
        %v3144 = vld [vmem:[%s3137 + $0x30] sm:$0xff]
        %v3145 = vld [vmem:[%s3137 + $0x38] sm:$0xff]
        %v3146 = vld [vmem:[%s3137 + $0x40] sm:$0xff]
        %v3147 = vld [vmem:[%s3137 + $0x48] sm:$0xff]
        %v3148 = vld [vmem:[%s3137 + $0x50] sm:$0xff]
        %v3149 = vld [vmem:[%s3137 + $0x58] sm:$0xff]
        %v3150 = vld [vmem:[%s3137 + $0x60] sm:$0xff]
        %v3151 = vld [vmem:[%s3137 + $0x68] sm:$0xff]
        %v3152 = vld [vmem:[%s3137 + $0x70] sm:$0xff]
        %v3153 = vld [vmem:[%s3137 + $0x78] sm:$0xff]
        %v3154 = vld [vmem:[%s3137 + $0x80] sm:$0xff]
        %v3155 = vld [vmem:[%s3137 + $0x88] sm:$0xff]
        %v3156 = vld [vmem:[%s3137 + $0x90] sm:$0xff]
        %v3157 = vld [vmem:[%s3137 + $0x98] sm:$0xff]
        %v3158 = vld [vmem:[%s3137 + $0xa0] sm:$0xff]
        %v3159 = vld [vmem:[%s3137 + $0xa8] sm:$0xff]
        %v3160 = vld [vmem:[%s3137 + $0xb0] sm:$0xff]
        %v3161 = vld [vmem:[%s3137 + $0xb8] sm:$0xff]
        %v3163 = vsel %vm779, %v3140, 0
        %v3166 = vsel %vm779, %v3143, 0
        %v3169 = vsel %vm779, %v3146, 0
        %v3172 = vsel %vm779, %v3149, 0
        %v3175 = vsel %vm779, %v3152, 0
        %v3178 = vsel %vm779, %v3155, 0
        %v3181 = vsel %vm779, %v3158, 0
        %v3184 = vsel %vm779, %v3161, 0
        %3186 = vmatprep.subr.mxu0 0.0
        %3187 = vmatpush1.msra.mxu0 %v729
        %3188 = vmatprep.subr.mxu0 0.0
        %3189 = vmatpush1.msra.mxu0 %v728
        %3190 = vmatprep.subr.mxu0 0.0
        %3191 = vmatpush1.msra.mxu0 %v727
        %3192 = vmatprep.subr.mxu0 0.0
        %3193 = vmatpush1.msra.mxu0 %v726
        %3194 = vmatprep.subr.mxu0 0.0
        %3195 = vmatpush1.msra.mxu0 %v725
        %3196 = vmatprep.subr.mxu0 0.0
        %3197 = vmatpush1.msra.mxu0 %v724
        %3198 = vmatprep.subr.mxu0 0.0
        %3199 = vmatpush1.msra.mxu0 %v723
        %3200 = vmatprep.subr.mxu0 0.0
        %3201 = vmatpush1.msra.mxu0 %v722
        %3202 = vmatprep.subr.mxu0 0.0
        %3203 = vmatpush1.msra.mxu0 %v721
        %3204 = vmatprep.subr.mxu0 0.0
        %3205 = vmatpush1.msra.mxu0 %v720
        %3206 = vmatprep.subr.mxu0 0.0
        %3207 = vmatpush1.msra.mxu0 %v719
        %3208 = vmatprep.subr.mxu0 0.0
        %3209 = vmatpush1.msra.mxu0 %v718
        %3210 = vmatprep.subr.mxu0 0.0
        %3211 = vmatpush1.msra.mxu0 %v717
        %3212 = vmatprep.subr.mxu0 0.0
        %3213 = vmatpush1.msra.mxu0 %v716
        %3214 = vmatprep.subr.mxu0 0.0
        %3215 = vmatpush1.msra.mxu0 %v715
        %3216 = vmatprep.subr.mxu0 0.0
        %3217 = vmatpush1.msra.mxu0 %v714
        %3218 = vmatprep.subr.mxu0 0.0
        %3219 = vmatpush2.msra.mxu0 %v745
        %3220 = vmatprep.subr.mxu0 0.0
        %3221 = vmatpush2.msra.mxu0 %v744
        %3222 = vmatprep.subr.mxu0 0.0
        %3223 = vmatpush2.msra.mxu0 %v743
        %3224 = vmatprep.subr.mxu0 0.0
        %3225 = vmatpush2.msra.mxu0 %v742
        %3226 = vmatprep.subr.mxu0 0.0
        %3227 = vmatpush2.msra.mxu0 %v741
        %3228 = vmatprep.subr.mxu0 0.0
        %3229 = vmatpush2.msra.mxu0 %v740
        %3230 = vmatprep.subr.mxu0 0.0
        %3231 = vmatpush2.msra.mxu0 %v739
        %3232 = vmatprep.subr.mxu0 0.0
        %3233 = vmatpush2.msra.mxu0 %v738
        %3234 = vmatprep.subr.mxu0 0.0
        %3235 = vmatpush2.msra.mxu0 %v737
        %3236 = vmatprep.subr.mxu0 0.0
        %3237 = vmatpush2.msra.mxu0 %v736
        %3238 = vmatprep.subr.mxu0 0.0
        %3239 = vmatpush2.msra.mxu0 %v735
        %3240 = vmatprep.subr.mxu0 0.0
        %3241 = vmatpush2.msra.mxu0 %v734
        %3242 = vmatprep.subr.mxu0 0.0
        %3243 = vmatpush2.msra.mxu0 %v733
        %3244 = vmatprep.subr.mxu0 0.0
        %3245 = vmatpush2.msra.mxu0 %v732
        %3246 = vmatprep.subr.mxu0 0.0
        %3247 = vmatpush2.msra.mxu0 %v731
        %3248 = vmatprep.subr.mxu0 0.0
        %3249 = vmatpush2.msra.mxu0 %v730
        %3250 = vmatprep.mubr.f32.mxu0 %v3139
        %3251 = vmatmul.mubr.f32.gmra.mxu0 %v3138
        %v3252 = vpop.f32.mrf.mxu0
        %v3253 = vadd.f32 0.0, %v3252
        %v3254 = vpop.f32.mrf.mxu0
        %3255 = vmatprep.mubr.f32.mxu0 %v3142
        %3256 = vmatmul.mubr.f32.gmra.mxu0 %v3141
        %v3257 = vpop.f32.mrf.mxu0
        %v3258 = vadd.f32 0.0, %v3257
        %v3259 = vpop.f32.mrf.mxu0
        %3260 = vmatprep.mubr.f32.mxu0 %v3145
        %3261 = vmatmul.mubr.f32.gmra.mxu0 %v3144
        %v3262 = vpop.f32.mrf.mxu0
        %v3263 = vadd.f32 0.0, %v3262
        %v3264 = vpop.f32.mrf.mxu0
        %3265 = vmatprep.mubr.f32.mxu0 %v3148
        %3266 = vmatmul.mubr.f32.gmra.mxu0 %v3147
        %v3267 = vpop.f32.mrf.mxu0
        %v3268 = vadd.f32 0.0, %v3267
        %v3269 = vpop.f32.mrf.mxu0
        %3270 = vmatprep.mubr.f32.mxu0 %v3151
        %3271 = vmatmul.mubr.f32.gmra.mxu0 %v3150
        %v3272 = vpop.f32.mrf.mxu0
        %v3273 = vadd.f32 0.0, %v3272
        %v3274 = vpop.f32.mrf.mxu0
        %3275 = vmatprep.mubr.f32.mxu0 %v3154
        %3276 = vmatmul.mubr.f32.gmra.mxu0 %v3153
        %v3277 = vpop.f32.mrf.mxu0
        %v3278 = vadd.f32 0.0, %v3277
        %v3279 = vpop.f32.mrf.mxu0
        %3280 = vmatprep.mubr.f32.mxu0 %v3157
        %3281 = vmatmul.mubr.f32.gmra.mxu0 %v3156
        %v3282 = vpop.f32.mrf.mxu0
        %v3283 = vadd.f32 0.0, %v3282
        %v3284 = vpop.f32.mrf.mxu0
        %3285 = vmatprep.mubr.f32.mxu0 %v3160
        %3286 = vmatmul.mubr.f32.gmra.mxu0 %v3159
        %v3287 = vpop.f32.mrf.mxu0
        %v3288 = vadd.f32 0.0, %v3287
        %v3289 = vpop.f32.mrf.mxu0
        %3290 = vdwg.mxu0
        %3291 = vmatprep.subr.mxu0 0.0
        %3292 = vmatpush1.msra.mxu0 0.0
        %3293 = vmatprep.subr.mxu0 0.0
        %3294 = vmatpush1.msra.mxu0 0.0
        %3295 = vmatprep.subr.mxu0 0.0
        %3296 = vmatpush1.msra.mxu0 0.0
        %3297 = vmatprep.subr.mxu0 0.0
        %3298 = vmatpush1.msra.mxu0 0.0
        %3299 = vmatprep.subr.mxu0 0.0
        %3300 = vmatpush1.msra.mxu0 0.0
        %3301 = vmatprep.subr.mxu0 0.0
        %3302 = vmatpush1.msra.mxu0 0.0
        %3303 = vmatprep.subr.mxu0 0.0
        %3304 = vmatpush1.msra.mxu0 0.0
        %3305 = vmatprep.subr.mxu0 0.0
        %3306 = vmatpush1.msra.mxu0 %v806
        %3307 = vmatprep.subr.mxu0 0.0
        %3308 = vmatpush1.msra.mxu0 %v753
        %3309 = vmatprep.subr.mxu0 0.0
        %3310 = vmatpush1.msra.mxu0 %v752
        %3311 = vmatprep.subr.mxu0 0.0
        %3312 = vmatpush1.msra.mxu0 %v751
        %3313 = vmatprep.subr.mxu0 0.0
        %3314 = vmatpush1.msra.mxu0 %v750
        %3315 = vmatprep.subr.mxu0 0.0
        %3316 = vmatpush1.msra.mxu0 %v749
        %3317 = vmatprep.subr.mxu0 0.0
        %3318 = vmatpush1.msra.mxu0 %v748
        %3319 = vmatprep.subr.mxu0 0.0
        %3320 = vmatpush1.msra.mxu0 %v747
        %3321 = vmatprep.subr.mxu0 0.0
        %3322 = vmatpush1.msra.mxu0 %v746
        %3323 = vmatprep.subr.mxu0 0.0
        %3324 = vmatpush2.msra.mxu0 0.0
        %3325 = vmatprep.subr.mxu0 0.0
        %3326 = vmatpush2.msra.mxu0 0.0
        %3327 = vmatprep.subr.mxu0 0.0
        %3328 = vmatpush2.msra.mxu0 0.0
        %3329 = vmatprep.subr.mxu0 0.0
        %3330 = vmatpush2.msra.mxu0 0.0
        %3331 = vmatprep.subr.mxu0 0.0
        %3332 = vmatpush2.msra.mxu0 0.0
        %3333 = vmatprep.subr.mxu0 0.0
        %3334 = vmatpush2.msra.mxu0 0.0
        %3335 = vmatprep.subr.mxu0 0.0
        %3336 = vmatpush2.msra.mxu0 0.0
        %3337 = vmatprep.subr.mxu0 0.0
        %3338 = vmatpush2.msra.mxu0 0.0
        %3339 = vmatprep.subr.mxu0 0.0
        %3340 = vmatpush2.msra.mxu0 0.0
        %3341 = vmatprep.subr.mxu0 0.0
        %3342 = vmatpush2.msra.mxu0 0.0
        %3343 = vmatprep.subr.mxu0 0.0
        %3344 = vmatpush2.msra.mxu0 0.0
        %3345 = vmatprep.subr.mxu0 0.0
        %3346 = vmatpush2.msra.mxu0 0.0
        %3347 = vmatprep.subr.mxu0 0.0
        %3348 = vmatpush2.msra.mxu0 0.0
        %3349 = vmatprep.subr.mxu0 0.0
        %3350 = vmatpush2.msra.mxu0 0.0
        %3351 = vmatprep.subr.mxu0 0.0
        %3352 = vmatpush2.msra.mxu0 0.0
        %3353 = vmatprep.subr.mxu0 0.0
        %3354 = vmatpush2.msra.mxu0 0.0
        %3355 = vmatprep.mubr.f32.mxu0 0.0
        %3356 = vmatmul.mubr.f32.gmra.mxu0 %v3163
        %v3357 = vpop.f32.mrf.mxu0
        %v3358 = vadd.f32 %v3253, %v3357
        %v3359 = vpop.f32.mrf.mxu0
        %3360 = vmatprep.mubr.f32.mxu0 0.0
        %3361 = vmatmul.mubr.f32.gmra.mxu0 %v3166
        %v3362 = vpop.f32.mrf.mxu0
        %v3363 = vadd.f32 %v3258, %v3362
        %v3364 = vpop.f32.mrf.mxu0
        %3365 = vmatprep.mubr.f32.mxu0 0.0
        %3366 = vmatmul.mubr.f32.gmra.mxu0 %v3169
        %v3367 = vpop.f32.mrf.mxu0
        %v3368 = vadd.f32 %v3263, %v3367
        %v3369 = vpop.f32.mrf.mxu0
        %3370 = vmatprep.mubr.f32.mxu0 0.0
        %3371 = vmatmul.mubr.f32.gmra.mxu0 %v3172
        %v3372 = vpop.f32.mrf.mxu0
        %v3373 = vadd.f32 %v3268, %v3372
        %v3374 = vpop.f32.mrf.mxu0
        %3375 = vmatprep.mubr.f32.mxu0 0.0
        %3376 = vmatmul.mubr.f32.gmra.mxu0 %v3175
        %v3377 = vpop.f32.mrf.mxu0
        %v3378 = vadd.f32 %v3273, %v3377
        %v3379 = vpop.f32.mrf.mxu0
        %3380 = vmatprep.mubr.f32.mxu0 0.0
        %3381 = vmatmul.mubr.f32.gmra.mxu0 %v3178
        %v3382 = vpop.f32.mrf.mxu0
        %v3383 = vadd.f32 %v3278, %v3382
        %v3384 = vpop.f32.mrf.mxu0
        %3385 = vmatprep.mubr.f32.mxu0 0.0
        %3386 = vmatmul.mubr.f32.gmra.mxu0 %v3181
        %v3387 = vpop.f32.mrf.mxu0
        %v3388 = vadd.f32 %v3283, %v3387
        %v3389 = vpop.f32.mrf.mxu0
        %3390 = vmatprep.mubr.f32.mxu0 0.0
        %3391 = vmatmul.mubr.f32.gmra.mxu0 %v3184
        %v3392 = vpop.f32.mrf.mxu0
        %v3393 = vadd.f32 %v3288, %v3392
        %v3394 = vpop.f32.mrf.mxu0
        %3395 = vdwg.mxu0
        %s3396 = scalar_lea.vmem %s3, 96
        %v3397 = vld [vmem:[%s3396] sm:$0xff]
        %v3398 = vld [vmem:[%s3396 + $0x8] sm:$0xff]
        %v3400 = vsel %vm1282, %v3358, 0
        %v3403 = vsel %vm1282, %v3363, 0
        %v3406 = vsel %vm1282, %v3368, 0
        %v3409 = vsel %vm1282, %v3373, 0
        %v3412 = vsel %vm1282, %v3378, 0
        %v3415 = vsel %vm1282, %v3383, 0
        %v3418 = vsel %vm1282, %v3388, 0
        %v3421 = vsel %vm1282, %v3393, 0
        %3423 = vmatprep.subr.mxu0 0.0
        %3424 = vmatpush1.msra.mxu0 0.0
        %3425 = vmatprep.subr.mxu0 0.0
        %3426 = vmatpush1.msra.mxu0 0.0
        %3427 = vmatprep.subr.mxu0 0.0
        %3428 = vmatpush1.msra.mxu0 0.0
        %3429 = vmatprep.subr.mxu0 0.0
        %3430 = vmatpush1.msra.mxu0 0.0
        %3431 = vmatprep.subr.mxu0 0.0
        %3432 = vmatpush1.msra.mxu0 0.0
        %3433 = vmatprep.subr.mxu0 0.0
        %3434 = vmatpush1.msra.mxu0 0.0
        %3435 = vmatprep.subr.mxu0 0.0
        %3436 = vmatpush1.msra.mxu0 0.0
        %3437 = vmatprep.subr.mxu0 0.0
        %3438 = vmatpush1.msra.mxu0 0.0
        %3439 = vmatprep.subr.mxu0 0.0
        %3440 = vmatpush1.msra.mxu0 0.0
        %3441 = vmatprep.subr.mxu0 0.0
        %3442 = vmatpush1.msra.mxu0 0.0
        %3443 = vmatprep.subr.mxu0 0.0
        %3444 = vmatpush1.msra.mxu0 0.0
        %3445 = vmatprep.subr.mxu0 0.0
        %3446 = vmatpush1.msra.mxu0 0.0
        %3447 = vmatprep.subr.mxu0 0.0
        %3448 = vmatpush1.msra.mxu0 0.0
        %3449 = vmatprep.subr.mxu0 0.0
        %3450 = vmatpush1.msra.mxu0 0.0
        %3451 = vmatprep.subr.mxu0 0.0
        %3452 = vmatpush1.msra.mxu0 %v3398
        %3453 = vmatprep.subr.mxu0 0.0
        %3454 = vmatpush1.msra.mxu0 %v3397
        %3455 = vmatprep.subr.mxu0 0.0
        %3456 = vmatpush2.msra.mxu0 0.0
        %3457 = vmatprep.subr.mxu0 0.0
        %3458 = vmatpush2.msra.mxu0 0.0
        %3459 = vmatprep.subr.mxu0 0.0
        %3460 = vmatpush2.msra.mxu0 0.0
        %3461 = vmatprep.subr.mxu0 0.0
        %3462 = vmatpush2.msra.mxu0 0.0
        %3463 = vmatprep.subr.mxu0 0.0
        %3464 = vmatpush2.msra.mxu0 0.0
        %3465 = vmatprep.subr.mxu0 0.0
        %3466 = vmatpush2.msra.mxu0 0.0
        %3467 = vmatprep.subr.mxu0 0.0
        %3468 = vmatpush2.msra.mxu0 0.0
        %3469 = vmatprep.subr.mxu0 0.0
        %3470 = vmatpush2.msra.mxu0 0.0
        %3471 = vmatprep.subr.mxu0 0.0
        %3472 = vmatpush2.msra.mxu0 0.0
        %3473 = vmatprep.subr.mxu0 0.0
        %3474 = vmatpush2.msra.mxu0 0.0
        %3475 = vmatprep.subr.mxu0 0.0
        %3476 = vmatpush2.msra.mxu0 0.0
        %3477 = vmatprep.subr.mxu0 0.0
        %3478 = vmatpush2.msra.mxu0 0.0
        %3479 = vmatprep.subr.mxu0 0.0
        %3480 = vmatpush2.msra.mxu0 0.0
        %3481 = vmatprep.subr.mxu0 0.0
        %3482 = vmatpush2.msra.mxu0 0.0
        %3483 = vmatprep.subr.mxu0 0.0
        %3484 = vmatpush2.msra.mxu0 0.0
        %3485 = vmatprep.subr.mxu0 0.0
        %3486 = vmatpush2.msra.mxu0 0.0
        %3487 = vmatprep.mubr.f32.mxu0 0.0
        %3488 = vmatmul.mubr.f32.gmra.mxu0 %v3400
        %v3489 = vpop.f32.mrf.mxu0
        %v3490 = vadd.f32 0.0, %v3489
        %v3491 = vpop.f32.mrf.mxu0
        %3492 = vmatprep.mubr.f32.mxu0 0.0
        %3493 = vmatmul.mubr.f32.gmra.mxu0 %v3403
        %v3494 = vpop.f32.mrf.mxu0
        %v3495 = vadd.f32 0.0, %v3494
        %v3496 = vpop.f32.mrf.mxu0
        %3497 = vmatprep.mubr.f32.mxu0 0.0
        %3498 = vmatmul.mubr.f32.gmra.mxu0 %v3406
        %v3499 = vpop.f32.mrf.mxu0
        %v3500 = vadd.f32 0.0, %v3499
        %v3501 = vpop.f32.mrf.mxu0
        %3502 = vmatprep.mubr.f32.mxu0 0.0
        %3503 = vmatmul.mubr.f32.gmra.mxu0 %v3409
        %v3504 = vpop.f32.mrf.mxu0
        %v3505 = vadd.f32 0.0, %v3504
        %v3506 = vpop.f32.mrf.mxu0
        %3507 = vmatprep.mubr.f32.mxu0 0.0
        %3508 = vmatmul.mubr.f32.gmra.mxu0 %v3412
        %v3509 = vpop.f32.mrf.mxu0
        %v3510 = vadd.f32 0.0, %v3509
        %v3511 = vpop.f32.mrf.mxu0
        %3512 = vmatprep.mubr.f32.mxu0 0.0
        %3513 = vmatmul.mubr.f32.gmra.mxu0 %v3415
        %v3514 = vpop.f32.mrf.mxu0
        %v3515 = vadd.f32 0.0, %v3514
        %v3516 = vpop.f32.mrf.mxu0
        %3517 = vmatprep.mubr.f32.mxu0 0.0
        %3518 = vmatmul.mubr.f32.gmra.mxu0 %v3418
        %v3519 = vpop.f32.mrf.mxu0
        %v3520 = vadd.f32 0.0, %v3519
        %v3521 = vpop.f32.mrf.mxu0
        %3522 = vmatprep.mubr.f32.mxu0 0.0
        %3523 = vmatmul.mubr.f32.gmra.mxu0 %v3421
        %v3524 = vpop.f32.mrf.mxu0
        %v3525 = vadd.f32 0.0, %v3524
        %v3526 = vpop.f32.mrf.mxu0
        %3527 = vdwg.mxu0
        %v3528 = vadd.f32 %v3129, %v3490
        %v3529 = vadd.f32 %v3130, %v3495
        %v3530 = vadd.f32 %v3131, %v3500
        %v3531 = vadd.f32 %v3132, %v3505
        %v3532 = vadd.f32 %v3133, %v3510
        %v3533 = vadd.f32 %v3134, %v3515
        %v3534 = vadd.f32 %v3135, %v3520
        %v3535 = vadd.f32 %v3136, %v3525
        %s3536 = scalar_lea.vmem %s2, 1344
        %v3537 = vld [vmem:[%s3536] sm:$0xff]
        %v3538 = vld [vmem:[%s3536 + $0x8] sm:$0xff]
        %v3539 = vld [vmem:[%s3536 + $0x10] sm:$0xff]
        %v3540 = vld [vmem:[%s3536 + $0x18] sm:$0xff]
        %v3541 = vld [vmem:[%s3536 + $0x20] sm:$0xff]
        %v3542 = vld [vmem:[%s3536 + $0x28] sm:$0xff]
        %v3543 = vld [vmem:[%s3536 + $0x30] sm:$0xff]
        %v3544 = vld [vmem:[%s3536 + $0x38] sm:$0xff]
        %v3545 = vld [vmem:[%s3536 + $0x40] sm:$0xff]
        %v3546 = vld [vmem:[%s3536 + $0x48] sm:$0xff]
        %v3547 = vld [vmem:[%s3536 + $0x50] sm:$0xff]
        %v3548 = vld [vmem:[%s3536 + $0x58] sm:$0xff]
        %v3549 = vld [vmem:[%s3536 + $0x60] sm:$0xff]
        %v3550 = vld [vmem:[%s3536 + $0x68] sm:$0xff]
        %v3551 = vld [vmem:[%s3536 + $0x70] sm:$0xff]
        %v3552 = vld [vmem:[%s3536 + $0x78] sm:$0xff]
        %v3553 = vld [vmem:[%s3536 + $0x80] sm:$0xff]
        %v3554 = vld [vmem:[%s3536 + $0x88] sm:$0xff]
        %v3555 = vld [vmem:[%s3536 + $0x90] sm:$0xff]
        %v3556 = vld [vmem:[%s3536 + $0x98] sm:$0xff]
        %v3557 = vld [vmem:[%s3536 + $0xa0] sm:$0xff]
        %v3558 = vld [vmem:[%s3536 + $0xa8] sm:$0xff]
        %v3559 = vld [vmem:[%s3536 + $0xb0] sm:$0xff]
        %v3560 = vld [vmem:[%s3536 + $0xb8] sm:$0xff]
        %v3562 = vsel %vm779, %v3539, 0
        %v3565 = vsel %vm779, %v3542, 0
        %v3568 = vsel %vm779, %v3545, 0
        %v3571 = vsel %vm779, %v3548, 0
        %v3574 = vsel %vm779, %v3551, 0
        %v3577 = vsel %vm779, %v3554, 0
        %v3580 = vsel %vm779, %v3557, 0
        %v3583 = vsel %vm779, %v3560, 0
        %3585 = vmatprep.subr.mxu0 0.0
        %3586 = vmatpush1.msra.mxu0 %v729
        %3587 = vmatprep.subr.mxu0 0.0
        %3588 = vmatpush1.msra.mxu0 %v728
        %3589 = vmatprep.subr.mxu0 0.0
        %3590 = vmatpush1.msra.mxu0 %v727
        %3591 = vmatprep.subr.mxu0 0.0
        %3592 = vmatpush1.msra.mxu0 %v726
        %3593 = vmatprep.subr.mxu0 0.0
        %3594 = vmatpush1.msra.mxu0 %v725
        %3595 = vmatprep.subr.mxu0 0.0
        %3596 = vmatpush1.msra.mxu0 %v724
        %3597 = vmatprep.subr.mxu0 0.0
        %3598 = vmatpush1.msra.mxu0 %v723
        %3599 = vmatprep.subr.mxu0 0.0
        %3600 = vmatpush1.msra.mxu0 %v722
        %3601 = vmatprep.subr.mxu0 0.0
        %3602 = vmatpush1.msra.mxu0 %v721
        %3603 = vmatprep.subr.mxu0 0.0
        %3604 = vmatpush1.msra.mxu0 %v720
        %3605 = vmatprep.subr.mxu0 0.0
        %3606 = vmatpush1.msra.mxu0 %v719
        %3607 = vmatprep.subr.mxu0 0.0
        %3608 = vmatpush1.msra.mxu0 %v718
        %3609 = vmatprep.subr.mxu0 0.0
        %3610 = vmatpush1.msra.mxu0 %v717
        %3611 = vmatprep.subr.mxu0 0.0
        %3612 = vmatpush1.msra.mxu0 %v716
        %3613 = vmatprep.subr.mxu0 0.0
        %3614 = vmatpush1.msra.mxu0 %v715
        %3615 = vmatprep.subr.mxu0 0.0
        %3616 = vmatpush1.msra.mxu0 %v714
        %3617 = vmatprep.subr.mxu0 0.0
        %3618 = vmatpush2.msra.mxu0 %v745
        %3619 = vmatprep.subr.mxu0 0.0
        %3620 = vmatpush2.msra.mxu0 %v744
        %3621 = vmatprep.subr.mxu0 0.0
        %3622 = vmatpush2.msra.mxu0 %v743
        %3623 = vmatprep.subr.mxu0 0.0
        %3624 = vmatpush2.msra.mxu0 %v742
        %3625 = vmatprep.subr.mxu0 0.0
        %3626 = vmatpush2.msra.mxu0 %v741
        %3627 = vmatprep.subr.mxu0 0.0
        %3628 = vmatpush2.msra.mxu0 %v740
        %3629 = vmatprep.subr.mxu0 0.0
        %3630 = vmatpush2.msra.mxu0 %v739
        %3631 = vmatprep.subr.mxu0 0.0
        %3632 = vmatpush2.msra.mxu0 %v738
        %3633 = vmatprep.subr.mxu0 0.0
        %3634 = vmatpush2.msra.mxu0 %v737
        %3635 = vmatprep.subr.mxu0 0.0
        %3636 = vmatpush2.msra.mxu0 %v736
        %3637 = vmatprep.subr.mxu0 0.0
        %3638 = vmatpush2.msra.mxu0 %v735
        %3639 = vmatprep.subr.mxu0 0.0
        %3640 = vmatpush2.msra.mxu0 %v734
        %3641 = vmatprep.subr.mxu0 0.0
        %3642 = vmatpush2.msra.mxu0 %v733
        %3643 = vmatprep.subr.mxu0 0.0
        %3644 = vmatpush2.msra.mxu0 %v732
        %3645 = vmatprep.subr.mxu0 0.0
        %3646 = vmatpush2.msra.mxu0 %v731
        %3647 = vmatprep.subr.mxu0 0.0
        %3648 = vmatpush2.msra.mxu0 %v730
        %3649 = vmatprep.mubr.f32.mxu0 %v3538
        %3650 = vmatmul.mubr.f32.gmra.mxu0 %v3537
        %v3651 = vpop.f32.mrf.mxu0
        %v3652 = vadd.f32 0.0, %v3651
        %v3653 = vpop.f32.mrf.mxu0
        %3654 = vmatprep.mubr.f32.mxu0 %v3541
        %3655 = vmatmul.mubr.f32.gmra.mxu0 %v3540
        %v3656 = vpop.f32.mrf.mxu0
        %v3657 = vadd.f32 0.0, %v3656
        %v3658 = vpop.f32.mrf.mxu0
        %3659 = vmatprep.mubr.f32.mxu0 %v3544
        %3660 = vmatmul.mubr.f32.gmra.mxu0 %v3543
        %v3661 = vpop.f32.mrf.mxu0
        %v3662 = vadd.f32 0.0, %v3661
        %v3663 = vpop.f32.mrf.mxu0
        %3664 = vmatprep.mubr.f32.mxu0 %v3547
        %3665 = vmatmul.mubr.f32.gmra.mxu0 %v3546
        %v3666 = vpop.f32.mrf.mxu0
        %v3667 = vadd.f32 0.0, %v3666
        %v3668 = vpop.f32.mrf.mxu0
        %3669 = vmatprep.mubr.f32.mxu0 %v3550
        %3670 = vmatmul.mubr.f32.gmra.mxu0 %v3549
        %v3671 = vpop.f32.mrf.mxu0
        %v3672 = vadd.f32 0.0, %v3671
        %v3673 = vpop.f32.mrf.mxu0
        %3674 = vmatprep.mubr.f32.mxu0 %v3553
        %3675 = vmatmul.mubr.f32.gmra.mxu0 %v3552
        %v3676 = vpop.f32.mrf.mxu0
        %v3677 = vadd.f32 0.0, %v3676
        %v3678 = vpop.f32.mrf.mxu0
        %3679 = vmatprep.mubr.f32.mxu0 %v3556
        %3680 = vmatmul.mubr.f32.gmra.mxu0 %v3555
        %v3681 = vpop.f32.mrf.mxu0
        %v3682 = vadd.f32 0.0, %v3681
        %v3683 = vpop.f32.mrf.mxu0
        %3684 = vmatprep.mubr.f32.mxu0 %v3559
        %3685 = vmatmul.mubr.f32.gmra.mxu0 %v3558
        %v3686 = vpop.f32.mrf.mxu0
        %v3687 = vadd.f32 0.0, %v3686
        %v3688 = vpop.f32.mrf.mxu0
        %3689 = vdwg.mxu0
        %3690 = vmatprep.subr.mxu0 0.0
        %3691 = vmatpush1.msra.mxu0 0.0
        %3692 = vmatprep.subr.mxu0 0.0
        %3693 = vmatpush1.msra.mxu0 0.0
        %3694 = vmatprep.subr.mxu0 0.0
        %3695 = vmatpush1.msra.mxu0 0.0
        %3696 = vmatprep.subr.mxu0 0.0
        %3697 = vmatpush1.msra.mxu0 0.0
        %3698 = vmatprep.subr.mxu0 0.0
        %3699 = vmatpush1.msra.mxu0 0.0
        %3700 = vmatprep.subr.mxu0 0.0
        %3701 = vmatpush1.msra.mxu0 0.0
        %3702 = vmatprep.subr.mxu0 0.0
        %3703 = vmatpush1.msra.mxu0 0.0
        %3704 = vmatprep.subr.mxu0 0.0
        %3705 = vmatpush1.msra.mxu0 %v806
        %3706 = vmatprep.subr.mxu0 0.0
        %3707 = vmatpush1.msra.mxu0 %v753
        %3708 = vmatprep.subr.mxu0 0.0
        %3709 = vmatpush1.msra.mxu0 %v752
        %3710 = vmatprep.subr.mxu0 0.0
        %3711 = vmatpush1.msra.mxu0 %v751
        %3712 = vmatprep.subr.mxu0 0.0
        %3713 = vmatpush1.msra.mxu0 %v750
        %3714 = vmatprep.subr.mxu0 0.0
        %3715 = vmatpush1.msra.mxu0 %v749
        %3716 = vmatprep.subr.mxu0 0.0
        %3717 = vmatpush1.msra.mxu0 %v748
        %3718 = vmatprep.subr.mxu0 0.0
        %3719 = vmatpush1.msra.mxu0 %v747
        %3720 = vmatprep.subr.mxu0 0.0
        %3721 = vmatpush1.msra.mxu0 %v746
        %3722 = vmatprep.subr.mxu0 0.0
        %3723 = vmatpush2.msra.mxu0 0.0
        %3724 = vmatprep.subr.mxu0 0.0
        %3725 = vmatpush2.msra.mxu0 0.0
        %3726 = vmatprep.subr.mxu0 0.0
        %3727 = vmatpush2.msra.mxu0 0.0
        %3728 = vmatprep.subr.mxu0 0.0
        %3729 = vmatpush2.msra.mxu0 0.0
        %3730 = vmatprep.subr.mxu0 0.0
        %3731 = vmatpush2.msra.mxu0 0.0
        %3732 = vmatprep.subr.mxu0 0.0
        %3733 = vmatpush2.msra.mxu0 0.0
        %3734 = vmatprep.subr.mxu0 0.0
        %3735 = vmatpush2.msra.mxu0 0.0
        %3736 = vmatprep.subr.mxu0 0.0
        %3737 = vmatpush2.msra.mxu0 0.0
        %3738 = vmatprep.subr.mxu0 0.0
        %3739 = vmatpush2.msra.mxu0 0.0
        %3740 = vmatprep.subr.mxu0 0.0
        %3741 = vmatpush2.msra.mxu0 0.0
        %3742 = vmatprep.subr.mxu0 0.0
        %3743 = vmatpush2.msra.mxu0 0.0
        %3744 = vmatprep.subr.mxu0 0.0
        %3745 = vmatpush2.msra.mxu0 0.0
        %3746 = vmatprep.subr.mxu0 0.0
        %3747 = vmatpush2.msra.mxu0 0.0
        %3748 = vmatprep.subr.mxu0 0.0
        %3749 = vmatpush2.msra.mxu0 0.0
        %3750 = vmatprep.subr.mxu0 0.0
        %3751 = vmatpush2.msra.mxu0 0.0
        %3752 = vmatprep.subr.mxu0 0.0
        %3753 = vmatpush2.msra.mxu0 0.0
        %3754 = vmatprep.mubr.f32.mxu0 0.0
        %3755 = vmatmul.mubr.f32.gmra.mxu0 %v3562
        %v3756 = vpop.f32.mrf.mxu0
        %v3757 = vadd.f32 %v3652, %v3756
        %v3758 = vpop.f32.mrf.mxu0
        %3759 = vmatprep.mubr.f32.mxu0 0.0
        %3760 = vmatmul.mubr.f32.gmra.mxu0 %v3565
        %v3761 = vpop.f32.mrf.mxu0
        %v3762 = vadd.f32 %v3657, %v3761
        %v3763 = vpop.f32.mrf.mxu0
        %3764 = vmatprep.mubr.f32.mxu0 0.0
        %3765 = vmatmul.mubr.f32.gmra.mxu0 %v3568
        %v3766 = vpop.f32.mrf.mxu0
        %v3767 = vadd.f32 %v3662, %v3766
        %v3768 = vpop.f32.mrf.mxu0
        %3769 = vmatprep.mubr.f32.mxu0 0.0
        %3770 = vmatmul.mubr.f32.gmra.mxu0 %v3571
        %v3771 = vpop.f32.mrf.mxu0
        %v3772 = vadd.f32 %v3667, %v3771
        %v3773 = vpop.f32.mrf.mxu0
        %3774 = vmatprep.mubr.f32.mxu0 0.0
        %3775 = vmatmul.mubr.f32.gmra.mxu0 %v3574
        %v3776 = vpop.f32.mrf.mxu0
        %v3777 = vadd.f32 %v3672, %v3776
        %v3778 = vpop.f32.mrf.mxu0
        %3779 = vmatprep.mubr.f32.mxu0 0.0
        %3780 = vmatmul.mubr.f32.gmra.mxu0 %v3577
        %v3781 = vpop.f32.mrf.mxu0
        %v3782 = vadd.f32 %v3677, %v3781
        %v3783 = vpop.f32.mrf.mxu0
        %3784 = vmatprep.mubr.f32.mxu0 0.0
        %3785 = vmatmul.mubr.f32.gmra.mxu0 %v3580
        %v3786 = vpop.f32.mrf.mxu0
        %v3787 = vadd.f32 %v3682, %v3786
        %v3788 = vpop.f32.mrf.mxu0
        %3789 = vmatprep.mubr.f32.mxu0 0.0
        %3790 = vmatmul.mubr.f32.gmra.mxu0 %v3583
        %v3791 = vpop.f32.mrf.mxu0
        %v3792 = vadd.f32 %v3687, %v3791
        %v3793 = vpop.f32.mrf.mxu0
        %3794 = vdwg.mxu0
        %s3795 = scalar_lea.vmem %s3, 112
        %v3796 = vld [vmem:[%s3795] sm:$0xff]
        %v3797 = vld [vmem:[%s3795 + $0x8] sm:$0xff]
        %v3799 = vsel %vm1282, %v3757, 0
        %v3802 = vsel %vm1282, %v3762, 0
        %v3805 = vsel %vm1282, %v3767, 0
        %v3808 = vsel %vm1282, %v3772, 0
        %v3811 = vsel %vm1282, %v3777, 0
        %v3814 = vsel %vm1282, %v3782, 0
        %v3817 = vsel %vm1282, %v3787, 0
        %v3820 = vsel %vm1282, %v3792, 0
        %3822 = vmatprep.subr.mxu0 0.0
        %3823 = vmatpush1.msra.mxu0 0.0
        %3824 = vmatprep.subr.mxu0 0.0
        %3825 = vmatpush1.msra.mxu0 0.0
        %3826 = vmatprep.subr.mxu0 0.0
        %3827 = vmatpush1.msra.mxu0 0.0
        %3828 = vmatprep.subr.mxu0 0.0
        %3829 = vmatpush1.msra.mxu0 0.0
        %3830 = vmatprep.subr.mxu0 0.0
        %3831 = vmatpush1.msra.mxu0 0.0
        %3832 = vmatprep.subr.mxu0 0.0
        %3833 = vmatpush1.msra.mxu0 0.0
        %3834 = vmatprep.subr.mxu0 0.0
        %3835 = vmatpush1.msra.mxu0 0.0
        %3836 = vmatprep.subr.mxu0 0.0
        %3837 = vmatpush1.msra.mxu0 0.0
        %3838 = vmatprep.subr.mxu0 0.0
        %3839 = vmatpush1.msra.mxu0 0.0
        %3840 = vmatprep.subr.mxu0 0.0
        %3841 = vmatpush1.msra.mxu0 0.0
        %3842 = vmatprep.subr.mxu0 0.0
        %3843 = vmatpush1.msra.mxu0 0.0
        %3844 = vmatprep.subr.mxu0 0.0
        %3845 = vmatpush1.msra.mxu0 0.0
        %3846 = vmatprep.subr.mxu0 0.0
        %3847 = vmatpush1.msra.mxu0 0.0
        %3848 = vmatprep.subr.mxu0 0.0
        %3849 = vmatpush1.msra.mxu0 0.0
        %3850 = vmatprep.subr.mxu0 0.0
        %3851 = vmatpush1.msra.mxu0 %v3797
        %3852 = vmatprep.subr.mxu0 0.0
        %3853 = vmatpush1.msra.mxu0 %v3796
        %3854 = vmatprep.subr.mxu0 0.0
        %3855 = vmatpush2.msra.mxu0 0.0
        %3856 = vmatprep.subr.mxu0 0.0
        %3857 = vmatpush2.msra.mxu0 0.0
        %3858 = vmatprep.subr.mxu0 0.0
        %3859 = vmatpush2.msra.mxu0 0.0
        %3860 = vmatprep.subr.mxu0 0.0
        %3861 = vmatpush2.msra.mxu0 0.0
        %3862 = vmatprep.subr.mxu0 0.0
        %3863 = vmatpush2.msra.mxu0 0.0
        %3864 = vmatprep.subr.mxu0 0.0
        %3865 = vmatpush2.msra.mxu0 0.0
        %3866 = vmatprep.subr.mxu0 0.0
        %3867 = vmatpush2.msra.mxu0 0.0
        %3868 = vmatprep.subr.mxu0 0.0
        %3869 = vmatpush2.msra.mxu0 0.0
        %3870 = vmatprep.subr.mxu0 0.0
        %3871 = vmatpush2.msra.mxu0 0.0
        %3872 = vmatprep.subr.mxu0 0.0
        %3873 = vmatpush2.msra.mxu0 0.0
        %3874 = vmatprep.subr.mxu0 0.0
        %3875 = vmatpush2.msra.mxu0 0.0
        %3876 = vmatprep.subr.mxu0 0.0
        %3877 = vmatpush2.msra.mxu0 0.0
        %3878 = vmatprep.subr.mxu0 0.0
        %3879 = vmatpush2.msra.mxu0 0.0
        %3880 = vmatprep.subr.mxu0 0.0
        %3881 = vmatpush2.msra.mxu0 0.0
        %3882 = vmatprep.subr.mxu0 0.0
        %3883 = vmatpush2.msra.mxu0 0.0
        %3884 = vmatprep.subr.mxu0 0.0
        %3885 = vmatpush2.msra.mxu0 0.0
        %3886 = vmatprep.mubr.f32.mxu0 0.0
        %3887 = vmatmul.mubr.f32.gmra.mxu0 %v3799
        %v3888 = vpop.f32.mrf.mxu0
        %v3889 = vadd.f32 0.0, %v3888
        %v3890 = vpop.f32.mrf.mxu0
        %3891 = vmatprep.mubr.f32.mxu0 0.0
        %3892 = vmatmul.mubr.f32.gmra.mxu0 %v3802
        %v3893 = vpop.f32.mrf.mxu0
        %v3894 = vadd.f32 0.0, %v3893
        %v3895 = vpop.f32.mrf.mxu0
        %3896 = vmatprep.mubr.f32.mxu0 0.0
        %3897 = vmatmul.mubr.f32.gmra.mxu0 %v3805
        %v3898 = vpop.f32.mrf.mxu0
        %v3899 = vadd.f32 0.0, %v3898
        %v3900 = vpop.f32.mrf.mxu0
        %3901 = vmatprep.mubr.f32.mxu0 0.0
        %3902 = vmatmul.mubr.f32.gmra.mxu0 %v3808
        %v3903 = vpop.f32.mrf.mxu0
        %v3904 = vadd.f32 0.0, %v3903
        %v3905 = vpop.f32.mrf.mxu0
        %3906 = vmatprep.mubr.f32.mxu0 0.0
        %3907 = vmatmul.mubr.f32.gmra.mxu0 %v3811
        %v3908 = vpop.f32.mrf.mxu0
        %v3909 = vadd.f32 0.0, %v3908
        %v3910 = vpop.f32.mrf.mxu0
        %3911 = vmatprep.mubr.f32.mxu0 0.0
        %3912 = vmatmul.mubr.f32.gmra.mxu0 %v3814
        %v3913 = vpop.f32.mrf.mxu0
        %v3914 = vadd.f32 0.0, %v3913
        %v3915 = vpop.f32.mrf.mxu0
        %3916 = vmatprep.mubr.f32.mxu0 0.0
        %3917 = vmatmul.mubr.f32.gmra.mxu0 %v3817
        %v3918 = vpop.f32.mrf.mxu0
        %v3919 = vadd.f32 0.0, %v3918
        %v3920 = vpop.f32.mrf.mxu0
        %3921 = vmatprep.mubr.f32.mxu0 0.0
        %3922 = vmatmul.mubr.f32.gmra.mxu0 %v3820
        %v3923 = vpop.f32.mrf.mxu0
        %v3924 = vadd.f32 0.0, %v3923
        %v3925 = vpop.f32.mrf.mxu0
        %3926 = vdwg.mxu0
        %v3927 = vadd.f32 %v3528, %v3889
        %v3928 = vadd.f32 %v3529, %v3894
        %v3929 = vadd.f32 %v3530, %v3899
        %v3930 = vadd.f32 %v3531, %v3904
        %v3931 = vadd.f32 %v3532, %v3909
        %v3932 = vadd.f32 %v3533, %v3914
        %v3933 = vadd.f32 %v3534, %v3919
        %v3934 = vadd.f32 %v3535, %v3924
        %s3935 = scalar_lea.vmem %s2, 1536
        %v3936 = vld [vmem:[%s3935] sm:$0xff]
        %v3937 = vld [vmem:[%s3935 + $0x8] sm:$0xff]
        %v3938 = vld [vmem:[%s3935 + $0x10] sm:$0xff]
        %v3939 = vld [vmem:[%s3935 + $0x18] sm:$0xff]
        %v3940 = vld [vmem:[%s3935 + $0x20] sm:$0xff]
        %v3941 = vld [vmem:[%s3935 + $0x28] sm:$0xff]
        %v3942 = vld [vmem:[%s3935 + $0x30] sm:$0xff]
        %v3943 = vld [vmem:[%s3935 + $0x38] sm:$0xff]
        %v3944 = vld [vmem:[%s3935 + $0x40] sm:$0xff]
        %v3945 = vld [vmem:[%s3935 + $0x48] sm:$0xff]
        %v3946 = vld [vmem:[%s3935 + $0x50] sm:$0xff]
        %v3947 = vld [vmem:[%s3935 + $0x58] sm:$0xff]
        %v3948 = vld [vmem:[%s3935 + $0x60] sm:$0xff]
        %v3949 = vld [vmem:[%s3935 + $0x68] sm:$0xff]
        %v3950 = vld [vmem:[%s3935 + $0x70] sm:$0xff]
        %v3951 = vld [vmem:[%s3935 + $0x78] sm:$0xff]
        %v3952 = vld [vmem:[%s3935 + $0x80] sm:$0xff]
        %v3953 = vld [vmem:[%s3935 + $0x88] sm:$0xff]
        %v3954 = vld [vmem:[%s3935 + $0x90] sm:$0xff]
        %v3955 = vld [vmem:[%s3935 + $0x98] sm:$0xff]
        %v3956 = vld [vmem:[%s3935 + $0xa0] sm:$0xff]
        %v3957 = vld [vmem:[%s3935 + $0xa8] sm:$0xff]
        %v3958 = vld [vmem:[%s3935 + $0xb0] sm:$0xff]
        %v3959 = vld [vmem:[%s3935 + $0xb8] sm:$0xff]
        %v3961 = vsel %vm779, %v3938, 0
        %v3964 = vsel %vm779, %v3941, 0
        %v3967 = vsel %vm779, %v3944, 0
        %v3970 = vsel %vm779, %v3947, 0
        %v3973 = vsel %vm779, %v3950, 0
        %v3976 = vsel %vm779, %v3953, 0
        %v3979 = vsel %vm779, %v3956, 0
        %v3982 = vsel %vm779, %v3959, 0
        %3984 = vmatprep.subr.mxu0 0.0
        %3985 = vmatpush1.msra.mxu0 %v729
        %3986 = vmatprep.subr.mxu0 0.0
        %3987 = vmatpush1.msra.mxu0 %v728
        %3988 = vmatprep.subr.mxu0 0.0
        %3989 = vmatpush1.msra.mxu0 %v727
        %3990 = vmatprep.subr.mxu0 0.0
        %3991 = vmatpush1.msra.mxu0 %v726
        %3992 = vmatprep.subr.mxu0 0.0
        %3993 = vmatpush1.msra.mxu0 %v725
        %3994 = vmatprep.subr.mxu0 0.0
        %3995 = vmatpush1.msra.mxu0 %v724
        %3996 = vmatprep.subr.mxu0 0.0
        %3997 = vmatpush1.msra.mxu0 %v723
        %3998 = vmatprep.subr.mxu0 0.0
        %3999 = vmatpush1.msra.mxu0 %v722
        %4000 = vmatprep.subr.mxu0 0.0
        %4001 = vmatpush1.msra.mxu0 %v721
        %4002 = vmatprep.subr.mxu0 0.0
        %4003 = vmatpush1.msra.mxu0 %v720
        %4004 = vmatprep.subr.mxu0 0.0
        %4005 = vmatpush1.msra.mxu0 %v719
        %4006 = vmatprep.subr.mxu0 0.0
        %4007 = vmatpush1.msra.mxu0 %v718
        %4008 = vmatprep.subr.mxu0 0.0
        %4009 = vmatpush1.msra.mxu0 %v717
        %4010 = vmatprep.subr.mxu0 0.0
        %4011 = vmatpush1.msra.mxu0 %v716
        %4012 = vmatprep.subr.mxu0 0.0
        %4013 = vmatpush1.msra.mxu0 %v715
        %4014 = vmatprep.subr.mxu0 0.0
        %4015 = vmatpush1.msra.mxu0 %v714
        %4016 = vmatprep.subr.mxu0 0.0
        %4017 = vmatpush2.msra.mxu0 %v745
        %4018 = vmatprep.subr.mxu0 0.0
        %4019 = vmatpush2.msra.mxu0 %v744
        %4020 = vmatprep.subr.mxu0 0.0
        %4021 = vmatpush2.msra.mxu0 %v743
        %4022 = vmatprep.subr.mxu0 0.0
        %4023 = vmatpush2.msra.mxu0 %v742
        %4024 = vmatprep.subr.mxu0 0.0
        %4025 = vmatpush2.msra.mxu0 %v741
        %4026 = vmatprep.subr.mxu0 0.0
        %4027 = vmatpush2.msra.mxu0 %v740
        %4028 = vmatprep.subr.mxu0 0.0
        %4029 = vmatpush2.msra.mxu0 %v739
        %4030 = vmatprep.subr.mxu0 0.0
        %4031 = vmatpush2.msra.mxu0 %v738
        %4032 = vmatprep.subr.mxu0 0.0
        %4033 = vmatpush2.msra.mxu0 %v737
        %4034 = vmatprep.subr.mxu0 0.0
        %4035 = vmatpush2.msra.mxu0 %v736
        %4036 = vmatprep.subr.mxu0 0.0
        %4037 = vmatpush2.msra.mxu0 %v735
        %4038 = vmatprep.subr.mxu0 0.0
        %4039 = vmatpush2.msra.mxu0 %v734
        %4040 = vmatprep.subr.mxu0 0.0
        %4041 = vmatpush2.msra.mxu0 %v733
        %4042 = vmatprep.subr.mxu0 0.0
        %4043 = vmatpush2.msra.mxu0 %v732
        %4044 = vmatprep.subr.mxu0 0.0
        %4045 = vmatpush2.msra.mxu0 %v731
        %4046 = vmatprep.subr.mxu0 0.0
        %4047 = vmatpush2.msra.mxu0 %v730
        %4048 = vmatprep.mubr.f32.mxu0 %v3937
        %4049 = vmatmul.mubr.f32.gmra.mxu0 %v3936
        %v4050 = vpop.f32.mrf.mxu0
        %v4051 = vadd.f32 0.0, %v4050
        %v4052 = vpop.f32.mrf.mxu0
        %4053 = vmatprep.mubr.f32.mxu0 %v3940
        %4054 = vmatmul.mubr.f32.gmra.mxu0 %v3939
        %v4055 = vpop.f32.mrf.mxu0
        %v4056 = vadd.f32 0.0, %v4055
        %v4057 = vpop.f32.mrf.mxu0
        %4058 = vmatprep.mubr.f32.mxu0 %v3943
        %4059 = vmatmul.mubr.f32.gmra.mxu0 %v3942
        %v4060 = vpop.f32.mrf.mxu0
        %v4061 = vadd.f32 0.0, %v4060
        %v4062 = vpop.f32.mrf.mxu0
        %4063 = vmatprep.mubr.f32.mxu0 %v3946
        %4064 = vmatmul.mubr.f32.gmra.mxu0 %v3945
        %v4065 = vpop.f32.mrf.mxu0
        %v4066 = vadd.f32 0.0, %v4065
        %v4067 = vpop.f32.mrf.mxu0
        %4068 = vmatprep.mubr.f32.mxu0 %v3949
        %4069 = vmatmul.mubr.f32.gmra.mxu0 %v3948
        %v4070 = vpop.f32.mrf.mxu0
        %v4071 = vadd.f32 0.0, %v4070
        %v4072 = vpop.f32.mrf.mxu0
        %4073 = vmatprep.mubr.f32.mxu0 %v3952
        %4074 = vmatmul.mubr.f32.gmra.mxu0 %v3951
        %v4075 = vpop.f32.mrf.mxu0
        %v4076 = vadd.f32 0.0, %v4075
        %v4077 = vpop.f32.mrf.mxu0
        %4078 = vmatprep.mubr.f32.mxu0 %v3955
        %4079 = vmatmul.mubr.f32.gmra.mxu0 %v3954
        %v4080 = vpop.f32.mrf.mxu0
        %v4081 = vadd.f32 0.0, %v4080
        %v4082 = vpop.f32.mrf.mxu0
        %4083 = vmatprep.mubr.f32.mxu0 %v3958
        %4084 = vmatmul.mubr.f32.gmra.mxu0 %v3957
        %v4085 = vpop.f32.mrf.mxu0
        %v4086 = vadd.f32 0.0, %v4085
        %v4087 = vpop.f32.mrf.mxu0
        %4088 = vdwg.mxu0
        %4089 = vmatprep.subr.mxu0 0.0
        %4090 = vmatpush1.msra.mxu0 0.0
        %4091 = vmatprep.subr.mxu0 0.0
        %4092 = vmatpush1.msra.mxu0 0.0
        %4093 = vmatprep.subr.mxu0 0.0
        %4094 = vmatpush1.msra.mxu0 0.0
        %4095 = vmatprep.subr.mxu0 0.0
        %4096 = vmatpush1.msra.mxu0 0.0
        %4097 = vmatprep.subr.mxu0 0.0
        %4098 = vmatpush1.msra.mxu0 0.0
        %4099 = vmatprep.subr.mxu0 0.0
        %4100 = vmatpush1.msra.mxu0 0.0
        %4101 = vmatprep.subr.mxu0 0.0
        %4102 = vmatpush1.msra.mxu0 0.0
        %4103 = vmatprep.subr.mxu0 0.0
        %4104 = vmatpush1.msra.mxu0 %v806
        %4105 = vmatprep.subr.mxu0 0.0
        %4106 = vmatpush1.msra.mxu0 %v753
        %4107 = vmatprep.subr.mxu0 0.0
        %4108 = vmatpush1.msra.mxu0 %v752
        %4109 = vmatprep.subr.mxu0 0.0
        %4110 = vmatpush1.msra.mxu0 %v751
        %4111 = vmatprep.subr.mxu0 0.0
        %4112 = vmatpush1.msra.mxu0 %v750
        %4113 = vmatprep.subr.mxu0 0.0
        %4114 = vmatpush1.msra.mxu0 %v749
        %4115 = vmatprep.subr.mxu0 0.0
        %4116 = vmatpush1.msra.mxu0 %v748
        %4117 = vmatprep.subr.mxu0 0.0
        %4118 = vmatpush1.msra.mxu0 %v747
        %4119 = vmatprep.subr.mxu0 0.0
        %4120 = vmatpush1.msra.mxu0 %v746
        %4121 = vmatprep.subr.mxu0 0.0
        %4122 = vmatpush2.msra.mxu0 0.0
        %4123 = vmatprep.subr.mxu0 0.0
        %4124 = vmatpush2.msra.mxu0 0.0
        %4125 = vmatprep.subr.mxu0 0.0
        %4126 = vmatpush2.msra.mxu0 0.0
        %4127 = vmatprep.subr.mxu0 0.0
        %4128 = vmatpush2.msra.mxu0 0.0
        %4129 = vmatprep.subr.mxu0 0.0
        %4130 = vmatpush2.msra.mxu0 0.0
        %4131 = vmatprep.subr.mxu0 0.0
        %4132 = vmatpush2.msra.mxu0 0.0
        %4133 = vmatprep.subr.mxu0 0.0
        %4134 = vmatpush2.msra.mxu0 0.0
        %4135 = vmatprep.subr.mxu0 0.0
        %4136 = vmatpush2.msra.mxu0 0.0
        %4137 = vmatprep.subr.mxu0 0.0
        %4138 = vmatpush2.msra.mxu0 0.0
        %4139 = vmatprep.subr.mxu0 0.0
        %4140 = vmatpush2.msra.mxu0 0.0
        %4141 = vmatprep.subr.mxu0 0.0
        %4142 = vmatpush2.msra.mxu0 0.0
        %4143 = vmatprep.subr.mxu0 0.0
        %4144 = vmatpush2.msra.mxu0 0.0
        %4145 = vmatprep.subr.mxu0 0.0
        %4146 = vmatpush2.msra.mxu0 0.0
        %4147 = vmatprep.subr.mxu0 0.0
        %4148 = vmatpush2.msra.mxu0 0.0
        %4149 = vmatprep.subr.mxu0 0.0
        %4150 = vmatpush2.msra.mxu0 0.0
        %4151 = vmatprep.subr.mxu0 0.0
        %4152 = vmatpush2.msra.mxu0 0.0
        %4153 = vmatprep.mubr.f32.mxu0 0.0
        %4154 = vmatmul.mubr.f32.gmra.mxu0 %v3961
        %v4155 = vpop.f32.mrf.mxu0
        %v4156 = vadd.f32 %v4051, %v4155
        %v4157 = vpop.f32.mrf.mxu0
        %4158 = vmatprep.mubr.f32.mxu0 0.0
        %4159 = vmatmul.mubr.f32.gmra.mxu0 %v3964
        %v4160 = vpop.f32.mrf.mxu0
        %v4161 = vadd.f32 %v4056, %v4160
        %v4162 = vpop.f32.mrf.mxu0
        %4163 = vmatprep.mubr.f32.mxu0 0.0
        %4164 = vmatmul.mubr.f32.gmra.mxu0 %v3967
        %v4165 = vpop.f32.mrf.mxu0
        %v4166 = vadd.f32 %v4061, %v4165
        %v4167 = vpop.f32.mrf.mxu0
        %4168 = vmatprep.mubr.f32.mxu0 0.0
        %4169 = vmatmul.mubr.f32.gmra.mxu0 %v3970
        %v4170 = vpop.f32.mrf.mxu0
        %v4171 = vadd.f32 %v4066, %v4170
        %v4172 = vpop.f32.mrf.mxu0
        %4173 = vmatprep.mubr.f32.mxu0 0.0
        %4174 = vmatmul.mubr.f32.gmra.mxu0 %v3973
        %v4175 = vpop.f32.mrf.mxu0
        %v4176 = vadd.f32 %v4071, %v4175
        %v4177 = vpop.f32.mrf.mxu0
        %4178 = vmatprep.mubr.f32.mxu0 0.0
        %4179 = vmatmul.mubr.f32.gmra.mxu0 %v3976
        %v4180 = vpop.f32.mrf.mxu0
        %v4181 = vadd.f32 %v4076, %v4180
        %v4182 = vpop.f32.mrf.mxu0
        %4183 = vmatprep.mubr.f32.mxu0 0.0
        %4184 = vmatmul.mubr.f32.gmra.mxu0 %v3979
        %v4185 = vpop.f32.mrf.mxu0
        %v4186 = vadd.f32 %v4081, %v4185
        %v4187 = vpop.f32.mrf.mxu0
        %4188 = vmatprep.mubr.f32.mxu0 0.0
        %4189 = vmatmul.mubr.f32.gmra.mxu0 %v3982
        %v4190 = vpop.f32.mrf.mxu0
        %v4191 = vadd.f32 %v4086, %v4190
        %v4192 = vpop.f32.mrf.mxu0
        %4193 = vdwg.mxu0
        %s4194 = scalar_lea.vmem %s3, 128
        %v4195 = vld [vmem:[%s4194] sm:$0xff]
        %v4196 = vld [vmem:[%s4194 + $0x8] sm:$0xff]
        %v4198 = vsel %vm1282, %v4156, 0
        %v4201 = vsel %vm1282, %v4161, 0
        %v4204 = vsel %vm1282, %v4166, 0
        %v4207 = vsel %vm1282, %v4171, 0
        %v4210 = vsel %vm1282, %v4176, 0
        %v4213 = vsel %vm1282, %v4181, 0
        %v4216 = vsel %vm1282, %v4186, 0
        %v4219 = vsel %vm1282, %v4191, 0
        %4221 = vmatprep.subr.mxu0 0.0
        %4222 = vmatpush1.msra.mxu0 0.0
        %4223 = vmatprep.subr.mxu0 0.0
        %4224 = vmatpush1.msra.mxu0 0.0
        %4225 = vmatprep.subr.mxu0 0.0
        %4226 = vmatpush1.msra.mxu0 0.0
        %4227 = vmatprep.subr.mxu0 0.0
        %4228 = vmatpush1.msra.mxu0 0.0
        %4229 = vmatprep.subr.mxu0 0.0
        %4230 = vmatpush1.msra.mxu0 0.0
        %4231 = vmatprep.subr.mxu0 0.0
        %4232 = vmatpush1.msra.mxu0 0.0
        %4233 = vmatprep.subr.mxu0 0.0
        %4234 = vmatpush1.msra.mxu0 0.0
        %4235 = vmatprep.subr.mxu0 0.0
        %4236 = vmatpush1.msra.mxu0 0.0
        %4237 = vmatprep.subr.mxu0 0.0
        %4238 = vmatpush1.msra.mxu0 0.0
        %4239 = vmatprep.subr.mxu0 0.0
        %4240 = vmatpush1.msra.mxu0 0.0
        %4241 = vmatprep.subr.mxu0 0.0
        %4242 = vmatpush1.msra.mxu0 0.0
        %4243 = vmatprep.subr.mxu0 0.0
        %4244 = vmatpush1.msra.mxu0 0.0
        %4245 = vmatprep.subr.mxu0 0.0
        %4246 = vmatpush1.msra.mxu0 0.0
        %4247 = vmatprep.subr.mxu0 0.0
        %4248 = vmatpush1.msra.mxu0 0.0
        %4249 = vmatprep.subr.mxu0 0.0
        %4250 = vmatpush1.msra.mxu0 %v4196
        %4251 = vmatprep.subr.mxu0 0.0
        %4252 = vmatpush1.msra.mxu0 %v4195
        %4253 = vmatprep.subr.mxu0 0.0
        %4254 = vmatpush2.msra.mxu0 0.0
        %4255 = vmatprep.subr.mxu0 0.0
        %4256 = vmatpush2.msra.mxu0 0.0
        %4257 = vmatprep.subr.mxu0 0.0
        %4258 = vmatpush2.msra.mxu0 0.0
        %4259 = vmatprep.subr.mxu0 0.0
        %4260 = vmatpush2.msra.mxu0 0.0
        %4261 = vmatprep.subr.mxu0 0.0
        %4262 = vmatpush2.msra.mxu0 0.0
        %4263 = vmatprep.subr.mxu0 0.0
        %4264 = vmatpush2.msra.mxu0 0.0
        %4265 = vmatprep.subr.mxu0 0.0
        %4266 = vmatpush2.msra.mxu0 0.0
        %4267 = vmatprep.subr.mxu0 0.0
        %4268 = vmatpush2.msra.mxu0 0.0
        %4269 = vmatprep.subr.mxu0 0.0
        %4270 = vmatpush2.msra.mxu0 0.0
        %4271 = vmatprep.subr.mxu0 0.0
        %4272 = vmatpush2.msra.mxu0 0.0
        %4273 = vmatprep.subr.mxu0 0.0
        %4274 = vmatpush2.msra.mxu0 0.0
        %4275 = vmatprep.subr.mxu0 0.0
        %4276 = vmatpush2.msra.mxu0 0.0
        %4277 = vmatprep.subr.mxu0 0.0
        %4278 = vmatpush2.msra.mxu0 0.0
        %4279 = vmatprep.subr.mxu0 0.0
        %4280 = vmatpush2.msra.mxu0 0.0
        %4281 = vmatprep.subr.mxu0 0.0
        %4282 = vmatpush2.msra.mxu0 0.0
        %4283 = vmatprep.subr.mxu0 0.0
        %4284 = vmatpush2.msra.mxu0 0.0
        %4285 = vmatprep.mubr.f32.mxu0 0.0
        %4286 = vmatmul.mubr.f32.gmra.mxu0 %v4198
        %v4287 = vpop.f32.mrf.mxu0
        %v4288 = vadd.f32 0.0, %v4287
        %v4289 = vpop.f32.mrf.mxu0
        %4290 = vmatprep.mubr.f32.mxu0 0.0
        %4291 = vmatmul.mubr.f32.gmra.mxu0 %v4201
        %v4292 = vpop.f32.mrf.mxu0
        %v4293 = vadd.f32 0.0, %v4292
        %v4294 = vpop.f32.mrf.mxu0
        %4295 = vmatprep.mubr.f32.mxu0 0.0
        %4296 = vmatmul.mubr.f32.gmra.mxu0 %v4204
        %v4297 = vpop.f32.mrf.mxu0
        %v4298 = vadd.f32 0.0, %v4297
        %v4299 = vpop.f32.mrf.mxu0
        %4300 = vmatprep.mubr.f32.mxu0 0.0
        %4301 = vmatmul.mubr.f32.gmra.mxu0 %v4207
        %v4302 = vpop.f32.mrf.mxu0
        %v4303 = vadd.f32 0.0, %v4302
        %v4304 = vpop.f32.mrf.mxu0
        %4305 = vmatprep.mubr.f32.mxu0 0.0
        %4306 = vmatmul.mubr.f32.gmra.mxu0 %v4210
        %v4307 = vpop.f32.mrf.mxu0
        %v4308 = vadd.f32 0.0, %v4307
        %v4309 = vpop.f32.mrf.mxu0
        %4310 = vmatprep.mubr.f32.mxu0 0.0
        %4311 = vmatmul.mubr.f32.gmra.mxu0 %v4213
        %v4312 = vpop.f32.mrf.mxu0
        %v4313 = vadd.f32 0.0, %v4312
        %v4314 = vpop.f32.mrf.mxu0
        %4315 = vmatprep.mubr.f32.mxu0 0.0
        %4316 = vmatmul.mubr.f32.gmra.mxu0 %v4216
        %v4317 = vpop.f32.mrf.mxu0
        %v4318 = vadd.f32 0.0, %v4317
        %v4319 = vpop.f32.mrf.mxu0
        %4320 = vmatprep.mubr.f32.mxu0 0.0
        %4321 = vmatmul.mubr.f32.gmra.mxu0 %v4219
        %v4322 = vpop.f32.mrf.mxu0
        %v4323 = vadd.f32 0.0, %v4322
        %v4324 = vpop.f32.mrf.mxu0
        %4325 = vdwg.mxu0
        %v4326 = vadd.f32 %v3927, %v4288
        %v4327 = vadd.f32 %v3928, %v4293
        %v4328 = vadd.f32 %v3929, %v4298
        %v4329 = vadd.f32 %v3930, %v4303
        %v4330 = vadd.f32 %v3931, %v4308
        %v4331 = vadd.f32 %v3932, %v4313
        %v4332 = vadd.f32 %v3933, %v4318
        %v4333 = vadd.f32 %v3934, %v4323
        %s4334 = scalar_lea.vmem %s2, 1728
        %v4335 = vld [vmem:[%s4334] sm:$0xff]
        %v4336 = vld [vmem:[%s4334 + $0x8] sm:$0xff]
        %v4337 = vld [vmem:[%s4334 + $0x10] sm:$0xff]
        %v4338 = vld [vmem:[%s4334 + $0x18] sm:$0xff]
        %v4339 = vld [vmem:[%s4334 + $0x20] sm:$0xff]
        %v4340 = vld [vmem:[%s4334 + $0x28] sm:$0xff]
        %v4341 = vld [vmem:[%s4334 + $0x30] sm:$0xff]
        %v4342 = vld [vmem:[%s4334 + $0x38] sm:$0xff]
        %v4343 = vld [vmem:[%s4334 + $0x40] sm:$0xff]
        %v4344 = vld [vmem:[%s4334 + $0x48] sm:$0xff]
        %v4345 = vld [vmem:[%s4334 + $0x50] sm:$0xff]
        %v4346 = vld [vmem:[%s4334 + $0x58] sm:$0xff]
        %v4347 = vld [vmem:[%s4334 + $0x60] sm:$0xff]
        %v4348 = vld [vmem:[%s4334 + $0x68] sm:$0xff]
        %v4349 = vld [vmem:[%s4334 + $0x70] sm:$0xff]
        %v4350 = vld [vmem:[%s4334 + $0x78] sm:$0xff]
        %v4351 = vld [vmem:[%s4334 + $0x80] sm:$0xff]
        %v4352 = vld [vmem:[%s4334 + $0x88] sm:$0xff]
        %v4353 = vld [vmem:[%s4334 + $0x90] sm:$0xff]
        %v4354 = vld [vmem:[%s4334 + $0x98] sm:$0xff]
        %v4355 = vld [vmem:[%s4334 + $0xa0] sm:$0xff]
        %v4356 = vld [vmem:[%s4334 + $0xa8] sm:$0xff]
        %v4357 = vld [vmem:[%s4334 + $0xb0] sm:$0xff]
        %v4358 = vld [vmem:[%s4334 + $0xb8] sm:$0xff]
        %v4360 = vsel %vm779, %v4337, 0
        %v4363 = vsel %vm779, %v4340, 0
        %v4366 = vsel %vm779, %v4343, 0
        %v4369 = vsel %vm779, %v4346, 0
        %v4372 = vsel %vm779, %v4349, 0
        %v4375 = vsel %vm779, %v4352, 0
        %v4378 = vsel %vm779, %v4355, 0
        %v4381 = vsel %vm779, %v4358, 0
        %4383 = vmatprep.subr.mxu0 0.0
        %4384 = vmatpush1.msra.mxu0 %v729
        %4385 = vmatprep.subr.mxu0 0.0
        %4386 = vmatpush1.msra.mxu0 %v728
        %4387 = vmatprep.subr.mxu0 0.0
        %4388 = vmatpush1.msra.mxu0 %v727
        %4389 = vmatprep.subr.mxu0 0.0
        %4390 = vmatpush1.msra.mxu0 %v726
        %4391 = vmatprep.subr.mxu0 0.0
        %4392 = vmatpush1.msra.mxu0 %v725
        %4393 = vmatprep.subr.mxu0 0.0
        %4394 = vmatpush1.msra.mxu0 %v724
        %4395 = vmatprep.subr.mxu0 0.0
        %4396 = vmatpush1.msra.mxu0 %v723
        %4397 = vmatprep.subr.mxu0 0.0
        %4398 = vmatpush1.msra.mxu0 %v722
        %4399 = vmatprep.subr.mxu0 0.0
        %4400 = vmatpush1.msra.mxu0 %v721
        %4401 = vmatprep.subr.mxu0 0.0
        %4402 = vmatpush1.msra.mxu0 %v720
        %4403 = vmatprep.subr.mxu0 0.0
        %4404 = vmatpush1.msra.mxu0 %v719
        %4405 = vmatprep.subr.mxu0 0.0
        %4406 = vmatpush1.msra.mxu0 %v718
        %4407 = vmatprep.subr.mxu0 0.0
        %4408 = vmatpush1.msra.mxu0 %v717
        %4409 = vmatprep.subr.mxu0 0.0
        %4410 = vmatpush1.msra.mxu0 %v716
        %4411 = vmatprep.subr.mxu0 0.0
        %4412 = vmatpush1.msra.mxu0 %v715
        %4413 = vmatprep.subr.mxu0 0.0
        %4414 = vmatpush1.msra.mxu0 %v714
        %4415 = vmatprep.subr.mxu0 0.0
        %4416 = vmatpush2.msra.mxu0 %v745
        %4417 = vmatprep.subr.mxu0 0.0
        %4418 = vmatpush2.msra.mxu0 %v744
        %4419 = vmatprep.subr.mxu0 0.0
        %4420 = vmatpush2.msra.mxu0 %v743
        %4421 = vmatprep.subr.mxu0 0.0
        %4422 = vmatpush2.msra.mxu0 %v742
        %4423 = vmatprep.subr.mxu0 0.0
        %4424 = vmatpush2.msra.mxu0 %v741
        %4425 = vmatprep.subr.mxu0 0.0
        %4426 = vmatpush2.msra.mxu0 %v740
        %4427 = vmatprep.subr.mxu0 0.0
        %4428 = vmatpush2.msra.mxu0 %v739
        %4429 = vmatprep.subr.mxu0 0.0
        %4430 = vmatpush2.msra.mxu0 %v738
        %4431 = vmatprep.subr.mxu0 0.0
        %4432 = vmatpush2.msra.mxu0 %v737
        %4433 = vmatprep.subr.mxu0 0.0
        %4434 = vmatpush2.msra.mxu0 %v736
        %4435 = vmatprep.subr.mxu0 0.0
        %4436 = vmatpush2.msra.mxu0 %v735
        %4437 = vmatprep.subr.mxu0 0.0
        %4438 = vmatpush2.msra.mxu0 %v734
        %4439 = vmatprep.subr.mxu0 0.0
        %4440 = vmatpush2.msra.mxu0 %v733
        %4441 = vmatprep.subr.mxu0 0.0
        %4442 = vmatpush2.msra.mxu0 %v732
        %4443 = vmatprep.subr.mxu0 0.0
        %4444 = vmatpush2.msra.mxu0 %v731
        %4445 = vmatprep.subr.mxu0 0.0
        %4446 = vmatpush2.msra.mxu0 %v730
        %4447 = vmatprep.mubr.f32.mxu0 %v4336
        %4448 = vmatmul.mubr.f32.gmra.mxu0 %v4335
        %v4449 = vpop.f32.mrf.mxu0
        %v4450 = vadd.f32 0.0, %v4449
        %v4451 = vpop.f32.mrf.mxu0
        %4452 = vmatprep.mubr.f32.mxu0 %v4339
        %4453 = vmatmul.mubr.f32.gmra.mxu0 %v4338
        %v4454 = vpop.f32.mrf.mxu0
        %v4455 = vadd.f32 0.0, %v4454
        %v4456 = vpop.f32.mrf.mxu0
        %4457 = vmatprep.mubr.f32.mxu0 %v4342
        %4458 = vmatmul.mubr.f32.gmra.mxu0 %v4341
        %v4459 = vpop.f32.mrf.mxu0
        %v4460 = vadd.f32 0.0, %v4459
        %v4461 = vpop.f32.mrf.mxu0
        %4462 = vmatprep.mubr.f32.mxu0 %v4345
        %4463 = vmatmul.mubr.f32.gmra.mxu0 %v4344
        %v4464 = vpop.f32.mrf.mxu0
        %v4465 = vadd.f32 0.0, %v4464
        %v4466 = vpop.f32.mrf.mxu0
        %4467 = vmatprep.mubr.f32.mxu0 %v4348
        %4468 = vmatmul.mubr.f32.gmra.mxu0 %v4347
        %v4469 = vpop.f32.mrf.mxu0
        %v4470 = vadd.f32 0.0, %v4469
        %v4471 = vpop.f32.mrf.mxu0
        %4472 = vmatprep.mubr.f32.mxu0 %v4351
        %4473 = vmatmul.mubr.f32.gmra.mxu0 %v4350
        %v4474 = vpop.f32.mrf.mxu0
        %v4475 = vadd.f32 0.0, %v4474
        %v4476 = vpop.f32.mrf.mxu0
        %4477 = vmatprep.mubr.f32.mxu0 %v4354
        %4478 = vmatmul.mubr.f32.gmra.mxu0 %v4353
        %v4479 = vpop.f32.mrf.mxu0
        %v4480 = vadd.f32 0.0, %v4479
        %v4481 = vpop.f32.mrf.mxu0
        %4482 = vmatprep.mubr.f32.mxu0 %v4357
        %4483 = vmatmul.mubr.f32.gmra.mxu0 %v4356
        %v4484 = vpop.f32.mrf.mxu0
        %v4485 = vadd.f32 0.0, %v4484
        %v4486 = vpop.f32.mrf.mxu0
        %4487 = vdwg.mxu0
        %4488 = vmatprep.subr.mxu0 0.0
        %4489 = vmatpush1.msra.mxu0 0.0
        %4490 = vmatprep.subr.mxu0 0.0
        %4491 = vmatpush1.msra.mxu0 0.0
        %4492 = vmatprep.subr.mxu0 0.0
        %4493 = vmatpush1.msra.mxu0 0.0
        %4494 = vmatprep.subr.mxu0 0.0
        %4495 = vmatpush1.msra.mxu0 0.0
        %4496 = vmatprep.subr.mxu0 0.0
        %4497 = vmatpush1.msra.mxu0 0.0
        %4498 = vmatprep.subr.mxu0 0.0
        %4499 = vmatpush1.msra.mxu0 0.0
        %4500 = vmatprep.subr.mxu0 0.0
        %4501 = vmatpush1.msra.mxu0 0.0
        %4502 = vmatprep.subr.mxu0 0.0
        %4503 = vmatpush1.msra.mxu0 %v806
        %4504 = vmatprep.subr.mxu0 0.0
        %4505 = vmatpush1.msra.mxu0 %v753
        %4506 = vmatprep.subr.mxu0 0.0
        %4507 = vmatpush1.msra.mxu0 %v752
        %4508 = vmatprep.subr.mxu0 0.0
        %4509 = vmatpush1.msra.mxu0 %v751
        %4510 = vmatprep.subr.mxu0 0.0
        %4511 = vmatpush1.msra.mxu0 %v750
        %4512 = vmatprep.subr.mxu0 0.0
        %4513 = vmatpush1.msra.mxu0 %v749
        %4514 = vmatprep.subr.mxu0 0.0
        %4515 = vmatpush1.msra.mxu0 %v748
        %4516 = vmatprep.subr.mxu0 0.0
        %4517 = vmatpush1.msra.mxu0 %v747
        %4518 = vmatprep.subr.mxu0 0.0
        %4519 = vmatpush1.msra.mxu0 %v746
        %4520 = vmatprep.subr.mxu0 0.0
        %4521 = vmatpush2.msra.mxu0 0.0
        %4522 = vmatprep.subr.mxu0 0.0
        %4523 = vmatpush2.msra.mxu0 0.0
        %4524 = vmatprep.subr.mxu0 0.0
        %4525 = vmatpush2.msra.mxu0 0.0
        %4526 = vmatprep.subr.mxu0 0.0
        %4527 = vmatpush2.msra.mxu0 0.0
        %4528 = vmatprep.subr.mxu0 0.0
        %4529 = vmatpush2.msra.mxu0 0.0
        %4530 = vmatprep.subr.mxu0 0.0
        %4531 = vmatpush2.msra.mxu0 0.0
        %4532 = vmatprep.subr.mxu0 0.0
        %4533 = vmatpush2.msra.mxu0 0.0
        %4534 = vmatprep.subr.mxu0 0.0
        %4535 = vmatpush2.msra.mxu0 0.0
        %4536 = vmatprep.subr.mxu0 0.0
        %4537 = vmatpush2.msra.mxu0 0.0
        %4538 = vmatprep.subr.mxu0 0.0
        %4539 = vmatpush2.msra.mxu0 0.0
        %4540 = vmatprep.subr.mxu0 0.0
        %4541 = vmatpush2.msra.mxu0 0.0
        %4542 = vmatprep.subr.mxu0 0.0
        %4543 = vmatpush2.msra.mxu0 0.0
        %4544 = vmatprep.subr.mxu0 0.0
        %4545 = vmatpush2.msra.mxu0 0.0
        %4546 = vmatprep.subr.mxu0 0.0
        %4547 = vmatpush2.msra.mxu0 0.0
        %4548 = vmatprep.subr.mxu0 0.0
        %4549 = vmatpush2.msra.mxu0 0.0
        %4550 = vmatprep.subr.mxu0 0.0
        %4551 = vmatpush2.msra.mxu0 0.0
        %4552 = vmatprep.mubr.f32.mxu0 0.0
        %4553 = vmatmul.mubr.f32.gmra.mxu0 %v4360
        %v4554 = vpop.f32.mrf.mxu0
        %v4555 = vadd.f32 %v4450, %v4554
        %v4556 = vpop.f32.mrf.mxu0
        %4557 = vmatprep.mubr.f32.mxu0 0.0
        %4558 = vmatmul.mubr.f32.gmra.mxu0 %v4363
        %v4559 = vpop.f32.mrf.mxu0
        %v4560 = vadd.f32 %v4455, %v4559
        %v4561 = vpop.f32.mrf.mxu0
        %4562 = vmatprep.mubr.f32.mxu0 0.0
        %4563 = vmatmul.mubr.f32.gmra.mxu0 %v4366
        %v4564 = vpop.f32.mrf.mxu0
        %v4565 = vadd.f32 %v4460, %v4564
        %v4566 = vpop.f32.mrf.mxu0
        %4567 = vmatprep.mubr.f32.mxu0 0.0
        %4568 = vmatmul.mubr.f32.gmra.mxu0 %v4369
        %v4569 = vpop.f32.mrf.mxu0
        %v4570 = vadd.f32 %v4465, %v4569
        %v4571 = vpop.f32.mrf.mxu0
        %4572 = vmatprep.mubr.f32.mxu0 0.0
        %4573 = vmatmul.mubr.f32.gmra.mxu0 %v4372
        %v4574 = vpop.f32.mrf.mxu0
        %v4575 = vadd.f32 %v4470, %v4574
        %v4576 = vpop.f32.mrf.mxu0
        %4577 = vmatprep.mubr.f32.mxu0 0.0
        %4578 = vmatmul.mubr.f32.gmra.mxu0 %v4375
        %v4579 = vpop.f32.mrf.mxu0
        %v4580 = vadd.f32 %v4475, %v4579
        %v4581 = vpop.f32.mrf.mxu0
        %4582 = vmatprep.mubr.f32.mxu0 0.0
        %4583 = vmatmul.mubr.f32.gmra.mxu0 %v4378
        %v4584 = vpop.f32.mrf.mxu0
        %v4585 = vadd.f32 %v4480, %v4584
        %v4586 = vpop.f32.mrf.mxu0
        %4587 = vmatprep.mubr.f32.mxu0 0.0
        %4588 = vmatmul.mubr.f32.gmra.mxu0 %v4381
        %v4589 = vpop.f32.mrf.mxu0
        %v4590 = vadd.f32 %v4485, %v4589
        %v4591 = vpop.f32.mrf.mxu0
        %4592 = vdwg.mxu0
        %s4593 = scalar_lea.vmem %s3, 144
        %v4594 = vld [vmem:[%s4593] sm:$0xff]
        %v4595 = vld [vmem:[%s4593 + $0x8] sm:$0xff]
        %v4597 = vsel %vm1282, %v4555, 0
        %v4600 = vsel %vm1282, %v4560, 0
        %v4603 = vsel %vm1282, %v4565, 0
        %v4606 = vsel %vm1282, %v4570, 0
        %v4609 = vsel %vm1282, %v4575, 0
        %v4612 = vsel %vm1282, %v4580, 0
        %v4615 = vsel %vm1282, %v4585, 0
        %v4618 = vsel %vm1282, %v4590, 0
        %4620 = vmatprep.subr.mxu0 0.0
        %4621 = vmatpush1.msra.mxu0 0.0
        %4622 = vmatprep.subr.mxu0 0.0
        %4623 = vmatpush1.msra.mxu0 0.0
        %4624 = vmatprep.subr.mxu0 0.0
        %4625 = vmatpush1.msra.mxu0 0.0
        %4626 = vmatprep.subr.mxu0 0.0
        %4627 = vmatpush1.msra.mxu0 0.0
        %4628 = vmatprep.subr.mxu0 0.0
        %4629 = vmatpush1.msra.mxu0 0.0
        %4630 = vmatprep.subr.mxu0 0.0
        %4631 = vmatpush1.msra.mxu0 0.0
        %4632 = vmatprep.subr.mxu0 0.0
        %4633 = vmatpush1.msra.mxu0 0.0
        %4634 = vmatprep.subr.mxu0 0.0
        %4635 = vmatpush1.msra.mxu0 0.0
        %4636 = vmatprep.subr.mxu0 0.0
        %4637 = vmatpush1.msra.mxu0 0.0
        %4638 = vmatprep.subr.mxu0 0.0
        %4639 = vmatpush1.msra.mxu0 0.0
        %4640 = vmatprep.subr.mxu0 0.0
        %4641 = vmatpush1.msra.mxu0 0.0
        %4642 = vmatprep.subr.mxu0 0.0
        %4643 = vmatpush1.msra.mxu0 0.0
        %4644 = vmatprep.subr.mxu0 0.0
        %4645 = vmatpush1.msra.mxu0 0.0
        %4646 = vmatprep.subr.mxu0 0.0
        %4647 = vmatpush1.msra.mxu0 0.0
        %4648 = vmatprep.subr.mxu0 0.0
        %4649 = vmatpush1.msra.mxu0 %v4595
        %4650 = vmatprep.subr.mxu0 0.0
        %4651 = vmatpush1.msra.mxu0 %v4594
        %4652 = vmatprep.subr.mxu0 0.0
        %4653 = vmatpush2.msra.mxu0 0.0
        %4654 = vmatprep.subr.mxu0 0.0
        %4655 = vmatpush2.msra.mxu0 0.0
        %4656 = vmatprep.subr.mxu0 0.0
        %4657 = vmatpush2.msra.mxu0 0.0
        %4658 = vmatprep.subr.mxu0 0.0
        %4659 = vmatpush2.msra.mxu0 0.0
        %4660 = vmatprep.subr.mxu0 0.0
        %4661 = vmatpush2.msra.mxu0 0.0
        %4662 = vmatprep.subr.mxu0 0.0
        %4663 = vmatpush2.msra.mxu0 0.0
        %4664 = vmatprep.subr.mxu0 0.0
        %4665 = vmatpush2.msra.mxu0 0.0
        %4666 = vmatprep.subr.mxu0 0.0
        %4667 = vmatpush2.msra.mxu0 0.0
        %4668 = vmatprep.subr.mxu0 0.0
        %4669 = vmatpush2.msra.mxu0 0.0
        %4670 = vmatprep.subr.mxu0 0.0
        %4671 = vmatpush2.msra.mxu0 0.0
        %4672 = vmatprep.subr.mxu0 0.0
        %4673 = vmatpush2.msra.mxu0 0.0
        %4674 = vmatprep.subr.mxu0 0.0
        %4675 = vmatpush2.msra.mxu0 0.0
        %4676 = vmatprep.subr.mxu0 0.0
        %4677 = vmatpush2.msra.mxu0 0.0
        %4678 = vmatprep.subr.mxu0 0.0
        %4679 = vmatpush2.msra.mxu0 0.0
        %4680 = vmatprep.subr.mxu0 0.0
        %4681 = vmatpush2.msra.mxu0 0.0
        %4682 = vmatprep.subr.mxu0 0.0
        %4683 = vmatpush2.msra.mxu0 0.0
        %4684 = vmatprep.mubr.f32.mxu0 0.0
        %4685 = vmatmul.mubr.f32.gmra.mxu0 %v4597
        %v4686 = vpop.f32.mrf.mxu0
        %v4687 = vadd.f32 0.0, %v4686
        %v4688 = vpop.f32.mrf.mxu0
        %4689 = vmatprep.mubr.f32.mxu0 0.0
        %4690 = vmatmul.mubr.f32.gmra.mxu0 %v4600
        %v4691 = vpop.f32.mrf.mxu0
        %v4692 = vadd.f32 0.0, %v4691
        %v4693 = vpop.f32.mrf.mxu0
        %4694 = vmatprep.mubr.f32.mxu0 0.0
        %4695 = vmatmul.mubr.f32.gmra.mxu0 %v4603
        %v4696 = vpop.f32.mrf.mxu0
        %v4697 = vadd.f32 0.0, %v4696
        %v4698 = vpop.f32.mrf.mxu0
        %4699 = vmatprep.mubr.f32.mxu0 0.0
        %4700 = vmatmul.mubr.f32.gmra.mxu0 %v4606
        %v4701 = vpop.f32.mrf.mxu0
        %v4702 = vadd.f32 0.0, %v4701
        %v4703 = vpop.f32.mrf.mxu0
        %4704 = vmatprep.mubr.f32.mxu0 0.0
        %4705 = vmatmul.mubr.f32.gmra.mxu0 %v4609
        %v4706 = vpop.f32.mrf.mxu0
        %v4707 = vadd.f32 0.0, %v4706
        %v4708 = vpop.f32.mrf.mxu0
        %4709 = vmatprep.mubr.f32.mxu0 0.0
        %4710 = vmatmul.mubr.f32.gmra.mxu0 %v4612
        %v4711 = vpop.f32.mrf.mxu0
        %v4712 = vadd.f32 0.0, %v4711
        %v4713 = vpop.f32.mrf.mxu0
        %4714 = vmatprep.mubr.f32.mxu0 0.0
        %4715 = vmatmul.mubr.f32.gmra.mxu0 %v4615
        %v4716 = vpop.f32.mrf.mxu0
        %v4717 = vadd.f32 0.0, %v4716
        %v4718 = vpop.f32.mrf.mxu0
        %4719 = vmatprep.mubr.f32.mxu0 0.0
        %4720 = vmatmul.mubr.f32.gmra.mxu0 %v4618
        %v4721 = vpop.f32.mrf.mxu0
        %v4722 = vadd.f32 0.0, %v4721
        %v4723 = vpop.f32.mrf.mxu0
        %4724 = vdwg.mxu0
        %v4725 = vadd.f32 %v4326, %v4687
        %v4726 = vadd.f32 %v4327, %v4692
        %v4727 = vadd.f32 %v4328, %v4697
        %v4728 = vadd.f32 %v4329, %v4702
        %v4729 = vadd.f32 %v4330, %v4707
        %v4730 = vadd.f32 %v4331, %v4712
        %v4731 = vadd.f32 %v4332, %v4717
        %v4732 = vadd.f32 %v4333, %v4722
        %s4733 = scalar_lea.vmem %s2, 1920
        %v4734 = vld [vmem:[%s4733] sm:$0xff]
        %v4735 = vld [vmem:[%s4733 + $0x8] sm:$0xff]
        %v4736 = vld [vmem:[%s4733 + $0x10] sm:$0xff]
        %v4737 = vld [vmem:[%s4733 + $0x18] sm:$0xff]
        %v4738 = vld [vmem:[%s4733 + $0x20] sm:$0xff]
        %v4739 = vld [vmem:[%s4733 + $0x28] sm:$0xff]
        %v4740 = vld [vmem:[%s4733 + $0x30] sm:$0xff]
        %v4741 = vld [vmem:[%s4733 + $0x38] sm:$0xff]
        %v4742 = vld [vmem:[%s4733 + $0x40] sm:$0xff]
        %v4743 = vld [vmem:[%s4733 + $0x48] sm:$0xff]
        %v4744 = vld [vmem:[%s4733 + $0x50] sm:$0xff]
        %v4745 = vld [vmem:[%s4733 + $0x58] sm:$0xff]
        %v4746 = vld [vmem:[%s4733 + $0x60] sm:$0xff]
        %v4747 = vld [vmem:[%s4733 + $0x68] sm:$0xff]
        %v4748 = vld [vmem:[%s4733 + $0x70] sm:$0xff]
        %v4749 = vld [vmem:[%s4733 + $0x78] sm:$0xff]
        %v4750 = vld [vmem:[%s4733 + $0x80] sm:$0xff]
        %v4751 = vld [vmem:[%s4733 + $0x88] sm:$0xff]
        %v4752 = vld [vmem:[%s4733 + $0x90] sm:$0xff]
        %v4753 = vld [vmem:[%s4733 + $0x98] sm:$0xff]
        %v4754 = vld [vmem:[%s4733 + $0xa0] sm:$0xff]
        %v4755 = vld [vmem:[%s4733 + $0xa8] sm:$0xff]
        %v4756 = vld [vmem:[%s4733 + $0xb0] sm:$0xff]
        %v4757 = vld [vmem:[%s4733 + $0xb8] sm:$0xff]
        %v4759 = vsel %vm779, %v4736, 0
        %v4762 = vsel %vm779, %v4739, 0
        %v4765 = vsel %vm779, %v4742, 0
        %v4768 = vsel %vm779, %v4745, 0
        %v4771 = vsel %vm779, %v4748, 0
        %v4774 = vsel %vm779, %v4751, 0
        %v4777 = vsel %vm779, %v4754, 0
        %v4780 = vsel %vm779, %v4757, 0
        %4782 = vmatprep.subr.mxu0 0.0
        %4783 = vmatpush1.msra.mxu0 %v729
        %4784 = vmatprep.subr.mxu0 0.0
        %4785 = vmatpush1.msra.mxu0 %v728
        %4786 = vmatprep.subr.mxu0 0.0
        %4787 = vmatpush1.msra.mxu0 %v727
        %4788 = vmatprep.subr.mxu0 0.0
        %4789 = vmatpush1.msra.mxu0 %v726
        %4790 = vmatprep.subr.mxu0 0.0
        %4791 = vmatpush1.msra.mxu0 %v725
        %4792 = vmatprep.subr.mxu0 0.0
        %4793 = vmatpush1.msra.mxu0 %v724
        %4794 = vmatprep.subr.mxu0 0.0
        %4795 = vmatpush1.msra.mxu0 %v723
        %4796 = vmatprep.subr.mxu0 0.0
        %4797 = vmatpush1.msra.mxu0 %v722
        %4798 = vmatprep.subr.mxu0 0.0
        %4799 = vmatpush1.msra.mxu0 %v721
        %4800 = vmatprep.subr.mxu0 0.0
        %4801 = vmatpush1.msra.mxu0 %v720
        %4802 = vmatprep.subr.mxu0 0.0
        %4803 = vmatpush1.msra.mxu0 %v719
        %4804 = vmatprep.subr.mxu0 0.0
        %4805 = vmatpush1.msra.mxu0 %v718
        %4806 = vmatprep.subr.mxu0 0.0
        %4807 = vmatpush1.msra.mxu0 %v717
        %4808 = vmatprep.subr.mxu0 0.0
        %4809 = vmatpush1.msra.mxu0 %v716
        %4810 = vmatprep.subr.mxu0 0.0
        %4811 = vmatpush1.msra.mxu0 %v715
        %4812 = vmatprep.subr.mxu0 0.0
        %4813 = vmatpush1.msra.mxu0 %v714
        %4814 = vmatprep.subr.mxu0 0.0
        %4815 = vmatpush2.msra.mxu0 %v745
        %4816 = vmatprep.subr.mxu0 0.0
        %4817 = vmatpush2.msra.mxu0 %v744
        %4818 = vmatprep.subr.mxu0 0.0
        %4819 = vmatpush2.msra.mxu0 %v743
        %4820 = vmatprep.subr.mxu0 0.0
        %4821 = vmatpush2.msra.mxu0 %v742
        %4822 = vmatprep.subr.mxu0 0.0
        %4823 = vmatpush2.msra.mxu0 %v741
        %4824 = vmatprep.subr.mxu0 0.0
        %4825 = vmatpush2.msra.mxu0 %v740
        %4826 = vmatprep.subr.mxu0 0.0
        %4827 = vmatpush2.msra.mxu0 %v739
        %4828 = vmatprep.subr.mxu0 0.0
        %4829 = vmatpush2.msra.mxu0 %v738
        %4830 = vmatprep.subr.mxu0 0.0
        %4831 = vmatpush2.msra.mxu0 %v737
        %4832 = vmatprep.subr.mxu0 0.0
        %4833 = vmatpush2.msra.mxu0 %v736
        %4834 = vmatprep.subr.mxu0 0.0
        %4835 = vmatpush2.msra.mxu0 %v735
        %4836 = vmatprep.subr.mxu0 0.0
        %4837 = vmatpush2.msra.mxu0 %v734
        %4838 = vmatprep.subr.mxu0 0.0
        %4839 = vmatpush2.msra.mxu0 %v733
        %4840 = vmatprep.subr.mxu0 0.0
        %4841 = vmatpush2.msra.mxu0 %v732
        %4842 = vmatprep.subr.mxu0 0.0
        %4843 = vmatpush2.msra.mxu0 %v731
        %4844 = vmatprep.subr.mxu0 0.0
        %4845 = vmatpush2.msra.mxu0 %v730
        %4846 = vmatprep.mubr.f32.mxu0 %v4735
        %4847 = vmatmul.mubr.f32.gmra.mxu0 %v4734
        %v4848 = vpop.f32.mrf.mxu0
        %v4849 = vadd.f32 0.0, %v4848
        %v4850 = vpop.f32.mrf.mxu0
        %4851 = vmatprep.mubr.f32.mxu0 %v4738
        %4852 = vmatmul.mubr.f32.gmra.mxu0 %v4737
        %v4853 = vpop.f32.mrf.mxu0
        %v4854 = vadd.f32 0.0, %v4853
        %v4855 = vpop.f32.mrf.mxu0
        %4856 = vmatprep.mubr.f32.mxu0 %v4741
        %4857 = vmatmul.mubr.f32.gmra.mxu0 %v4740
        %v4858 = vpop.f32.mrf.mxu0
        %v4859 = vadd.f32 0.0, %v4858
        %v4860 = vpop.f32.mrf.mxu0
        %4861 = vmatprep.mubr.f32.mxu0 %v4744
        %4862 = vmatmul.mubr.f32.gmra.mxu0 %v4743
        %v4863 = vpop.f32.mrf.mxu0
        %v4864 = vadd.f32 0.0, %v4863
        %v4865 = vpop.f32.mrf.mxu0
        %4866 = vmatprep.mubr.f32.mxu0 %v4747
        %4867 = vmatmul.mubr.f32.gmra.mxu0 %v4746
        %v4868 = vpop.f32.mrf.mxu0
        %v4869 = vadd.f32 0.0, %v4868
        %v4870 = vpop.f32.mrf.mxu0
        %4871 = vmatprep.mubr.f32.mxu0 %v4750
        %4872 = vmatmul.mubr.f32.gmra.mxu0 %v4749
        %v4873 = vpop.f32.mrf.mxu0
        %v4874 = vadd.f32 0.0, %v4873
        %v4875 = vpop.f32.mrf.mxu0
        %4876 = vmatprep.mubr.f32.mxu0 %v4753
        %4877 = vmatmul.mubr.f32.gmra.mxu0 %v4752
        %v4878 = vpop.f32.mrf.mxu0
        %v4879 = vadd.f32 0.0, %v4878
        %v4880 = vpop.f32.mrf.mxu0
        %4881 = vmatprep.mubr.f32.mxu0 %v4756
        %4882 = vmatmul.mubr.f32.gmra.mxu0 %v4755
        %v4883 = vpop.f32.mrf.mxu0
        %v4884 = vadd.f32 0.0, %v4883
        %v4885 = vpop.f32.mrf.mxu0
        %4886 = vdwg.mxu0
        %4887 = vmatprep.subr.mxu0 0.0
        %4888 = vmatpush1.msra.mxu0 0.0
        %4889 = vmatprep.subr.mxu0 0.0
        %4890 = vmatpush1.msra.mxu0 0.0
        %4891 = vmatprep.subr.mxu0 0.0
        %4892 = vmatpush1.msra.mxu0 0.0
        %4893 = vmatprep.subr.mxu0 0.0
        %4894 = vmatpush1.msra.mxu0 0.0
        %4895 = vmatprep.subr.mxu0 0.0
        %4896 = vmatpush1.msra.mxu0 0.0
        %4897 = vmatprep.subr.mxu0 0.0
        %4898 = vmatpush1.msra.mxu0 0.0
        %4899 = vmatprep.subr.mxu0 0.0
        %4900 = vmatpush1.msra.mxu0 0.0
        %4901 = vmatprep.subr.mxu0 0.0
        %4902 = vmatpush1.msra.mxu0 %v806
        %4903 = vmatprep.subr.mxu0 0.0
        %4904 = vmatpush1.msra.mxu0 %v753
        %4905 = vmatprep.subr.mxu0 0.0
        %4906 = vmatpush1.msra.mxu0 %v752
        %4907 = vmatprep.subr.mxu0 0.0
        %4908 = vmatpush1.msra.mxu0 %v751
        %4909 = vmatprep.subr.mxu0 0.0
        %4910 = vmatpush1.msra.mxu0 %v750
        %4911 = vmatprep.subr.mxu0 0.0
        %4912 = vmatpush1.msra.mxu0 %v749
        %4913 = vmatprep.subr.mxu0 0.0
        %4914 = vmatpush1.msra.mxu0 %v748
        %4915 = vmatprep.subr.mxu0 0.0
        %4916 = vmatpush1.msra.mxu0 %v747
        %4917 = vmatprep.subr.mxu0 0.0
        %4918 = vmatpush1.msra.mxu0 %v746
        %4919 = vmatprep.subr.mxu0 0.0
        %4920 = vmatpush2.msra.mxu0 0.0
        %4921 = vmatprep.subr.mxu0 0.0
        %4922 = vmatpush2.msra.mxu0 0.0
        %4923 = vmatprep.subr.mxu0 0.0
        %4924 = vmatpush2.msra.mxu0 0.0
        %4925 = vmatprep.subr.mxu0 0.0
        %4926 = vmatpush2.msra.mxu0 0.0
        %4927 = vmatprep.subr.mxu0 0.0
        %4928 = vmatpush2.msra.mxu0 0.0
        %4929 = vmatprep.subr.mxu0 0.0
        %4930 = vmatpush2.msra.mxu0 0.0
        %4931 = vmatprep.subr.mxu0 0.0
        %4932 = vmatpush2.msra.mxu0 0.0
        %4933 = vmatprep.subr.mxu0 0.0
        %4934 = vmatpush2.msra.mxu0 0.0
        %4935 = vmatprep.subr.mxu0 0.0
        %4936 = vmatpush2.msra.mxu0 0.0
        %4937 = vmatprep.subr.mxu0 0.0
        %4938 = vmatpush2.msra.mxu0 0.0
        %4939 = vmatprep.subr.mxu0 0.0
        %4940 = vmatpush2.msra.mxu0 0.0
        %4941 = vmatprep.subr.mxu0 0.0
        %4942 = vmatpush2.msra.mxu0 0.0
        %4943 = vmatprep.subr.mxu0 0.0
        %4944 = vmatpush2.msra.mxu0 0.0
        %4945 = vmatprep.subr.mxu0 0.0
        %4946 = vmatpush2.msra.mxu0 0.0
        %4947 = vmatprep.subr.mxu0 0.0
        %4948 = vmatpush2.msra.mxu0 0.0
        %4949 = vmatprep.subr.mxu0 0.0
        %4950 = vmatpush2.msra.mxu0 0.0
        %4951 = vmatprep.mubr.f32.mxu0 0.0
        %4952 = vmatmul.mubr.f32.gmra.mxu0 %v4759
        %v4953 = vpop.f32.mrf.mxu0
        %v4954 = vadd.f32 %v4849, %v4953
        %v4955 = vpop.f32.mrf.mxu0
        %4956 = vmatprep.mubr.f32.mxu0 0.0
        %4957 = vmatmul.mubr.f32.gmra.mxu0 %v4762
        %v4958 = vpop.f32.mrf.mxu0
        %v4959 = vadd.f32 %v4854, %v4958
        %v4960 = vpop.f32.mrf.mxu0
        %4961 = vmatprep.mubr.f32.mxu0 0.0
        %4962 = vmatmul.mubr.f32.gmra.mxu0 %v4765
        %v4963 = vpop.f32.mrf.mxu0
        %v4964 = vadd.f32 %v4859, %v4963
        %v4965 = vpop.f32.mrf.mxu0
        %4966 = vmatprep.mubr.f32.mxu0 0.0
        %4967 = vmatmul.mubr.f32.gmra.mxu0 %v4768
        %v4968 = vpop.f32.mrf.mxu0
        %v4969 = vadd.f32 %v4864, %v4968
        %v4970 = vpop.f32.mrf.mxu0
        %4971 = vmatprep.mubr.f32.mxu0 0.0
        %4972 = vmatmul.mubr.f32.gmra.mxu0 %v4771
        %v4973 = vpop.f32.mrf.mxu0
        %v4974 = vadd.f32 %v4869, %v4973
        %v4975 = vpop.f32.mrf.mxu0
        %4976 = vmatprep.mubr.f32.mxu0 0.0
        %4977 = vmatmul.mubr.f32.gmra.mxu0 %v4774
        %v4978 = vpop.f32.mrf.mxu0
        %v4979 = vadd.f32 %v4874, %v4978
        %v4980 = vpop.f32.mrf.mxu0
        %4981 = vmatprep.mubr.f32.mxu0 0.0
        %4982 = vmatmul.mubr.f32.gmra.mxu0 %v4777
        %v4983 = vpop.f32.mrf.mxu0
        %v4984 = vadd.f32 %v4879, %v4983
        %v4985 = vpop.f32.mrf.mxu0
        %4986 = vmatprep.mubr.f32.mxu0 0.0
        %4987 = vmatmul.mubr.f32.gmra.mxu0 %v4780
        %v4988 = vpop.f32.mrf.mxu0
        %v4989 = vadd.f32 %v4884, %v4988
        %v4990 = vpop.f32.mrf.mxu0
        %4991 = vdwg.mxu0
        %s4992 = scalar_lea.vmem %s3, 160
        %v4993 = vld [vmem:[%s4992] sm:$0xff]
        %v4994 = vld [vmem:[%s4992 + $0x8] sm:$0xff]
        %v4996 = vsel %vm1282, %v4954, 0
        %v4999 = vsel %vm1282, %v4959, 0
        %v5002 = vsel %vm1282, %v4964, 0
        %v5005 = vsel %vm1282, %v4969, 0
        %v5008 = vsel %vm1282, %v4974, 0
        %v5011 = vsel %vm1282, %v4979, 0
        %v5014 = vsel %vm1282, %v4984, 0
        %v5017 = vsel %vm1282, %v4989, 0
        %5019 = vmatprep.subr.mxu0 0.0
        %5020 = vmatpush1.msra.mxu0 0.0
        %5021 = vmatprep.subr.mxu0 0.0
        %5022 = vmatpush1.msra.mxu0 0.0
        %5023 = vmatprep.subr.mxu0 0.0
        %5024 = vmatpush1.msra.mxu0 0.0
        %5025 = vmatprep.subr.mxu0 0.0
        %5026 = vmatpush1.msra.mxu0 0.0
        %5027 = vmatprep.subr.mxu0 0.0
        %5028 = vmatpush1.msra.mxu0 0.0
        %5029 = vmatprep.subr.mxu0 0.0
        %5030 = vmatpush1.msra.mxu0 0.0
        %5031 = vmatprep.subr.mxu0 0.0
        %5032 = vmatpush1.msra.mxu0 0.0
        %5033 = vmatprep.subr.mxu0 0.0
        %5034 = vmatpush1.msra.mxu0 0.0
        %5035 = vmatprep.subr.mxu0 0.0
        %5036 = vmatpush1.msra.mxu0 0.0
        %5037 = vmatprep.subr.mxu0 0.0
        %5038 = vmatpush1.msra.mxu0 0.0
        %5039 = vmatprep.subr.mxu0 0.0
        %5040 = vmatpush1.msra.mxu0 0.0
        %5041 = vmatprep.subr.mxu0 0.0
        %5042 = vmatpush1.msra.mxu0 0.0
        %5043 = vmatprep.subr.mxu0 0.0
        %5044 = vmatpush1.msra.mxu0 0.0
        %5045 = vmatprep.subr.mxu0 0.0
        %5046 = vmatpush1.msra.mxu0 0.0
        %5047 = vmatprep.subr.mxu0 0.0
        %5048 = vmatpush1.msra.mxu0 %v4994
        %5049 = vmatprep.subr.mxu0 0.0
        %5050 = vmatpush1.msra.mxu0 %v4993
        %5051 = vmatprep.subr.mxu0 0.0
        %5052 = vmatpush2.msra.mxu0 0.0
        %5053 = vmatprep.subr.mxu0 0.0
        %5054 = vmatpush2.msra.mxu0 0.0
        %5055 = vmatprep.subr.mxu0 0.0
        %5056 = vmatpush2.msra.mxu0 0.0
        %5057 = vmatprep.subr.mxu0 0.0
        %5058 = vmatpush2.msra.mxu0 0.0
        %5059 = vmatprep.subr.mxu0 0.0
        %5060 = vmatpush2.msra.mxu0 0.0
        %5061 = vmatprep.subr.mxu0 0.0
        %5062 = vmatpush2.msra.mxu0 0.0
        %5063 = vmatprep.subr.mxu0 0.0
        %5064 = vmatpush2.msra.mxu0 0.0
        %5065 = vmatprep.subr.mxu0 0.0
        %5066 = vmatpush2.msra.mxu0 0.0
        %5067 = vmatprep.subr.mxu0 0.0
        %5068 = vmatpush2.msra.mxu0 0.0
        %5069 = vmatprep.subr.mxu0 0.0
        %5070 = vmatpush2.msra.mxu0 0.0
        %5071 = vmatprep.subr.mxu0 0.0
        %5072 = vmatpush2.msra.mxu0 0.0
        %5073 = vmatprep.subr.mxu0 0.0
        %5074 = vmatpush2.msra.mxu0 0.0
        %5075 = vmatprep.subr.mxu0 0.0
        %5076 = vmatpush2.msra.mxu0 0.0
        %5077 = vmatprep.subr.mxu0 0.0
        %5078 = vmatpush2.msra.mxu0 0.0
        %5079 = vmatprep.subr.mxu0 0.0
        %5080 = vmatpush2.msra.mxu0 0.0
        %5081 = vmatprep.subr.mxu0 0.0
        %5082 = vmatpush2.msra.mxu0 0.0
        %5083 = vmatprep.mubr.f32.mxu0 0.0
        %5084 = vmatmul.mubr.f32.gmra.mxu0 %v4996
        %v5085 = vpop.f32.mrf.mxu0
        %v5086 = vadd.f32 0.0, %v5085
        %v5087 = vpop.f32.mrf.mxu0
        %5088 = vmatprep.mubr.f32.mxu0 0.0
        %5089 = vmatmul.mubr.f32.gmra.mxu0 %v4999
        %v5090 = vpop.f32.mrf.mxu0
        %v5091 = vadd.f32 0.0, %v5090
        %v5092 = vpop.f32.mrf.mxu0
        %5093 = vmatprep.mubr.f32.mxu0 0.0
        %5094 = vmatmul.mubr.f32.gmra.mxu0 %v5002
        %v5095 = vpop.f32.mrf.mxu0
        %v5096 = vadd.f32 0.0, %v5095
        %v5097 = vpop.f32.mrf.mxu0
        %5098 = vmatprep.mubr.f32.mxu0 0.0
        %5099 = vmatmul.mubr.f32.gmra.mxu0 %v5005
        %v5100 = vpop.f32.mrf.mxu0
        %v5101 = vadd.f32 0.0, %v5100
        %v5102 = vpop.f32.mrf.mxu0
        %5103 = vmatprep.mubr.f32.mxu0 0.0
        %5104 = vmatmul.mubr.f32.gmra.mxu0 %v5008
        %v5105 = vpop.f32.mrf.mxu0
        %v5106 = vadd.f32 0.0, %v5105
        %v5107 = vpop.f32.mrf.mxu0
        %5108 = vmatprep.mubr.f32.mxu0 0.0
        %5109 = vmatmul.mubr.f32.gmra.mxu0 %v5011
        %v5110 = vpop.f32.mrf.mxu0
        %v5111 = vadd.f32 0.0, %v5110
        %v5112 = vpop.f32.mrf.mxu0
        %5113 = vmatprep.mubr.f32.mxu0 0.0
        %5114 = vmatmul.mubr.f32.gmra.mxu0 %v5014
        %v5115 = vpop.f32.mrf.mxu0
        %v5116 = vadd.f32 0.0, %v5115
        %v5117 = vpop.f32.mrf.mxu0
        %5118 = vmatprep.mubr.f32.mxu0 0.0
        %5119 = vmatmul.mubr.f32.gmra.mxu0 %v5017
        %v5120 = vpop.f32.mrf.mxu0
        %v5121 = vadd.f32 0.0, %v5120
        %v5122 = vpop.f32.mrf.mxu0
        %5123 = vdwg.mxu0
        %v5124 = vadd.f32 %v4725, %v5086
        %v5125 = vadd.f32 %v4726, %v5091
        %v5126 = vadd.f32 %v4727, %v5096
        %v5127 = vadd.f32 %v4728, %v5101
        %v5128 = vadd.f32 %v4729, %v5106
        %v5129 = vadd.f32 %v4730, %v5111
        %v5130 = vadd.f32 %v4731, %v5116
        %v5131 = vadd.f32 %v4732, %v5121
        %s5132 = scalar_lea.vmem %s2, 2112
        %v5133 = vld [vmem:[%s5132] sm:$0xff]
        %v5134 = vld [vmem:[%s5132 + $0x8] sm:$0xff]
        %v5135 = vld [vmem:[%s5132 + $0x10] sm:$0xff]
        %v5136 = vld [vmem:[%s5132 + $0x18] sm:$0xff]
        %v5137 = vld [vmem:[%s5132 + $0x20] sm:$0xff]
        %v5138 = vld [vmem:[%s5132 + $0x28] sm:$0xff]
        %v5139 = vld [vmem:[%s5132 + $0x30] sm:$0xff]
        %v5140 = vld [vmem:[%s5132 + $0x38] sm:$0xff]
        %v5141 = vld [vmem:[%s5132 + $0x40] sm:$0xff]
        %v5142 = vld [vmem:[%s5132 + $0x48] sm:$0xff]
        %v5143 = vld [vmem:[%s5132 + $0x50] sm:$0xff]
        %v5144 = vld [vmem:[%s5132 + $0x58] sm:$0xff]
        %v5145 = vld [vmem:[%s5132 + $0x60] sm:$0xff]
        %v5146 = vld [vmem:[%s5132 + $0x68] sm:$0xff]
        %v5147 = vld [vmem:[%s5132 + $0x70] sm:$0xff]
        %v5148 = vld [vmem:[%s5132 + $0x78] sm:$0xff]
        %v5149 = vld [vmem:[%s5132 + $0x80] sm:$0xff]
        %v5150 = vld [vmem:[%s5132 + $0x88] sm:$0xff]
        %v5151 = vld [vmem:[%s5132 + $0x90] sm:$0xff]
        %v5152 = vld [vmem:[%s5132 + $0x98] sm:$0xff]
        %v5153 = vld [vmem:[%s5132 + $0xa0] sm:$0xff]
        %v5154 = vld [vmem:[%s5132 + $0xa8] sm:$0xff]
        %v5155 = vld [vmem:[%s5132 + $0xb0] sm:$0xff]
        %v5156 = vld [vmem:[%s5132 + $0xb8] sm:$0xff]
        %v5158 = vsel %vm779, %v5135, 0
        %v5161 = vsel %vm779, %v5138, 0
        %v5164 = vsel %vm779, %v5141, 0
        %v5167 = vsel %vm779, %v5144, 0
        %v5170 = vsel %vm779, %v5147, 0
        %v5173 = vsel %vm779, %v5150, 0
        %v5176 = vsel %vm779, %v5153, 0
        %v5179 = vsel %vm779, %v5156, 0
        %5181 = vmatprep.subr.mxu0 0.0
        %5182 = vmatpush1.msra.mxu0 %v729
        %5183 = vmatprep.subr.mxu0 0.0
        %5184 = vmatpush1.msra.mxu0 %v728
        %5185 = vmatprep.subr.mxu0 0.0
        %5186 = vmatpush1.msra.mxu0 %v727
        %5187 = vmatprep.subr.mxu0 0.0
        %5188 = vmatpush1.msra.mxu0 %v726
        %5189 = vmatprep.subr.mxu0 0.0
        %5190 = vmatpush1.msra.mxu0 %v725
        %5191 = vmatprep.subr.mxu0 0.0
        %5192 = vmatpush1.msra.mxu0 %v724
        %5193 = vmatprep.subr.mxu0 0.0
        %5194 = vmatpush1.msra.mxu0 %v723
        %5195 = vmatprep.subr.mxu0 0.0
        %5196 = vmatpush1.msra.mxu0 %v722
        %5197 = vmatprep.subr.mxu0 0.0
        %5198 = vmatpush1.msra.mxu0 %v721
        %5199 = vmatprep.subr.mxu0 0.0
        %5200 = vmatpush1.msra.mxu0 %v720
        %5201 = vmatprep.subr.mxu0 0.0
        %5202 = vmatpush1.msra.mxu0 %v719
        %5203 = vmatprep.subr.mxu0 0.0
        %5204 = vmatpush1.msra.mxu0 %v718
        %5205 = vmatprep.subr.mxu0 0.0
        %5206 = vmatpush1.msra.mxu0 %v717
        %5207 = vmatprep.subr.mxu0 0.0
        %5208 = vmatpush1.msra.mxu0 %v716
        %5209 = vmatprep.subr.mxu0 0.0
        %5210 = vmatpush1.msra.mxu0 %v715
        %5211 = vmatprep.subr.mxu0 0.0
        %5212 = vmatpush1.msra.mxu0 %v714
        %5213 = vmatprep.subr.mxu0 0.0
        %5214 = vmatpush2.msra.mxu0 %v745
        %5215 = vmatprep.subr.mxu0 0.0
        %5216 = vmatpush2.msra.mxu0 %v744
        %5217 = vmatprep.subr.mxu0 0.0
        %5218 = vmatpush2.msra.mxu0 %v743
        %5219 = vmatprep.subr.mxu0 0.0
        %5220 = vmatpush2.msra.mxu0 %v742
        %5221 = vmatprep.subr.mxu0 0.0
        %5222 = vmatpush2.msra.mxu0 %v741
        %5223 = vmatprep.subr.mxu0 0.0
        %5224 = vmatpush2.msra.mxu0 %v740
        %5225 = vmatprep.subr.mxu0 0.0
        %5226 = vmatpush2.msra.mxu0 %v739
        %5227 = vmatprep.subr.mxu0 0.0
        %5228 = vmatpush2.msra.mxu0 %v738
        %5229 = vmatprep.subr.mxu0 0.0
        %5230 = vmatpush2.msra.mxu0 %v737
        %5231 = vmatprep.subr.mxu0 0.0
        %5232 = vmatpush2.msra.mxu0 %v736
        %5233 = vmatprep.subr.mxu0 0.0
        %5234 = vmatpush2.msra.mxu0 %v735
        %5235 = vmatprep.subr.mxu0 0.0
        %5236 = vmatpush2.msra.mxu0 %v734
        %5237 = vmatprep.subr.mxu0 0.0
        %5238 = vmatpush2.msra.mxu0 %v733
        %5239 = vmatprep.subr.mxu0 0.0
        %5240 = vmatpush2.msra.mxu0 %v732
        %5241 = vmatprep.subr.mxu0 0.0
        %5242 = vmatpush2.msra.mxu0 %v731
        %5243 = vmatprep.subr.mxu0 0.0
        %5244 = vmatpush2.msra.mxu0 %v730
        %5245 = vmatprep.mubr.f32.mxu0 %v5134
        %5246 = vmatmul.mubr.f32.gmra.mxu0 %v5133
        %v5247 = vpop.f32.mrf.mxu0
        %v5248 = vadd.f32 0.0, %v5247
        %v5249 = vpop.f32.mrf.mxu0
        %5250 = vmatprep.mubr.f32.mxu0 %v5137
        %5251 = vmatmul.mubr.f32.gmra.mxu0 %v5136
        %v5252 = vpop.f32.mrf.mxu0
        %v5253 = vadd.f32 0.0, %v5252
        %v5254 = vpop.f32.mrf.mxu0
        %5255 = vmatprep.mubr.f32.mxu0 %v5140
        %5256 = vmatmul.mubr.f32.gmra.mxu0 %v5139
        %v5257 = vpop.f32.mrf.mxu0
        %v5258 = vadd.f32 0.0, %v5257
        %v5259 = vpop.f32.mrf.mxu0
        %5260 = vmatprep.mubr.f32.mxu0 %v5143
        %5261 = vmatmul.mubr.f32.gmra.mxu0 %v5142
        %v5262 = vpop.f32.mrf.mxu0
        %v5263 = vadd.f32 0.0, %v5262
        %v5264 = vpop.f32.mrf.mxu0
        %5265 = vmatprep.mubr.f32.mxu0 %v5146
        %5266 = vmatmul.mubr.f32.gmra.mxu0 %v5145
        %v5267 = vpop.f32.mrf.mxu0
        %v5268 = vadd.f32 0.0, %v5267
        %v5269 = vpop.f32.mrf.mxu0
        %5270 = vmatprep.mubr.f32.mxu0 %v5149
        %5271 = vmatmul.mubr.f32.gmra.mxu0 %v5148
        %v5272 = vpop.f32.mrf.mxu0
        %v5273 = vadd.f32 0.0, %v5272
        %v5274 = vpop.f32.mrf.mxu0
        %5275 = vmatprep.mubr.f32.mxu0 %v5152
        %5276 = vmatmul.mubr.f32.gmra.mxu0 %v5151
        %v5277 = vpop.f32.mrf.mxu0
        %v5278 = vadd.f32 0.0, %v5277
        %v5279 = vpop.f32.mrf.mxu0
        %5280 = vmatprep.mubr.f32.mxu0 %v5155
        %5281 = vmatmul.mubr.f32.gmra.mxu0 %v5154
        %v5282 = vpop.f32.mrf.mxu0
        %v5283 = vadd.f32 0.0, %v5282
        %v5284 = vpop.f32.mrf.mxu0
        %5285 = vdwg.mxu0
        %5286 = vmatprep.subr.mxu0 0.0
        %5287 = vmatpush1.msra.mxu0 0.0
        %5288 = vmatprep.subr.mxu0 0.0
        %5289 = vmatpush1.msra.mxu0 0.0
        %5290 = vmatprep.subr.mxu0 0.0
        %5291 = vmatpush1.msra.mxu0 0.0
        %5292 = vmatprep.subr.mxu0 0.0
        %5293 = vmatpush1.msra.mxu0 0.0
        %5294 = vmatprep.subr.mxu0 0.0
        %5295 = vmatpush1.msra.mxu0 0.0
        %5296 = vmatprep.subr.mxu0 0.0
        %5297 = vmatpush1.msra.mxu0 0.0
        %5298 = vmatprep.subr.mxu0 0.0
        %5299 = vmatpush1.msra.mxu0 0.0
        %5300 = vmatprep.subr.mxu0 0.0
        %5301 = vmatpush1.msra.mxu0 %v806
        %5302 = vmatprep.subr.mxu0 0.0
        %5303 = vmatpush1.msra.mxu0 %v753
        %5304 = vmatprep.subr.mxu0 0.0
        %5305 = vmatpush1.msra.mxu0 %v752
        %5306 = vmatprep.subr.mxu0 0.0
        %5307 = vmatpush1.msra.mxu0 %v751
        %5308 = vmatprep.subr.mxu0 0.0
        %5309 = vmatpush1.msra.mxu0 %v750
        %5310 = vmatprep.subr.mxu0 0.0
        %5311 = vmatpush1.msra.mxu0 %v749
        %5312 = vmatprep.subr.mxu0 0.0
        %5313 = vmatpush1.msra.mxu0 %v748
        %5314 = vmatprep.subr.mxu0 0.0
        %5315 = vmatpush1.msra.mxu0 %v747
        %5316 = vmatprep.subr.mxu0 0.0
        %5317 = vmatpush1.msra.mxu0 %v746
        %5318 = vmatprep.subr.mxu0 0.0
        %5319 = vmatpush2.msra.mxu0 0.0
        %5320 = vmatprep.subr.mxu0 0.0
        %5321 = vmatpush2.msra.mxu0 0.0
        %5322 = vmatprep.subr.mxu0 0.0
        %5323 = vmatpush2.msra.mxu0 0.0
        %5324 = vmatprep.subr.mxu0 0.0
        %5325 = vmatpush2.msra.mxu0 0.0
        %5326 = vmatprep.subr.mxu0 0.0
        %5327 = vmatpush2.msra.mxu0 0.0
        %5328 = vmatprep.subr.mxu0 0.0
        %5329 = vmatpush2.msra.mxu0 0.0
        %5330 = vmatprep.subr.mxu0 0.0
        %5331 = vmatpush2.msra.mxu0 0.0
        %5332 = vmatprep.subr.mxu0 0.0
        %5333 = vmatpush2.msra.mxu0 0.0
        %5334 = vmatprep.subr.mxu0 0.0
        %5335 = vmatpush2.msra.mxu0 0.0
        %5336 = vmatprep.subr.mxu0 0.0
        %5337 = vmatpush2.msra.mxu0 0.0
        %5338 = vmatprep.subr.mxu0 0.0
        %5339 = vmatpush2.msra.mxu0 0.0
        %5340 = vmatprep.subr.mxu0 0.0
        %5341 = vmatpush2.msra.mxu0 0.0
        %5342 = vmatprep.subr.mxu0 0.0
        %5343 = vmatpush2.msra.mxu0 0.0
        %5344 = vmatprep.subr.mxu0 0.0
        %5345 = vmatpush2.msra.mxu0 0.0
        %5346 = vmatprep.subr.mxu0 0.0
        %5347 = vmatpush2.msra.mxu0 0.0
        %5348 = vmatprep.subr.mxu0 0.0
        %5349 = vmatpush2.msra.mxu0 0.0
        %5350 = vmatprep.mubr.f32.mxu0 0.0
        %5351 = vmatmul.mubr.f32.gmra.mxu0 %v5158
        %v5352 = vpop.f32.mrf.mxu0
        %v5353 = vadd.f32 %v5248, %v5352
        %v5354 = vpop.f32.mrf.mxu0
        %5355 = vmatprep.mubr.f32.mxu0 0.0
        %5356 = vmatmul.mubr.f32.gmra.mxu0 %v5161
        %v5357 = vpop.f32.mrf.mxu0
        %v5358 = vadd.f32 %v5253, %v5357
        %v5359 = vpop.f32.mrf.mxu0
        %5360 = vmatprep.mubr.f32.mxu0 0.0
        %5361 = vmatmul.mubr.f32.gmra.mxu0 %v5164
        %v5362 = vpop.f32.mrf.mxu0
        %v5363 = vadd.f32 %v5258, %v5362
        %v5364 = vpop.f32.mrf.mxu0
        %5365 = vmatprep.mubr.f32.mxu0 0.0
        %5366 = vmatmul.mubr.f32.gmra.mxu0 %v5167
        %v5367 = vpop.f32.mrf.mxu0
        %v5368 = vadd.f32 %v5263, %v5367
        %v5369 = vpop.f32.mrf.mxu0
        %5370 = vmatprep.mubr.f32.mxu0 0.0
        %5371 = vmatmul.mubr.f32.gmra.mxu0 %v5170
        %v5372 = vpop.f32.mrf.mxu0
        %v5373 = vadd.f32 %v5268, %v5372
        %v5374 = vpop.f32.mrf.mxu0
        %5375 = vmatprep.mubr.f32.mxu0 0.0
        %5376 = vmatmul.mubr.f32.gmra.mxu0 %v5173
        %v5377 = vpop.f32.mrf.mxu0
        %v5378 = vadd.f32 %v5273, %v5377
        %v5379 = vpop.f32.mrf.mxu0
        %5380 = vmatprep.mubr.f32.mxu0 0.0
        %5381 = vmatmul.mubr.f32.gmra.mxu0 %v5176
        %v5382 = vpop.f32.mrf.mxu0
        %v5383 = vadd.f32 %v5278, %v5382
        %v5384 = vpop.f32.mrf.mxu0
        %5385 = vmatprep.mubr.f32.mxu0 0.0
        %5386 = vmatmul.mubr.f32.gmra.mxu0 %v5179
        %v5387 = vpop.f32.mrf.mxu0
        %v5388 = vadd.f32 %v5283, %v5387
        %v5389 = vpop.f32.mrf.mxu0
        %5390 = vdwg.mxu0
        %s5391 = scalar_lea.vmem %s3, 176
        %v5392 = vld [vmem:[%s5391] sm:$0xff]
        %v5393 = vld [vmem:[%s5391 + $0x8] sm:$0xff]
        %v5395 = vsel %vm1282, %v5353, 0
        %v5398 = vsel %vm1282, %v5358, 0
        %v5401 = vsel %vm1282, %v5363, 0
        %v5404 = vsel %vm1282, %v5368, 0
        %v5407 = vsel %vm1282, %v5373, 0
        %v5410 = vsel %vm1282, %v5378, 0
        %v5413 = vsel %vm1282, %v5383, 0
        %v5416 = vsel %vm1282, %v5388, 0
        %5418 = vmatprep.subr.mxu0 0.0
        %5419 = vmatpush1.msra.mxu0 0.0
        %5420 = vmatprep.subr.mxu0 0.0
        %5421 = vmatpush1.msra.mxu0 0.0
        %5422 = vmatprep.subr.mxu0 0.0
        %5423 = vmatpush1.msra.mxu0 0.0
        %5424 = vmatprep.subr.mxu0 0.0
        %5425 = vmatpush1.msra.mxu0 0.0
        %5426 = vmatprep.subr.mxu0 0.0
        %5427 = vmatpush1.msra.mxu0 0.0
        %5428 = vmatprep.subr.mxu0 0.0
        %5429 = vmatpush1.msra.mxu0 0.0
        %5430 = vmatprep.subr.mxu0 0.0
        %5431 = vmatpush1.msra.mxu0 0.0
        %5432 = vmatprep.subr.mxu0 0.0
        %5433 = vmatpush1.msra.mxu0 0.0
        %5434 = vmatprep.subr.mxu0 0.0
        %5435 = vmatpush1.msra.mxu0 0.0
        %5436 = vmatprep.subr.mxu0 0.0
        %5437 = vmatpush1.msra.mxu0 0.0
        %5438 = vmatprep.subr.mxu0 0.0
        %5439 = vmatpush1.msra.mxu0 0.0
        %5440 = vmatprep.subr.mxu0 0.0
        %5441 = vmatpush1.msra.mxu0 0.0
        %5442 = vmatprep.subr.mxu0 0.0
        %5443 = vmatpush1.msra.mxu0 0.0
        %5444 = vmatprep.subr.mxu0 0.0
        %5445 = vmatpush1.msra.mxu0 0.0
        %5446 = vmatprep.subr.mxu0 0.0
        %5447 = vmatpush1.msra.mxu0 %v5393
        %5448 = vmatprep.subr.mxu0 0.0
        %5449 = vmatpush1.msra.mxu0 %v5392
        %5450 = vmatprep.subr.mxu0 0.0
        %5451 = vmatpush2.msra.mxu0 0.0
        %5452 = vmatprep.subr.mxu0 0.0
        %5453 = vmatpush2.msra.mxu0 0.0
        %5454 = vmatprep.subr.mxu0 0.0
        %5455 = vmatpush2.msra.mxu0 0.0
        %5456 = vmatprep.subr.mxu0 0.0
        %5457 = vmatpush2.msra.mxu0 0.0
        %5458 = vmatprep.subr.mxu0 0.0
        %5459 = vmatpush2.msra.mxu0 0.0
        %5460 = vmatprep.subr.mxu0 0.0
        %5461 = vmatpush2.msra.mxu0 0.0
        %5462 = vmatprep.subr.mxu0 0.0
        %5463 = vmatpush2.msra.mxu0 0.0
        %5464 = vmatprep.subr.mxu0 0.0
        %5465 = vmatpush2.msra.mxu0 0.0
        %5466 = vmatprep.subr.mxu0 0.0
        %5467 = vmatpush2.msra.mxu0 0.0
        %5468 = vmatprep.subr.mxu0 0.0
        %5469 = vmatpush2.msra.mxu0 0.0
        %5470 = vmatprep.subr.mxu0 0.0
        %5471 = vmatpush2.msra.mxu0 0.0
        %5472 = vmatprep.subr.mxu0 0.0
        %5473 = vmatpush2.msra.mxu0 0.0
        %5474 = vmatprep.subr.mxu0 0.0
        %5475 = vmatpush2.msra.mxu0 0.0
        %5476 = vmatprep.subr.mxu0 0.0
        %5477 = vmatpush2.msra.mxu0 0.0
        %5478 = vmatprep.subr.mxu0 0.0
        %5479 = vmatpush2.msra.mxu0 0.0
        %5480 = vmatprep.subr.mxu0 0.0
        %5481 = vmatpush2.msra.mxu0 0.0
        %5482 = vmatprep.mubr.f32.mxu0 0.0
        %5483 = vmatmul.mubr.f32.gmra.mxu0 %v5395
        %v5484 = vpop.f32.mrf.mxu0
        %v5485 = vadd.f32 0.0, %v5484
        %v5486 = vpop.f32.mrf.mxu0
        %5487 = vmatprep.mubr.f32.mxu0 0.0
        %5488 = vmatmul.mubr.f32.gmra.mxu0 %v5398
        %v5489 = vpop.f32.mrf.mxu0
        %v5490 = vadd.f32 0.0, %v5489
        %v5491 = vpop.f32.mrf.mxu0
        %5492 = vmatprep.mubr.f32.mxu0 0.0
        %5493 = vmatmul.mubr.f32.gmra.mxu0 %v5401
        %v5494 = vpop.f32.mrf.mxu0
        %v5495 = vadd.f32 0.0, %v5494
        %v5496 = vpop.f32.mrf.mxu0
        %5497 = vmatprep.mubr.f32.mxu0 0.0
        %5498 = vmatmul.mubr.f32.gmra.mxu0 %v5404
        %v5499 = vpop.f32.mrf.mxu0
        %v5500 = vadd.f32 0.0, %v5499
        %v5501 = vpop.f32.mrf.mxu0
        %5502 = vmatprep.mubr.f32.mxu0 0.0
        %5503 = vmatmul.mubr.f32.gmra.mxu0 %v5407
        %v5504 = vpop.f32.mrf.mxu0
        %v5505 = vadd.f32 0.0, %v5504
        %v5506 = vpop.f32.mrf.mxu0
        %5507 = vmatprep.mubr.f32.mxu0 0.0
        %5508 = vmatmul.mubr.f32.gmra.mxu0 %v5410
        %v5509 = vpop.f32.mrf.mxu0
        %v5510 = vadd.f32 0.0, %v5509
        %v5511 = vpop.f32.mrf.mxu0
        %5512 = vmatprep.mubr.f32.mxu0 0.0
        %5513 = vmatmul.mubr.f32.gmra.mxu0 %v5413
        %v5514 = vpop.f32.mrf.mxu0
        %v5515 = vadd.f32 0.0, %v5514
        %v5516 = vpop.f32.mrf.mxu0
        %5517 = vmatprep.mubr.f32.mxu0 0.0
        %5518 = vmatmul.mubr.f32.gmra.mxu0 %v5416
        %v5519 = vpop.f32.mrf.mxu0
        %v5520 = vadd.f32 0.0, %v5519
        %v5521 = vpop.f32.mrf.mxu0
        %5522 = vdwg.mxu0
        %v5523 = vadd.f32 %v5124, %v5485
        %v5524 = vadd.f32 %v5125, %v5490
        %v5525 = vadd.f32 %v5126, %v5495
        %v5526 = vadd.f32 %v5127, %v5500
        %v5527 = vadd.f32 %v5128, %v5505
        %v5528 = vadd.f32 %v5129, %v5510
        %v5529 = vadd.f32 %v5130, %v5515
        %v5530 = vadd.f32 %v5131, %v5520
        %s5531 = scalar_lea.vmem %s2, 2304
        %v5532 = vld [vmem:[%s5531] sm:$0xff]
        %v5533 = vld [vmem:[%s5531 + $0x8] sm:$0xff]
        %v5534 = vld [vmem:[%s5531 + $0x10] sm:$0xff]
        %v5535 = vld [vmem:[%s5531 + $0x18] sm:$0xff]
        %v5536 = vld [vmem:[%s5531 + $0x20] sm:$0xff]
        %v5537 = vld [vmem:[%s5531 + $0x28] sm:$0xff]
        %v5538 = vld [vmem:[%s5531 + $0x30] sm:$0xff]
        %v5539 = vld [vmem:[%s5531 + $0x38] sm:$0xff]
        %v5540 = vld [vmem:[%s5531 + $0x40] sm:$0xff]
        %v5541 = vld [vmem:[%s5531 + $0x48] sm:$0xff]
        %v5542 = vld [vmem:[%s5531 + $0x50] sm:$0xff]
        %v5543 = vld [vmem:[%s5531 + $0x58] sm:$0xff]
        %v5544 = vld [vmem:[%s5531 + $0x60] sm:$0xff]
        %v5545 = vld [vmem:[%s5531 + $0x68] sm:$0xff]
        %v5546 = vld [vmem:[%s5531 + $0x70] sm:$0xff]
        %v5547 = vld [vmem:[%s5531 + $0x78] sm:$0xff]
        %v5548 = vld [vmem:[%s5531 + $0x80] sm:$0xff]
        %v5549 = vld [vmem:[%s5531 + $0x88] sm:$0xff]
        %v5550 = vld [vmem:[%s5531 + $0x90] sm:$0xff]
        %v5551 = vld [vmem:[%s5531 + $0x98] sm:$0xff]
        %v5552 = vld [vmem:[%s5531 + $0xa0] sm:$0xff]
        %v5553 = vld [vmem:[%s5531 + $0xa8] sm:$0xff]
        %v5554 = vld [vmem:[%s5531 + $0xb0] sm:$0xff]
        %v5555 = vld [vmem:[%s5531 + $0xb8] sm:$0xff]
        %v5557 = vsel %vm779, %v5534, 0
        %v5560 = vsel %vm779, %v5537, 0
        %v5563 = vsel %vm779, %v5540, 0
        %v5566 = vsel %vm779, %v5543, 0
        %v5569 = vsel %vm779, %v5546, 0
        %v5572 = vsel %vm779, %v5549, 0
        %v5575 = vsel %vm779, %v5552, 0
        %v5578 = vsel %vm779, %v5555, 0
        %5580 = vmatprep.subr.mxu0 0.0
        %5581 = vmatpush1.msra.mxu0 %v729
        %5582 = vmatprep.subr.mxu0 0.0
        %5583 = vmatpush1.msra.mxu0 %v728
        %5584 = vmatprep.subr.mxu0 0.0
        %5585 = vmatpush1.msra.mxu0 %v727
        %5586 = vmatprep.subr.mxu0 0.0
        %5587 = vmatpush1.msra.mxu0 %v726
        %5588 = vmatprep.subr.mxu0 0.0
        %5589 = vmatpush1.msra.mxu0 %v725
        %5590 = vmatprep.subr.mxu0 0.0
        %5591 = vmatpush1.msra.mxu0 %v724
        %5592 = vmatprep.subr.mxu0 0.0
        %5593 = vmatpush1.msra.mxu0 %v723
        %5594 = vmatprep.subr.mxu0 0.0
        %5595 = vmatpush1.msra.mxu0 %v722
        %5596 = vmatprep.subr.mxu0 0.0
        %5597 = vmatpush1.msra.mxu0 %v721
        %5598 = vmatprep.subr.mxu0 0.0
        %5599 = vmatpush1.msra.mxu0 %v720
        %5600 = vmatprep.subr.mxu0 0.0
        %5601 = vmatpush1.msra.mxu0 %v719
        %5602 = vmatprep.subr.mxu0 0.0
        %5603 = vmatpush1.msra.mxu0 %v718
        %5604 = vmatprep.subr.mxu0 0.0
        %5605 = vmatpush1.msra.mxu0 %v717
        %5606 = vmatprep.subr.mxu0 0.0
        %5607 = vmatpush1.msra.mxu0 %v716
        %5608 = vmatprep.subr.mxu0 0.0
        %5609 = vmatpush1.msra.mxu0 %v715
        %5610 = vmatprep.subr.mxu0 0.0
        %5611 = vmatpush1.msra.mxu0 %v714
        %5612 = vmatprep.subr.mxu0 0.0
        %5613 = vmatpush2.msra.mxu0 %v745
        %5614 = vmatprep.subr.mxu0 0.0
        %5615 = vmatpush2.msra.mxu0 %v744
        %5616 = vmatprep.subr.mxu0 0.0
        %5617 = vmatpush2.msra.mxu0 %v743
        %5618 = vmatprep.subr.mxu0 0.0
        %5619 = vmatpush2.msra.mxu0 %v742
        %5620 = vmatprep.subr.mxu0 0.0
        %5621 = vmatpush2.msra.mxu0 %v741
        %5622 = vmatprep.subr.mxu0 0.0
        %5623 = vmatpush2.msra.mxu0 %v740
        %5624 = vmatprep.subr.mxu0 0.0
        %5625 = vmatpush2.msra.mxu0 %v739
        %5626 = vmatprep.subr.mxu0 0.0
        %5627 = vmatpush2.msra.mxu0 %v738
        %5628 = vmatprep.subr.mxu0 0.0
        %5629 = vmatpush2.msra.mxu0 %v737
        %5630 = vmatprep.subr.mxu0 0.0
        %5631 = vmatpush2.msra.mxu0 %v736
        %5632 = vmatprep.subr.mxu0 0.0
        %5633 = vmatpush2.msra.mxu0 %v735
        %5634 = vmatprep.subr.mxu0 0.0
        %5635 = vmatpush2.msra.mxu0 %v734
        %5636 = vmatprep.subr.mxu0 0.0
        %5637 = vmatpush2.msra.mxu0 %v733
        %5638 = vmatprep.subr.mxu0 0.0
        %5639 = vmatpush2.msra.mxu0 %v732
        %5640 = vmatprep.subr.mxu0 0.0
        %5641 = vmatpush2.msra.mxu0 %v731
        %5642 = vmatprep.subr.mxu0 0.0
        %5643 = vmatpush2.msra.mxu0 %v730
        %5644 = vmatprep.mubr.f32.mxu0 %v5533
        %5645 = vmatmul.mubr.f32.gmra.mxu0 %v5532
        %v5646 = vpop.f32.mrf.mxu0
        %v5647 = vadd.f32 0.0, %v5646
        %v5648 = vpop.f32.mrf.mxu0
        %5649 = vmatprep.mubr.f32.mxu0 %v5536
        %5650 = vmatmul.mubr.f32.gmra.mxu0 %v5535
        %v5651 = vpop.f32.mrf.mxu0
        %v5652 = vadd.f32 0.0, %v5651
        %v5653 = vpop.f32.mrf.mxu0
        %5654 = vmatprep.mubr.f32.mxu0 %v5539
        %5655 = vmatmul.mubr.f32.gmra.mxu0 %v5538
        %v5656 = vpop.f32.mrf.mxu0
        %v5657 = vadd.f32 0.0, %v5656
        %v5658 = vpop.f32.mrf.mxu0
        %5659 = vmatprep.mubr.f32.mxu0 %v5542
        %5660 = vmatmul.mubr.f32.gmra.mxu0 %v5541
        %v5661 = vpop.f32.mrf.mxu0
        %v5662 = vadd.f32 0.0, %v5661
        %v5663 = vpop.f32.mrf.mxu0
        %5664 = vmatprep.mubr.f32.mxu0 %v5545
        %5665 = vmatmul.mubr.f32.gmra.mxu0 %v5544
        %v5666 = vpop.f32.mrf.mxu0
        %v5667 = vadd.f32 0.0, %v5666
        %v5668 = vpop.f32.mrf.mxu0
        %5669 = vmatprep.mubr.f32.mxu0 %v5548
        %5670 = vmatmul.mubr.f32.gmra.mxu0 %v5547
        %v5671 = vpop.f32.mrf.mxu0
        %v5672 = vadd.f32 0.0, %v5671
        %v5673 = vpop.f32.mrf.mxu0
        %5674 = vmatprep.mubr.f32.mxu0 %v5551
        %5675 = vmatmul.mubr.f32.gmra.mxu0 %v5550
        %v5676 = vpop.f32.mrf.mxu0
        %v5677 = vadd.f32 0.0, %v5676
        %v5678 = vpop.f32.mrf.mxu0
        %5679 = vmatprep.mubr.f32.mxu0 %v5554
        %5680 = vmatmul.mubr.f32.gmra.mxu0 %v5553
        %v5681 = vpop.f32.mrf.mxu0
        %v5682 = vadd.f32 0.0, %v5681
        %v5683 = vpop.f32.mrf.mxu0
        %5684 = vdwg.mxu0
        %5685 = vmatprep.subr.mxu0 0.0
        %5686 = vmatpush1.msra.mxu0 0.0
        %5687 = vmatprep.subr.mxu0 0.0
        %5688 = vmatpush1.msra.mxu0 0.0
        %5689 = vmatprep.subr.mxu0 0.0
        %5690 = vmatpush1.msra.mxu0 0.0
        %5691 = vmatprep.subr.mxu0 0.0
        %5692 = vmatpush1.msra.mxu0 0.0
        %5693 = vmatprep.subr.mxu0 0.0
        %5694 = vmatpush1.msra.mxu0 0.0
        %5695 = vmatprep.subr.mxu0 0.0
        %5696 = vmatpush1.msra.mxu0 0.0
        %5697 = vmatprep.subr.mxu0 0.0
        %5698 = vmatpush1.msra.mxu0 0.0
        %5699 = vmatprep.subr.mxu0 0.0
        %5700 = vmatpush1.msra.mxu0 %v806
        %5701 = vmatprep.subr.mxu0 0.0
        %5702 = vmatpush1.msra.mxu0 %v753
        %5703 = vmatprep.subr.mxu0 0.0
        %5704 = vmatpush1.msra.mxu0 %v752
        %5705 = vmatprep.subr.mxu0 0.0
        %5706 = vmatpush1.msra.mxu0 %v751
        %5707 = vmatprep.subr.mxu0 0.0
        %5708 = vmatpush1.msra.mxu0 %v750
        %5709 = vmatprep.subr.mxu0 0.0
        %5710 = vmatpush1.msra.mxu0 %v749
        %5711 = vmatprep.subr.mxu0 0.0
        %5712 = vmatpush1.msra.mxu0 %v748
        %5713 = vmatprep.subr.mxu0 0.0
        %5714 = vmatpush1.msra.mxu0 %v747
        %5715 = vmatprep.subr.mxu0 0.0
        %5716 = vmatpush1.msra.mxu0 %v746
        %5717 = vmatprep.subr.mxu0 0.0
        %5718 = vmatpush2.msra.mxu0 0.0
        %5719 = vmatprep.subr.mxu0 0.0
        %5720 = vmatpush2.msra.mxu0 0.0
        %5721 = vmatprep.subr.mxu0 0.0
        %5722 = vmatpush2.msra.mxu0 0.0
        %5723 = vmatprep.subr.mxu0 0.0
        %5724 = vmatpush2.msra.mxu0 0.0
        %5725 = vmatprep.subr.mxu0 0.0
        %5726 = vmatpush2.msra.mxu0 0.0
        %5727 = vmatprep.subr.mxu0 0.0
        %5728 = vmatpush2.msra.mxu0 0.0
        %5729 = vmatprep.subr.mxu0 0.0
        %5730 = vmatpush2.msra.mxu0 0.0
        %5731 = vmatprep.subr.mxu0 0.0
        %5732 = vmatpush2.msra.mxu0 0.0
        %5733 = vmatprep.subr.mxu0 0.0
        %5734 = vmatpush2.msra.mxu0 0.0
        %5735 = vmatprep.subr.mxu0 0.0
        %5736 = vmatpush2.msra.mxu0 0.0
        %5737 = vmatprep.subr.mxu0 0.0
        %5738 = vmatpush2.msra.mxu0 0.0
        %5739 = vmatprep.subr.mxu0 0.0
        %5740 = vmatpush2.msra.mxu0 0.0
        %5741 = vmatprep.subr.mxu0 0.0
        %5742 = vmatpush2.msra.mxu0 0.0
        %5743 = vmatprep.subr.mxu0 0.0
        %5744 = vmatpush2.msra.mxu0 0.0
        %5745 = vmatprep.subr.mxu0 0.0
        %5746 = vmatpush2.msra.mxu0 0.0
        %5747 = vmatprep.subr.mxu0 0.0
        %5748 = vmatpush2.msra.mxu0 0.0
        %5749 = vmatprep.mubr.f32.mxu0 0.0
        %5750 = vmatmul.mubr.f32.gmra.mxu0 %v5557
        %v5751 = vpop.f32.mrf.mxu0
        %v5752 = vadd.f32 %v5647, %v5751
        %v5753 = vpop.f32.mrf.mxu0
        %5754 = vmatprep.mubr.f32.mxu0 0.0
        %5755 = vmatmul.mubr.f32.gmra.mxu0 %v5560
        %v5756 = vpop.f32.mrf.mxu0
        %v5757 = vadd.f32 %v5652, %v5756
        %v5758 = vpop.f32.mrf.mxu0
        %5759 = vmatprep.mubr.f32.mxu0 0.0
        %5760 = vmatmul.mubr.f32.gmra.mxu0 %v5563
        %v5761 = vpop.f32.mrf.mxu0
        %v5762 = vadd.f32 %v5657, %v5761
        %v5763 = vpop.f32.mrf.mxu0
        %5764 = vmatprep.mubr.f32.mxu0 0.0
        %5765 = vmatmul.mubr.f32.gmra.mxu0 %v5566
        %v5766 = vpop.f32.mrf.mxu0
        %v5767 = vadd.f32 %v5662, %v5766
        %v5768 = vpop.f32.mrf.mxu0
        %5769 = vmatprep.mubr.f32.mxu0 0.0
        %5770 = vmatmul.mubr.f32.gmra.mxu0 %v5569
        %v5771 = vpop.f32.mrf.mxu0
        %v5772 = vadd.f32 %v5667, %v5771
        %v5773 = vpop.f32.mrf.mxu0
        %5774 = vmatprep.mubr.f32.mxu0 0.0
        %5775 = vmatmul.mubr.f32.gmra.mxu0 %v5572
        %v5776 = vpop.f32.mrf.mxu0
        %v5777 = vadd.f32 %v5672, %v5776
        %v5778 = vpop.f32.mrf.mxu0
        %5779 = vmatprep.mubr.f32.mxu0 0.0
        %5780 = vmatmul.mubr.f32.gmra.mxu0 %v5575
        %v5781 = vpop.f32.mrf.mxu0
        %v5782 = vadd.f32 %v5677, %v5781
        %v5783 = vpop.f32.mrf.mxu0
        %5784 = vmatprep.mubr.f32.mxu0 0.0
        %5785 = vmatmul.mubr.f32.gmra.mxu0 %v5578
        %v5786 = vpop.f32.mrf.mxu0
        %v5787 = vadd.f32 %v5682, %v5786
        %v5788 = vpop.f32.mrf.mxu0
        %5789 = vdwg.mxu0
        %s5790 = scalar_lea.vmem %s3, 192
        %v5791 = vld [vmem:[%s5790] sm:$0xff]
        %v5792 = vld [vmem:[%s5790 + $0x8] sm:$0xff]
        %v5794 = vsel %vm1282, %v5752, 0
        %v5797 = vsel %vm1282, %v5757, 0
        %v5800 = vsel %vm1282, %v5762, 0
        %v5803 = vsel %vm1282, %v5767, 0
        %v5806 = vsel %vm1282, %v5772, 0
        %v5809 = vsel %vm1282, %v5777, 0
        %v5812 = vsel %vm1282, %v5782, 0
        %v5815 = vsel %vm1282, %v5787, 0
        %5817 = vmatprep.subr.mxu0 0.0
        %5818 = vmatpush1.msra.mxu0 0.0
        %5819 = vmatprep.subr.mxu0 0.0
        %5820 = vmatpush1.msra.mxu0 0.0
        %5821 = vmatprep.subr.mxu0 0.0
        %5822 = vmatpush1.msra.mxu0 0.0
        %5823 = vmatprep.subr.mxu0 0.0
        %5824 = vmatpush1.msra.mxu0 0.0
        %5825 = vmatprep.subr.mxu0 0.0
        %5826 = vmatpush1.msra.mxu0 0.0
        %5827 = vmatprep.subr.mxu0 0.0
        %5828 = vmatpush1.msra.mxu0 0.0
        %5829 = vmatprep.subr.mxu0 0.0
        %5830 = vmatpush1.msra.mxu0 0.0
        %5831 = vmatprep.subr.mxu0 0.0
        %5832 = vmatpush1.msra.mxu0 0.0
        %5833 = vmatprep.subr.mxu0 0.0
        %5834 = vmatpush1.msra.mxu0 0.0
        %5835 = vmatprep.subr.mxu0 0.0
        %5836 = vmatpush1.msra.mxu0 0.0
        %5837 = vmatprep.subr.mxu0 0.0
        %5838 = vmatpush1.msra.mxu0 0.0
        %5839 = vmatprep.subr.mxu0 0.0
        %5840 = vmatpush1.msra.mxu0 0.0
        %5841 = vmatprep.subr.mxu0 0.0
        %5842 = vmatpush1.msra.mxu0 0.0
        %5843 = vmatprep.subr.mxu0 0.0
        %5844 = vmatpush1.msra.mxu0 0.0
        %5845 = vmatprep.subr.mxu0 0.0
        %5846 = vmatpush1.msra.mxu0 %v5792
        %5847 = vmatprep.subr.mxu0 0.0
        %5848 = vmatpush1.msra.mxu0 %v5791
        %5849 = vmatprep.subr.mxu0 0.0
        %5850 = vmatpush2.msra.mxu0 0.0
        %5851 = vmatprep.subr.mxu0 0.0
        %5852 = vmatpush2.msra.mxu0 0.0
        %5853 = vmatprep.subr.mxu0 0.0
        %5854 = vmatpush2.msra.mxu0 0.0
        %5855 = vmatprep.subr.mxu0 0.0
        %5856 = vmatpush2.msra.mxu0 0.0
        %5857 = vmatprep.subr.mxu0 0.0
        %5858 = vmatpush2.msra.mxu0 0.0
        %5859 = vmatprep.subr.mxu0 0.0
        %5860 = vmatpush2.msra.mxu0 0.0
        %5861 = vmatprep.subr.mxu0 0.0
        %5862 = vmatpush2.msra.mxu0 0.0
        %5863 = vmatprep.subr.mxu0 0.0
        %5864 = vmatpush2.msra.mxu0 0.0
        %5865 = vmatprep.subr.mxu0 0.0
        %5866 = vmatpush2.msra.mxu0 0.0
        %5867 = vmatprep.subr.mxu0 0.0
        %5868 = vmatpush2.msra.mxu0 0.0
        %5869 = vmatprep.subr.mxu0 0.0
        %5870 = vmatpush2.msra.mxu0 0.0
        %5871 = vmatprep.subr.mxu0 0.0
        %5872 = vmatpush2.msra.mxu0 0.0
        %5873 = vmatprep.subr.mxu0 0.0
        %5874 = vmatpush2.msra.mxu0 0.0
        %5875 = vmatprep.subr.mxu0 0.0
        %5876 = vmatpush2.msra.mxu0 0.0
        %5877 = vmatprep.subr.mxu0 0.0
        %5878 = vmatpush2.msra.mxu0 0.0
        %5879 = vmatprep.subr.mxu0 0.0
        %5880 = vmatpush2.msra.mxu0 0.0
        %5881 = vmatprep.mubr.f32.mxu0 0.0
        %5882 = vmatmul.mubr.f32.gmra.mxu0 %v5794
        %v5883 = vpop.f32.mrf.mxu0
        %v5884 = vadd.f32 0.0, %v5883
        %v5885 = vpop.f32.mrf.mxu0
        %5886 = vmatprep.mubr.f32.mxu0 0.0
        %5887 = vmatmul.mubr.f32.gmra.mxu0 %v5797
        %v5888 = vpop.f32.mrf.mxu0
        %v5889 = vadd.f32 0.0, %v5888
        %v5890 = vpop.f32.mrf.mxu0
        %5891 = vmatprep.mubr.f32.mxu0 0.0
        %5892 = vmatmul.mubr.f32.gmra.mxu0 %v5800
        %v5893 = vpop.f32.mrf.mxu0
        %v5894 = vadd.f32 0.0, %v5893
        %v5895 = vpop.f32.mrf.mxu0
        %5896 = vmatprep.mubr.f32.mxu0 0.0
        %5897 = vmatmul.mubr.f32.gmra.mxu0 %v5803
        %v5898 = vpop.f32.mrf.mxu0
        %v5899 = vadd.f32 0.0, %v5898
        %v5900 = vpop.f32.mrf.mxu0
        %5901 = vmatprep.mubr.f32.mxu0 0.0
        %5902 = vmatmul.mubr.f32.gmra.mxu0 %v5806
        %v5903 = vpop.f32.mrf.mxu0
        %v5904 = vadd.f32 0.0, %v5903
        %v5905 = vpop.f32.mrf.mxu0
        %5906 = vmatprep.mubr.f32.mxu0 0.0
        %5907 = vmatmul.mubr.f32.gmra.mxu0 %v5809
        %v5908 = vpop.f32.mrf.mxu0
        %v5909 = vadd.f32 0.0, %v5908
        %v5910 = vpop.f32.mrf.mxu0
        %5911 = vmatprep.mubr.f32.mxu0 0.0
        %5912 = vmatmul.mubr.f32.gmra.mxu0 %v5812
        %v5913 = vpop.f32.mrf.mxu0
        %v5914 = vadd.f32 0.0, %v5913
        %v5915 = vpop.f32.mrf.mxu0
        %5916 = vmatprep.mubr.f32.mxu0 0.0
        %5917 = vmatmul.mubr.f32.gmra.mxu0 %v5815
        %v5918 = vpop.f32.mrf.mxu0
        %v5919 = vadd.f32 0.0, %v5918
        %v5920 = vpop.f32.mrf.mxu0
        %5921 = vdwg.mxu0
        %v5922 = vadd.f32 %v5523, %v5884
        %v5923 = vadd.f32 %v5524, %v5889
        %v5924 = vadd.f32 %v5525, %v5894
        %v5925 = vadd.f32 %v5526, %v5899
        %v5926 = vadd.f32 %v5527, %v5904
        %v5927 = vadd.f32 %v5528, %v5909
        %v5928 = vadd.f32 %v5529, %v5914
        %v5929 = vadd.f32 %v5530, %v5919
        %s5930 = scalar_lea.vmem %s2, 2496
        %v5931 = vld [vmem:[%s5930] sm:$0xff]
        %v5932 = vld [vmem:[%s5930 + $0x8] sm:$0xff]
        %v5933 = vld [vmem:[%s5930 + $0x10] sm:$0xff]
        %v5934 = vld [vmem:[%s5930 + $0x18] sm:$0xff]
        %v5935 = vld [vmem:[%s5930 + $0x20] sm:$0xff]
        %v5936 = vld [vmem:[%s5930 + $0x28] sm:$0xff]
        %v5937 = vld [vmem:[%s5930 + $0x30] sm:$0xff]
        %v5938 = vld [vmem:[%s5930 + $0x38] sm:$0xff]
        %v5939 = vld [vmem:[%s5930 + $0x40] sm:$0xff]
        %v5940 = vld [vmem:[%s5930 + $0x48] sm:$0xff]
        %v5941 = vld [vmem:[%s5930 + $0x50] sm:$0xff]
        %v5942 = vld [vmem:[%s5930 + $0x58] sm:$0xff]
        %v5943 = vld [vmem:[%s5930 + $0x60] sm:$0xff]
        %v5944 = vld [vmem:[%s5930 + $0x68] sm:$0xff]
        %v5945 = vld [vmem:[%s5930 + $0x70] sm:$0xff]
        %v5946 = vld [vmem:[%s5930 + $0x78] sm:$0xff]
        %v5947 = vld [vmem:[%s5930 + $0x80] sm:$0xff]
        %v5948 = vld [vmem:[%s5930 + $0x88] sm:$0xff]
        %v5949 = vld [vmem:[%s5930 + $0x90] sm:$0xff]
        %v5950 = vld [vmem:[%s5930 + $0x98] sm:$0xff]
        %v5951 = vld [vmem:[%s5930 + $0xa0] sm:$0xff]
        %v5952 = vld [vmem:[%s5930 + $0xa8] sm:$0xff]
        %v5953 = vld [vmem:[%s5930 + $0xb0] sm:$0xff]
        %v5954 = vld [vmem:[%s5930 + $0xb8] sm:$0xff]
        %v5956 = vsel %vm779, %v5933, 0
        %v5959 = vsel %vm779, %v5936, 0
        %v5962 = vsel %vm779, %v5939, 0
        %v5965 = vsel %vm779, %v5942, 0
        %v5968 = vsel %vm779, %v5945, 0
        %v5971 = vsel %vm779, %v5948, 0
        %v5974 = vsel %vm779, %v5951, 0
        %v5977 = vsel %vm779, %v5954, 0
        %5979 = vmatprep.subr.mxu0 0.0
        %5980 = vmatpush1.msra.mxu0 %v729
        %5981 = vmatprep.subr.mxu0 0.0
        %5982 = vmatpush1.msra.mxu0 %v728
        %5983 = vmatprep.subr.mxu0 0.0
        %5984 = vmatpush1.msra.mxu0 %v727
        %5985 = vmatprep.subr.mxu0 0.0
        %5986 = vmatpush1.msra.mxu0 %v726
        %5987 = vmatprep.subr.mxu0 0.0
        %5988 = vmatpush1.msra.mxu0 %v725
        %5989 = vmatprep.subr.mxu0 0.0
        %5990 = vmatpush1.msra.mxu0 %v724
        %5991 = vmatprep.subr.mxu0 0.0
        %5992 = vmatpush1.msra.mxu0 %v723
        %5993 = vmatprep.subr.mxu0 0.0
        %5994 = vmatpush1.msra.mxu0 %v722
        %5995 = vmatprep.subr.mxu0 0.0
        %5996 = vmatpush1.msra.mxu0 %v721
        %5997 = vmatprep.subr.mxu0 0.0
        %5998 = vmatpush1.msra.mxu0 %v720
        %5999 = vmatprep.subr.mxu0 0.0
        %6000 = vmatpush1.msra.mxu0 %v719
        %6001 = vmatprep.subr.mxu0 0.0
        %6002 = vmatpush1.msra.mxu0 %v718
        %6003 = vmatprep.subr.mxu0 0.0
        %6004 = vmatpush1.msra.mxu0 %v717
        %6005 = vmatprep.subr.mxu0 0.0
        %6006 = vmatpush1.msra.mxu0 %v716
        %6007 = vmatprep.subr.mxu0 0.0
        %6008 = vmatpush1.msra.mxu0 %v715
        %6009 = vmatprep.subr.mxu0 0.0
        %6010 = vmatpush1.msra.mxu0 %v714
        %6011 = vmatprep.subr.mxu0 0.0
        %6012 = vmatpush2.msra.mxu0 %v745
        %6013 = vmatprep.subr.mxu0 0.0
        %6014 = vmatpush2.msra.mxu0 %v744
        %6015 = vmatprep.subr.mxu0 0.0
        %6016 = vmatpush2.msra.mxu0 %v743
        %6017 = vmatprep.subr.mxu0 0.0
        %6018 = vmatpush2.msra.mxu0 %v742
        %6019 = vmatprep.subr.mxu0 0.0
        %6020 = vmatpush2.msra.mxu0 %v741
        %6021 = vmatprep.subr.mxu0 0.0
        %6022 = vmatpush2.msra.mxu0 %v740
        %6023 = vmatprep.subr.mxu0 0.0
        %6024 = vmatpush2.msra.mxu0 %v739
        %6025 = vmatprep.subr.mxu0 0.0
        %6026 = vmatpush2.msra.mxu0 %v738
        %6027 = vmatprep.subr.mxu0 0.0
        %6028 = vmatpush2.msra.mxu0 %v737
        %6029 = vmatprep.subr.mxu0 0.0
        %6030 = vmatpush2.msra.mxu0 %v736
        %6031 = vmatprep.subr.mxu0 0.0
        %6032 = vmatpush2.msra.mxu0 %v735
        %6033 = vmatprep.subr.mxu0 0.0
        %6034 = vmatpush2.msra.mxu0 %v734
        %6035 = vmatprep.subr.mxu0 0.0
        %6036 = vmatpush2.msra.mxu0 %v733
        %6037 = vmatprep.subr.mxu0 0.0
        %6038 = vmatpush2.msra.mxu0 %v732
        %6039 = vmatprep.subr.mxu0 0.0
        %6040 = vmatpush2.msra.mxu0 %v731
        %6041 = vmatprep.subr.mxu0 0.0
        %6042 = vmatpush2.msra.mxu0 %v730
        %6043 = vmatprep.mubr.f32.mxu0 %v5932
        %6044 = vmatmul.mubr.f32.gmra.mxu0 %v5931
        %v6045 = vpop.f32.mrf.mxu0
        %v6046 = vadd.f32 0.0, %v6045
        %v6047 = vpop.f32.mrf.mxu0
        %6048 = vmatprep.mubr.f32.mxu0 %v5935
        %6049 = vmatmul.mubr.f32.gmra.mxu0 %v5934
        %v6050 = vpop.f32.mrf.mxu0
        %v6051 = vadd.f32 0.0, %v6050
        %v6052 = vpop.f32.mrf.mxu0
        %6053 = vmatprep.mubr.f32.mxu0 %v5938
        %6054 = vmatmul.mubr.f32.gmra.mxu0 %v5937
        %v6055 = vpop.f32.mrf.mxu0
        %v6056 = vadd.f32 0.0, %v6055
        %v6057 = vpop.f32.mrf.mxu0
        %6058 = vmatprep.mubr.f32.mxu0 %v5941
        %6059 = vmatmul.mubr.f32.gmra.mxu0 %v5940
        %v6060 = vpop.f32.mrf.mxu0
        %v6061 = vadd.f32 0.0, %v6060
        %v6062 = vpop.f32.mrf.mxu0
        %6063 = vmatprep.mubr.f32.mxu0 %v5944
        %6064 = vmatmul.mubr.f32.gmra.mxu0 %v5943
        %v6065 = vpop.f32.mrf.mxu0
        %v6066 = vadd.f32 0.0, %v6065
        %v6067 = vpop.f32.mrf.mxu0
        %6068 = vmatprep.mubr.f32.mxu0 %v5947
        %6069 = vmatmul.mubr.f32.gmra.mxu0 %v5946
        %v6070 = vpop.f32.mrf.mxu0
        %v6071 = vadd.f32 0.0, %v6070
        %v6072 = vpop.f32.mrf.mxu0
        %6073 = vmatprep.mubr.f32.mxu0 %v5950
        %6074 = vmatmul.mubr.f32.gmra.mxu0 %v5949
        %v6075 = vpop.f32.mrf.mxu0
        %v6076 = vadd.f32 0.0, %v6075
        %v6077 = vpop.f32.mrf.mxu0
        %6078 = vmatprep.mubr.f32.mxu0 %v5953
        %6079 = vmatmul.mubr.f32.gmra.mxu0 %v5952
        %v6080 = vpop.f32.mrf.mxu0
        %v6081 = vadd.f32 0.0, %v6080
        %v6082 = vpop.f32.mrf.mxu0
        %6083 = vdwg.mxu0
        %6084 = vmatprep.subr.mxu0 0.0
        %6085 = vmatpush1.msra.mxu0 0.0
        %6086 = vmatprep.subr.mxu0 0.0
        %6087 = vmatpush1.msra.mxu0 0.0
        %6088 = vmatprep.subr.mxu0 0.0
        %6089 = vmatpush1.msra.mxu0 0.0
        %6090 = vmatprep.subr.mxu0 0.0
        %6091 = vmatpush1.msra.mxu0 0.0
        %6092 = vmatprep.subr.mxu0 0.0
        %6093 = vmatpush1.msra.mxu0 0.0
        %6094 = vmatprep.subr.mxu0 0.0
        %6095 = vmatpush1.msra.mxu0 0.0
        %6096 = vmatprep.subr.mxu0 0.0
        %6097 = vmatpush1.msra.mxu0 0.0
        %6098 = vmatprep.subr.mxu0 0.0
        %6099 = vmatpush1.msra.mxu0 %v806
        %6100 = vmatprep.subr.mxu0 0.0
        %6101 = vmatpush1.msra.mxu0 %v753
        %6102 = vmatprep.subr.mxu0 0.0
        %6103 = vmatpush1.msra.mxu0 %v752
        %6104 = vmatprep.subr.mxu0 0.0
        %6105 = vmatpush1.msra.mxu0 %v751
        %6106 = vmatprep.subr.mxu0 0.0
        %6107 = vmatpush1.msra.mxu0 %v750
        %6108 = vmatprep.subr.mxu0 0.0
        %6109 = vmatpush1.msra.mxu0 %v749
        %6110 = vmatprep.subr.mxu0 0.0
        %6111 = vmatpush1.msra.mxu0 %v748
        %6112 = vmatprep.subr.mxu0 0.0
        %6113 = vmatpush1.msra.mxu0 %v747
        %6114 = vmatprep.subr.mxu0 0.0
        %6115 = vmatpush1.msra.mxu0 %v746
        %6116 = vmatprep.subr.mxu0 0.0
        %6117 = vmatpush2.msra.mxu0 0.0
        %6118 = vmatprep.subr.mxu0 0.0
        %6119 = vmatpush2.msra.mxu0 0.0
        %6120 = vmatprep.subr.mxu0 0.0
        %6121 = vmatpush2.msra.mxu0 0.0
        %6122 = vmatprep.subr.mxu0 0.0
        %6123 = vmatpush2.msra.mxu0 0.0
        %6124 = vmatprep.subr.mxu0 0.0
        %6125 = vmatpush2.msra.mxu0 0.0
        %6126 = vmatprep.subr.mxu0 0.0
        %6127 = vmatpush2.msra.mxu0 0.0
        %6128 = vmatprep.subr.mxu0 0.0
        %6129 = vmatpush2.msra.mxu0 0.0
        %6130 = vmatprep.subr.mxu0 0.0
        %6131 = vmatpush2.msra.mxu0 0.0
        %6132 = vmatprep.subr.mxu0 0.0
        %6133 = vmatpush2.msra.mxu0 0.0
        %6134 = vmatprep.subr.mxu0 0.0
        %6135 = vmatpush2.msra.mxu0 0.0
        %6136 = vmatprep.subr.mxu0 0.0
        %6137 = vmatpush2.msra.mxu0 0.0
        %6138 = vmatprep.subr.mxu0 0.0
        %6139 = vmatpush2.msra.mxu0 0.0
        %6140 = vmatprep.subr.mxu0 0.0
        %6141 = vmatpush2.msra.mxu0 0.0
        %6142 = vmatprep.subr.mxu0 0.0
        %6143 = vmatpush2.msra.mxu0 0.0
        %6144 = vmatprep.subr.mxu0 0.0
        %6145 = vmatpush2.msra.mxu0 0.0
        %6146 = vmatprep.subr.mxu0 0.0
        %6147 = vmatpush2.msra.mxu0 0.0
        %6148 = vmatprep.mubr.f32.mxu0 0.0
        %6149 = vmatmul.mubr.f32.gmra.mxu0 %v5956
        %v6150 = vpop.f32.mrf.mxu0
        %v6151 = vadd.f32 %v6046, %v6150
        %v6152 = vpop.f32.mrf.mxu0
        %6153 = vmatprep.mubr.f32.mxu0 0.0
        %6154 = vmatmul.mubr.f32.gmra.mxu0 %v5959
        %v6155 = vpop.f32.mrf.mxu0
        %v6156 = vadd.f32 %v6051, %v6155
        %v6157 = vpop.f32.mrf.mxu0
        %6158 = vmatprep.mubr.f32.mxu0 0.0
        %6159 = vmatmul.mubr.f32.gmra.mxu0 %v5962
        %v6160 = vpop.f32.mrf.mxu0
        %v6161 = vadd.f32 %v6056, %v6160
        %v6162 = vpop.f32.mrf.mxu0
        %6163 = vmatprep.mubr.f32.mxu0 0.0
        %6164 = vmatmul.mubr.f32.gmra.mxu0 %v5965
        %v6165 = vpop.f32.mrf.mxu0
        %v6166 = vadd.f32 %v6061, %v6165
        %v6167 = vpop.f32.mrf.mxu0
        %6168 = vmatprep.mubr.f32.mxu0 0.0
        %6169 = vmatmul.mubr.f32.gmra.mxu0 %v5968
        %v6170 = vpop.f32.mrf.mxu0
        %v6171 = vadd.f32 %v6066, %v6170
        %v6172 = vpop.f32.mrf.mxu0
        %6173 = vmatprep.mubr.f32.mxu0 0.0
        %6174 = vmatmul.mubr.f32.gmra.mxu0 %v5971
        %v6175 = vpop.f32.mrf.mxu0
        %v6176 = vadd.f32 %v6071, %v6175
        %v6177 = vpop.f32.mrf.mxu0
        %6178 = vmatprep.mubr.f32.mxu0 0.0
        %6179 = vmatmul.mubr.f32.gmra.mxu0 %v5974
        %v6180 = vpop.f32.mrf.mxu0
        %v6181 = vadd.f32 %v6076, %v6180
        %v6182 = vpop.f32.mrf.mxu0
        %6183 = vmatprep.mubr.f32.mxu0 0.0
        %6184 = vmatmul.mubr.f32.gmra.mxu0 %v5977
        %v6185 = vpop.f32.mrf.mxu0
        %v6186 = vadd.f32 %v6081, %v6185
        %v6187 = vpop.f32.mrf.mxu0
        %6188 = vdwg.mxu0
        %s6189 = scalar_lea.vmem %s3, 208
        %v6190 = vld [vmem:[%s6189] sm:$0xff]
        %v6191 = vld [vmem:[%s6189 + $0x8] sm:$0xff]
        %v6193 = vsel %vm1282, %v6151, 0
        %v6196 = vsel %vm1282, %v6156, 0
        %v6199 = vsel %vm1282, %v6161, 0
        %v6202 = vsel %vm1282, %v6166, 0
        %v6205 = vsel %vm1282, %v6171, 0
        %v6208 = vsel %vm1282, %v6176, 0
        %v6211 = vsel %vm1282, %v6181, 0
        %v6214 = vsel %vm1282, %v6186, 0
        %6216 = vmatprep.subr.mxu0 0.0
        %6217 = vmatpush1.msra.mxu0 0.0
        %6218 = vmatprep.subr.mxu0 0.0
        %6219 = vmatpush1.msra.mxu0 0.0
        %6220 = vmatprep.subr.mxu0 0.0
        %6221 = vmatpush1.msra.mxu0 0.0
        %6222 = vmatprep.subr.mxu0 0.0
        %6223 = vmatpush1.msra.mxu0 0.0
        %6224 = vmatprep.subr.mxu0 0.0
        %6225 = vmatpush1.msra.mxu0 0.0
        %6226 = vmatprep.subr.mxu0 0.0
        %6227 = vmatpush1.msra.mxu0 0.0
        %6228 = vmatprep.subr.mxu0 0.0
        %6229 = vmatpush1.msra.mxu0 0.0
        %6230 = vmatprep.subr.mxu0 0.0
        %6231 = vmatpush1.msra.mxu0 0.0
        %6232 = vmatprep.subr.mxu0 0.0
        %6233 = vmatpush1.msra.mxu0 0.0
        %6234 = vmatprep.subr.mxu0 0.0
        %6235 = vmatpush1.msra.mxu0 0.0
        %6236 = vmatprep.subr.mxu0 0.0
        %6237 = vmatpush1.msra.mxu0 0.0
        %6238 = vmatprep.subr.mxu0 0.0
        %6239 = vmatpush1.msra.mxu0 0.0
        %6240 = vmatprep.subr.mxu0 0.0
        %6241 = vmatpush1.msra.mxu0 0.0
        %6242 = vmatprep.subr.mxu0 0.0
        %6243 = vmatpush1.msra.mxu0 0.0
        %6244 = vmatprep.subr.mxu0 0.0
        %6245 = vmatpush1.msra.mxu0 %v6191
        %6246 = vmatprep.subr.mxu0 0.0
        %6247 = vmatpush1.msra.mxu0 %v6190
        %6248 = vmatprep.subr.mxu0 0.0
        %6249 = vmatpush2.msra.mxu0 0.0
        %6250 = vmatprep.subr.mxu0 0.0
        %6251 = vmatpush2.msra.mxu0 0.0
        %6252 = vmatprep.subr.mxu0 0.0
        %6253 = vmatpush2.msra.mxu0 0.0
        %6254 = vmatprep.subr.mxu0 0.0
        %6255 = vmatpush2.msra.mxu0 0.0
        %6256 = vmatprep.subr.mxu0 0.0
        %6257 = vmatpush2.msra.mxu0 0.0
        %6258 = vmatprep.subr.mxu0 0.0
        %6259 = vmatpush2.msra.mxu0 0.0
        %6260 = vmatprep.subr.mxu0 0.0
        %6261 = vmatpush2.msra.mxu0 0.0
        %6262 = vmatprep.subr.mxu0 0.0
        %6263 = vmatpush2.msra.mxu0 0.0
        %6264 = vmatprep.subr.mxu0 0.0
        %6265 = vmatpush2.msra.mxu0 0.0
        %6266 = vmatprep.subr.mxu0 0.0
        %6267 = vmatpush2.msra.mxu0 0.0
        %6268 = vmatprep.subr.mxu0 0.0
        %6269 = vmatpush2.msra.mxu0 0.0
        %6270 = vmatprep.subr.mxu0 0.0
        %6271 = vmatpush2.msra.mxu0 0.0
        %6272 = vmatprep.subr.mxu0 0.0
        %6273 = vmatpush2.msra.mxu0 0.0
        %6274 = vmatprep.subr.mxu0 0.0
        %6275 = vmatpush2.msra.mxu0 0.0
        %6276 = vmatprep.subr.mxu0 0.0
        %6277 = vmatpush2.msra.mxu0 0.0
        %6278 = vmatprep.subr.mxu0 0.0
        %6279 = vmatpush2.msra.mxu0 0.0
        %6280 = vmatprep.mubr.f32.mxu0 0.0
        %6281 = vmatmul.mubr.f32.gmra.mxu0 %v6193
        %v6282 = vpop.f32.mrf.mxu0
        %v6283 = vadd.f32 0.0, %v6282
        %v6284 = vpop.f32.mrf.mxu0
        %6285 = vmatprep.mubr.f32.mxu0 0.0
        %6286 = vmatmul.mubr.f32.gmra.mxu0 %v6196
        %v6287 = vpop.f32.mrf.mxu0
        %v6288 = vadd.f32 0.0, %v6287
        %v6289 = vpop.f32.mrf.mxu0
        %6290 = vmatprep.mubr.f32.mxu0 0.0
        %6291 = vmatmul.mubr.f32.gmra.mxu0 %v6199
        %v6292 = vpop.f32.mrf.mxu0
        %v6293 = vadd.f32 0.0, %v6292
        %v6294 = vpop.f32.mrf.mxu0
        %6295 = vmatprep.mubr.f32.mxu0 0.0
        %6296 = vmatmul.mubr.f32.gmra.mxu0 %v6202
        %v6297 = vpop.f32.mrf.mxu0
        %v6298 = vadd.f32 0.0, %v6297
        %v6299 = vpop.f32.mrf.mxu0
        %6300 = vmatprep.mubr.f32.mxu0 0.0
        %6301 = vmatmul.mubr.f32.gmra.mxu0 %v6205
        %v6302 = vpop.f32.mrf.mxu0
        %v6303 = vadd.f32 0.0, %v6302
        %v6304 = vpop.f32.mrf.mxu0
        %6305 = vmatprep.mubr.f32.mxu0 0.0
        %6306 = vmatmul.mubr.f32.gmra.mxu0 %v6208
        %v6307 = vpop.f32.mrf.mxu0
        %v6308 = vadd.f32 0.0, %v6307
        %v6309 = vpop.f32.mrf.mxu0
        %6310 = vmatprep.mubr.f32.mxu0 0.0
        %6311 = vmatmul.mubr.f32.gmra.mxu0 %v6211
        %v6312 = vpop.f32.mrf.mxu0
        %v6313 = vadd.f32 0.0, %v6312
        %v6314 = vpop.f32.mrf.mxu0
        %6315 = vmatprep.mubr.f32.mxu0 0.0
        %6316 = vmatmul.mubr.f32.gmra.mxu0 %v6214
        %v6317 = vpop.f32.mrf.mxu0
        %v6318 = vadd.f32 0.0, %v6317
        %v6319 = vpop.f32.mrf.mxu0
        %6320 = vdwg.mxu0
        %v6321 = vadd.f32 %v5922, %v6283
        %v6322 = vadd.f32 %v5923, %v6288
        %v6323 = vadd.f32 %v5924, %v6293
        %v6324 = vadd.f32 %v5925, %v6298
        %v6325 = vadd.f32 %v5926, %v6303
        %v6326 = vadd.f32 %v5927, %v6308
        %v6327 = vadd.f32 %v5928, %v6313
        %v6328 = vadd.f32 %v5929, %v6318
        %s6329 = scalar_lea.vmem %s2, 2688
        %v6330 = vld [vmem:[%s6329] sm:$0xff]
        %v6331 = vld [vmem:[%s6329 + $0x8] sm:$0xff]
        %v6332 = vld [vmem:[%s6329 + $0x10] sm:$0xff]
        %v6333 = vld [vmem:[%s6329 + $0x18] sm:$0xff]
        %v6334 = vld [vmem:[%s6329 + $0x20] sm:$0xff]
        %v6335 = vld [vmem:[%s6329 + $0x28] sm:$0xff]
        %v6336 = vld [vmem:[%s6329 + $0x30] sm:$0xff]
        %v6337 = vld [vmem:[%s6329 + $0x38] sm:$0xff]
        %v6338 = vld [vmem:[%s6329 + $0x40] sm:$0xff]
        %v6339 = vld [vmem:[%s6329 + $0x48] sm:$0xff]
        %v6340 = vld [vmem:[%s6329 + $0x50] sm:$0xff]
        %v6341 = vld [vmem:[%s6329 + $0x58] sm:$0xff]
        %v6342 = vld [vmem:[%s6329 + $0x60] sm:$0xff]
        %v6343 = vld [vmem:[%s6329 + $0x68] sm:$0xff]
        %v6344 = vld [vmem:[%s6329 + $0x70] sm:$0xff]
        %v6345 = vld [vmem:[%s6329 + $0x78] sm:$0xff]
        %v6346 = vld [vmem:[%s6329 + $0x80] sm:$0xff]
        %v6347 = vld [vmem:[%s6329 + $0x88] sm:$0xff]
        %v6348 = vld [vmem:[%s6329 + $0x90] sm:$0xff]
        %v6349 = vld [vmem:[%s6329 + $0x98] sm:$0xff]
        %v6350 = vld [vmem:[%s6329 + $0xa0] sm:$0xff]
        %v6351 = vld [vmem:[%s6329 + $0xa8] sm:$0xff]
        %v6352 = vld [vmem:[%s6329 + $0xb0] sm:$0xff]
        %v6353 = vld [vmem:[%s6329 + $0xb8] sm:$0xff]
        %v6355 = vsel %vm779, %v6332, 0
        %v6358 = vsel %vm779, %v6335, 0
        %v6361 = vsel %vm779, %v6338, 0
        %v6364 = vsel %vm779, %v6341, 0
        %v6367 = vsel %vm779, %v6344, 0
        %v6370 = vsel %vm779, %v6347, 0
        %v6373 = vsel %vm779, %v6350, 0
        %v6376 = vsel %vm779, %v6353, 0
        %6378 = vmatprep.subr.mxu0 0.0
        %6379 = vmatpush1.msra.mxu0 %v729
        %6380 = vmatprep.subr.mxu0 0.0
        %6381 = vmatpush1.msra.mxu0 %v728
        %6382 = vmatprep.subr.mxu0 0.0
        %6383 = vmatpush1.msra.mxu0 %v727
        %6384 = vmatprep.subr.mxu0 0.0
        %6385 = vmatpush1.msra.mxu0 %v726
        %6386 = vmatprep.subr.mxu0 0.0
        %6387 = vmatpush1.msra.mxu0 %v725
        %6388 = vmatprep.subr.mxu0 0.0
        %6389 = vmatpush1.msra.mxu0 %v724
        %6390 = vmatprep.subr.mxu0 0.0
        %6391 = vmatpush1.msra.mxu0 %v723
        %6392 = vmatprep.subr.mxu0 0.0
        %6393 = vmatpush1.msra.mxu0 %v722
        %6394 = vmatprep.subr.mxu0 0.0
        %6395 = vmatpush1.msra.mxu0 %v721
        %6396 = vmatprep.subr.mxu0 0.0
        %6397 = vmatpush1.msra.mxu0 %v720
        %6398 = vmatprep.subr.mxu0 0.0
        %6399 = vmatpush1.msra.mxu0 %v719
        %6400 = vmatprep.subr.mxu0 0.0
        %6401 = vmatpush1.msra.mxu0 %v718
        %6402 = vmatprep.subr.mxu0 0.0
        %6403 = vmatpush1.msra.mxu0 %v717
        %6404 = vmatprep.subr.mxu0 0.0
        %6405 = vmatpush1.msra.mxu0 %v716
        %6406 = vmatprep.subr.mxu0 0.0
        %6407 = vmatpush1.msra.mxu0 %v715
        %6408 = vmatprep.subr.mxu0 0.0
        %6409 = vmatpush1.msra.mxu0 %v714
        %6410 = vmatprep.subr.mxu0 0.0
        %6411 = vmatpush2.msra.mxu0 %v745
        %6412 = vmatprep.subr.mxu0 0.0
        %6413 = vmatpush2.msra.mxu0 %v744
        %6414 = vmatprep.subr.mxu0 0.0
        %6415 = vmatpush2.msra.mxu0 %v743
        %6416 = vmatprep.subr.mxu0 0.0
        %6417 = vmatpush2.msra.mxu0 %v742
        %6418 = vmatprep.subr.mxu0 0.0
        %6419 = vmatpush2.msra.mxu0 %v741
        %6420 = vmatprep.subr.mxu0 0.0
        %6421 = vmatpush2.msra.mxu0 %v740
        %6422 = vmatprep.subr.mxu0 0.0
        %6423 = vmatpush2.msra.mxu0 %v739
        %6424 = vmatprep.subr.mxu0 0.0
        %6425 = vmatpush2.msra.mxu0 %v738
        %6426 = vmatprep.subr.mxu0 0.0
        %6427 = vmatpush2.msra.mxu0 %v737
        %6428 = vmatprep.subr.mxu0 0.0
        %6429 = vmatpush2.msra.mxu0 %v736
        %6430 = vmatprep.subr.mxu0 0.0
        %6431 = vmatpush2.msra.mxu0 %v735
        %6432 = vmatprep.subr.mxu0 0.0
        %6433 = vmatpush2.msra.mxu0 %v734
        %6434 = vmatprep.subr.mxu0 0.0
        %6435 = vmatpush2.msra.mxu0 %v733
        %6436 = vmatprep.subr.mxu0 0.0
        %6437 = vmatpush2.msra.mxu0 %v732
        %6438 = vmatprep.subr.mxu0 0.0
        %6439 = vmatpush2.msra.mxu0 %v731
        %6440 = vmatprep.subr.mxu0 0.0
        %6441 = vmatpush2.msra.mxu0 %v730
        %6442 = vmatprep.mubr.f32.mxu0 %v6331
        %6443 = vmatmul.mubr.f32.gmra.mxu0 %v6330
        %v6444 = vpop.f32.mrf.mxu0
        %v6445 = vadd.f32 0.0, %v6444
        %v6446 = vpop.f32.mrf.mxu0
        %6447 = vmatprep.mubr.f32.mxu0 %v6334
        %6448 = vmatmul.mubr.f32.gmra.mxu0 %v6333
        %v6449 = vpop.f32.mrf.mxu0
        %v6450 = vadd.f32 0.0, %v6449
        %v6451 = vpop.f32.mrf.mxu0
        %6452 = vmatprep.mubr.f32.mxu0 %v6337
        %6453 = vmatmul.mubr.f32.gmra.mxu0 %v6336
        %v6454 = vpop.f32.mrf.mxu0
        %v6455 = vadd.f32 0.0, %v6454
        %v6456 = vpop.f32.mrf.mxu0
        %6457 = vmatprep.mubr.f32.mxu0 %v6340
        %6458 = vmatmul.mubr.f32.gmra.mxu0 %v6339
        %v6459 = vpop.f32.mrf.mxu0
        %v6460 = vadd.f32 0.0, %v6459
        %v6461 = vpop.f32.mrf.mxu0
        %6462 = vmatprep.mubr.f32.mxu0 %v6343
        %6463 = vmatmul.mubr.f32.gmra.mxu0 %v6342
        %v6464 = vpop.f32.mrf.mxu0
        %v6465 = vadd.f32 0.0, %v6464
        %v6466 = vpop.f32.mrf.mxu0
        %6467 = vmatprep.mubr.f32.mxu0 %v6346
        %6468 = vmatmul.mubr.f32.gmra.mxu0 %v6345
        %v6469 = vpop.f32.mrf.mxu0
        %v6470 = vadd.f32 0.0, %v6469
        %v6471 = vpop.f32.mrf.mxu0
        %6472 = vmatprep.mubr.f32.mxu0 %v6349
        %6473 = vmatmul.mubr.f32.gmra.mxu0 %v6348
        %v6474 = vpop.f32.mrf.mxu0
        %v6475 = vadd.f32 0.0, %v6474
        %v6476 = vpop.f32.mrf.mxu0
        %6477 = vmatprep.mubr.f32.mxu0 %v6352
        %6478 = vmatmul.mubr.f32.gmra.mxu0 %v6351
        %v6479 = vpop.f32.mrf.mxu0
        %v6480 = vadd.f32 0.0, %v6479
        %v6481 = vpop.f32.mrf.mxu0
        %6482 = vdwg.mxu0
        %6483 = vmatprep.subr.mxu0 0.0
        %6484 = vmatpush1.msra.mxu0 0.0
        %6485 = vmatprep.subr.mxu0 0.0
        %6486 = vmatpush1.msra.mxu0 0.0
        %6487 = vmatprep.subr.mxu0 0.0
        %6488 = vmatpush1.msra.mxu0 0.0
        %6489 = vmatprep.subr.mxu0 0.0
        %6490 = vmatpush1.msra.mxu0 0.0
        %6491 = vmatprep.subr.mxu0 0.0
        %6492 = vmatpush1.msra.mxu0 0.0
        %6493 = vmatprep.subr.mxu0 0.0
        %6494 = vmatpush1.msra.mxu0 0.0
        %6495 = vmatprep.subr.mxu0 0.0
        %6496 = vmatpush1.msra.mxu0 0.0
        %6497 = vmatprep.subr.mxu0 0.0
        %6498 = vmatpush1.msra.mxu0 %v806
        %6499 = vmatprep.subr.mxu0 0.0
        %6500 = vmatpush1.msra.mxu0 %v753
        %6501 = vmatprep.subr.mxu0 0.0
        %6502 = vmatpush1.msra.mxu0 %v752
        %6503 = vmatprep.subr.mxu0 0.0
        %6504 = vmatpush1.msra.mxu0 %v751
        %6505 = vmatprep.subr.mxu0 0.0
        %6506 = vmatpush1.msra.mxu0 %v750
        %6507 = vmatprep.subr.mxu0 0.0
        %6508 = vmatpush1.msra.mxu0 %v749
        %6509 = vmatprep.subr.mxu0 0.0
        %6510 = vmatpush1.msra.mxu0 %v748
        %6511 = vmatprep.subr.mxu0 0.0
        %6512 = vmatpush1.msra.mxu0 %v747
        %6513 = vmatprep.subr.mxu0 0.0
        %6514 = vmatpush1.msra.mxu0 %v746
        %6515 = vmatprep.subr.mxu0 0.0
        %6516 = vmatpush2.msra.mxu0 0.0
        %6517 = vmatprep.subr.mxu0 0.0
        %6518 = vmatpush2.msra.mxu0 0.0
        %6519 = vmatprep.subr.mxu0 0.0
        %6520 = vmatpush2.msra.mxu0 0.0
        %6521 = vmatprep.subr.mxu0 0.0
        %6522 = vmatpush2.msra.mxu0 0.0
        %6523 = vmatprep.subr.mxu0 0.0
        %6524 = vmatpush2.msra.mxu0 0.0
        %6525 = vmatprep.subr.mxu0 0.0
        %6526 = vmatpush2.msra.mxu0 0.0
        %6527 = vmatprep.subr.mxu0 0.0
        %6528 = vmatpush2.msra.mxu0 0.0
        %6529 = vmatprep.subr.mxu0 0.0
        %6530 = vmatpush2.msra.mxu0 0.0
        %6531 = vmatprep.subr.mxu0 0.0
        %6532 = vmatpush2.msra.mxu0 0.0
        %6533 = vmatprep.subr.mxu0 0.0
        %6534 = vmatpush2.msra.mxu0 0.0
        %6535 = vmatprep.subr.mxu0 0.0
        %6536 = vmatpush2.msra.mxu0 0.0
        %6537 = vmatprep.subr.mxu0 0.0
        %6538 = vmatpush2.msra.mxu0 0.0
        %6539 = vmatprep.subr.mxu0 0.0
        %6540 = vmatpush2.msra.mxu0 0.0
        %6541 = vmatprep.subr.mxu0 0.0
        %6542 = vmatpush2.msra.mxu0 0.0
        %6543 = vmatprep.subr.mxu0 0.0
        %6544 = vmatpush2.msra.mxu0 0.0
        %6545 = vmatprep.subr.mxu0 0.0
        %6546 = vmatpush2.msra.mxu0 0.0
        %6547 = vmatprep.mubr.f32.mxu0 0.0
        %6548 = vmatmul.mubr.f32.gmra.mxu0 %v6355
        %v6549 = vpop.f32.mrf.mxu0
        %v6550 = vadd.f32 %v6445, %v6549
        %v6551 = vpop.f32.mrf.mxu0
        %6552 = vmatprep.mubr.f32.mxu0 0.0
        %6553 = vmatmul.mubr.f32.gmra.mxu0 %v6358
        %v6554 = vpop.f32.mrf.mxu0
        %v6555 = vadd.f32 %v6450, %v6554
        %v6556 = vpop.f32.mrf.mxu0
        %6557 = vmatprep.mubr.f32.mxu0 0.0
        %6558 = vmatmul.mubr.f32.gmra.mxu0 %v6361
        %v6559 = vpop.f32.mrf.mxu0
        %v6560 = vadd.f32 %v6455, %v6559
        %v6561 = vpop.f32.mrf.mxu0
        %6562 = vmatprep.mubr.f32.mxu0 0.0
        %6563 = vmatmul.mubr.f32.gmra.mxu0 %v6364
        %v6564 = vpop.f32.mrf.mxu0
        %v6565 = vadd.f32 %v6460, %v6564
        %v6566 = vpop.f32.mrf.mxu0
        %6567 = vmatprep.mubr.f32.mxu0 0.0
        %6568 = vmatmul.mubr.f32.gmra.mxu0 %v6367
        %v6569 = vpop.f32.mrf.mxu0
        %v6570 = vadd.f32 %v6465, %v6569
        %v6571 = vpop.f32.mrf.mxu0
        %6572 = vmatprep.mubr.f32.mxu0 0.0
        %6573 = vmatmul.mubr.f32.gmra.mxu0 %v6370
        %v6574 = vpop.f32.mrf.mxu0
        %v6575 = vadd.f32 %v6470, %v6574
        %v6576 = vpop.f32.mrf.mxu0
        %6577 = vmatprep.mubr.f32.mxu0 0.0
        %6578 = vmatmul.mubr.f32.gmra.mxu0 %v6373
        %v6579 = vpop.f32.mrf.mxu0
        %v6580 = vadd.f32 %v6475, %v6579
        %v6581 = vpop.f32.mrf.mxu0
        %6582 = vmatprep.mubr.f32.mxu0 0.0
        %6583 = vmatmul.mubr.f32.gmra.mxu0 %v6376
        %v6584 = vpop.f32.mrf.mxu0
        %v6585 = vadd.f32 %v6480, %v6584
        %v6586 = vpop.f32.mrf.mxu0
        %6587 = vdwg.mxu0
        %s6588 = scalar_lea.vmem %s3, 224
        %v6589 = vld [vmem:[%s6588] sm:$0xff]
        %v6590 = vld [vmem:[%s6588 + $0x8] sm:$0xff]
        %v6592 = vsel %vm1282, %v6550, 0
        %v6595 = vsel %vm1282, %v6555, 0
        %v6598 = vsel %vm1282, %v6560, 0
        %v6601 = vsel %vm1282, %v6565, 0
        %v6604 = vsel %vm1282, %v6570, 0
        %v6607 = vsel %vm1282, %v6575, 0
        %v6610 = vsel %vm1282, %v6580, 0
        %v6613 = vsel %vm1282, %v6585, 0
        %6615 = vmatprep.subr.mxu0 0.0
        %6616 = vmatpush1.msra.mxu0 0.0
        %6617 = vmatprep.subr.mxu0 0.0
        %6618 = vmatpush1.msra.mxu0 0.0
        %6619 = vmatprep.subr.mxu0 0.0
        %6620 = vmatpush1.msra.mxu0 0.0
        %6621 = vmatprep.subr.mxu0 0.0
        %6622 = vmatpush1.msra.mxu0 0.0
        %6623 = vmatprep.subr.mxu0 0.0
        %6624 = vmatpush1.msra.mxu0 0.0
        %6625 = vmatprep.subr.mxu0 0.0
        %6626 = vmatpush1.msra.mxu0 0.0
        %6627 = vmatprep.subr.mxu0 0.0
        %6628 = vmatpush1.msra.mxu0 0.0
        %6629 = vmatprep.subr.mxu0 0.0
        %6630 = vmatpush1.msra.mxu0 0.0
        %6631 = vmatprep.subr.mxu0 0.0
        %6632 = vmatpush1.msra.mxu0 0.0
        %6633 = vmatprep.subr.mxu0 0.0
        %6634 = vmatpush1.msra.mxu0 0.0
        %6635 = vmatprep.subr.mxu0 0.0
        %6636 = vmatpush1.msra.mxu0 0.0
        %6637 = vmatprep.subr.mxu0 0.0
        %6638 = vmatpush1.msra.mxu0 0.0
        %6639 = vmatprep.subr.mxu0 0.0
        %6640 = vmatpush1.msra.mxu0 0.0
        %6641 = vmatprep.subr.mxu0 0.0
        %6642 = vmatpush1.msra.mxu0 0.0
        %6643 = vmatprep.subr.mxu0 0.0
        %6644 = vmatpush1.msra.mxu0 %v6590
        %6645 = vmatprep.subr.mxu0 0.0
        %6646 = vmatpush1.msra.mxu0 %v6589
        %6647 = vmatprep.subr.mxu0 0.0
        %6648 = vmatpush2.msra.mxu0 0.0
        %6649 = vmatprep.subr.mxu0 0.0
        %6650 = vmatpush2.msra.mxu0 0.0
        %6651 = vmatprep.subr.mxu0 0.0
        %6652 = vmatpush2.msra.mxu0 0.0
        %6653 = vmatprep.subr.mxu0 0.0
        %6654 = vmatpush2.msra.mxu0 0.0
        %6655 = vmatprep.subr.mxu0 0.0
        %6656 = vmatpush2.msra.mxu0 0.0
        %6657 = vmatprep.subr.mxu0 0.0
        %6658 = vmatpush2.msra.mxu0 0.0
        %6659 = vmatprep.subr.mxu0 0.0
        %6660 = vmatpush2.msra.mxu0 0.0
        %6661 = vmatprep.subr.mxu0 0.0
        %6662 = vmatpush2.msra.mxu0 0.0
        %6663 = vmatprep.subr.mxu0 0.0
        %6664 = vmatpush2.msra.mxu0 0.0
        %6665 = vmatprep.subr.mxu0 0.0
        %6666 = vmatpush2.msra.mxu0 0.0
        %6667 = vmatprep.subr.mxu0 0.0
        %6668 = vmatpush2.msra.mxu0 0.0
        %6669 = vmatprep.subr.mxu0 0.0
        %6670 = vmatpush2.msra.mxu0 0.0
        %6671 = vmatprep.subr.mxu0 0.0
        %6672 = vmatpush2.msra.mxu0 0.0
        %6673 = vmatprep.subr.mxu0 0.0
        %6674 = vmatpush2.msra.mxu0 0.0
        %6675 = vmatprep.subr.mxu0 0.0
        %6676 = vmatpush2.msra.mxu0 0.0
        %6677 = vmatprep.subr.mxu0 0.0
        %6678 = vmatpush2.msra.mxu0 0.0
        %6679 = vmatprep.mubr.f32.mxu0 0.0
        %6680 = vmatmul.mubr.f32.gmra.mxu0 %v6592
        %v6681 = vpop.f32.mrf.mxu0
        %v6682 = vadd.f32 0.0, %v6681
        %v6683 = vpop.f32.mrf.mxu0
        %6684 = vmatprep.mubr.f32.mxu0 0.0
        %6685 = vmatmul.mubr.f32.gmra.mxu0 %v6595
        %v6686 = vpop.f32.mrf.mxu0
        %v6687 = vadd.f32 0.0, %v6686
        %v6688 = vpop.f32.mrf.mxu0
        %6689 = vmatprep.mubr.f32.mxu0 0.0
        %6690 = vmatmul.mubr.f32.gmra.mxu0 %v6598
        %v6691 = vpop.f32.mrf.mxu0
        %v6692 = vadd.f32 0.0, %v6691
        %v6693 = vpop.f32.mrf.mxu0
        %6694 = vmatprep.mubr.f32.mxu0 0.0
        %6695 = vmatmul.mubr.f32.gmra.mxu0 %v6601
        %v6696 = vpop.f32.mrf.mxu0
        %v6697 = vadd.f32 0.0, %v6696
        %v6698 = vpop.f32.mrf.mxu0
        %6699 = vmatprep.mubr.f32.mxu0 0.0
        %6700 = vmatmul.mubr.f32.gmra.mxu0 %v6604
        %v6701 = vpop.f32.mrf.mxu0
        %v6702 = vadd.f32 0.0, %v6701
        %v6703 = vpop.f32.mrf.mxu0
        %6704 = vmatprep.mubr.f32.mxu0 0.0
        %6705 = vmatmul.mubr.f32.gmra.mxu0 %v6607
        %v6706 = vpop.f32.mrf.mxu0
        %v6707 = vadd.f32 0.0, %v6706
        %v6708 = vpop.f32.mrf.mxu0
        %6709 = vmatprep.mubr.f32.mxu0 0.0
        %6710 = vmatmul.mubr.f32.gmra.mxu0 %v6610
        %v6711 = vpop.f32.mrf.mxu0
        %v6712 = vadd.f32 0.0, %v6711
        %v6713 = vpop.f32.mrf.mxu0
        %6714 = vmatprep.mubr.f32.mxu0 0.0
        %6715 = vmatmul.mubr.f32.gmra.mxu0 %v6613
        %v6716 = vpop.f32.mrf.mxu0
        %v6717 = vadd.f32 0.0, %v6716
        %v6718 = vpop.f32.mrf.mxu0
        %6719 = vdwg.mxu0
        %v6720 = vadd.f32 %v6321, %v6682
        %v6721 = vadd.f32 %v6322, %v6687
        %v6722 = vadd.f32 %v6323, %v6692
        %v6723 = vadd.f32 %v6324, %v6697
        %v6724 = vadd.f32 %v6325, %v6702
        %v6725 = vadd.f32 %v6326, %v6707
        %v6726 = vadd.f32 %v6327, %v6712
        %v6727 = vadd.f32 %v6328, %v6717
        %s6728 = scalar_lea.vmem %s2, 2880
        %v6729 = vld [vmem:[%s6728] sm:$0xff]
        %v6730 = vld [vmem:[%s6728 + $0x8] sm:$0xff]
        %v6731 = vld [vmem:[%s6728 + $0x10] sm:$0xff]
        %v6732 = vld [vmem:[%s6728 + $0x18] sm:$0xff]
        %v6733 = vld [vmem:[%s6728 + $0x20] sm:$0xff]
        %v6734 = vld [vmem:[%s6728 + $0x28] sm:$0xff]
        %v6735 = vld [vmem:[%s6728 + $0x30] sm:$0xff]
        %v6736 = vld [vmem:[%s6728 + $0x38] sm:$0xff]
        %v6737 = vld [vmem:[%s6728 + $0x40] sm:$0xff]
        %v6738 = vld [vmem:[%s6728 + $0x48] sm:$0xff]
        %v6739 = vld [vmem:[%s6728 + $0x50] sm:$0xff]
        %v6740 = vld [vmem:[%s6728 + $0x58] sm:$0xff]
        %v6741 = vld [vmem:[%s6728 + $0x60] sm:$0xff]
        %v6742 = vld [vmem:[%s6728 + $0x68] sm:$0xff]
        %v6743 = vld [vmem:[%s6728 + $0x70] sm:$0xff]
        %v6744 = vld [vmem:[%s6728 + $0x78] sm:$0xff]
        %v6745 = vld [vmem:[%s6728 + $0x80] sm:$0xff]
        %v6746 = vld [vmem:[%s6728 + $0x88] sm:$0xff]
        %v6747 = vld [vmem:[%s6728 + $0x90] sm:$0xff]
        %v6748 = vld [vmem:[%s6728 + $0x98] sm:$0xff]
        %v6749 = vld [vmem:[%s6728 + $0xa0] sm:$0xff]
        %v6750 = vld [vmem:[%s6728 + $0xa8] sm:$0xff]
        %v6751 = vld [vmem:[%s6728 + $0xb0] sm:$0xff]
        %v6752 = vld [vmem:[%s6728 + $0xb8] sm:$0xff]
        %v6754 = vsel %vm779, %v6731, 0
        %v6757 = vsel %vm779, %v6734, 0
        %v6760 = vsel %vm779, %v6737, 0
        %v6763 = vsel %vm779, %v6740, 0
        %v6766 = vsel %vm779, %v6743, 0
        %v6769 = vsel %vm779, %v6746, 0
        %v6772 = vsel %vm779, %v6749, 0
        %v6775 = vsel %vm779, %v6752, 0
        %6777 = vmatprep.subr.mxu0 0.0
        %6778 = vmatpush1.msra.mxu0 %v729
        %6779 = vmatprep.subr.mxu0 0.0
        %6780 = vmatpush1.msra.mxu0 %v728
        %6781 = vmatprep.subr.mxu0 0.0
        %6782 = vmatpush1.msra.mxu0 %v727
        %6783 = vmatprep.subr.mxu0 0.0
        %6784 = vmatpush1.msra.mxu0 %v726
        %6785 = vmatprep.subr.mxu0 0.0
        %6786 = vmatpush1.msra.mxu0 %v725
        %6787 = vmatprep.subr.mxu0 0.0
        %6788 = vmatpush1.msra.mxu0 %v724
        %6789 = vmatprep.subr.mxu0 0.0
        %6790 = vmatpush1.msra.mxu0 %v723
        %6791 = vmatprep.subr.mxu0 0.0
        %6792 = vmatpush1.msra.mxu0 %v722
        %6793 = vmatprep.subr.mxu0 0.0
        %6794 = vmatpush1.msra.mxu0 %v721
        %6795 = vmatprep.subr.mxu0 0.0
        %6796 = vmatpush1.msra.mxu0 %v720
        %6797 = vmatprep.subr.mxu0 0.0
        %6798 = vmatpush1.msra.mxu0 %v719
        %6799 = vmatprep.subr.mxu0 0.0
        %6800 = vmatpush1.msra.mxu0 %v718
        %6801 = vmatprep.subr.mxu0 0.0
        %6802 = vmatpush1.msra.mxu0 %v717
        %6803 = vmatprep.subr.mxu0 0.0
        %6804 = vmatpush1.msra.mxu0 %v716
        %6805 = vmatprep.subr.mxu0 0.0
        %6806 = vmatpush1.msra.mxu0 %v715
        %6807 = vmatprep.subr.mxu0 0.0
        %6808 = vmatpush1.msra.mxu0 %v714
        %6809 = vmatprep.subr.mxu0 0.0
        %6810 = vmatpush2.msra.mxu0 %v745
        %6811 = vmatprep.subr.mxu0 0.0
        %6812 = vmatpush2.msra.mxu0 %v744
        %6813 = vmatprep.subr.mxu0 0.0
        %6814 = vmatpush2.msra.mxu0 %v743
        %6815 = vmatprep.subr.mxu0 0.0
        %6816 = vmatpush2.msra.mxu0 %v742
        %6817 = vmatprep.subr.mxu0 0.0
        %6818 = vmatpush2.msra.mxu0 %v741
        %6819 = vmatprep.subr.mxu0 0.0
        %6820 = vmatpush2.msra.mxu0 %v740
        %6821 = vmatprep.subr.mxu0 0.0
        %6822 = vmatpush2.msra.mxu0 %v739
        %6823 = vmatprep.subr.mxu0 0.0
        %6824 = vmatpush2.msra.mxu0 %v738
        %6825 = vmatprep.subr.mxu0 0.0
        %6826 = vmatpush2.msra.mxu0 %v737
        %6827 = vmatprep.subr.mxu0 0.0
        %6828 = vmatpush2.msra.mxu0 %v736
        %6829 = vmatprep.subr.mxu0 0.0
        %6830 = vmatpush2.msra.mxu0 %v735
        %6831 = vmatprep.subr.mxu0 0.0
        %6832 = vmatpush2.msra.mxu0 %v734
        %6833 = vmatprep.subr.mxu0 0.0
        %6834 = vmatpush2.msra.mxu0 %v733
        %6835 = vmatprep.subr.mxu0 0.0
        %6836 = vmatpush2.msra.mxu0 %v732
        %6837 = vmatprep.subr.mxu0 0.0
        %6838 = vmatpush2.msra.mxu0 %v731
        %6839 = vmatprep.subr.mxu0 0.0
        %6840 = vmatpush2.msra.mxu0 %v730
        %6841 = vmatprep.mubr.f32.mxu0 %v6730
        %6842 = vmatmul.mubr.f32.gmra.mxu0 %v6729
        %v6843 = vpop.f32.mrf.mxu0
        %v6844 = vadd.f32 0.0, %v6843
        %v6845 = vpop.f32.mrf.mxu0
        %6846 = vmatprep.mubr.f32.mxu0 %v6733
        %6847 = vmatmul.mubr.f32.gmra.mxu0 %v6732
        %v6848 = vpop.f32.mrf.mxu0
        %v6849 = vadd.f32 0.0, %v6848
        %v6850 = vpop.f32.mrf.mxu0
        %6851 = vmatprep.mubr.f32.mxu0 %v6736
        %6852 = vmatmul.mubr.f32.gmra.mxu0 %v6735
        %v6853 = vpop.f32.mrf.mxu0
        %v6854 = vadd.f32 0.0, %v6853
        %v6855 = vpop.f32.mrf.mxu0
        %6856 = vmatprep.mubr.f32.mxu0 %v6739
        %6857 = vmatmul.mubr.f32.gmra.mxu0 %v6738
        %v6858 = vpop.f32.mrf.mxu0
        %v6859 = vadd.f32 0.0, %v6858
        %v6860 = vpop.f32.mrf.mxu0
        %6861 = vmatprep.mubr.f32.mxu0 %v6742
        %6862 = vmatmul.mubr.f32.gmra.mxu0 %v6741
        %v6863 = vpop.f32.mrf.mxu0
        %v6864 = vadd.f32 0.0, %v6863
        %v6865 = vpop.f32.mrf.mxu0
        %6866 = vmatprep.mubr.f32.mxu0 %v6745
        %6867 = vmatmul.mubr.f32.gmra.mxu0 %v6744
        %v6868 = vpop.f32.mrf.mxu0
        %v6869 = vadd.f32 0.0, %v6868
        %v6870 = vpop.f32.mrf.mxu0
        %6871 = vmatprep.mubr.f32.mxu0 %v6748
        %6872 = vmatmul.mubr.f32.gmra.mxu0 %v6747
        %v6873 = vpop.f32.mrf.mxu0
        %v6874 = vadd.f32 0.0, %v6873
        %v6875 = vpop.f32.mrf.mxu0
        %6876 = vmatprep.mubr.f32.mxu0 %v6751
        %6877 = vmatmul.mubr.f32.gmra.mxu0 %v6750
        %v6878 = vpop.f32.mrf.mxu0
        %v6879 = vadd.f32 0.0, %v6878
        %v6880 = vpop.f32.mrf.mxu0
        %6881 = vdwg.mxu0
        %6882 = vmatprep.subr.mxu0 0.0
        %6883 = vmatpush1.msra.mxu0 0.0
        %6884 = vmatprep.subr.mxu0 0.0
        %6885 = vmatpush1.msra.mxu0 0.0
        %6886 = vmatprep.subr.mxu0 0.0
        %6887 = vmatpush1.msra.mxu0 0.0
        %6888 = vmatprep.subr.mxu0 0.0
        %6889 = vmatpush1.msra.mxu0 0.0
        %6890 = vmatprep.subr.mxu0 0.0
        %6891 = vmatpush1.msra.mxu0 0.0
        %6892 = vmatprep.subr.mxu0 0.0
        %6893 = vmatpush1.msra.mxu0 0.0
        %6894 = vmatprep.subr.mxu0 0.0
        %6895 = vmatpush1.msra.mxu0 0.0
        %6896 = vmatprep.subr.mxu0 0.0
        %6897 = vmatpush1.msra.mxu0 %v806
        %6898 = vmatprep.subr.mxu0 0.0
        %6899 = vmatpush1.msra.mxu0 %v753
        %6900 = vmatprep.subr.mxu0 0.0
        %6901 = vmatpush1.msra.mxu0 %v752
        %6902 = vmatprep.subr.mxu0 0.0
        %6903 = vmatpush1.msra.mxu0 %v751
        %6904 = vmatprep.subr.mxu0 0.0
        %6905 = vmatpush1.msra.mxu0 %v750
        %6906 = vmatprep.subr.mxu0 0.0
        %6907 = vmatpush1.msra.mxu0 %v749
        %6908 = vmatprep.subr.mxu0 0.0
        %6909 = vmatpush1.msra.mxu0 %v748
        %6910 = vmatprep.subr.mxu0 0.0
        %6911 = vmatpush1.msra.mxu0 %v747
        %6912 = vmatprep.subr.mxu0 0.0
        %6913 = vmatpush1.msra.mxu0 %v746
        %6914 = vmatprep.subr.mxu0 0.0
        %6915 = vmatpush2.msra.mxu0 0.0
        %6916 = vmatprep.subr.mxu0 0.0
        %6917 = vmatpush2.msra.mxu0 0.0
        %6918 = vmatprep.subr.mxu0 0.0
        %6919 = vmatpush2.msra.mxu0 0.0
        %6920 = vmatprep.subr.mxu0 0.0
        %6921 = vmatpush2.msra.mxu0 0.0
        %6922 = vmatprep.subr.mxu0 0.0
        %6923 = vmatpush2.msra.mxu0 0.0
        %6924 = vmatprep.subr.mxu0 0.0
        %6925 = vmatpush2.msra.mxu0 0.0
        %6926 = vmatprep.subr.mxu0 0.0
        %6927 = vmatpush2.msra.mxu0 0.0
        %6928 = vmatprep.subr.mxu0 0.0
        %6929 = vmatpush2.msra.mxu0 0.0
        %6930 = vmatprep.subr.mxu0 0.0
        %6931 = vmatpush2.msra.mxu0 0.0
        %6932 = vmatprep.subr.mxu0 0.0
        %6933 = vmatpush2.msra.mxu0 0.0
        %6934 = vmatprep.subr.mxu0 0.0
        %6935 = vmatpush2.msra.mxu0 0.0
        %6936 = vmatprep.subr.mxu0 0.0
        %6937 = vmatpush2.msra.mxu0 0.0
        %6938 = vmatprep.subr.mxu0 0.0
        %6939 = vmatpush2.msra.mxu0 0.0
        %6940 = vmatprep.subr.mxu0 0.0
        %6941 = vmatpush2.msra.mxu0 0.0
        %6942 = vmatprep.subr.mxu0 0.0
        %6943 = vmatpush2.msra.mxu0 0.0
        %6944 = vmatprep.subr.mxu0 0.0
        %6945 = vmatpush2.msra.mxu0 0.0
        %6946 = vmatprep.mubr.f32.mxu0 0.0
        %6947 = vmatmul.mubr.f32.gmra.mxu0 %v6754
        %v6948 = vpop.f32.mrf.mxu0
        %v6949 = vadd.f32 %v6844, %v6948
        %v6950 = vpop.f32.mrf.mxu0
        %6951 = vmatprep.mubr.f32.mxu0 0.0
        %6952 = vmatmul.mubr.f32.gmra.mxu0 %v6757
        %v6953 = vpop.f32.mrf.mxu0
        %v6954 = vadd.f32 %v6849, %v6953
        %v6955 = vpop.f32.mrf.mxu0
        %6956 = vmatprep.mubr.f32.mxu0 0.0
        %6957 = vmatmul.mubr.f32.gmra.mxu0 %v6760
        %v6958 = vpop.f32.mrf.mxu0
        %v6959 = vadd.f32 %v6854, %v6958
        %v6960 = vpop.f32.mrf.mxu0
        %6961 = vmatprep.mubr.f32.mxu0 0.0
        %6962 = vmatmul.mubr.f32.gmra.mxu0 %v6763
        %v6963 = vpop.f32.mrf.mxu0
        %v6964 = vadd.f32 %v6859, %v6963
        %v6965 = vpop.f32.mrf.mxu0
        %6966 = vmatprep.mubr.f32.mxu0 0.0
        %6967 = vmatmul.mubr.f32.gmra.mxu0 %v6766
        %v6968 = vpop.f32.mrf.mxu0
        %v6969 = vadd.f32 %v6864, %v6968
        %v6970 = vpop.f32.mrf.mxu0
        %6971 = vmatprep.mubr.f32.mxu0 0.0
        %6972 = vmatmul.mubr.f32.gmra.mxu0 %v6769
        %v6973 = vpop.f32.mrf.mxu0
        %v6974 = vadd.f32 %v6869, %v6973
        %v6975 = vpop.f32.mrf.mxu0
        %6976 = vmatprep.mubr.f32.mxu0 0.0
        %6977 = vmatmul.mubr.f32.gmra.mxu0 %v6772
        %v6978 = vpop.f32.mrf.mxu0
        %v6979 = vadd.f32 %v6874, %v6978
        %v6980 = vpop.f32.mrf.mxu0
        %6981 = vmatprep.mubr.f32.mxu0 0.0
        %6982 = vmatmul.mubr.f32.gmra.mxu0 %v6775
        %v6983 = vpop.f32.mrf.mxu0
        %v6984 = vadd.f32 %v6879, %v6983
        %v6985 = vpop.f32.mrf.mxu0
        %6986 = vdwg.mxu0
        %s6987 = scalar_lea.vmem %s3, 240
        %v6988 = vld [vmem:[%s6987] sm:$0xff]
        %v6989 = vld [vmem:[%s6987 + $0x8] sm:$0xff]
        %v6991 = vsel %vm1282, %v6949, 0
        %v6994 = vsel %vm1282, %v6954, 0
        %v6997 = vsel %vm1282, %v6959, 0
        %v7000 = vsel %vm1282, %v6964, 0
        %v7003 = vsel %vm1282, %v6969, 0
        %v7006 = vsel %vm1282, %v6974, 0
        %v7009 = vsel %vm1282, %v6979, 0
        %v7012 = vsel %vm1282, %v6984, 0
        %7014 = vmatprep.subr.mxu0 0.0
        %7015 = vmatpush1.msra.mxu0 0.0
        %7016 = vmatprep.subr.mxu0 0.0
        %7017 = vmatpush1.msra.mxu0 0.0
        %7018 = vmatprep.subr.mxu0 0.0
        %7019 = vmatpush1.msra.mxu0 0.0
        %7020 = vmatprep.subr.mxu0 0.0
        %7021 = vmatpush1.msra.mxu0 0.0
        %7022 = vmatprep.subr.mxu0 0.0
        %7023 = vmatpush1.msra.mxu0 0.0
        %7024 = vmatprep.subr.mxu0 0.0
        %7025 = vmatpush1.msra.mxu0 0.0
        %7026 = vmatprep.subr.mxu0 0.0
        %7027 = vmatpush1.msra.mxu0 0.0
        %7028 = vmatprep.subr.mxu0 0.0
        %7029 = vmatpush1.msra.mxu0 0.0
        %7030 = vmatprep.subr.mxu0 0.0
        %7031 = vmatpush1.msra.mxu0 0.0
        %7032 = vmatprep.subr.mxu0 0.0
        %7033 = vmatpush1.msra.mxu0 0.0
        %7034 = vmatprep.subr.mxu0 0.0
        %7035 = vmatpush1.msra.mxu0 0.0
        %7036 = vmatprep.subr.mxu0 0.0
        %7037 = vmatpush1.msra.mxu0 0.0
        %7038 = vmatprep.subr.mxu0 0.0
        %7039 = vmatpush1.msra.mxu0 0.0
        %7040 = vmatprep.subr.mxu0 0.0
        %7041 = vmatpush1.msra.mxu0 0.0
        %7042 = vmatprep.subr.mxu0 0.0
        %7043 = vmatpush1.msra.mxu0 %v6989
        %7044 = vmatprep.subr.mxu0 0.0
        %7045 = vmatpush1.msra.mxu0 %v6988
        %7046 = vmatprep.subr.mxu0 0.0
        %7047 = vmatpush2.msra.mxu0 0.0
        %7048 = vmatprep.subr.mxu0 0.0
        %7049 = vmatpush2.msra.mxu0 0.0
        %7050 = vmatprep.subr.mxu0 0.0
        %7051 = vmatpush2.msra.mxu0 0.0
        %7052 = vmatprep.subr.mxu0 0.0
        %7053 = vmatpush2.msra.mxu0 0.0
        %7054 = vmatprep.subr.mxu0 0.0
        %7055 = vmatpush2.msra.mxu0 0.0
        %7056 = vmatprep.subr.mxu0 0.0
        %7057 = vmatpush2.msra.mxu0 0.0
        %7058 = vmatprep.subr.mxu0 0.0
        %7059 = vmatpush2.msra.mxu0 0.0
        %7060 = vmatprep.subr.mxu0 0.0
        %7061 = vmatpush2.msra.mxu0 0.0
        %7062 = vmatprep.subr.mxu0 0.0
        %7063 = vmatpush2.msra.mxu0 0.0
        %7064 = vmatprep.subr.mxu0 0.0
        %7065 = vmatpush2.msra.mxu0 0.0
        %7066 = vmatprep.subr.mxu0 0.0
        %7067 = vmatpush2.msra.mxu0 0.0
        %7068 = vmatprep.subr.mxu0 0.0
        %7069 = vmatpush2.msra.mxu0 0.0
        %7070 = vmatprep.subr.mxu0 0.0
        %7071 = vmatpush2.msra.mxu0 0.0
        %7072 = vmatprep.subr.mxu0 0.0
        %7073 = vmatpush2.msra.mxu0 0.0
        %7074 = vmatprep.subr.mxu0 0.0
        %7075 = vmatpush2.msra.mxu0 0.0
        %7076 = vmatprep.subr.mxu0 0.0
        %7077 = vmatpush2.msra.mxu0 0.0
        %7078 = vmatprep.mubr.f32.mxu0 0.0
        %7079 = vmatmul.mubr.f32.gmra.mxu0 %v6991
        %v7080 = vpop.f32.mrf.mxu0
        %v7081 = vadd.f32 0.0, %v7080
        %v7082 = vpop.f32.mrf.mxu0
        %7083 = vmatprep.mubr.f32.mxu0 0.0
        %7084 = vmatmul.mubr.f32.gmra.mxu0 %v6994
        %v7085 = vpop.f32.mrf.mxu0
        %v7086 = vadd.f32 0.0, %v7085
        %v7087 = vpop.f32.mrf.mxu0
        %7088 = vmatprep.mubr.f32.mxu0 0.0
        %7089 = vmatmul.mubr.f32.gmra.mxu0 %v6997
        %v7090 = vpop.f32.mrf.mxu0
        %v7091 = vadd.f32 0.0, %v7090
        %v7092 = vpop.f32.mrf.mxu0
        %7093 = vmatprep.mubr.f32.mxu0 0.0
        %7094 = vmatmul.mubr.f32.gmra.mxu0 %v7000
        %v7095 = vpop.f32.mrf.mxu0
        %v7096 = vadd.f32 0.0, %v7095
        %v7097 = vpop.f32.mrf.mxu0
        %7098 = vmatprep.mubr.f32.mxu0 0.0
        %7099 = vmatmul.mubr.f32.gmra.mxu0 %v7003
        %v7100 = vpop.f32.mrf.mxu0
        %v7101 = vadd.f32 0.0, %v7100
        %v7102 = vpop.f32.mrf.mxu0
        %7103 = vmatprep.mubr.f32.mxu0 0.0
        %7104 = vmatmul.mubr.f32.gmra.mxu0 %v7006
        %v7105 = vpop.f32.mrf.mxu0
        %v7106 = vadd.f32 0.0, %v7105
        %v7107 = vpop.f32.mrf.mxu0
        %7108 = vmatprep.mubr.f32.mxu0 0.0
        %7109 = vmatmul.mubr.f32.gmra.mxu0 %v7009
        %v7110 = vpop.f32.mrf.mxu0
        %v7111 = vadd.f32 0.0, %v7110
        %v7112 = vpop.f32.mrf.mxu0
        %7113 = vmatprep.mubr.f32.mxu0 0.0
        %7114 = vmatmul.mubr.f32.gmra.mxu0 %v7012
        %v7115 = vpop.f32.mrf.mxu0
        %v7116 = vadd.f32 0.0, %v7115
        %v7117 = vpop.f32.mrf.mxu0
        %7118 = vdwg.mxu0
        %v7119 = vadd.f32 %v6720, %v7081
        %v7120 = vadd.f32 %v6721, %v7086
        %v7121 = vadd.f32 %v6722, %v7091
        %v7122 = vadd.f32 %v6723, %v7096
        %v7123 = vadd.f32 %v6724, %v7101
        %v7124 = vadd.f32 %v6725, %v7106
        %v7125 = vadd.f32 %v6726, %v7111
        %v7126 = vadd.f32 %v6727, %v7116
        %v7127 = vld [vmem:[%s4] sm:$0x1]
        %v7129 = vlaneseq
        %v7130 = vshrl.u32 %v7129, 7
        %v7131 = vsub.s32 0, %v7130
        %v7132 = vrot.slane %v7127, %v7131
        %v7134 = vadd.f32 %v7119, %v7132
        %v7135 = vadd.f32 %v7120, %v7132
        %v7136 = vadd.f32 %v7121, %v7132
        %v7137 = vadd.f32 %v7122, %v7132
        %v7138 = vadd.f32 %v7123, %v7132
        %v7139 = vadd.f32 %v7124, %v7132
        %v7140 = vadd.f32 %v7125, %v7132
        %v7141 = vadd.f32 %v7126, %v7132
        %v7142 = vmax.f32 %v7134, 0.0
        %v7143 = vmax.f32 %v7135, 0.0
        %v7144 = vmax.f32 %v7136, 0.0
        %v7145 = vmax.f32 %v7137, 0.0
        %v7146 = vmax.f32 %v7138, 0.0
        %v7147 = vmax.f32 %v7139, 0.0
        %v7148 = vmax.f32 %v7140, 0.0
        %v7149 = vmax.f32 %v7141, 0.0
        %v7150 = vlaneseq
        %vm7151 = vcmp.ge.s32.totalorder %v7150, 0
        %vm7152 = vcmp.lt.s32.totalorder %v7150, 32
        %vm7153 = vmand %vm7151, %vm7152
        %7154 = vst.msk [vmem:[#allocation2] sm:$0x1] %vm7153, %v7142
        %v7157 = vunpack.c.l.s4 1966171168
        %v7158 = vunpack.c.0.s8 %v7157
        %v7159 = vlaneseq
        %v7160 = vshrl.u32 %v7159, 7
        %v7161 = vsub.s32 %v7158, %v7160
        %v7162 = vrot.slane %v7142, %v7161
        %v7163 = vcombine.high %v7162, %v7162
        %v7165 = vunpack.c.l.s4 1966171168
        %v7166 = vunpack.c.0.s8 %v7165
        %v7167 = vlaneseq
        %v7168 = vshrl.u32 %v7167, 7
        %v7169 = vsub.s32 %v7166, %v7168
        %v7170 = vrot.slane %v7162, %v7169
        %v7172 = vunpack.c.l.s4 1966171168
        %v7173 = vunpack.c.0.s8 %v7172
        %v7174 = vlaneseq
        %v7175 = vshrl.u32 %v7174, 7
        %v7176 = vsub.s32 %v7173, %v7175
        %v7177 = vrot.slane %v7163, %v7176
        %7178 = vrot.lane.b32.xlu0 %v7177, 32
        %v7179 = vpop.permute.xlu0 %7178
        %vm7181 = vcmp.ge.s32.totalorder %v7150, 32
        %vm7182 = vcmp.lt.s32.totalorder %v7150, 64
        %vm7183 = vmand %vm7181, %vm7182
        %7184 = vst.msk [vmem:[#allocation2] sm:$0x1] %vm7183, %v7179
        %v7185 = vcombine.high %v7170, %v7170
        %7186 = vrot.lane.b32.xlu0 %v7185, 64
        %v7187 = vpop.permute.xlu0 %7186
        %vm7189 = vcmp.ge.s32.totalorder %v7150, 64
        %vm7190 = vcmp.lt.s32.totalorder %v7150, 96
        %vm7191 = vmand %vm7189, %vm7190
        %7192 = vst.msk [vmem:[#allocation2] sm:$0x1] %vm7191, %v7187
        %v7193 = vcombine.high %v7177, %v7177
        %7194 = vrot.lane.b32.xlu0 %v7193, 96
        %v7195 = vpop.permute.xlu0 %7194
        %vm7197 = vcmp.ge.s32.totalorder %v7150, 96
        %vm7198 = vcmp.lt.s32.totalorder %v7150, 128
        %vm7199 = vmand %vm7197, %vm7198
        %7200 = vst.msk [vmem:[#allocation2] sm:$0x1] %vm7199, %v7195
        %v7201 = vcombine.high %v7142, %v7142
        %v7203 = vunpack.c.l.s4 1966171168
        %v7204 = vunpack.c.0.s8 %v7203
        %v7205 = vlaneseq
        %v7206 = vshrl.u32 %v7205, 7
        %v7207 = vsub.s32 %v7204, %v7206
        %v7208 = vrot.slane %v7201, %v7207
        %v7210 = vunpack.c.l.s4 1966171168
        %v7211 = vunpack.c.0.s8 %v7210
        %v7212 = vlaneseq
        %v7213 = vshrl.u32 %v7212, 7
        %v7214 = vsub.s32 %v7211, %v7213
        %v7215 = vrot.slane %v7208, %v7214
        %7217 = vst.msk [vmem:[#allocation2 + $0x1] sm:$0x1] %vm7153, %v7215
        %v7218 = vcombine.high %v7208, %v7208
        %v7220 = vunpack.c.l.s4 1966171168
        %v7221 = vunpack.c.0.s8 %v7220
        %v7222 = vlaneseq
        %v7223 = vshrl.u32 %v7222, 7
        %v7224 = vsub.s32 %v7221, %v7223
        %v7225 = vrot.slane %v7218, %v7224
        %7226 = vrot.lane.b32.xlu0 %v7225, 32
        %v7227 = vpop.permute.xlu0 %7226
        %7229 = vst.msk [vmem:[#allocation2 + $0x1] sm:$0x1] %vm7183, %v7227
        %v7230 = vcombine.high %v7215, %v7215
        %7231 = vrot.lane.b32.xlu0 %v7230, 64
        %v7232 = vpop.permute.xlu0 %7231
        %7234 = vst.msk [vmem:[#allocation2 + $0x1] sm:$0x1] %vm7191, %v7232
        %v7235 = vcombine.high %v7225, %v7225
        %7236 = vrot.lane.b32.xlu0 %v7235, 96
        %v7237 = vpop.permute.xlu0 %7236
        %7239 = vst.msk [vmem:[#allocation2 + $0x1] sm:$0x1] %vm7199, %v7237
        %7240 = vst.msk [vmem:[#allocation2 + $0x2] sm:$0x1] %vm7153, %v7143
        %v7243 = vunpack.c.l.s4 1966171168
        %v7244 = vunpack.c.0.s8 %v7243
        %v7245 = vlaneseq
        %v7246 = vshrl.u32 %v7245, 7
        %v7247 = vsub.s32 %v7244, %v7246
        %v7248 = vrot.slane %v7143, %v7247
        %v7249 = vcombine.high %v7248, %v7248
        %v7251 = vunpack.c.l.s4 1966171168
        %v7252 = vunpack.c.0.s8 %v7251
        %v7253 = vlaneseq
        %v7254 = vshrl.u32 %v7253, 7
        %v7255 = vsub.s32 %v7252, %v7254
        %v7256 = vrot.slane %v7248, %v7255
        %v7258 = vunpack.c.l.s4 1966171168
        %v7259 = vunpack.c.0.s8 %v7258
        %v7260 = vlaneseq
        %v7261 = vshrl.u32 %v7260, 7
        %v7262 = vsub.s32 %v7259, %v7261
        %v7263 = vrot.slane %v7249, %v7262
        %7264 = vrot.lane.b32.xlu0 %v7263, 32
        %v7265 = vpop.permute.xlu0 %7264
        %7267 = vst.msk [vmem:[#allocation2 + $0x2] sm:$0x1] %vm7183, %v7265
        %v7268 = vcombine.high %v7256, %v7256
        %7269 = vrot.lane.b32.xlu0 %v7268, 64
        %v7270 = vpop.permute.xlu0 %7269
        %7272 = vst.msk [vmem:[#allocation2 + $0x2] sm:$0x1] %vm7191, %v7270
        %v7273 = vcombine.high %v7263, %v7263
        %7274 = vrot.lane.b32.xlu0 %v7273, 96
        %v7275 = vpop.permute.xlu0 %7274
        %7277 = vst.msk [vmem:[#allocation2 + $0x2] sm:$0x1] %vm7199, %v7275
        %v7278 = vcombine.high %v7143, %v7143
        %v7280 = vunpack.c.l.s4 1966171168
        %v7281 = vunpack.c.0.s8 %v7280
        %v7282 = vlaneseq
        %v7283 = vshrl.u32 %v7282, 7
        %v7284 = vsub.s32 %v7281, %v7283
        %v7285 = vrot.slane %v7278, %v7284
        %v7287 = vunpack.c.l.s4 1966171168
        %v7288 = vunpack.c.0.s8 %v7287
        %v7289 = vlaneseq
        %v7290 = vshrl.u32 %v7289, 7
        %v7291 = vsub.s32 %v7288, %v7290
        %v7292 = vrot.slane %v7285, %v7291
        %7294 = vst.msk [vmem:[#allocation2 + $0x3] sm:$0x1] %vm7153, %v7292
        %v7295 = vcombine.high %v7285, %v7285
        %v7297 = vunpack.c.l.s4 1966171168
        %v7298 = vunpack.c.0.s8 %v7297
        %v7299 = vlaneseq
        %v7300 = vshrl.u32 %v7299, 7
        %v7301 = vsub.s32 %v7298, %v7300
        %v7302 = vrot.slane %v7295, %v7301
        %7303 = vrot.lane.b32.xlu0 %v7302, 32
        %v7304 = vpop.permute.xlu0 %7303
        %7306 = vst.msk [vmem:[#allocation2 + $0x3] sm:$0x1] %vm7183, %v7304
        %v7307 = vcombine.high %v7292, %v7292
        %7308 = vrot.lane.b32.xlu0 %v7307, 64
        %v7309 = vpop.permute.xlu0 %7308
        %7311 = vst.msk [vmem:[#allocation2 + $0x3] sm:$0x1] %vm7191, %v7309
        %v7312 = vcombine.high %v7302, %v7302
        %7313 = vrot.lane.b32.xlu0 %v7312, 96
        %v7314 = vpop.permute.xlu0 %7313
        %7316 = vst.msk [vmem:[#allocation2 + $0x3] sm:$0x1] %vm7199, %v7314
        %7317 = vst.msk [vmem:[#allocation2 + $0x4] sm:$0x1] %vm7153, %v7144
        %v7320 = vunpack.c.l.s4 1966171168
        %v7321 = vunpack.c.0.s8 %v7320
        %v7322 = vlaneseq
        %v7323 = vshrl.u32 %v7322, 7
        %v7324 = vsub.s32 %v7321, %v7323
        %v7325 = vrot.slane %v7144, %v7324
        %v7326 = vcombine.high %v7325, %v7325
        %v7328 = vunpack.c.l.s4 1966171168
        %v7329 = vunpack.c.0.s8 %v7328
        %v7330 = vlaneseq
        %v7331 = vshrl.u32 %v7330, 7
        %v7332 = vsub.s32 %v7329, %v7331
        %v7333 = vrot.slane %v7325, %v7332
        %v7335 = vunpack.c.l.s4 1966171168
        %v7336 = vunpack.c.0.s8 %v7335
        %v7337 = vlaneseq
        %v7338 = vshrl.u32 %v7337, 7
        %v7339 = vsub.s32 %v7336, %v7338
        %v7340 = vrot.slane %v7326, %v7339
        %7341 = vrot.lane.b32.xlu0 %v7340, 32
        %v7342 = vpop.permute.xlu0 %7341
        %7344 = vst.msk [vmem:[#allocation2 + $0x4] sm:$0x1] %vm7183, %v7342
        %v7345 = vcombine.high %v7333, %v7333
        %7346 = vrot.lane.b32.xlu0 %v7345, 64
        %v7347 = vpop.permute.xlu0 %7346
        %7349 = vst.msk [vmem:[#allocation2 + $0x4] sm:$0x1] %vm7191, %v7347
        %v7350 = vcombine.high %v7340, %v7340
        %7351 = vrot.lane.b32.xlu0 %v7350, 96
        %v7352 = vpop.permute.xlu0 %7351
        %7354 = vst.msk [vmem:[#allocation2 + $0x4] sm:$0x1] %vm7199, %v7352
        %v7355 = vcombine.high %v7144, %v7144
        %v7357 = vunpack.c.l.s4 1966171168
        %v7358 = vunpack.c.0.s8 %v7357
        %v7359 = vlaneseq
        %v7360 = vshrl.u32 %v7359, 7
        %v7361 = vsub.s32 %v7358, %v7360
        %v7362 = vrot.slane %v7355, %v7361
        %v7364 = vunpack.c.l.s4 1966171168
        %v7365 = vunpack.c.0.s8 %v7364
        %v7366 = vlaneseq
        %v7367 = vshrl.u32 %v7366, 7
        %v7368 = vsub.s32 %v7365, %v7367
        %v7369 = vrot.slane %v7362, %v7368
        %7371 = vst.msk [vmem:[#allocation2 + $0x5] sm:$0x1] %vm7153, %v7369
        %v7372 = vcombine.high %v7362, %v7362
        %v7374 = vunpack.c.l.s4 1966171168
        %v7375 = vunpack.c.0.s8 %v7374
        %v7376 = vlaneseq
        %v7377 = vshrl.u32 %v7376, 7
        %v7378 = vsub.s32 %v7375, %v7377
        %v7379 = vrot.slane %v7372, %v7378
        %7380 = vrot.lane.b32.xlu0 %v7379, 32
        %v7381 = vpop.permute.xlu0 %7380
        %7383 = vst.msk [vmem:[#allocation2 + $0x5] sm:$0x1] %vm7183, %v7381
        %v7384 = vcombine.high %v7369, %v7369
        %7385 = vrot.lane.b32.xlu0 %v7384, 64
        %v7386 = vpop.permute.xlu0 %7385
        %7388 = vst.msk [vmem:[#allocation2 + $0x5] sm:$0x1] %vm7191, %v7386
        %v7389 = vcombine.high %v7379, %v7379
        %7390 = vrot.lane.b32.xlu0 %v7389, 96
        %v7391 = vpop.permute.xlu0 %7390
        %7393 = vst.msk [vmem:[#allocation2 + $0x5] sm:$0x1] %vm7199, %v7391
        %7394 = vst.msk [vmem:[#allocation2 + $0x6] sm:$0x1] %vm7153, %v7145
        %v7397 = vunpack.c.l.s4 1966171168
        %v7398 = vunpack.c.0.s8 %v7397
        %v7399 = vlaneseq
        %v7400 = vshrl.u32 %v7399, 7
        %v7401 = vsub.s32 %v7398, %v7400
        %v7402 = vrot.slane %v7145, %v7401
        %v7403 = vcombine.high %v7402, %v7402
        %v7405 = vunpack.c.l.s4 1966171168
        %v7406 = vunpack.c.0.s8 %v7405
        %v7407 = vlaneseq
        %v7408 = vshrl.u32 %v7407, 7
        %v7409 = vsub.s32 %v7406, %v7408
        %v7410 = vrot.slane %v7402, %v7409
        %v7412 = vunpack.c.l.s4 1966171168
        %v7413 = vunpack.c.0.s8 %v7412
        %v7414 = vlaneseq
        %v7415 = vshrl.u32 %v7414, 7
        %v7416 = vsub.s32 %v7413, %v7415
        %v7417 = vrot.slane %v7403, %v7416
        %7418 = vrot.lane.b32.xlu0 %v7417, 32
        %v7419 = vpop.permute.xlu0 %7418
        %7421 = vst.msk [vmem:[#allocation2 + $0x6] sm:$0x1] %vm7183, %v7419
        %v7422 = vcombine.high %v7410, %v7410
        %7423 = vrot.lane.b32.xlu0 %v7422, 64
        %v7424 = vpop.permute.xlu0 %7423
        %7426 = vst.msk [vmem:[#allocation2 + $0x6] sm:$0x1] %vm7191, %v7424
        %v7427 = vcombine.high %v7417, %v7417
        %7428 = vrot.lane.b32.xlu0 %v7427, 96
        %v7429 = vpop.permute.xlu0 %7428
        %7431 = vst.msk [vmem:[#allocation2 + $0x6] sm:$0x1] %vm7199, %v7429
        %v7432 = vcombine.high %v7145, %v7145
        %v7434 = vunpack.c.l.s4 1966171168
        %v7435 = vunpack.c.0.s8 %v7434
        %v7436 = vlaneseq
        %v7437 = vshrl.u32 %v7436, 7
        %v7438 = vsub.s32 %v7435, %v7437
        %v7439 = vrot.slane %v7432, %v7438
        %v7441 = vunpack.c.l.s4 1966171168
        %v7442 = vunpack.c.0.s8 %v7441
        %v7443 = vlaneseq
        %v7444 = vshrl.u32 %v7443, 7
        %v7445 = vsub.s32 %v7442, %v7444
        %v7446 = vrot.slane %v7439, %v7445
        %7448 = vst.msk [vmem:[#allocation2 + $0x7] sm:$0x1] %vm7153, %v7446
        %v7449 = vcombine.high %v7439, %v7439
        %v7451 = vunpack.c.l.s4 1966171168
        %v7452 = vunpack.c.0.s8 %v7451
        %v7453 = vlaneseq
        %v7454 = vshrl.u32 %v7453, 7
        %v7455 = vsub.s32 %v7452, %v7454
        %v7456 = vrot.slane %v7449, %v7455
        %7457 = vrot.lane.b32.xlu0 %v7456, 32
        %v7458 = vpop.permute.xlu0 %7457
        %7460 = vst.msk [vmem:[#allocation2 + $0x7] sm:$0x1] %vm7183, %v7458
        %v7461 = vcombine.high %v7446, %v7446
        %7462 = vrot.lane.b32.xlu0 %v7461, 64
        %v7463 = vpop.permute.xlu0 %7462
        %7465 = vst.msk [vmem:[#allocation2 + $0x7] sm:$0x1] %vm7191, %v7463
        %v7466 = vcombine.high %v7456, %v7456
        %7467 = vrot.lane.b32.xlu0 %v7466, 96
        %v7468 = vpop.permute.xlu0 %7467
        %7470 = vst.msk [vmem:[#allocation2 + $0x7] sm:$0x1] %vm7199, %v7468
        %7471 = vst.msk [vmem:[#allocation2 + $0x8] sm:$0x1] %vm7153, %v7146
        %v7474 = vunpack.c.l.s4 1966171168
        %v7475 = vunpack.c.0.s8 %v7474
        %v7476 = vlaneseq
        %v7477 = vshrl.u32 %v7476, 7
        %v7478 = vsub.s32 %v7475, %v7477
        %v7479 = vrot.slane %v7146, %v7478
        %v7480 = vcombine.high %v7479, %v7479
        %v7482 = vunpack.c.l.s4 1966171168
        %v7483 = vunpack.c.0.s8 %v7482
        %v7484 = vlaneseq
        %v7485 = vshrl.u32 %v7484, 7
        %v7486 = vsub.s32 %v7483, %v7485
        %v7487 = vrot.slane %v7479, %v7486
        %v7489 = vunpack.c.l.s4 1966171168
        %v7490 = vunpack.c.0.s8 %v7489
        %v7491 = vlaneseq
        %v7492 = vshrl.u32 %v7491, 7
        %v7493 = vsub.s32 %v7490, %v7492
        %v7494 = vrot.slane %v7480, %v7493
        %7495 = vrot.lane.b32.xlu0 %v7494, 32
        %v7496 = vpop.permute.xlu0 %7495
        %7498 = vst.msk [vmem:[#allocation2 + $0x8] sm:$0x1] %vm7183, %v7496
        %v7499 = vcombine.high %v7487, %v7487
        %7500 = vrot.lane.b32.xlu0 %v7499, 64
        %v7501 = vpop.permute.xlu0 %7500
        %7503 = vst.msk [vmem:[#allocation2 + $0x8] sm:$0x1] %vm7191, %v7501
        %v7504 = vcombine.high %v7494, %v7494
        %7505 = vrot.lane.b32.xlu0 %v7504, 96
        %v7506 = vpop.permute.xlu0 %7505
        %7508 = vst.msk [vmem:[#allocation2 + $0x8] sm:$0x1] %vm7199, %v7506
        %v7509 = vcombine.high %v7146, %v7146
        %v7511 = vunpack.c.l.s4 1966171168
        %v7512 = vunpack.c.0.s8 %v7511
        %v7513 = vlaneseq
        %v7514 = vshrl.u32 %v7513, 7
        %v7515 = vsub.s32 %v7512, %v7514
        %v7516 = vrot.slane %v7509, %v7515
        %v7518 = vunpack.c.l.s4 1966171168
        %v7519 = vunpack.c.0.s8 %v7518
        %v7520 = vlaneseq
        %v7521 = vshrl.u32 %v7520, 7
        %v7522 = vsub.s32 %v7519, %v7521
        %v7523 = vrot.slane %v7516, %v7522
        %7525 = vst.msk [vmem:[#allocation2 + $0x9] sm:$0x1] %vm7153, %v7523
        %v7526 = vcombine.high %v7516, %v7516
        %v7528 = vunpack.c.l.s4 1966171168
        %v7529 = vunpack.c.0.s8 %v7528
        %v7530 = vlaneseq
        %v7531 = vshrl.u32 %v7530, 7
        %v7532 = vsub.s32 %v7529, %v7531
        %v7533 = vrot.slane %v7526, %v7532
        %7534 = vrot.lane.b32.xlu0 %v7533, 32
        %v7535 = vpop.permute.xlu0 %7534
        %7537 = vst.msk [vmem:[#allocation2 + $0x9] sm:$0x1] %vm7183, %v7535
        %v7538 = vcombine.high %v7523, %v7523
        %7539 = vrot.lane.b32.xlu0 %v7538, 64
        %v7540 = vpop.permute.xlu0 %7539
        %7542 = vst.msk [vmem:[#allocation2 + $0x9] sm:$0x1] %vm7191, %v7540
        %v7543 = vcombine.high %v7533, %v7533
        %7544 = vrot.lane.b32.xlu0 %v7543, 96
        %v7545 = vpop.permute.xlu0 %7544
        %7547 = vst.msk [vmem:[#allocation2 + $0x9] sm:$0x1] %vm7199, %v7545
        %7548 = vst.msk [vmem:[#allocation2 + $0xa] sm:$0x1] %vm7153, %v7147
        %v7551 = vunpack.c.l.s4 1966171168
        %v7552 = vunpack.c.0.s8 %v7551
        %v7553 = vlaneseq
        %v7554 = vshrl.u32 %v7553, 7
        %v7555 = vsub.s32 %v7552, %v7554
        %v7556 = vrot.slane %v7147, %v7555
        %v7557 = vcombine.high %v7556, %v7556
        %v7559 = vunpack.c.l.s4 1966171168
        %v7560 = vunpack.c.0.s8 %v7559
        %v7561 = vlaneseq
        %v7562 = vshrl.u32 %v7561, 7
        %v7563 = vsub.s32 %v7560, %v7562
        %v7564 = vrot.slane %v7556, %v7563
        %v7566 = vunpack.c.l.s4 1966171168
        %v7567 = vunpack.c.0.s8 %v7566
        %v7568 = vlaneseq
        %v7569 = vshrl.u32 %v7568, 7
        %v7570 = vsub.s32 %v7567, %v7569
        %v7571 = vrot.slane %v7557, %v7570
        %7572 = vrot.lane.b32.xlu0 %v7571, 32
        %v7573 = vpop.permute.xlu0 %7572
        %7575 = vst.msk [vmem:[#allocation2 + $0xa] sm:$0x1] %vm7183, %v7573
        %v7576 = vcombine.high %v7564, %v7564
        %7577 = vrot.lane.b32.xlu0 %v7576, 64
        %v7578 = vpop.permute.xlu0 %7577
        %7580 = vst.msk [vmem:[#allocation2 + $0xa] sm:$0x1] %vm7191, %v7578
        %v7581 = vcombine.high %v7571, %v7571
        %7582 = vrot.lane.b32.xlu0 %v7581, 96
        %v7583 = vpop.permute.xlu0 %7582
        %7585 = vst.msk [vmem:[#allocation2 + $0xa] sm:$0x1] %vm7199, %v7583
        %v7586 = vcombine.high %v7147, %v7147
        %v7588 = vunpack.c.l.s4 1966171168
        %v7589 = vunpack.c.0.s8 %v7588
        %v7590 = vlaneseq
        %v7591 = vshrl.u32 %v7590, 7
        %v7592 = vsub.s32 %v7589, %v7591
        %v7593 = vrot.slane %v7586, %v7592
        %v7595 = vunpack.c.l.s4 1966171168
        %v7596 = vunpack.c.0.s8 %v7595
        %v7597 = vlaneseq
        %v7598 = vshrl.u32 %v7597, 7
        %v7599 = vsub.s32 %v7596, %v7598
        %v7600 = vrot.slane %v7593, %v7599
        %7602 = vst.msk [vmem:[#allocation2 + $0xb] sm:$0x1] %vm7153, %v7600
        %v7603 = vcombine.high %v7593, %v7593
        %v7605 = vunpack.c.l.s4 1966171168
        %v7606 = vunpack.c.0.s8 %v7605
        %v7607 = vlaneseq
        %v7608 = vshrl.u32 %v7607, 7
        %v7609 = vsub.s32 %v7606, %v7608
        %v7610 = vrot.slane %v7603, %v7609
        %7611 = vrot.lane.b32.xlu0 %v7610, 32
        %v7612 = vpop.permute.xlu0 %7611
        %7614 = vst.msk [vmem:[#allocation2 + $0xb] sm:$0x1] %vm7183, %v7612
        %v7615 = vcombine.high %v7600, %v7600
        %7616 = vrot.lane.b32.xlu0 %v7615, 64
        %v7617 = vpop.permute.xlu0 %7616
        %7619 = vst.msk [vmem:[#allocation2 + $0xb] sm:$0x1] %vm7191, %v7617
        %v7620 = vcombine.high %v7610, %v7610
        %7621 = vrot.lane.b32.xlu0 %v7620, 96
        %v7622 = vpop.permute.xlu0 %7621
        %7624 = vst.msk [vmem:[#allocation2 + $0xb] sm:$0x1] %vm7199, %v7622
        %7625 = vst.msk [vmem:[#allocation2 + $0xc] sm:$0x1] %vm7153, %v7148
        %v7628 = vunpack.c.l.s4 1966171168
        %v7629 = vunpack.c.0.s8 %v7628
        %v7630 = vlaneseq
        %v7631 = vshrl.u32 %v7630, 7
        %v7632 = vsub.s32 %v7629, %v7631
        %v7633 = vrot.slane %v7148, %v7632
        %v7634 = vcombine.high %v7633, %v7633
        %v7636 = vunpack.c.l.s4 1966171168
        %v7637 = vunpack.c.0.s8 %v7636
        %v7638 = vlaneseq
        %v7639 = vshrl.u32 %v7638, 7
        %v7640 = vsub.s32 %v7637, %v7639
        %v7641 = vrot.slane %v7633, %v7640
        %v7643 = vunpack.c.l.s4 1966171168
        %v7644 = vunpack.c.0.s8 %v7643
        %v7645 = vlaneseq
        %v7646 = vshrl.u32 %v7645, 7
        %v7647 = vsub.s32 %v7644, %v7646
        %v7648 = vrot.slane %v7634, %v7647
        %7649 = vrot.lane.b32.xlu0 %v7648, 32
        %v7650 = vpop.permute.xlu0 %7649
        %7652 = vst.msk [vmem:[#allocation2 + $0xc] sm:$0x1] %vm7183, %v7650
        %v7653 = vcombine.high %v7641, %v7641
        %7654 = vrot.lane.b32.xlu0 %v7653, 64
        %v7655 = vpop.permute.xlu0 %7654
        %7657 = vst.msk [vmem:[#allocation2 + $0xc] sm:$0x1] %vm7191, %v7655
        %v7658 = vcombine.high %v7648, %v7648
        %7659 = vrot.lane.b32.xlu0 %v7658, 96
        %v7660 = vpop.permute.xlu0 %7659
        %7662 = vst.msk [vmem:[#allocation2 + $0xc] sm:$0x1] %vm7199, %v7660
        %v7663 = vcombine.high %v7148, %v7148
        %v7665 = vunpack.c.l.s4 1966171168
        %v7666 = vunpack.c.0.s8 %v7665
        %v7667 = vlaneseq
        %v7668 = vshrl.u32 %v7667, 7
        %v7669 = vsub.s32 %v7666, %v7668
        %v7670 = vrot.slane %v7663, %v7669
        %v7672 = vunpack.c.l.s4 1966171168
        %v7673 = vunpack.c.0.s8 %v7672
        %v7674 = vlaneseq
        %v7675 = vshrl.u32 %v7674, 7
        %v7676 = vsub.s32 %v7673, %v7675
        %v7677 = vrot.slane %v7670, %v7676
        %7679 = vst.msk [vmem:[#allocation2 + $0xd] sm:$0x1] %vm7153, %v7677
        %v7680 = vcombine.high %v7670, %v7670
        %v7682 = vunpack.c.l.s4 1966171168
        %v7683 = vunpack.c.0.s8 %v7682
        %v7684 = vlaneseq
        %v7685 = vshrl.u32 %v7684, 7
        %v7686 = vsub.s32 %v7683, %v7685
        %v7687 = vrot.slane %v7680, %v7686
        %7688 = vrot.lane.b32.xlu0 %v7687, 32
        %v7689 = vpop.permute.xlu0 %7688
        %7691 = vst.msk [vmem:[#allocation2 + $0xd] sm:$0x1] %vm7183, %v7689
        %v7692 = vcombine.high %v7677, %v7677
        %7693 = vrot.lane.b32.xlu0 %v7692, 64
        %v7694 = vpop.permute.xlu0 %7693
        %7696 = vst.msk [vmem:[#allocation2 + $0xd] sm:$0x1] %vm7191, %v7694
        %v7697 = vcombine.high %v7687, %v7687
        %7698 = vrot.lane.b32.xlu0 %v7697, 96
        %v7699 = vpop.permute.xlu0 %7698
        %7701 = vst.msk [vmem:[#allocation2 + $0xd] sm:$0x1] %vm7199, %v7699
        %7702 = vst.msk [vmem:[#allocation2 + $0xe] sm:$0x1] %vm7153, %v7149
        %v7705 = vunpack.c.l.s4 1966171168
        %v7706 = vunpack.c.0.s8 %v7705
        %v7707 = vlaneseq
        %v7708 = vshrl.u32 %v7707, 7
        %v7709 = vsub.s32 %v7706, %v7708
        %v7710 = vrot.slane %v7149, %v7709
        %v7711 = vcombine.high %v7710, %v7710
        %v7713 = vunpack.c.l.s4 1966171168
        %v7714 = vunpack.c.0.s8 %v7713
        %v7715 = vlaneseq
        %v7716 = vshrl.u32 %v7715, 7
        %v7717 = vsub.s32 %v7714, %v7716
        %v7718 = vrot.slane %v7710, %v7717
        %v7720 = vunpack.c.l.s4 1966171168
        %v7721 = vunpack.c.0.s8 %v7720
        %v7722 = vlaneseq
        %v7723 = vshrl.u32 %v7722, 7
        %v7724 = vsub.s32 %v7721, %v7723
        %v7725 = vrot.slane %v7711, %v7724
        %7726 = vrot.lane.b32.xlu0 %v7725, 32
        %v7727 = vpop.permute.xlu0 %7726
        %7729 = vst.msk [vmem:[#allocation2 + $0xe] sm:$0x1] %vm7183, %v7727
        %v7730 = vcombine.high %v7718, %v7718
        %7731 = vrot.lane.b32.xlu0 %v7730, 64
        %v7732 = vpop.permute.xlu0 %7731
        %7734 = vst.msk [vmem:[#allocation2 + $0xe] sm:$0x1] %vm7191, %v7732
        %v7735 = vcombine.high %v7725, %v7725
        %7736 = vrot.lane.b32.xlu0 %v7735, 96
        %v7737 = vpop.permute.xlu0 %7736
        %7739 = vst.msk [vmem:[#allocation2 + $0xe] sm:$0x1] %vm7199, %v7737
        %v7740 = vcombine.high %v7149, %v7149
        %v7742 = vunpack.c.l.s4 1966171168
        %v7743 = vunpack.c.0.s8 %v7742
        %v7744 = vlaneseq
        %v7745 = vshrl.u32 %v7744, 7
        %v7746 = vsub.s32 %v7743, %v7745
        %v7747 = vrot.slane %v7740, %v7746
        %v7749 = vunpack.c.l.s4 1966171168
        %v7750 = vunpack.c.0.s8 %v7749
        %v7751 = vlaneseq
        %v7752 = vshrl.u32 %v7751, 7
        %v7753 = vsub.s32 %v7750, %v7752
        %v7754 = vrot.slane %v7747, %v7753
        %7756 = vst.msk [vmem:[#allocation2 + $0xf] sm:$0x1] %vm7153, %v7754
        %v7757 = vcombine.high %v7747, %v7747
        %v7759 = vunpack.c.l.s4 1966171168
        %v7760 = vunpack.c.0.s8 %v7759
        %v7761 = vlaneseq
        %v7762 = vshrl.u32 %v7761, 7
        %v7763 = vsub.s32 %v7760, %v7762
        %v7764 = vrot.slane %v7757, %v7763
        %7765 = vrot.lane.b32.xlu0 %v7764, 32
        %v7766 = vpop.permute.xlu0 %7765
        %7768 = vst.msk [vmem:[#allocation2 + $0xf] sm:$0x1] %vm7183, %v7766
        %v7769 = vcombine.high %v7754, %v7754
        %7770 = vrot.lane.b32.xlu0 %v7769, 64
        %v7771 = vpop.permute.xlu0 %7770
        %7773 = vst.msk [vmem:[#allocation2 + $0xf] sm:$0x1] %vm7191, %v7771
        %v7774 = vcombine.high %v7764, %v7764
        %7775 = vrot.lane.b32.xlu0 %v7774, 96
        %v7776 = vpop.permute.xlu0 %7775
        %7778 = vst.msk [vmem:[#allocation2 + $0xf] sm:$0x1] %vm7199, %v7776
        %v7779 = vld [vmem:[#allocation2] sm:$0xff]
        %v7780 = vld [vmem:[#allocation2 + $0x8] sm:$0xff]
        %v7781 = vld [vmem:[%s5] sm:$0xff]
        %v7782 = vld [vmem:[%s5 + $0x8] sm:$0xff]
        %v7783 = vld [vmem:[%s5 + $0x10] sm:$0xff]
        %v7784 = vld [vmem:[%s5 + $0x18] sm:$0xff]
        %v7785 = vld [vmem:[%s5 + $0x20] sm:$0xff]
        %v7786 = vld [vmem:[%s5 + $0x28] sm:$0xff]
        %v7787 = vld [vmem:[%s5 + $0x30] sm:$0xff]
        %v7788 = vld [vmem:[%s5 + $0x38] sm:$0xff]
        %v7789 = vld [vmem:[%s5 + $0x40] sm:$0xff]
        %v7790 = vld [vmem:[%s5 + $0x48] sm:$0xff]
        %v7791 = vld [vmem:[%s5 + $0x50] sm:$0xff]
        %v7792 = vld [vmem:[%s5 + $0x58] sm:$0xff]
        %v7793 = vld [vmem:[%s5 + $0x60] sm:$0xff]
        %v7794 = vld [vmem:[%s5 + $0x68] sm:$0xff]
        %v7795 = vld [vmem:[%s5 + $0x70] sm:$0xff]
        %v7796 = vld [vmem:[%s5 + $0x78] sm:$0xff]
        %v7797 = vld [vmem:[%s5 + $0x80] sm:$0xff]
        %v7798 = vld [vmem:[%s5 + $0x88] sm:$0xff]
        %v7799 = vld [vmem:[%s5 + $0x90] sm:$0xff]
        %v7800 = vld [vmem:[%s5 + $0x98] sm:$0xff]
        %v7801 = vld [vmem:[%s5 + $0xa0] sm:$0xff]
        %v7802 = vld [vmem:[%s5 + $0xa8] sm:$0xff]
        %v7803 = vld [vmem:[%s5 + $0xb0] sm:$0xff]
        %v7804 = vld [vmem:[%s5 + $0xb8] sm:$0xff]
        %v7805 = vld [vmem:[%s5 + $0xc0] sm:$0xff]
        %v7806 = vld [vmem:[%s5 + $0xc8] sm:$0xff]
        %v7807 = vld [vmem:[%s5 + $0xd0] sm:$0xff]
        %v7808 = vld [vmem:[%s5 + $0xd8] sm:$0xff]
        %v7809 = vld [vmem:[%s5 + $0xe0] sm:$0xff]
        %v7810 = vld [vmem:[%s5 + $0xe8] sm:$0xff]
        %v7811 = vld [vmem:[%s5 + $0xf0] sm:$0xff]
        %v7812 = vld [vmem:[%s5 + $0xf8] sm:$0xff]
        %v7813 = vld [vmem:[%s5 + $0x100] sm:$0xff]
        %v7814 = vld [vmem:[%s5 + $0x108] sm:$0xff]
        %v7815 = vld [vmem:[%s5 + $0x110] sm:$0xff]
        %v7816 = vld [vmem:[%s5 + $0x118] sm:$0xff]
        %v7817 = vld [vmem:[%s5 + $0x120] sm:$0xff]
        %v7818 = vld [vmem:[%s5 + $0x128] sm:$0xff]
        %v7819 = vld [vmem:[%s5 + $0x130] sm:$0xff]
        %v7820 = vld [vmem:[%s5 + $0x138] sm:$0xff]
        %v7821 = vld [vmem:[%s5 + $0x140] sm:$0xff]
        %v7822 = vld [vmem:[%s5 + $0x148] sm:$0xff]
        %v7823 = vld [vmem:[%s5 + $0x150] sm:$0xff]
        %v7824 = vld [vmem:[%s5 + $0x158] sm:$0xff]
        %v7825 = vld [vmem:[%s5 + $0x160] sm:$0xff]
        %v7826 = vld [vmem:[%s5 + $0x168] sm:$0xff]
        %v7827 = vld [vmem:[%s5 + $0x170] sm:$0xff]
        %v7828 = vld [vmem:[%s5 + $0x178] sm:$0xff]
        %v7829 = vld [vmem:[%s5 + $0x180] sm:$0xff]
        %v7830 = vld [vmem:[%s5 + $0x188] sm:$0xff]
        %v7831 = vld [vmem:[%s5 + $0x190] sm:$0xff]
        %v7832 = vld [vmem:[%s5 + $0x198] sm:$0xff]
        %v7833 = vld [vmem:[%s5 + $0x1a0] sm:$0xff]
        %v7834 = vld [vmem:[%s5 + $0x1a8] sm:$0xff]
        %v7835 = vld [vmem:[%s5 + $0x1b0] sm:$0xff]
        %v7836 = vld [vmem:[%s5 + $0x1b8] sm:$0xff]
        %v7837 = vld [vmem:[%s5 + $0x1c0] sm:$0xff]
        %v7838 = vld [vmem:[%s5 + $0x1c8] sm:$0xff]
        %v7839 = vld [vmem:[%s5 + $0x1d0] sm:$0xff]
        %v7840 = vld [vmem:[%s5 + $0x1d8] sm:$0xff]
        %v7841 = vld [vmem:[%s5 + $0x1e0] sm:$0xff]
        %v7842 = vld [vmem:[%s5 + $0x1e8] sm:$0xff]
        %v7843 = vld [vmem:[%s5 + $0x1f0] sm:$0xff]
        %v7844 = vld [vmem:[%s5 + $0x1f8] sm:$0xff]
        %v7845 = vld [vmem:[%s5 + $0x200] sm:$0xff]
        %v7846 = vld [vmem:[%s5 + $0x208] sm:$0xff]
        %v7847 = vld [vmem:[%s5 + $0x210] sm:$0xff]
        %v7848 = vld [vmem:[%s5 + $0x218] sm:$0xff]
        %v7849 = vld [vmem:[%s5 + $0x220] sm:$0xff]
        %v7850 = vld [vmem:[%s5 + $0x228] sm:$0xff]
        %v7851 = vld [vmem:[%s5 + $0x230] sm:$0xff]
        %v7852 = vld [vmem:[%s5 + $0x238] sm:$0xff]
        %v7853 = vld [vmem:[%s5 + $0x240] sm:$0xff]
        %v7854 = vld [vmem:[%s5 + $0x248] sm:$0xff]
        %v7855 = vld [vmem:[%s5 + $0x250] sm:$0xff]
        %v7856 = vld [vmem:[%s5 + $0x258] sm:$0xff]
        %v7857 = vld [vmem:[%s5 + $0x260] sm:$0xff]
        %v7858 = vld [vmem:[%s5 + $0x268] sm:$0xff]
        %v7859 = vld [vmem:[%s5 + $0x270] sm:$0xff]
        %v7860 = vld [vmem:[%s5 + $0x278] sm:$0xff]
        %v7861 = vld [vmem:[%s5 + $0x280] sm:$0xff]
        %v7862 = vld [vmem:[%s5 + $0x288] sm:$0xff]
        %v7863 = vld [vmem:[%s5 + $0x290] sm:$0xff]
        %v7864 = vld [vmem:[%s5 + $0x298] sm:$0xff]
        %v7865 = vld [vmem:[%s5 + $0x2a0] sm:$0xff]
        %v7866 = vld [vmem:[%s5 + $0x2a8] sm:$0xff]
        %v7867 = vld [vmem:[%s5 + $0x2b0] sm:$0xff]
        %v7868 = vld [vmem:[%s5 + $0x2b8] sm:$0xff]
        %v7869 = vld [vmem:[%s5 + $0x2c0] sm:$0xff]
        %v7870 = vld [vmem:[%s5 + $0x2c8] sm:$0xff]
        %v7871 = vld [vmem:[%s5 + $0x2d0] sm:$0xff]
        %v7872 = vld [vmem:[%s5 + $0x2d8] sm:$0xff]
        %v7873 = vld [vmem:[%s5 + $0x2e0] sm:$0xff]
        %v7874 = vld [vmem:[%s5 + $0x2e8] sm:$0xff]
        %v7875 = vld [vmem:[%s5 + $0x2f0] sm:$0xff]
        %v7876 = vld [vmem:[%s5 + $0x2f8] sm:$0xff]
        %v7877 = vld [vmem:[%s5 + $0x300] sm:$0xff]
        %v7878 = vld [vmem:[%s5 + $0x308] sm:$0xff]
        %v7879 = vld [vmem:[%s5 + $0x310] sm:$0xff]
        %v7880 = vld [vmem:[%s5 + $0x318] sm:$0xff]
        %v7881 = vld [vmem:[%s5 + $0x320] sm:$0xff]
        %v7882 = vld [vmem:[%s5 + $0x328] sm:$0xff]
        %v7883 = vld [vmem:[%s5 + $0x330] sm:$0xff]
        %v7884 = vld [vmem:[%s5 + $0x338] sm:$0xff]
        %v7885 = vld [vmem:[%s5 + $0x340] sm:$0xff]
        %v7886 = vld [vmem:[%s5 + $0x348] sm:$0xff]
        %v7887 = vld [vmem:[%s5 + $0x350] sm:$0xff]
        %v7888 = vld [vmem:[%s5 + $0x358] sm:$0xff]
        %v7889 = vld [vmem:[%s5 + $0x360] sm:$0xff]
        %v7890 = vld [vmem:[%s5 + $0x368] sm:$0xff]
        %v7891 = vld [vmem:[%s5 + $0x370] sm:$0xff]
        %v7892 = vld [vmem:[%s5 + $0x378] sm:$0xff]
        %v7893 = vld [vmem:[%s5 + $0x380] sm:$0xff]
        %v7894 = vld [vmem:[%s5 + $0x388] sm:$0xff]
        %v7895 = vld [vmem:[%s5 + $0x390] sm:$0xff]
        %v7896 = vld [vmem:[%s5 + $0x398] sm:$0xff]
        %v7897 = vld [vmem:[%s5 + $0x3a0] sm:$0xff]
        %v7898 = vld [vmem:[%s5 + $0x3a8] sm:$0xff]
        %v7899 = vld [vmem:[%s5 + $0x3b0] sm:$0xff]
        %v7900 = vld [vmem:[%s5 + $0x3b8] sm:$0xff]
        %v7901 = vld [vmem:[%s5 + $0x3c0] sm:$0xff]
        %v7902 = vld [vmem:[%s5 + $0x3c8] sm:$0xff]
        %v7903 = vld [vmem:[%s5 + $0x3d0] sm:$0xff]
        %v7904 = vld [vmem:[%s5 + $0x3d8] sm:$0xff]
        %v7905 = vld [vmem:[%s5 + $0x3e0] sm:$0xff]
        %v7906 = vld [vmem:[%s5 + $0x3e8] sm:$0xff]
        %v7907 = vld [vmem:[%s5 + $0x3f0] sm:$0xff]
        %v7908 = vld [vmem:[%s5 + $0x3f8] sm:$0xff]
        %v7909 = vld [vmem:[%s5 + $0x400] sm:$0xff]
        %v7910 = vld [vmem:[%s5 + $0x408] sm:$0xff]
        %v7911 = vld [vmem:[%s5 + $0x410] sm:$0xff]
        %v7912 = vld [vmem:[%s5 + $0x418] sm:$0xff]
        %v7913 = vld [vmem:[%s5 + $0x420] sm:$0xff]
        %v7914 = vld [vmem:[%s5 + $0x428] sm:$0xff]
        %v7915 = vld [vmem:[%s5 + $0x430] sm:$0xff]
        %v7916 = vld [vmem:[%s5 + $0x438] sm:$0xff]
        %v7917 = vld [vmem:[%s5 + $0x440] sm:$0xff]
        %v7918 = vld [vmem:[%s5 + $0x448] sm:$0xff]
        %v7919 = vld [vmem:[%s5 + $0x450] sm:$0xff]
        %v7920 = vld [vmem:[%s5 + $0x458] sm:$0xff]
        %v7921 = vld [vmem:[%s5 + $0x460] sm:$0xff]
        %v7922 = vld [vmem:[%s5 + $0x468] sm:$0xff]
        %v7923 = vld [vmem:[%s5 + $0x470] sm:$0xff]
        %v7924 = vld [vmem:[%s5 + $0x478] sm:$0xff]
        %v7925 = vld [vmem:[%s5 + $0x480] sm:$0xff]
        %v7926 = vld [vmem:[%s5 + $0x488] sm:$0xff]
        %v7927 = vld [vmem:[%s5 + $0x490] sm:$0xff]
        %v7928 = vld [vmem:[%s5 + $0x498] sm:$0xff]
        %v7929 = vld [vmem:[%s5 + $0x4a0] sm:$0xff]
        %v7930 = vld [vmem:[%s5 + $0x4a8] sm:$0xff]
        %v7931 = vld [vmem:[%s5 + $0x4b0] sm:$0xff]
        %v7932 = vld [vmem:[%s5 + $0x4b8] sm:$0xff]
        %v7933 = vld [vmem:[%s5 + $0x4c0] sm:$0xff]
        %v7934 = vld [vmem:[%s5 + $0x4c8] sm:$0xff]
        %v7935 = vld [vmem:[%s5 + $0x4d0] sm:$0xff]
        %v7936 = vld [vmem:[%s5 + $0x4d8] sm:$0xff]
        %v7937 = vld [vmem:[%s5 + $0x4e0] sm:$0xff]
        %v7938 = vld [vmem:[%s5 + $0x4e8] sm:$0xff]
        %v7939 = vld [vmem:[%s5 + $0x4f0] sm:$0xff]
        %v7940 = vld [vmem:[%s5 + $0x4f8] sm:$0xff]
        %v7941 = vld [vmem:[%s5 + $0x500] sm:$0xff]
        %v7942 = vld [vmem:[%s5 + $0x508] sm:$0xff]
        %v7943 = vld [vmem:[%s5 + $0x510] sm:$0xff]
        %v7944 = vld [vmem:[%s5 + $0x518] sm:$0xff]
        %v7945 = vld [vmem:[%s5 + $0x520] sm:$0xff]
        %v7946 = vld [vmem:[%s5 + $0x528] sm:$0xff]
        %v7947 = vld [vmem:[%s5 + $0x530] sm:$0xff]
        %v7948 = vld [vmem:[%s5 + $0x538] sm:$0xff]
        %v7949 = vld [vmem:[%s5 + $0x540] sm:$0xff]
        %v7950 = vld [vmem:[%s5 + $0x548] sm:$0xff]
        %v7951 = vld [vmem:[%s5 + $0x550] sm:$0xff]
        %v7952 = vld [vmem:[%s5 + $0x558] sm:$0xff]
        %v7953 = vld [vmem:[%s5 + $0x560] sm:$0xff]
        %v7954 = vld [vmem:[%s5 + $0x568] sm:$0xff]
        %v7955 = vld [vmem:[%s5 + $0x570] sm:$0xff]
        %v7956 = vld [vmem:[%s5 + $0x578] sm:$0xff]
        %v7957 = vld [vmem:[%s5 + $0x580] sm:$0xff]
        %v7958 = vld [vmem:[%s5 + $0x588] sm:$0xff]
        %v7959 = vld [vmem:[%s5 + $0x590] sm:$0xff]
        %v7960 = vld [vmem:[%s5 + $0x598] sm:$0xff]
        %v7961 = vld [vmem:[%s5 + $0x5a0] sm:$0xff]
        %v7962 = vld [vmem:[%s5 + $0x5a8] sm:$0xff]
        %v7963 = vld [vmem:[%s5 + $0x5b0] sm:$0xff]
        %v7964 = vld [vmem:[%s5 + $0x5b8] sm:$0xff]
        %v7965 = vld [vmem:[%s5 + $0x5c0] sm:$0xff]
        %v7966 = vld [vmem:[%s5 + $0x5c8] sm:$0xff]
        %v7967 = vld [vmem:[%s5 + $0x5d0] sm:$0xff]
        %v7968 = vld [vmem:[%s5 + $0x5d8] sm:$0xff]
        %v7969 = vld [vmem:[%s5 + $0x5e0] sm:$0xff]
        %v7970 = vld [vmem:[%s5 + $0x5e8] sm:$0xff]
        %v7971 = vld [vmem:[%s5 + $0x5f0] sm:$0xff]
        %v7972 = vld [vmem:[%s5 + $0x5f8] sm:$0xff]
        %v7973 = vld [vmem:[%s5 + $0x600] sm:$0xff]
        %v7974 = vld [vmem:[%s5 + $0x608] sm:$0xff]
        %v7975 = vld [vmem:[%s5 + $0x610] sm:$0xff]
        %v7976 = vld [vmem:[%s5 + $0x618] sm:$0xff]
        %v7977 = vld [vmem:[%s5 + $0x620] sm:$0xff]
        %v7978 = vld [vmem:[%s5 + $0x628] sm:$0xff]
        %v7979 = vld [vmem:[%s5 + $0x630] sm:$0xff]
        %v7980 = vld [vmem:[%s5 + $0x638] sm:$0xff]
        %v7981 = vld [vmem:[%s5 + $0x640] sm:$0xff]
        %v7982 = vld [vmem:[%s5 + $0x648] sm:$0xff]
        %v7983 = vld [vmem:[%s5 + $0x650] sm:$0xff]
        %v7984 = vld [vmem:[%s5 + $0x658] sm:$0xff]
        %v7985 = vld [vmem:[%s5 + $0x660] sm:$0xff]
        %v7986 = vld [vmem:[%s5 + $0x668] sm:$0xff]
        %v7987 = vld [vmem:[%s5 + $0x670] sm:$0xff]
        %v7988 = vld [vmem:[%s5 + $0x678] sm:$0xff]
        %v7989 = vld [vmem:[%s5 + $0x680] sm:$0xff]
        %v7990 = vld [vmem:[%s5 + $0x688] sm:$0xff]
        %v7991 = vld [vmem:[%s5 + $0x690] sm:$0xff]
        %v7992 = vld [vmem:[%s5 + $0x698] sm:$0xff]
        %v7993 = vld [vmem:[%s5 + $0x6a0] sm:$0xff]
        %v7994 = vld [vmem:[%s5 + $0x6a8] sm:$0xff]
        %v7995 = vld [vmem:[%s5 + $0x6b0] sm:$0xff]
        %v7996 = vld [vmem:[%s5 + $0x6b8] sm:$0xff]
        %v7997 = vld [vmem:[%s5 + $0x6c0] sm:$0xff]
        %v7998 = vld [vmem:[%s5 + $0x6c8] sm:$0xff]
        %v7999 = vld [vmem:[%s5 + $0x6d0] sm:$0xff]
        %v8000 = vld [vmem:[%s5 + $0x6d8] sm:$0xff]
        %v8001 = vld [vmem:[%s5 + $0x6e0] sm:$0xff]
        %v8002 = vld [vmem:[%s5 + $0x6e8] sm:$0xff]
        %v8003 = vld [vmem:[%s5 + $0x6f0] sm:$0xff]
        %v8004 = vld [vmem:[%s5 + $0x6f8] sm:$0xff]
        %v8005 = vld [vmem:[%s5 + $0x700] sm:$0xff]
        %v8006 = vld [vmem:[%s5 + $0x708] sm:$0xff]
        %v8007 = vld [vmem:[%s5 + $0x710] sm:$0xff]
        %v8008 = vld [vmem:[%s5 + $0x718] sm:$0xff]
        %v8009 = vld [vmem:[%s5 + $0x720] sm:$0xff]
        %v8010 = vld [vmem:[%s5 + $0x728] sm:$0xff]
        %v8011 = vld [vmem:[%s5 + $0x730] sm:$0xff]
        %v8012 = vld [vmem:[%s5 + $0x738] sm:$0xff]
        %v8013 = vld [vmem:[%s5 + $0x740] sm:$0xff]
        %v8014 = vld [vmem:[%s5 + $0x748] sm:$0xff]
        %v8015 = vld [vmem:[%s5 + $0x750] sm:$0xff]
        %v8016 = vld [vmem:[%s5 + $0x758] sm:$0xff]
        %v8017 = vld [vmem:[%s5 + $0x760] sm:$0xff]
        %v8018 = vld [vmem:[%s5 + $0x768] sm:$0xff]
        %v8019 = vld [vmem:[%s5 + $0x770] sm:$0xff]
        %v8020 = vld [vmem:[%s5 + $0x778] sm:$0xff]
        %v8021 = vld [vmem:[%s5 + $0x780] sm:$0xff]
        %v8022 = vld [vmem:[%s5 + $0x788] sm:$0xff]
        %v8023 = vld [vmem:[%s5 + $0x790] sm:$0xff]
        %v8024 = vld [vmem:[%s5 + $0x798] sm:$0xff]
        %v8025 = vld [vmem:[%s5 + $0x7a0] sm:$0xff]
        %v8026 = vld [vmem:[%s5 + $0x7a8] sm:$0xff]
        %v8027 = vld [vmem:[%s5 + $0x7b0] sm:$0xff]
        %v8028 = vld [vmem:[%s5 + $0x7b8] sm:$0xff]
        %v8029 = vld [vmem:[%s5 + $0x7c0] sm:$0xff]
        %v8030 = vld [vmem:[%s5 + $0x7c8] sm:$0xff]
        %v8031 = vld [vmem:[%s5 + $0x7d0] sm:$0xff]
        %v8032 = vld [vmem:[%s5 + $0x7d8] sm:$0xff]
        %v8033 = vld [vmem:[%s5 + $0x7e0] sm:$0xff]
        %v8034 = vld [vmem:[%s5 + $0x7e8] sm:$0xff]
        %v8035 = vld [vmem:[%s5 + $0x7f0] sm:$0xff]
        %v8036 = vld [vmem:[%s5 + $0x7f8] sm:$0xff]
        %v8037 = vld [vmem:[%s5 + $0x800] sm:$0xff]
        %v8038 = vld [vmem:[%s5 + $0x808] sm:$0xff]
        %v8039 = vld [vmem:[%s5 + $0x810] sm:$0xff]
        %v8040 = vld [vmem:[%s5 + $0x818] sm:$0xff]
        %v8041 = vld [vmem:[%s5 + $0x820] sm:$0xff]
        %v8042 = vld [vmem:[%s5 + $0x828] sm:$0xff]
        %v8043 = vld [vmem:[%s5 + $0x830] sm:$0xff]
        %v8044 = vld [vmem:[%s5 + $0x838] sm:$0xff]
        %v8045 = vld [vmem:[%s5 + $0x840] sm:$0xff]
        %v8046 = vld [vmem:[%s5 + $0x848] sm:$0xff]
        %v8047 = vld [vmem:[%s5 + $0x850] sm:$0xff]
        %v8048 = vld [vmem:[%s5 + $0x858] sm:$0xff]
        %v8049 = vld [vmem:[%s5 + $0x860] sm:$0xff]
        %v8050 = vld [vmem:[%s5 + $0x868] sm:$0xff]
        %v8051 = vld [vmem:[%s5 + $0x870] sm:$0xff]
        %v8052 = vld [vmem:[%s5 + $0x878] sm:$0xff]
        %v8053 = vld [vmem:[%s5 + $0x880] sm:$0xff]
        %v8054 = vld [vmem:[%s5 + $0x888] sm:$0xff]
        %v8055 = vld [vmem:[%s5 + $0x890] sm:$0xff]
        %v8056 = vld [vmem:[%s5 + $0x898] sm:$0xff]
        %v8057 = vld [vmem:[%s5 + $0x8a0] sm:$0xff]
        %v8058 = vld [vmem:[%s5 + $0x8a8] sm:$0xff]
        %v8059 = vld [vmem:[%s5 + $0x8b0] sm:$0xff]
        %v8060 = vld [vmem:[%s5 + $0x8b8] sm:$0xff]
        %v8061 = vld [vmem:[%s5 + $0x8c0] sm:$0xff]
        %v8062 = vld [vmem:[%s5 + $0x8c8] sm:$0xff]
        %v8063 = vld [vmem:[%s5 + $0x8d0] sm:$0xff]
        %v8064 = vld [vmem:[%s5 + $0x8d8] sm:$0xff]
        %v8065 = vld [vmem:[%s5 + $0x8e0] sm:$0xff]
        %v8066 = vld [vmem:[%s5 + $0x8e8] sm:$0xff]
        %v8067 = vld [vmem:[%s5 + $0x8f0] sm:$0xff]
        %v8068 = vld [vmem:[%s5 + $0x8f8] sm:$0xff]
        %v8069 = vld [vmem:[%s5 + $0x900] sm:$0xff]
        %v8070 = vld [vmem:[%s5 + $0x908] sm:$0xff]
        %v8071 = vld [vmem:[%s5 + $0x910] sm:$0xff]
        %v8072 = vld [vmem:[%s5 + $0x918] sm:$0xff]
        %v8073 = vld [vmem:[%s5 + $0x920] sm:$0xff]
        %v8074 = vld [vmem:[%s5 + $0x928] sm:$0xff]
        %v8075 = vld [vmem:[%s5 + $0x930] sm:$0xff]
        %v8076 = vld [vmem:[%s5 + $0x938] sm:$0xff]
        %v8077 = vld [vmem:[%s5 + $0x940] sm:$0xff]
        %v8078 = vld [vmem:[%s5 + $0x948] sm:$0xff]
        %v8079 = vld [vmem:[%s5 + $0x950] sm:$0xff]
        %v8080 = vld [vmem:[%s5 + $0x958] sm:$0xff]
        %v8081 = vld [vmem:[%s5 + $0x960] sm:$0xff]
        %v8082 = vld [vmem:[%s5 + $0x968] sm:$0xff]
        %v8083 = vld [vmem:[%s5 + $0x970] sm:$0xff]
        %v8084 = vld [vmem:[%s5 + $0x978] sm:$0xff]
        %v8085 = vld [vmem:[%s5 + $0x980] sm:$0xff]
        %v8086 = vld [vmem:[%s5 + $0x988] sm:$0xff]
        %v8087 = vld [vmem:[%s5 + $0x990] sm:$0xff]
        %v8088 = vld [vmem:[%s5 + $0x998] sm:$0xff]
        %v8089 = vld [vmem:[%s5 + $0x9a0] sm:$0xff]
        %v8090 = vld [vmem:[%s5 + $0x9a8] sm:$0xff]
        %v8091 = vld [vmem:[%s5 + $0x9b0] sm:$0xff]
        %v8092 = vld [vmem:[%s5 + $0x9b8] sm:$0xff]
        %v8093 = vld [vmem:[%s5 + $0x9c0] sm:$0xff]
        %v8094 = vld [vmem:[%s5 + $0x9c8] sm:$0xff]
        %v8095 = vld [vmem:[%s5 + $0x9d0] sm:$0xff]
        %v8096 = vld [vmem:[%s5 + $0x9d8] sm:$0xff]
        %v8097 = vld [vmem:[%s5 + $0x9e0] sm:$0xff]
        %v8098 = vld [vmem:[%s5 + $0x9e8] sm:$0xff]
        %v8099 = vld [vmem:[%s5 + $0x9f0] sm:$0xff]
        %v8100 = vld [vmem:[%s5 + $0x9f8] sm:$0xff]
        %v8101 = vld [vmem:[%s5 + $0xa00] sm:$0xff]
        %v8102 = vld [vmem:[%s5 + $0xa08] sm:$0xff]
        %v8103 = vld [vmem:[%s5 + $0xa10] sm:$0xff]
        %v8104 = vld [vmem:[%s5 + $0xa18] sm:$0xff]
        %v8105 = vld [vmem:[%s5 + $0xa20] sm:$0xff]
        %v8106 = vld [vmem:[%s5 + $0xa28] sm:$0xff]
        %v8107 = vld [vmem:[%s5 + $0xa30] sm:$0xff]
        %v8108 = vld [vmem:[%s5 + $0xa38] sm:$0xff]
        %v8109 = vld [vmem:[%s5 + $0xa40] sm:$0xff]
        %v8110 = vld [vmem:[%s5 + $0xa48] sm:$0xff]
        %v8111 = vld [vmem:[%s5 + $0xa50] sm:$0xff]
        %v8112 = vld [vmem:[%s5 + $0xa58] sm:$0xff]
        %v8113 = vld [vmem:[%s5 + $0xa60] sm:$0xff]
        %v8114 = vld [vmem:[%s5 + $0xa68] sm:$0xff]
        %v8115 = vld [vmem:[%s5 + $0xa70] sm:$0xff]
        %v8116 = vld [vmem:[%s5 + $0xa78] sm:$0xff]
        %v8117 = vld [vmem:[%s5 + $0xa80] sm:$0xff]
        %v8118 = vld [vmem:[%s5 + $0xa88] sm:$0xff]
        %v8119 = vld [vmem:[%s5 + $0xa90] sm:$0xff]
        %v8120 = vld [vmem:[%s5 + $0xa98] sm:$0xff]
        %v8121 = vld [vmem:[%s5 + $0xaa0] sm:$0xff]
        %v8122 = vld [vmem:[%s5 + $0xaa8] sm:$0xff]
        %v8123 = vld [vmem:[%s5 + $0xab0] sm:$0xff]
        %v8124 = vld [vmem:[%s5 + $0xab8] sm:$0xff]
        %v8125 = vld [vmem:[%s5 + $0xac0] sm:$0xff]
        %v8126 = vld [vmem:[%s5 + $0xac8] sm:$0xff]
        %v8127 = vld [vmem:[%s5 + $0xad0] sm:$0xff]
        %v8128 = vld [vmem:[%s5 + $0xad8] sm:$0xff]
        %v8129 = vld [vmem:[%s5 + $0xae0] sm:$0xff]
        %v8130 = vld [vmem:[%s5 + $0xae8] sm:$0xff]
        %v8131 = vld [vmem:[%s5 + $0xaf0] sm:$0xff]
        %v8132 = vld [vmem:[%s5 + $0xaf8] sm:$0xff]
        %v8133 = vld [vmem:[%s5 + $0xb00] sm:$0xff]
        %v8134 = vld [vmem:[%s5 + $0xb08] sm:$0xff]
        %v8135 = vld [vmem:[%s5 + $0xb10] sm:$0xff]
        %v8136 = vld [vmem:[%s5 + $0xb18] sm:$0xff]
        %v8137 = vld [vmem:[%s5 + $0xb20] sm:$0xff]
        %v8138 = vld [vmem:[%s5 + $0xb28] sm:$0xff]
        %v8139 = vld [vmem:[%s5 + $0xb30] sm:$0xff]
        %v8140 = vld [vmem:[%s5 + $0xb38] sm:$0xff]
        %v8141 = vld [vmem:[%s5 + $0xb40] sm:$0xff]
        %v8142 = vld [vmem:[%s5 + $0xb48] sm:$0xff]
        %v8143 = vld [vmem:[%s5 + $0xb50] sm:$0xff]
        %v8144 = vld [vmem:[%s5 + $0xb58] sm:$0xff]
        %v8145 = vld [vmem:[%s5 + $0xb60] sm:$0xff]
        %v8146 = vld [vmem:[%s5 + $0xb68] sm:$0xff]
        %v8147 = vld [vmem:[%s5 + $0xb70] sm:$0xff]
        %v8148 = vld [vmem:[%s5 + $0xb78] sm:$0xff]
        %v8149 = vld [vmem:[%s5 + $0xb80] sm:$0xff]
        %v8150 = vld [vmem:[%s5 + $0xb88] sm:$0xff]
        %v8151 = vld [vmem:[%s5 + $0xb90] sm:$0xff]
        %v8152 = vld [vmem:[%s5 + $0xb98] sm:$0xff]
        %v8153 = vld [vmem:[%s5 + $0xba0] sm:$0xff]
        %v8154 = vld [vmem:[%s5 + $0xba8] sm:$0xff]
        %v8155 = vld [vmem:[%s5 + $0xbb0] sm:$0xff]
        %v8156 = vld [vmem:[%s5 + $0xbb8] sm:$0xff]
        %v8157 = vld [vmem:[%s5 + $0xbc0] sm:$0xff]
        %v8158 = vld [vmem:[%s5 + $0xbc8] sm:$0xff]
        %v8159 = vld [vmem:[%s5 + $0xbd0] sm:$0xff]
        %v8160 = vld [vmem:[%s5 + $0xbd8] sm:$0xff]
        %v8161 = vld [vmem:[%s5 + $0xbe0] sm:$0xff]
        %v8162 = vld [vmem:[%s5 + $0xbe8] sm:$0xff]
        %v8163 = vld [vmem:[%s5 + $0xbf0] sm:$0xff]
        %v8164 = vld [vmem:[%s5 + $0xbf8] sm:$0xff]
        %v8165 = vld [vmem:[%s5 + $0xc00] sm:$0xff]
        %v8166 = vld [vmem:[%s5 + $0xc08] sm:$0xff]
        %v8167 = vld [vmem:[%s5 + $0xc10] sm:$0xff]
        %v8168 = vld [vmem:[%s5 + $0xc18] sm:$0xff]
        %v8169 = vld [vmem:[%s5 + $0xc20] sm:$0xff]
        %v8170 = vld [vmem:[%s5 + $0xc28] sm:$0xff]
        %v8171 = vld [vmem:[%s5 + $0xc30] sm:$0xff]
        %v8172 = vld [vmem:[%s5 + $0xc38] sm:$0xff]
        %v8173 = vld [vmem:[%s5 + $0xc40] sm:$0xff]
        %v8174 = vld [vmem:[%s5 + $0xc48] sm:$0xff]
        %v8175 = vld [vmem:[%s5 + $0xc50] sm:$0xff]
        %v8176 = vld [vmem:[%s5 + $0xc58] sm:$0xff]
        %v8177 = vld [vmem:[%s5 + $0xc60] sm:$0xff]
        %v8178 = vld [vmem:[%s5 + $0xc68] sm:$0xff]
        %v8179 = vld [vmem:[%s5 + $0xc70] sm:$0xff]
        %v8180 = vld [vmem:[%s5 + $0xc78] sm:$0xff]
        %v8181 = vld [vmem:[%s5 + $0xc80] sm:$0xff]
        %v8182 = vld [vmem:[%s5 + $0xc88] sm:$0xff]
        %v8183 = vld [vmem:[%s5 + $0xc90] sm:$0xff]
        %v8184 = vld [vmem:[%s5 + $0xc98] sm:$0xff]
        %v8185 = vld [vmem:[%s5 + $0xca0] sm:$0xff]
        %v8186 = vld [vmem:[%s5 + $0xca8] sm:$0xff]
        %v8187 = vld [vmem:[%s5 + $0xcb0] sm:$0xff]
        %v8188 = vld [vmem:[%s5 + $0xcb8] sm:$0xff]
        %v8189 = vld [vmem:[%s5 + $0xcc0] sm:$0xff]
        %v8190 = vld [vmem:[%s5 + $0xcc8] sm:$0xff]
        %v8191 = vld [vmem:[%s5 + $0xcd0] sm:$0xff]
        %v8192 = vld [vmem:[%s5 + $0xcd8] sm:$0xff]
        %v8193 = vld [vmem:[%s5 + $0xce0] sm:$0xff]
        %v8194 = vld [vmem:[%s5 + $0xce8] sm:$0xff]
        %v8195 = vld [vmem:[%s5 + $0xcf0] sm:$0xff]
        %v8196 = vld [vmem:[%s5 + $0xcf8] sm:$0xff]
        %v8197 = vld [vmem:[%s5 + $0xd00] sm:$0xff]
        %v8198 = vld [vmem:[%s5 + $0xd08] sm:$0xff]
        %v8199 = vld [vmem:[%s5 + $0xd10] sm:$0xff]
        %v8200 = vld [vmem:[%s5 + $0xd18] sm:$0xff]
        %v8201 = vld [vmem:[%s5 + $0xd20] sm:$0xff]
        %v8202 = vld [vmem:[%s5 + $0xd28] sm:$0xff]
        %v8203 = vld [vmem:[%s5 + $0xd30] sm:$0xff]
        %v8204 = vld [vmem:[%s5 + $0xd38] sm:$0xff]
        %v8205 = vld [vmem:[%s5 + $0xd40] sm:$0xff]
        %v8206 = vld [vmem:[%s5 + $0xd48] sm:$0xff]
        %v8207 = vld [vmem:[%s5 + $0xd50] sm:$0xff]
        %v8208 = vld [vmem:[%s5 + $0xd58] sm:$0xff]
        %v8209 = vld [vmem:[%s5 + $0xd60] sm:$0xff]
        %v8210 = vld [vmem:[%s5 + $0xd68] sm:$0xff]
        %v8211 = vld [vmem:[%s5 + $0xd70] sm:$0xff]
        %v8212 = vld [vmem:[%s5 + $0xd78] sm:$0xff]
        %v8213 = vld [vmem:[%s5 + $0xd80] sm:$0xff]
        %v8214 = vld [vmem:[%s5 + $0xd88] sm:$0xff]
        %v8215 = vld [vmem:[%s5 + $0xd90] sm:$0xff]
        %v8216 = vld [vmem:[%s5 + $0xd98] sm:$0xff]
        %v8217 = vld [vmem:[%s5 + $0xda0] sm:$0xff]
        %v8218 = vld [vmem:[%s5 + $0xda8] sm:$0xff]
        %v8219 = vld [vmem:[%s5 + $0xdb0] sm:$0xff]
        %v8220 = vld [vmem:[%s5 + $0xdb8] sm:$0xff]
        %v8221 = vld [vmem:[%s5 + $0xdc0] sm:$0xff]
        %v8222 = vld [vmem:[%s5 + $0xdc8] sm:$0xff]
        %v8223 = vld [vmem:[%s5 + $0xdd0] sm:$0xff]
        %v8224 = vld [vmem:[%s5 + $0xdd8] sm:$0xff]
        %v8225 = vld [vmem:[%s5 + $0xde0] sm:$0xff]
        %v8226 = vld [vmem:[%s5 + $0xde8] sm:$0xff]
        %v8227 = vld [vmem:[%s5 + $0xdf0] sm:$0xff]
        %v8228 = vld [vmem:[%s5 + $0xdf8] sm:$0xff]
        %v8229 = vld [vmem:[%s5 + $0xe00] sm:$0xff]
        %v8230 = vld [vmem:[%s5 + $0xe08] sm:$0xff]
        %v8231 = vld [vmem:[%s5 + $0xe10] sm:$0xff]
        %v8232 = vld [vmem:[%s5 + $0xe18] sm:$0xff]
        %v8233 = vld [vmem:[%s5 + $0xe20] sm:$0xff]
        %v8234 = vld [vmem:[%s5 + $0xe28] sm:$0xff]
        %v8235 = vld [vmem:[%s5 + $0xe30] sm:$0xff]
        %v8236 = vld [vmem:[%s5 + $0xe38] sm:$0xff]
        %v8237 = vld [vmem:[%s5 + $0xe40] sm:$0xff]
        %v8238 = vld [vmem:[%s5 + $0xe48] sm:$0xff]
        %v8239 = vld [vmem:[%s5 + $0xe50] sm:$0xff]
        %v8240 = vld [vmem:[%s5 + $0xe58] sm:$0xff]
        %v8241 = vld [vmem:[%s5 + $0xe60] sm:$0xff]
        %v8242 = vld [vmem:[%s5 + $0xe68] sm:$0xff]
        %v8243 = vld [vmem:[%s5 + $0xe70] sm:$0xff]
        %v8244 = vld [vmem:[%s5 + $0xe78] sm:$0xff]
        %v8245 = vld [vmem:[%s5 + $0xe80] sm:$0xff]
        %v8246 = vld [vmem:[%s5 + $0xe88] sm:$0xff]
        %v8247 = vld [vmem:[%s5 + $0xe90] sm:$0xff]
        %v8248 = vld [vmem:[%s5 + $0xe98] sm:$0xff]
        %v8249 = vld [vmem:[%s5 + $0xea0] sm:$0xff]
        %v8250 = vld [vmem:[%s5 + $0xea8] sm:$0xff]
        %v8251 = vld [vmem:[%s5 + $0xeb0] sm:$0xff]
        %v8252 = vld [vmem:[%s5 + $0xeb8] sm:$0xff]
        %v8253 = vld [vmem:[%s5 + $0xec0] sm:$0xff]
        %v8254 = vld [vmem:[%s5 + $0xec8] sm:$0xff]
        %v8255 = vld [vmem:[%s5 + $0xed0] sm:$0xff]
        %v8256 = vld [vmem:[%s5 + $0xed8] sm:$0xff]
        %v8257 = vld [vmem:[%s5 + $0xee0] sm:$0xff]
        %v8258 = vld [vmem:[%s5 + $0xee8] sm:$0xff]
        %v8259 = vld [vmem:[%s5 + $0xef0] sm:$0xff]
        %v8260 = vld [vmem:[%s5 + $0xef8] sm:$0xff]
        %v8261 = vld [vmem:[%s5 + $0xf00] sm:$0xff]
        %v8262 = vld [vmem:[%s5 + $0xf08] sm:$0xff]
        %v8263 = vld [vmem:[%s5 + $0xf10] sm:$0xff]
        %v8264 = vld [vmem:[%s5 + $0xf18] sm:$0xff]
        %v8265 = vld [vmem:[%s5 + $0xf20] sm:$0xff]
        %v8266 = vld [vmem:[%s5 + $0xf28] sm:$0xff]
        %v8267 = vld [vmem:[%s5 + $0xf30] sm:$0xff]
        %v8268 = vld [vmem:[%s5 + $0xf38] sm:$0xff]
        %v8269 = vld [vmem:[%s5 + $0xf40] sm:$0xff]
        %v8270 = vld [vmem:[%s5 + $0xf48] sm:$0xff]
        %v8271 = vld [vmem:[%s5 + $0xf50] sm:$0xff]
        %v8272 = vld [vmem:[%s5 + $0xf58] sm:$0xff]
        %v8273 = vld [vmem:[%s5 + $0xf60] sm:$0xff]
        %v8274 = vld [vmem:[%s5 + $0xf68] sm:$0xff]
        %v8275 = vld [vmem:[%s5 + $0xf70] sm:$0xff]
        %v8276 = vld [vmem:[%s5 + $0xf78] sm:$0xff]
        %v8277 = vld [vmem:[%s5 + $0xf80] sm:$0xff]
        %v8278 = vld [vmem:[%s5 + $0xf88] sm:$0xff]
        %v8279 = vld [vmem:[%s5 + $0xf90] sm:$0xff]
        %v8280 = vld [vmem:[%s5 + $0xf98] sm:$0xff]
        %v8281 = vld [vmem:[%s5 + $0xfa0] sm:$0xff]
        %v8282 = vld [vmem:[%s5 + $0xfa8] sm:$0xff]
        %v8283 = vld [vmem:[%s5 + $0xfb0] sm:$0xff]
        %v8284 = vld [vmem:[%s5 + $0xfb8] sm:$0xff]
        %v8285 = vld [vmem:[%s5 + $0xfc0] sm:$0xff]
        %v8286 = vld [vmem:[%s5 + $0xfc8] sm:$0xff]
        %v8287 = vld [vmem:[%s5 + $0xfd0] sm:$0xff]
        %v8288 = vld [vmem:[%s5 + $0xfd8] sm:$0xff]
        %v8289 = vld [vmem:[%s5 + $0xfe0] sm:$0xff]
        %v8290 = vld [vmem:[%s5 + $0xfe8] sm:$0xff]
        %v8291 = vld [vmem:[%s5 + $0xff0] sm:$0xff]
        %v8292 = vld [vmem:[%s5 + $0xff8] sm:$0xff]
        %v8293 = vld [vmem:[%s6] sm:$0x3]
        %v8296 = vlaneseq
        %v8297 = vshrl.u32 %v8296, 7
        %v8298 = vsub.s32 0, %v8297
        %v8299 = vrot.slane %v7779, %v8298
        %v8300 = vlaneseq
        %v8301 = vshrl.u32 %v8300, 7
        %v8302 = vsub.s32 1, %v8301
        %v8303 = vrot.slane %v7779, %v8302
        %v8304 = vlaneseq
        %v8305 = vshrl.u32 %v8304, 7
        %v8306 = vsub.s32 2, %v8305
        %v8307 = vrot.slane %v7779, %v8306
        %v8308 = vlaneseq
        %v8309 = vshrl.u32 %v8308, 7
        %v8310 = vsub.s32 3, %v8309
        %v8311 = vrot.slane %v7779, %v8310
        %v8312 = vlaneseq
        %v8313 = vshrl.u32 %v8312, 7
        %v8314 = vsub.s32 4, %v8313
        %v8315 = vrot.slane %v7779, %v8314
        %v8316 = vlaneseq
        %v8317 = vshrl.u32 %v8316, 7
        %v8318 = vsub.s32 5, %v8317
        %v8319 = vrot.slane %v7779, %v8318
        %v8320 = vlaneseq
        %v8321 = vshrl.u32 %v8320, 7
        %v8322 = vsub.s32 6, %v8321
        %v8323 = vrot.slane %v7779, %v8322
        %v8324 = vlaneseq
        %v8325 = vshrl.u32 %v8324, 7
        %v8326 = vsub.s32 7, %v8325
        %v8327 = vrot.slane %v7779, %v8326
        %v8328 = vlaneseq
        %v8329 = vshrl.u32 %v8328, 7
        %v8330 = vsub.s32 0, %v8329
        %v8331 = vrot.slane %v7780, %v8330
        %v8332 = vlaneseq
        %v8333 = vshrl.u32 %v8332, 7
        %v8334 = vsub.s32 1, %v8333
        %v8335 = vrot.slane %v7780, %v8334
        %v8336 = vlaneseq
        %v8337 = vshrl.u32 %v8336, 7
        %v8338 = vsub.s32 2, %v8337
        %v8339 = vrot.slane %v7780, %v8338
        %v8340 = vlaneseq
        %v8341 = vshrl.u32 %v8340, 7
        %v8342 = vsub.s32 3, %v8341
        %v8343 = vrot.slane %v7780, %v8342
        %v8344 = vlaneseq
        %v8345 = vshrl.u32 %v8344, 7
        %v8346 = vsub.s32 4, %v8345
        %v8347 = vrot.slane %v7780, %v8346
        %v8348 = vlaneseq
        %v8349 = vshrl.u32 %v8348, 7
        %v8350 = vsub.s32 5, %v8349
        %v8351 = vrot.slane %v7780, %v8350
        %v8352 = vlaneseq
        %v8353 = vshrl.u32 %v8352, 7
        %v8354 = vsub.s32 6, %v8353
        %v8355 = vrot.slane %v7780, %v8354
        %v8356 = vlaneseq
        %v8357 = vshrl.u32 %v8356, 7
        %v8358 = vsub.s32 7, %v8357
        %v8359 = vrot.slane %v7780, %v8358
        %v8377 = vlaneseq
        %v8378 = vshrl.u32 %v8377, 7
        %v8379 = vsub.s32 0, %v8378
        %v8380 = vrot.slane %v8293, %v8379
        %v8381 = vlaneseq
        %v8382 = vshrl.u32 %v8381, 7
        %v8383 = vsub.s32 1, %v8382
        %v8384 = vrot.slane %v8293, %v8383
        %8387 = vmatprep.subr.mxu0 %v7812
        %8388 = vmatpush1.msra.mxu0 %v7811
        %8389 = vmatprep.subr.mxu0 %v7810
        %8390 = vmatpush1.msra.mxu0 %v7809
        %8391 = vmatprep.subr.mxu0 %v7808
        %8392 = vmatpush1.msra.mxu0 %v7807
        %8393 = vmatprep.subr.mxu0 %v7806
        %8394 = vmatpush1.msra.mxu0 %v7805
        %8395 = vmatprep.subr.mxu0 %v7804
        %8396 = vmatpush1.msra.mxu0 %v7803
        %8397 = vmatprep.subr.mxu0 %v7802
        %8398 = vmatpush1.msra.mxu0 %v7801
        %8399 = vmatprep.subr.mxu0 %v7800
        %8400 = vmatpush1.msra.mxu0 %v7799
        %8401 = vmatprep.subr.mxu0 %v7798
        %8402 = vmatpush1.msra.mxu0 %v7797
        %8403 = vmatprep.subr.mxu0 %v7796
        %8404 = vmatpush1.msra.mxu0 %v7795
        %8405 = vmatprep.subr.mxu0 %v7794
        %8406 = vmatpush1.msra.mxu0 %v7793
        %8407 = vmatprep.subr.mxu0 %v7792
        %8408 = vmatpush1.msra.mxu0 %v7791
        %8409 = vmatprep.subr.mxu0 %v7790
        %8410 = vmatpush1.msra.mxu0 %v7789
        %8411 = vmatprep.subr.mxu0 %v7788
        %8412 = vmatpush1.msra.mxu0 %v7787
        %8413 = vmatprep.subr.mxu0 %v7786
        %8414 = vmatpush1.msra.mxu0 %v7785
        %8415 = vmatprep.subr.mxu0 %v7784
        %8416 = vmatpush1.msra.mxu0 %v7783
        %8417 = vmatprep.subr.mxu0 %v7782
        %8418 = vmatpush1.msra.mxu0 %v7781
        %8419 = vmatprep.subr.mxu0 %v7844
        %8420 = vmatpush2.msra.mxu0 %v7843
        %8421 = vmatprep.subr.mxu0 %v7842
        %8422 = vmatpush2.msra.mxu0 %v7841
        %8423 = vmatprep.subr.mxu0 %v7840
        %8424 = vmatpush2.msra.mxu0 %v7839
        %8425 = vmatprep.subr.mxu0 %v7838
        %8426 = vmatpush2.msra.mxu0 %v7837
        %8427 = vmatprep.subr.mxu0 %v7836
        %8428 = vmatpush2.msra.mxu0 %v7835
        %8429 = vmatprep.subr.mxu0 %v7834
        %8430 = vmatpush2.msra.mxu0 %v7833
        %8431 = vmatprep.subr.mxu0 %v7832
        %8432 = vmatpush2.msra.mxu0 %v7831
        %8433 = vmatprep.subr.mxu0 %v7830
        %8434 = vmatpush2.msra.mxu0 %v7829
        %8435 = vmatprep.subr.mxu0 %v7828
        %8436 = vmatpush2.msra.mxu0 %v7827
        %8437 = vmatprep.subr.mxu0 %v7826
        %8438 = vmatpush2.msra.mxu0 %v7825
        %8439 = vmatprep.subr.mxu0 %v7824
        %8440 = vmatpush2.msra.mxu0 %v7823
        %8441 = vmatprep.subr.mxu0 %v7822
        %8442 = vmatpush2.msra.mxu0 %v7821
        %8443 = vmatprep.subr.mxu0 %v7820
        %8444 = vmatpush2.msra.mxu0 %v7819
        %8445 = vmatprep.subr.mxu0 %v7818
        %8446 = vmatpush2.msra.mxu0 %v7817
        %8447 = vmatprep.subr.mxu0 %v7816
        %8448 = vmatpush2.msra.mxu0 %v7815
        %8449 = vmatprep.subr.mxu0 %v7814
        %8450 = vmatpush2.msra.mxu0 %v7813
        %8451 = vmatprep.mubr.f32.mxu0 %v8303
        %8452 = vmatmul.mubr.f32.gmra.mxu0 %v8299
        %v8453 = vpop.f32.mrf.mxu0
        %v8454 = vadd.f32 %v8380, %v8453
        %v8455 = vpop.f32.mrf.mxu0
        %v8456 = vadd.f32 %v8384, %v8455
        %8457 = vdwg.mxu0
        %8458 = vmatprep.subr.mxu0 %v7876
        %8459 = vmatpush1.msra.mxu0 %v7875
        %8460 = vmatprep.subr.mxu0 %v7874
        %8461 = vmatpush1.msra.mxu0 %v7873
        %8462 = vmatprep.subr.mxu0 %v7872
        %8463 = vmatpush1.msra.mxu0 %v7871
        %8464 = vmatprep.subr.mxu0 %v7870
        %8465 = vmatpush1.msra.mxu0 %v7869
        %8466 = vmatprep.subr.mxu0 %v7868
        %8467 = vmatpush1.msra.mxu0 %v7867
        %8468 = vmatprep.subr.mxu0 %v7866
        %8469 = vmatpush1.msra.mxu0 %v7865
        %8470 = vmatprep.subr.mxu0 %v7864
        %8471 = vmatpush1.msra.mxu0 %v7863
        %8472 = vmatprep.subr.mxu0 %v7862
        %8473 = vmatpush1.msra.mxu0 %v7861
        %8474 = vmatprep.subr.mxu0 %v7860
        %8475 = vmatpush1.msra.mxu0 %v7859
        %8476 = vmatprep.subr.mxu0 %v7858
        %8477 = vmatpush1.msra.mxu0 %v7857
        %8478 = vmatprep.subr.mxu0 %v7856
        %8479 = vmatpush1.msra.mxu0 %v7855
        %8480 = vmatprep.subr.mxu0 %v7854
        %8481 = vmatpush1.msra.mxu0 %v7853
        %8482 = vmatprep.subr.mxu0 %v7852
        %8483 = vmatpush1.msra.mxu0 %v7851
        %8484 = vmatprep.subr.mxu0 %v7850
        %8485 = vmatpush1.msra.mxu0 %v7849
        %8486 = vmatprep.subr.mxu0 %v7848
        %8487 = vmatpush1.msra.mxu0 %v7847
        %8488 = vmatprep.subr.mxu0 %v7846
        %8489 = vmatpush1.msra.mxu0 %v7845
        %8490 = vmatprep.subr.mxu0 %v7908
        %8491 = vmatpush2.msra.mxu0 %v7907
        %8492 = vmatprep.subr.mxu0 %v7906
        %8493 = vmatpush2.msra.mxu0 %v7905
        %8494 = vmatprep.subr.mxu0 %v7904
        %8495 = vmatpush2.msra.mxu0 %v7903
        %8496 = vmatprep.subr.mxu0 %v7902
        %8497 = vmatpush2.msra.mxu0 %v7901
        %8498 = vmatprep.subr.mxu0 %v7900
        %8499 = vmatpush2.msra.mxu0 %v7899
        %8500 = vmatprep.subr.mxu0 %v7898
        %8501 = vmatpush2.msra.mxu0 %v7897
        %8502 = vmatprep.subr.mxu0 %v7896
        %8503 = vmatpush2.msra.mxu0 %v7895
        %8504 = vmatprep.subr.mxu0 %v7894
        %8505 = vmatpush2.msra.mxu0 %v7893
        %8506 = vmatprep.subr.mxu0 %v7892
        %8507 = vmatpush2.msra.mxu0 %v7891
        %8508 = vmatprep.subr.mxu0 %v7890
        %8509 = vmatpush2.msra.mxu0 %v7889
        %8510 = vmatprep.subr.mxu0 %v7888
        %8511 = vmatpush2.msra.mxu0 %v7887
        %8512 = vmatprep.subr.mxu0 %v7886
        %8513 = vmatpush2.msra.mxu0 %v7885
        %8514 = vmatprep.subr.mxu0 %v7884
        %8515 = vmatpush2.msra.mxu0 %v7883
        %8516 = vmatprep.subr.mxu0 %v7882
        %8517 = vmatpush2.msra.mxu0 %v7881
        %8518 = vmatprep.subr.mxu0 %v7880
        %8519 = vmatpush2.msra.mxu0 %v7879
        %8520 = vmatprep.subr.mxu0 %v7878
        %8521 = vmatpush2.msra.mxu0 %v7877
        %8522 = vmatprep.mubr.f32.mxu0 %v8311
        %8523 = vmatmul.mubr.f32.gmra.mxu0 %v8307
        %v8524 = vpop.f32.mrf.mxu0
        %v8525 = vadd.f32 %v8454, %v8524
        %v8526 = vpop.f32.mrf.mxu0
        %v8527 = vadd.f32 %v8456, %v8526
        %8528 = vdwg.mxu0
        %8529 = vmatprep.subr.mxu0 %v7940
        %8530 = vmatpush1.msra.mxu0 %v7939
        %8531 = vmatprep.subr.mxu0 %v7938
        %8532 = vmatpush1.msra.mxu0 %v7937
        %8533 = vmatprep.subr.mxu0 %v7936
        %8534 = vmatpush1.msra.mxu0 %v7935
        %8535 = vmatprep.subr.mxu0 %v7934
        %8536 = vmatpush1.msra.mxu0 %v7933
        %8537 = vmatprep.subr.mxu0 %v7932
        %8538 = vmatpush1.msra.mxu0 %v7931
        %8539 = vmatprep.subr.mxu0 %v7930
        %8540 = vmatpush1.msra.mxu0 %v7929
        %8541 = vmatprep.subr.mxu0 %v7928
        %8542 = vmatpush1.msra.mxu0 %v7927
        %8543 = vmatprep.subr.mxu0 %v7926
        %8544 = vmatpush1.msra.mxu0 %v7925
        %8545 = vmatprep.subr.mxu0 %v7924
        %8546 = vmatpush1.msra.mxu0 %v7923
        %8547 = vmatprep.subr.mxu0 %v7922
        %8548 = vmatpush1.msra.mxu0 %v7921
        %8549 = vmatprep.subr.mxu0 %v7920
        %8550 = vmatpush1.msra.mxu0 %v7919
        %8551 = vmatprep.subr.mxu0 %v7918
        %8552 = vmatpush1.msra.mxu0 %v7917
        %8553 = vmatprep.subr.mxu0 %v7916
        %8554 = vmatpush1.msra.mxu0 %v7915
        %8555 = vmatprep.subr.mxu0 %v7914
        %8556 = vmatpush1.msra.mxu0 %v7913
        %8557 = vmatprep.subr.mxu0 %v7912
        %8558 = vmatpush1.msra.mxu0 %v7911
        %8559 = vmatprep.subr.mxu0 %v7910
        %8560 = vmatpush1.msra.mxu0 %v7909
        %8561 = vmatprep.subr.mxu0 %v7972
        %8562 = vmatpush2.msra.mxu0 %v7971
        %8563 = vmatprep.subr.mxu0 %v7970
        %8564 = vmatpush2.msra.mxu0 %v7969
        %8565 = vmatprep.subr.mxu0 %v7968
        %8566 = vmatpush2.msra.mxu0 %v7967
        %8567 = vmatprep.subr.mxu0 %v7966
        %8568 = vmatpush2.msra.mxu0 %v7965
        %8569 = vmatprep.subr.mxu0 %v7964
        %8570 = vmatpush2.msra.mxu0 %v7963
        %8571 = vmatprep.subr.mxu0 %v7962
        %8572 = vmatpush2.msra.mxu0 %v7961
        %8573 = vmatprep.subr.mxu0 %v7960
        %8574 = vmatpush2.msra.mxu0 %v7959
        %8575 = vmatprep.subr.mxu0 %v7958
        %8576 = vmatpush2.msra.mxu0 %v7957
        %8577 = vmatprep.subr.mxu0 %v7956
        %8578 = vmatpush2.msra.mxu0 %v7955
        %8579 = vmatprep.subr.mxu0 %v7954
        %8580 = vmatpush2.msra.mxu0 %v7953
        %8581 = vmatprep.subr.mxu0 %v7952
        %8582 = vmatpush2.msra.mxu0 %v7951
        %8583 = vmatprep.subr.mxu0 %v7950
        %8584 = vmatpush2.msra.mxu0 %v7949
        %8585 = vmatprep.subr.mxu0 %v7948
        %8586 = vmatpush2.msra.mxu0 %v7947
        %8587 = vmatprep.subr.mxu0 %v7946
        %8588 = vmatpush2.msra.mxu0 %v7945
        %8589 = vmatprep.subr.mxu0 %v7944
        %8590 = vmatpush2.msra.mxu0 %v7943
        %8591 = vmatprep.subr.mxu0 %v7942
        %8592 = vmatpush2.msra.mxu0 %v7941
        %8593 = vmatprep.mubr.f32.mxu0 %v8319
        %8594 = vmatmul.mubr.f32.gmra.mxu0 %v8315
        %v8595 = vpop.f32.mrf.mxu0
        %v8596 = vadd.f32 %v8525, %v8595
        %v8597 = vpop.f32.mrf.mxu0
        %v8598 = vadd.f32 %v8527, %v8597
        %8599 = vdwg.mxu0
        %8600 = vmatprep.subr.mxu0 %v8004
        %8601 = vmatpush1.msra.mxu0 %v8003
        %8602 = vmatprep.subr.mxu0 %v8002
        %8603 = vmatpush1.msra.mxu0 %v8001
        %8604 = vmatprep.subr.mxu0 %v8000
        %8605 = vmatpush1.msra.mxu0 %v7999
        %8606 = vmatprep.subr.mxu0 %v7998
        %8607 = vmatpush1.msra.mxu0 %v7997
        %8608 = vmatprep.subr.mxu0 %v7996
        %8609 = vmatpush1.msra.mxu0 %v7995
        %8610 = vmatprep.subr.mxu0 %v7994
        %8611 = vmatpush1.msra.mxu0 %v7993
        %8612 = vmatprep.subr.mxu0 %v7992
        %8613 = vmatpush1.msra.mxu0 %v7991
        %8614 = vmatprep.subr.mxu0 %v7990
        %8615 = vmatpush1.msra.mxu0 %v7989
        %8616 = vmatprep.subr.mxu0 %v7988
        %8617 = vmatpush1.msra.mxu0 %v7987
        %8618 = vmatprep.subr.mxu0 %v7986
        %8619 = vmatpush1.msra.mxu0 %v7985
        %8620 = vmatprep.subr.mxu0 %v7984
        %8621 = vmatpush1.msra.mxu0 %v7983
        %8622 = vmatprep.subr.mxu0 %v7982
        %8623 = vmatpush1.msra.mxu0 %v7981
        %8624 = vmatprep.subr.mxu0 %v7980
        %8625 = vmatpush1.msra.mxu0 %v7979
        %8626 = vmatprep.subr.mxu0 %v7978
        %8627 = vmatpush1.msra.mxu0 %v7977
        %8628 = vmatprep.subr.mxu0 %v7976
        %8629 = vmatpush1.msra.mxu0 %v7975
        %8630 = vmatprep.subr.mxu0 %v7974
        %8631 = vmatpush1.msra.mxu0 %v7973
        %8632 = vmatprep.subr.mxu0 %v8036
        %8633 = vmatpush2.msra.mxu0 %v8035
        %8634 = vmatprep.subr.mxu0 %v8034
        %8635 = vmatpush2.msra.mxu0 %v8033
        %8636 = vmatprep.subr.mxu0 %v8032
        %8637 = vmatpush2.msra.mxu0 %v8031
        %8638 = vmatprep.subr.mxu0 %v8030
        %8639 = vmatpush2.msra.mxu0 %v8029
        %8640 = vmatprep.subr.mxu0 %v8028
        %8641 = vmatpush2.msra.mxu0 %v8027
        %8642 = vmatprep.subr.mxu0 %v8026
        %8643 = vmatpush2.msra.mxu0 %v8025
        %8644 = vmatprep.subr.mxu0 %v8024
        %8645 = vmatpush2.msra.mxu0 %v8023
        %8646 = vmatprep.subr.mxu0 %v8022
        %8647 = vmatpush2.msra.mxu0 %v8021
        %8648 = vmatprep.subr.mxu0 %v8020
        %8649 = vmatpush2.msra.mxu0 %v8019
        %8650 = vmatprep.subr.mxu0 %v8018
        %8651 = vmatpush2.msra.mxu0 %v8017
        %8652 = vmatprep.subr.mxu0 %v8016
        %8653 = vmatpush2.msra.mxu0 %v8015
        %8654 = vmatprep.subr.mxu0 %v8014
        %8655 = vmatpush2.msra.mxu0 %v8013
        %8656 = vmatprep.subr.mxu0 %v8012
        %8657 = vmatpush2.msra.mxu0 %v8011
        %8658 = vmatprep.subr.mxu0 %v8010
        %8659 = vmatpush2.msra.mxu0 %v8009
        %8660 = vmatprep.subr.mxu0 %v8008
        %8661 = vmatpush2.msra.mxu0 %v8007
        %8662 = vmatprep.subr.mxu0 %v8006
        %8663 = vmatpush2.msra.mxu0 %v8005
        %8664 = vmatprep.mubr.f32.mxu0 %v8327
        %8665 = vmatmul.mubr.f32.gmra.mxu0 %v8323
        %v8666 = vpop.f32.mrf.mxu0
        %v8667 = vadd.f32 %v8596, %v8666
        %v8668 = vpop.f32.mrf.mxu0
        %v8669 = vadd.f32 %v8598, %v8668
        %8670 = vdwg.mxu0
        %8671 = vmatprep.subr.mxu0 %v8068
        %8672 = vmatpush1.msra.mxu0 %v8067
        %8673 = vmatprep.subr.mxu0 %v8066
        %8674 = vmatpush1.msra.mxu0 %v8065
        %8675 = vmatprep.subr.mxu0 %v8064
        %8676 = vmatpush1.msra.mxu0 %v8063
        %8677 = vmatprep.subr.mxu0 %v8062
        %8678 = vmatpush1.msra.mxu0 %v8061
        %8679 = vmatprep.subr.mxu0 %v8060
        %8680 = vmatpush1.msra.mxu0 %v8059
        %8681 = vmatprep.subr.mxu0 %v8058
        %8682 = vmatpush1.msra.mxu0 %v8057
        %8683 = vmatprep.subr.mxu0 %v8056
        %8684 = vmatpush1.msra.mxu0 %v8055
        %8685 = vmatprep.subr.mxu0 %v8054
        %8686 = vmatpush1.msra.mxu0 %v8053
        %8687 = vmatprep.subr.mxu0 %v8052
        %8688 = vmatpush1.msra.mxu0 %v8051
        %8689 = vmatprep.subr.mxu0 %v8050
        %8690 = vmatpush1.msra.mxu0 %v8049
        %8691 = vmatprep.subr.mxu0 %v8048
        %8692 = vmatpush1.msra.mxu0 %v8047
        %8693 = vmatprep.subr.mxu0 %v8046
        %8694 = vmatpush1.msra.mxu0 %v8045
        %8695 = vmatprep.subr.mxu0 %v8044
        %8696 = vmatpush1.msra.mxu0 %v8043
        %8697 = vmatprep.subr.mxu0 %v8042
        %8698 = vmatpush1.msra.mxu0 %v8041
        %8699 = vmatprep.subr.mxu0 %v8040
        %8700 = vmatpush1.msra.mxu0 %v8039
        %8701 = vmatprep.subr.mxu0 %v8038
        %8702 = vmatpush1.msra.mxu0 %v8037
        %8703 = vmatprep.subr.mxu0 %v8100
        %8704 = vmatpush2.msra.mxu0 %v8099
        %8705 = vmatprep.subr.mxu0 %v8098
        %8706 = vmatpush2.msra.mxu0 %v8097
        %8707 = vmatprep.subr.mxu0 %v8096
        %8708 = vmatpush2.msra.mxu0 %v8095
        %8709 = vmatprep.subr.mxu0 %v8094
        %8710 = vmatpush2.msra.mxu0 %v8093
        %8711 = vmatprep.subr.mxu0 %v8092
        %8712 = vmatpush2.msra.mxu0 %v8091
        %8713 = vmatprep.subr.mxu0 %v8090
        %8714 = vmatpush2.msra.mxu0 %v8089
        %8715 = vmatprep.subr.mxu0 %v8088
        %8716 = vmatpush2.msra.mxu0 %v8087
        %8717 = vmatprep.subr.mxu0 %v8086
        %8718 = vmatpush2.msra.mxu0 %v8085
        %8719 = vmatprep.subr.mxu0 %v8084
        %8720 = vmatpush2.msra.mxu0 %v8083
        %8721 = vmatprep.subr.mxu0 %v8082
        %8722 = vmatpush2.msra.mxu0 %v8081
        %8723 = vmatprep.subr.mxu0 %v8080
        %8724 = vmatpush2.msra.mxu0 %v8079
        %8725 = vmatprep.subr.mxu0 %v8078
        %8726 = vmatpush2.msra.mxu0 %v8077
        %8727 = vmatprep.subr.mxu0 %v8076
        %8728 = vmatpush2.msra.mxu0 %v8075
        %8729 = vmatprep.subr.mxu0 %v8074
        %8730 = vmatpush2.msra.mxu0 %v8073
        %8731 = vmatprep.subr.mxu0 %v8072
        %8732 = vmatpush2.msra.mxu0 %v8071
        %8733 = vmatprep.subr.mxu0 %v8070
        %8734 = vmatpush2.msra.mxu0 %v8069
        %8735 = vmatprep.mubr.f32.mxu0 %v8335
        %8736 = vmatmul.mubr.f32.gmra.mxu0 %v8331
        %v8737 = vpop.f32.mrf.mxu0
        %v8738 = vadd.f32 %v8667, %v8737
        %v8739 = vpop.f32.mrf.mxu0
        %v8740 = vadd.f32 %v8669, %v8739
        %8741 = vdwg.mxu0
        %8742 = vmatprep.subr.mxu0 %v8132
        %8743 = vmatpush1.msra.mxu0 %v8131
        %8744 = vmatprep.subr.mxu0 %v8130
        %8745 = vmatpush1.msra.mxu0 %v8129
        %8746 = vmatprep.subr.mxu0 %v8128
        %8747 = vmatpush1.msra.mxu0 %v8127
        %8748 = vmatprep.subr.mxu0 %v8126
        %8749 = vmatpush1.msra.mxu0 %v8125
        %8750 = vmatprep.subr.mxu0 %v8124
        %8751 = vmatpush1.msra.mxu0 %v8123
        %8752 = vmatprep.subr.mxu0 %v8122
        %8753 = vmatpush1.msra.mxu0 %v8121
        %8754 = vmatprep.subr.mxu0 %v8120
        %8755 = vmatpush1.msra.mxu0 %v8119
        %8756 = vmatprep.subr.mxu0 %v8118
        %8757 = vmatpush1.msra.mxu0 %v8117
        %8758 = vmatprep.subr.mxu0 %v8116
        %8759 = vmatpush1.msra.mxu0 %v8115
        %8760 = vmatprep.subr.mxu0 %v8114
        %8761 = vmatpush1.msra.mxu0 %v8113
        %8762 = vmatprep.subr.mxu0 %v8112
        %8763 = vmatpush1.msra.mxu0 %v8111
        %8764 = vmatprep.subr.mxu0 %v8110
        %8765 = vmatpush1.msra.mxu0 %v8109
        %8766 = vmatprep.subr.mxu0 %v8108
        %8767 = vmatpush1.msra.mxu0 %v8107
        %8768 = vmatprep.subr.mxu0 %v8106
        %8769 = vmatpush1.msra.mxu0 %v8105
        %8770 = vmatprep.subr.mxu0 %v8104
        %8771 = vmatpush1.msra.mxu0 %v8103
        %8772 = vmatprep.subr.mxu0 %v8102
        %8773 = vmatpush1.msra.mxu0 %v8101
        %8774 = vmatprep.subr.mxu0 %v8164
        %8775 = vmatpush2.msra.mxu0 %v8163
        %8776 = vmatprep.subr.mxu0 %v8162
        %8777 = vmatpush2.msra.mxu0 %v8161
        %8778 = vmatprep.subr.mxu0 %v8160
        %8779 = vmatpush2.msra.mxu0 %v8159
        %8780 = vmatprep.subr.mxu0 %v8158
        %8781 = vmatpush2.msra.mxu0 %v8157
        %8782 = vmatprep.subr.mxu0 %v8156
        %8783 = vmatpush2.msra.mxu0 %v8155
        %8784 = vmatprep.subr.mxu0 %v8154
        %8785 = vmatpush2.msra.mxu0 %v8153
        %8786 = vmatprep.subr.mxu0 %v8152
        %8787 = vmatpush2.msra.mxu0 %v8151
        %8788 = vmatprep.subr.mxu0 %v8150
        %8789 = vmatpush2.msra.mxu0 %v8149
        %8790 = vmatprep.subr.mxu0 %v8148
        %8791 = vmatpush2.msra.mxu0 %v8147
        %8792 = vmatprep.subr.mxu0 %v8146
        %8793 = vmatpush2.msra.mxu0 %v8145
        %8794 = vmatprep.subr.mxu0 %v8144
        %8795 = vmatpush2.msra.mxu0 %v8143
        %8796 = vmatprep.subr.mxu0 %v8142
        %8797 = vmatpush2.msra.mxu0 %v8141
        %8798 = vmatprep.subr.mxu0 %v8140
        %8799 = vmatpush2.msra.mxu0 %v8139
        %8800 = vmatprep.subr.mxu0 %v8138
        %8801 = vmatpush2.msra.mxu0 %v8137
        %8802 = vmatprep.subr.mxu0 %v8136
        %8803 = vmatpush2.msra.mxu0 %v8135
        %8804 = vmatprep.subr.mxu0 %v8134
        %8805 = vmatpush2.msra.mxu0 %v8133
        %8806 = vmatprep.mubr.f32.mxu0 %v8343
        %8807 = vmatmul.mubr.f32.gmra.mxu0 %v8339
        %v8808 = vpop.f32.mrf.mxu0
        %v8809 = vadd.f32 %v8738, %v8808
        %v8810 = vpop.f32.mrf.mxu0
        %v8811 = vadd.f32 %v8740, %v8810
        %8812 = vdwg.mxu0
        %8813 = vmatprep.subr.mxu0 %v8196
        %8814 = vmatpush1.msra.mxu0 %v8195
        %8815 = vmatprep.subr.mxu0 %v8194
        %8816 = vmatpush1.msra.mxu0 %v8193
        %8817 = vmatprep.subr.mxu0 %v8192
        %8818 = vmatpush1.msra.mxu0 %v8191
        %8819 = vmatprep.subr.mxu0 %v8190
        %8820 = vmatpush1.msra.mxu0 %v8189
        %8821 = vmatprep.subr.mxu0 %v8188
        %8822 = vmatpush1.msra.mxu0 %v8187
        %8823 = vmatprep.subr.mxu0 %v8186
        %8824 = vmatpush1.msra.mxu0 %v8185
        %8825 = vmatprep.subr.mxu0 %v8184
        %8826 = vmatpush1.msra.mxu0 %v8183
        %8827 = vmatprep.subr.mxu0 %v8182
        %8828 = vmatpush1.msra.mxu0 %v8181
        %8829 = vmatprep.subr.mxu0 %v8180
        %8830 = vmatpush1.msra.mxu0 %v8179
        %8831 = vmatprep.subr.mxu0 %v8178
        %8832 = vmatpush1.msra.mxu0 %v8177
        %8833 = vmatprep.subr.mxu0 %v8176
        %8834 = vmatpush1.msra.mxu0 %v8175
        %8835 = vmatprep.subr.mxu0 %v8174
        %8836 = vmatpush1.msra.mxu0 %v8173
        %8837 = vmatprep.subr.mxu0 %v8172
        %8838 = vmatpush1.msra.mxu0 %v8171
        %8839 = vmatprep.subr.mxu0 %v8170
        %8840 = vmatpush1.msra.mxu0 %v8169
        %8841 = vmatprep.subr.mxu0 %v8168
        %8842 = vmatpush1.msra.mxu0 %v8167
        %8843 = vmatprep.subr.mxu0 %v8166
        %8844 = vmatpush1.msra.mxu0 %v8165
        %8845 = vmatprep.subr.mxu0 %v8228
        %8846 = vmatpush2.msra.mxu0 %v8227
        %8847 = vmatprep.subr.mxu0 %v8226
        %8848 = vmatpush2.msra.mxu0 %v8225
        %8849 = vmatprep.subr.mxu0 %v8224
        %8850 = vmatpush2.msra.mxu0 %v8223
        %8851 = vmatprep.subr.mxu0 %v8222
        %8852 = vmatpush2.msra.mxu0 %v8221
        %8853 = vmatprep.subr.mxu0 %v8220
        %8854 = vmatpush2.msra.mxu0 %v8219
        %8855 = vmatprep.subr.mxu0 %v8218
        %8856 = vmatpush2.msra.mxu0 %v8217
        %8857 = vmatprep.subr.mxu0 %v8216
        %8858 = vmatpush2.msra.mxu0 %v8215
        %8859 = vmatprep.subr.mxu0 %v8214
        %8860 = vmatpush2.msra.mxu0 %v8213
        %8861 = vmatprep.subr.mxu0 %v8212
        %8862 = vmatpush2.msra.mxu0 %v8211
        %8863 = vmatprep.subr.mxu0 %v8210
        %8864 = vmatpush2.msra.mxu0 %v8209
        %8865 = vmatprep.subr.mxu0 %v8208
        %8866 = vmatpush2.msra.mxu0 %v8207
        %8867 = vmatprep.subr.mxu0 %v8206
        %8868 = vmatpush2.msra.mxu0 %v8205
        %8869 = vmatprep.subr.mxu0 %v8204
        %8870 = vmatpush2.msra.mxu0 %v8203
        %8871 = vmatprep.subr.mxu0 %v8202
        %8872 = vmatpush2.msra.mxu0 %v8201
        %8873 = vmatprep.subr.mxu0 %v8200
        %8874 = vmatpush2.msra.mxu0 %v8199
        %8875 = vmatprep.subr.mxu0 %v8198
        %8876 = vmatpush2.msra.mxu0 %v8197
        %8877 = vmatprep.mubr.f32.mxu0 %v8351
        %8878 = vmatmul.mubr.f32.gmra.mxu0 %v8347
        %v8879 = vpop.f32.mrf.mxu0
        %v8880 = vadd.f32 %v8809, %v8879
        %v8881 = vpop.f32.mrf.mxu0
        %v8882 = vadd.f32 %v8811, %v8881
        %8883 = vdwg.mxu0
        %8884 = vmatprep.subr.mxu0 %v8260
        %8885 = vmatpush1.msra.mxu0 %v8259
        %8886 = vmatprep.subr.mxu0 %v8258
        %8887 = vmatpush1.msra.mxu0 %v8257
        %8888 = vmatprep.subr.mxu0 %v8256
        %8889 = vmatpush1.msra.mxu0 %v8255
        %8890 = vmatprep.subr.mxu0 %v8254
        %8891 = vmatpush1.msra.mxu0 %v8253
        %8892 = vmatprep.subr.mxu0 %v8252
        %8893 = vmatpush1.msra.mxu0 %v8251
        %8894 = vmatprep.subr.mxu0 %v8250
        %8895 = vmatpush1.msra.mxu0 %v8249
        %8896 = vmatprep.subr.mxu0 %v8248
        %8897 = vmatpush1.msra.mxu0 %v8247
        %8898 = vmatprep.subr.mxu0 %v8246
        %8899 = vmatpush1.msra.mxu0 %v8245
        %8900 = vmatprep.subr.mxu0 %v8244
        %8901 = vmatpush1.msra.mxu0 %v8243
        %8902 = vmatprep.subr.mxu0 %v8242
        %8903 = vmatpush1.msra.mxu0 %v8241
        %8904 = vmatprep.subr.mxu0 %v8240
        %8905 = vmatpush1.msra.mxu0 %v8239
        %8906 = vmatprep.subr.mxu0 %v8238
        %8907 = vmatpush1.msra.mxu0 %v8237
        %8908 = vmatprep.subr.mxu0 %v8236
        %8909 = vmatpush1.msra.mxu0 %v8235
        %8910 = vmatprep.subr.mxu0 %v8234
        %8911 = vmatpush1.msra.mxu0 %v8233
        %8912 = vmatprep.subr.mxu0 %v8232
        %8913 = vmatpush1.msra.mxu0 %v8231
        %8914 = vmatprep.subr.mxu0 %v8230
        %8915 = vmatpush1.msra.mxu0 %v8229
        %8916 = vmatprep.subr.mxu0 %v8292
        %8917 = vmatpush2.msra.mxu0 %v8291
        %8918 = vmatprep.subr.mxu0 %v8290
        %8919 = vmatpush2.msra.mxu0 %v8289
        %8920 = vmatprep.subr.mxu0 %v8288
        %8921 = vmatpush2.msra.mxu0 %v8287
        %8922 = vmatprep.subr.mxu0 %v8286
        %8923 = vmatpush2.msra.mxu0 %v8285
        %8924 = vmatprep.subr.mxu0 %v8284
        %8925 = vmatpush2.msra.mxu0 %v8283
        %8926 = vmatprep.subr.mxu0 %v8282
        %8927 = vmatpush2.msra.mxu0 %v8281
        %8928 = vmatprep.subr.mxu0 %v8280
        %8929 = vmatpush2.msra.mxu0 %v8279
        %8930 = vmatprep.subr.mxu0 %v8278
        %8931 = vmatpush2.msra.mxu0 %v8277
        %8932 = vmatprep.subr.mxu0 %v8276
        %8933 = vmatpush2.msra.mxu0 %v8275
        %8934 = vmatprep.subr.mxu0 %v8274
        %8935 = vmatpush2.msra.mxu0 %v8273
        %8936 = vmatprep.subr.mxu0 %v8272
        %8937 = vmatpush2.msra.mxu0 %v8271
        %8938 = vmatprep.subr.mxu0 %v8270
        %8939 = vmatpush2.msra.mxu0 %v8269
        %8940 = vmatprep.subr.mxu0 %v8268
        %8941 = vmatpush2.msra.mxu0 %v8267
        %8942 = vmatprep.subr.mxu0 %v8266
        %8943 = vmatpush2.msra.mxu0 %v8265
        %8944 = vmatprep.subr.mxu0 %v8264
        %8945 = vmatpush2.msra.mxu0 %v8263
        %8946 = vmatprep.subr.mxu0 %v8262
        %8947 = vmatpush2.msra.mxu0 %v8261
        %8948 = vmatprep.mubr.f32.mxu0 %v8359
        %8949 = vmatmul.mubr.f32.gmra.mxu0 %v8355
        %v8950 = vpop.f32.mrf.mxu0
        %v8951 = vadd.f32 %v8880, %v8950
        %v8952 = vpop.f32.mrf.mxu0
        %v8953 = vadd.f32 %v8882, %v8952
        %8954 = vdwg.mxu0
        %v8955 = vmax.f32 %v8951, 0.0
        %v8956 = vmax.f32 %v8953, 0.0
        %v8957 = vld [vmem:[%s7] sm:$0xff]
        %v8958 = vld [vmem:[%s7 + $0x8] sm:$0xff]
        %v8959 = vld [vmem:[%s7 + $0x10] sm:$0xff]
        %v8960 = vld [vmem:[%s7 + $0x18] sm:$0xff]
        %v8961 = vld [vmem:[%s7 + $0x20] sm:$0xff]
        %v8962 = vld [vmem:[%s7 + $0x28] sm:$0xff]
        %v8963 = vld [vmem:[%s7 + $0x30] sm:$0xff]
        %v8964 = vld [vmem:[%s7 + $0x38] sm:$0xff]
        %v8965 = vld [vmem:[%s7 + $0x40] sm:$0xff]
        %v8966 = vld [vmem:[%s7 + $0x48] sm:$0xff]
        %v8967 = vld [vmem:[%s7 + $0x50] sm:$0xff]
        %v8968 = vld [vmem:[%s7 + $0x58] sm:$0xff]
        %v8969 = vld [vmem:[%s7 + $0x60] sm:$0xff]
        %v8970 = vld [vmem:[%s7 + $0x68] sm:$0xff]
        %v8971 = vld [vmem:[%s7 + $0x70] sm:$0xff]
        %v8972 = vld [vmem:[%s7 + $0x78] sm:$0xff]
        %v8973 = vld [vmem:[%s7 + $0x80] sm:$0xff]
        %v8974 = vld [vmem:[%s7 + $0x88] sm:$0xff]
        %v8975 = vld [vmem:[%s7 + $0x90] sm:$0xff]
        %v8976 = vld [vmem:[%s7 + $0x98] sm:$0xff]
        %v8977 = vld [vmem:[%s7 + $0xa0] sm:$0xff]
        %v8978 = vld [vmem:[%s7 + $0xa8] sm:$0xff]
        %v8979 = vld [vmem:[%s7 + $0xb0] sm:$0xff]
        %v8980 = vld [vmem:[%s7 + $0xb8] sm:$0xff]
        %v8981 = vld [vmem:[%s7 + $0xc0] sm:$0xff]
        %v8982 = vld [vmem:[%s7 + $0xc8] sm:$0xff]
        %v8983 = vld [vmem:[%s7 + $0xd0] sm:$0xff]
        %v8984 = vld [vmem:[%s7 + $0xd8] sm:$0xff]
        %v8985 = vld [vmem:[%s7 + $0xe0] sm:$0xff]
        %v8986 = vld [vmem:[%s7 + $0xe8] sm:$0xff]
        %v8987 = vld [vmem:[%s7 + $0xf0] sm:$0xff]
        %v8988 = vld [vmem:[%s7 + $0xf8] sm:$0xff]
        %v8989 = vld [vmem:[%s8] sm:$0x1]
        %8990 = vmatprep.subr.mxu0 0.0
        %8991 = vmatpush1.msra.mxu0 %v8972
        %8992 = vmatprep.subr.mxu0 0.0
        %8993 = vmatpush1.msra.mxu0 %v8971
        %8994 = vmatprep.subr.mxu0 0.0
        %8995 = vmatpush1.msra.mxu0 %v8970
        %8996 = vmatprep.subr.mxu0 0.0
        %8997 = vmatpush1.msra.mxu0 %v8969
        %8998 = vmatprep.subr.mxu0 0.0
        %8999 = vmatpush1.msra.mxu0 %v8968
        %9000 = vmatprep.subr.mxu0 0.0
        %9001 = vmatpush1.msra.mxu0 %v8967
        %9002 = vmatprep.subr.mxu0 0.0
        %9003 = vmatpush1.msra.mxu0 %v8966
        %9004 = vmatprep.subr.mxu0 0.0
        %9005 = vmatpush1.msra.mxu0 %v8965
        %9006 = vmatprep.subr.mxu0 0.0
        %9007 = vmatpush1.msra.mxu0 %v8964
        %9008 = vmatprep.subr.mxu0 0.0
        %9009 = vmatpush1.msra.mxu0 %v8963
        %9010 = vmatprep.subr.mxu0 0.0
        %9011 = vmatpush1.msra.mxu0 %v8962
        %9012 = vmatprep.subr.mxu0 0.0
        %9013 = vmatpush1.msra.mxu0 %v8961
        %9014 = vmatprep.subr.mxu0 0.0
        %9015 = vmatpush1.msra.mxu0 %v8960
        %9016 = vmatprep.subr.mxu0 0.0
        %9017 = vmatpush1.msra.mxu0 %v8959
        %9018 = vmatprep.subr.mxu0 0.0
        %9019 = vmatpush1.msra.mxu0 %v8958
        %9020 = vmatprep.subr.mxu0 0.0
        %9021 = vmatpush1.msra.mxu0 %v8957
        %9022 = vmatprep.subr.mxu0 0.0
        %9023 = vmatpush2.msra.mxu0 %v8988
        %9024 = vmatprep.subr.mxu0 0.0
        %9025 = vmatpush2.msra.mxu0 %v8987
        %9026 = vmatprep.subr.mxu0 0.0
        %9027 = vmatpush2.msra.mxu0 %v8986
        %9028 = vmatprep.subr.mxu0 0.0
        %9029 = vmatpush2.msra.mxu0 %v8985
        %9030 = vmatprep.subr.mxu0 0.0
        %9031 = vmatpush2.msra.mxu0 %v8984
        %9032 = vmatprep.subr.mxu0 0.0
        %9033 = vmatpush2.msra.mxu0 %v8983
        %9034 = vmatprep.subr.mxu0 0.0
        %9035 = vmatpush2.msra.mxu0 %v8982
        %9036 = vmatprep.subr.mxu0 0.0
        %9037 = vmatpush2.msra.mxu0 %v8981
        %9038 = vmatprep.subr.mxu0 0.0
        %9039 = vmatpush2.msra.mxu0 %v8980
        %9040 = vmatprep.subr.mxu0 0.0
        %9041 = vmatpush2.msra.mxu0 %v8979
        %9042 = vmatprep.subr.mxu0 0.0
        %9043 = vmatpush2.msra.mxu0 %v8978
        %9044 = vmatprep.subr.mxu0 0.0
        %9045 = vmatpush2.msra.mxu0 %v8977
        %9046 = vmatprep.subr.mxu0 0.0
        %9047 = vmatpush2.msra.mxu0 %v8976
        %9048 = vmatprep.subr.mxu0 0.0
        %9049 = vmatpush2.msra.mxu0 %v8975
        %9050 = vmatprep.subr.mxu0 0.0
        %9051 = vmatpush2.msra.mxu0 %v8974
        %9052 = vmatprep.subr.mxu0 0.0
        %9053 = vmatpush2.msra.mxu0 %v8973
        %9054 = vmatprep.mubr.f32.mxu0 %v8956
        %9055 = vmatmul.mubr.f32.gmra.mxu0 %v8955
        %v9056 = vpop.f32.mrf.mxu0
        %v9057 = vadd.f32 %v8989, %v9056
        %v9058 = vpop.f32.mrf.mxu0
        %9059 = vdwg.mxu0
        %9060 = vst [vmem:[%s324] sm:$0x1] %v9057
        %s9061 = sand.u32 %s225, 1
        %s9062 = scalar_lea.sflag [#allocation4], %s9061
        %s9063 = sand.u32 %s225, 1
        %s9064 = scalar_lea.vmem [#allocation3], %s9063
        // Predicated region
        $region57: #{conv_qnet_forward.1} parent=55 // pred_check
          %p9065 = pneg %p235
        $region58: #{conv_qnet_forward.1} parent=55 // pred_check_branch
          %9067 = sbr.rel (%p9065) target = $region60
        $region59: #{conv_qnet_forward.1} parent=55 // pred_region
          %s9069 = ssub.s32 16, 16
          %9070 = vsyncadd %s9062, %s9069
          %s9071 = smul.addr %s23, 16
          %s9072 = scalar_lea.hbm %s9, %s9071
          %s9074 = sshll.u32 %s9064, 4
          %s9075 = int_to_ptr.vmem [resolvable:$true] %s9074
          %9077 = dma.vmem_to_hbm [thread:$0]  %s9075, 16, %s9072, %s9062
        $region60: #{conv_qnet_forward.1} parent=55 // pred_fallthru
          _
      $region56: #{conv_qnet_forward.1} parent=5 // pred_fallthru
        _
      %p9078 = scmp.le.s32.totalorder 2, %s18
      // Predicated region
      $region61: #{conv_qnet_forward.1} parent=5 // pred_check
        %p9079 = pneg %p9078
      $region62: #{conv_qnet_forward.1} parent=5 // pred_check_branch
        %9081 = sbr.rel (%p9079) target = $region64
      $region63: #{conv_qnet_forward.1} parent=5 // pred_region
        %s9082 = ssub.s32 %s18, 2
        // Predicated region
        $region65: #{conv_qnet_forward.1} parent=63 // pred_check
          %p9083 = pneg %p241
        $region66: #{conv_qnet_forward.1} parent=63 // pred_check_branch
          %9085 = sbr.rel (%p9083) target = $region68
        $region67: #{conv_qnet_forward.1} parent=63 // pred_region
          %s9086 = sand.u32 %s226, 1
          %s9087 = scalar_lea.sflag [#allocation4], %s9086
          %s9088 = sand.u32 %s226, 1
          %s9089 = scalar_lea.vmem [#allocation3], %s9088
          %9090 = dma.done %s9087, 16
        $region68: #{conv_qnet_forward.1} parent=63 // pred_fallthru
          _
      $region64: #{conv_qnet_forward.1} parent=5 // pred_fallthru
        _
    $region6: #{conv_qnet_forward.1} parent=1 // loop_footer
      %s22 = sadd.s32 1, %s18
    $region7: #{conv_qnet_forward.1} parent=1 // loop_footer_branch
      %17 = sbr.rel target = $region3
    $region8: #{conv_qnet_forward.1} parent=1 // loop_exit
      _
    %9091 = vsyncpa [#allocation4], 1
    %s9092 = scalar_lea.sflag [#allocation4], 1
    %9093 = vsyncpa %s9092, 1

</llo_original>
